<compile_context>
chip_gen: v7x
topology: tpu7x:2x2x1
jax: 0.10.0
libtpu: 0.0.40
codegen_flags: <defaults>
</compile_context>

<pallas_src>
import jax
import jax.numpy as jnp
from jax import lax
from jax.experimental import pallas as pl
from jax.experimental.pallas import tpu as pltpu


def _round_up(x, m):
    return (x + m - 1) // m * m


# --------------------------- kernel 1: conv1 + pool1 -------------------------

def _conv1_pool1_kernel(a1_ref, w1_ref, b1_ref, out_ref):
    """conv1 (one GEMM) + bias + ReLU + 2x2/stride-1 max-pool.

    a1_ref : (196*B, 64) bf16 im2col, row = pos*B + b, pos = oh*14 + ow.
    out_ref: (196*B, 16) bf16 pooled output; rows with oh==13 or ow==13 are
             don't-care (the wrapper only consumes oh, ow <= 12).
    """
    rows = a1_ref.shape[0]          # 196 * B (static)
    bsz = rows // 196
    c1 = jnp.dot(a1_ref[...], w1_ref[...], preferred_element_type=jnp.float32)
    c1 = jnp.maximum(c1 + b1_ref[...], 0.0)                        # (196B, 16)
    # pool window {(h,w),(h,w+1),(h+1,w),(h+1,w+1)} == row shifts of
    # {0, B, 14B, 15B} in position-major layout -- all tile-aligned slices.
    c1p = jnp.concatenate(
        [c1, jnp.zeros((15 * bsz, 16), jnp.float32)], axis=0)      # (211B, 16)
    m = jnp.maximum(
        jnp.maximum(c1, c1p[bsz:bsz + rows]),
        jnp.maximum(c1p[14 * bsz:14 * bsz + rows],
                    c1p[15 * bsz:15 * bsz + rows]))
    out_ref[...] = m.astype(out_ref.dtype)


# ----------------- kernel 2: conv2 + pool2 + flatten + fc1 + fc2 -------------

def _conv2_fc_kernel(a2_ref, w2_ref, b2_ref, fw1_ref, fb1_ref,
                     fw2_ref, fb2_ref, out_ref):
    """conv2 (one GEMM) + bias + ReLU + pool2 + flatten + fc1 + ReLU + fc2.

    a2_ref : (25*B, 256) bf16 conv2 im2col, row = pos*B + b, pos = oh*5 + ow.
    out_ref: (B, 128) f32 logits (lanes 10..127 are zero padding).
    """
    f32 = jnp.float32
    bsz = a2_ref.shape[0] // 25      # static
    c2 = jnp.dot(a2_ref[...], w2_ref[...], preferred_element_type=f32)
    c2 = jnp.maximum(c2 + b2_ref[...], 0.0)                        # (25B, 32)

    # per-output-position (B, 32) slabs -- aligned static slices only.
    slabs = [c2[p * bsz:(p + 1) * bsz, :] for p in range(25)]
    # 2x2 stride-1 max-pool (5x5 -> 4x4), flattened in (h, w, c) order; the
    # torch (c, h, w) flatten order is folded into fw1 at parameter-prep time.
    pooled = [jnp.maximum(jnp.maximum(slabs[h * 5 + w], slabs[h * 5 + w + 1]),
                          jnp.maximum(slabs[h * 5 + w + 5], slabs[h * 5 + w + 6]))
              for h in range(4) for w in range(4)]
    fcin = jnp.concatenate(pooled, axis=-1)                        # (B, 512) f32

    h1 = jnp.dot(fcin.astype(jnp.bfloat16), fw1_ref[...],
                 preferred_element_type=f32) + fb1_ref[...]        # (B, 32)
    h1 = jnp.maximum(h1, 0.0)
    y = jnp.dot(h1.astype(jnp.bfloat16), fw2_ref[...],
                preferred_element_type=f32) + fb2_ref[...]         # (B, 128)
    out_ref[...] = y


# ------------------------------ host wrapper ---------------------------------

def sample_convnet_forward(params, x_nchw, *, block_images=128):
    """x_nchw: (N, 1, 28, 28) float -> logits (N, 10) f32."""
    n = x_nchw.shape[0]
    bsz = _round_up(min(block_images, _round_up(n, 16)), 16)
    npad = _round_up(n, bsz)
    g = npad // bsz

    x = x_nchw[:, 0].astype(jnp.float32)
    if npad != n:
        x = jnp.concatenate(
            [x, jnp.zeros((npad - n, 28, 28), jnp.float32)], axis=0)

    # ---- conv1 im2col (wrapper-side, pure data movement) ---------------------
    xp = jnp.pad(x, ((0, 0), (3, 3), (3, 3)))                      # (N, 34, 34)
    a1 = jnp.stack([xp[:, i:i + 27:2, j:j + 27:2]
                    for i in range(8) for j in range(8)], axis=-1)  # (N,14,14,64)
    # position-major within each block: row = ((block, pos), b_local)
    a1 = (a1.reshape(g, bsz, 196, 64).transpose(0, 2, 1, 3)
          .reshape(g * 196 * bsz, 64).astype(jnp.bfloat16))

    pool1 = pl.pallas_call(
        _conv1_pool1_kernel,
        out_shape=jax.ShapeDtypeStruct((g * 196 * bsz, 16), jnp.bfloat16),
        grid_spec=pltpu.PrefetchScalarGridSpec(
            num_scalar_prefetch=0,
            grid=(g,),
            in_specs=[
                pl.BlockSpec((196 * bsz, 64), lambda i: (i, 0)),   # im2col block
                pl.BlockSpec((64, 16), lambda i: (0, 0)),          # conv1 weight
                pl.BlockSpec((1, 16), lambda i: (0, 0)),           # conv1 bias
            ],
            out_specs=pl.BlockSpec((196 * bsz, 16), lambda i: (i, 0)),
        ),
        compiler_params=pltpu.CompilerParams(
            dimension_semantics=("parallel",)),
    )(a1, params["w1"], params["b1"])

    # ---- conv2 im2col from pool1 (wrapper-side) ------------------------------
    p1 = (pool1.reshape(g, 196, bsz, 16).transpose(0, 2, 1, 3)
          .reshape(npad, 14, 14, 16)[:, :13, :13, :])              # valid pool1
    a2 = jnp.concatenate([p1[:, i:i + 9:2, j:j + 9:2, :]
                          for i in range(4) for j in range(4)],
                         axis=-1)                                   # (N,5,5,256) bf16
    a2 = (a2.reshape(g, bsz, 25, 256).transpose(0, 2, 1, 3)
          .reshape(g * 25 * bsz, 256))

    out = pl.pallas_call(
        _conv2_fc_kernel,
        out_shape=jax.ShapeDtypeStruct((npad, 128), jnp.float32),
        grid_spec=pltpu.PrefetchScalarGridSpec(
            num_scalar_prefetch=0,
            grid=(g,),
            in_specs=[
                pl.BlockSpec((25 * bsz, 256), lambda i: (i, 0)),   # im2col block
                pl.BlockSpec((256, 32), lambda i: (0, 0)),         # conv2 weight
                pl.BlockSpec((1, 32), lambda i: (0, 0)),           # conv2 bias
                pl.BlockSpec((512, 32), lambda i: (0, 0)),         # fc1 weight
                pl.BlockSpec((1, 32), lambda i: (0, 0)),           # fc1 bias
                pl.BlockSpec((32, 128), lambda i: (0, 0)),         # fc2 weight (padded)
                pl.BlockSpec((1, 128), lambda i: (0, 0)),          # fc2 bias (padded)
            ],
            out_specs=pl.BlockSpec((bsz, 128), lambda i: (i, 0)),  # lane-dense logits
        ),
        compiler_params=pltpu.CompilerParams(
            dimension_semantics=("parallel",)),
    )(a2, params["w2"], params["b2"], params["fw1"], params["fb1"],
      params["fw2"], params["fb2"])

    return out[:n, :10]


# ------------------------------ parameters -----------------------------------

def init_raw_params(key):
    """Deterministic PyTorch-default-style init, torch layouts."""
    ks = jax.random.split(key, 8)

    def u(k, shape, fan_in):
        bound = 1.0 / (fan_in ** 0.5)
        return jax.random.uniform(k, shape, jnp.float32, -bound, bound)

    return {
        "conv1_w": u(ks[0], (16, 1, 8, 8), 1 * 8 * 8),
        "conv1_b": u(ks[1], (16,), 1 * 8 * 8),
        "conv2_w": u(ks[2], (32, 16, 4, 4), 16 * 4 * 4),
        "conv2_b": u(ks[3], (32,), 16 * 4 * 4),
        "fc1_w":   u(ks[4], (32, 32 * 4 * 4), 32 * 4 * 4),
        "fc1_b":   u(ks[5], (32,), 32 * 4 * 4),
        "fc2_w":   u(ks[6], (10, 32), 32),
        "fc2_b":   u(ks[7], (10,), 32),
    }


def prepare_params(raw):
    """Torch-layout params -> kernel-ready layouts (static, done once)."""
    # conv weights (O, I, KH, KW) -> (KH*KW*I, O), matching the im2col tap order.
    w1 = jnp.transpose(raw["conv1_w"], (2, 3, 1, 0)).reshape(64, 16)
    w2 = jnp.transpose(raw["conv2_w"], (2, 3, 1, 0)).reshape(256, 32)
    # torch flattens (C=32, H=4, W=4) as c*16 + h*4 + w; the kernel packs fc input
    # as (h*4 + w)*32 + c, so permute fc1 weight rows accordingly.
    fw1 = (raw["fc1_w"].reshape(32, 32, 4, 4)    # (o, c, h, w)
           .transpose(2, 3, 1, 0)                # (h, w, c, o)
           .reshape(512, 32))
    # fc2 padded to 128 output lanes for a lane-dense final store.
    fw2 = jnp.zeros((32, 128), jnp.float32).at[:, :10].set(raw["fc2_w"].T)
    fb2 = jnp.zeros((1, 128), jnp.float32).at[:, :10].set(raw["fc2_b"][None, :])
    return {
        "w1": w1.astype(jnp.bfloat16),   "b1": raw["conv1_b"].reshape(1, 16),
        "w2": w2.astype(jnp.bfloat16),   "b2": raw["conv2_b"].reshape(1, 32),
        "fw1": fw1.astype(jnp.bfloat16), "fb1": raw["fc1_b"].reshape(1, 32),
        "fw2": fw2.astype(jnp.bfloat16), "fb2": fb2,
    }


# ------------------------------ plain-JAX reference --------------------------

def reference_forward(raw, x):
    def conv(x, w, b, stride, pad):
        y = lax.conv_general_dilated(
            x, w, (stride, stride), [(pad, pad), (pad, pad)],
            dimension_numbers=("NCHW", "OIHW", "NCHW"))
        return y + b[None, :, None, None]

    def pool(x):
        return lax.reduce_window(x, -jnp.inf, lax.max,
                                 (1, 1, 2, 2), (1, 1, 1, 1), "VALID")

    y = pool(jax.nn.relu(conv(x, raw["conv1_w"], raw["conv1_b"], 2, 3)))
    y = pool(jax.nn.relu(conv(y, raw["conv2_w"], raw["conv2_b"], 2, 0)))
    y = y.reshape(y.shape[0], -1)
    y = jax.nn.relu(y @ raw["fc1_w"].T + raw["fc1_b"])
    return y @ raw["fc2_w"].T + raw["fc2_b"]


if __name__ == "__main__":
    key = jax.random.PRNGKey(0)
    pkey, xkey = jax.random.split(key)
    raw = init_raw_params(pkey)
    params = prepare_params(raw)
    # MNIST-style input implied by the module's shapes: (N, 1, 28, 28) NCHW.
    x = jax.random.normal(xkey, (2, 1, 28, 28), jnp.float32)

    fwd = jax.jit(sample_convnet_forward)
    out = jax.block_until_ready(fwd(params, x))
    assert out.shape == (2, 10) and out.dtype == jnp.float32

    # Sanity check vs. f32 reference (kernel uses bf16 MXU operands, f32 accum).
    ref = reference_forward(raw, x)
    err = float(jnp.max(jnp.abs(out - ref)))
    assert err < 5e-2, f"kernel mismatch vs reference: max abs err {err}"
    print("KERNEL_OK")
</pallas_src>

<mosaic_0001>
module attributes {stable_mosaic.version = 11 : i64} {
  func.func @_conv1_pool1_kernel(%arg0: i32, %arg1: memref<3136x64xbf16, #tpu.memory_space<vmem>>, %arg2: memref<64x16xbf16, #tpu.memory_space<vmem>>, %arg3: memref<1x16xf32, #tpu.memory_space<vmem>>, %arg4: memref<3136x16xbf16, #tpu.memory_space<vmem>>) attributes {dimension_semantics = [#tpu.dimension_semantics<parallel>], iteration_bounds = array<i64: 1>, scalar_prefetch = 0 : i64, scratch_operands = 0 : i64, tpu.core_type = #tpu.core_type<tc>, window_params = [{transform_indices = @transform_0, window_bounds = array<i64: 3136, 64>}, {pipeline_mode = #tpu.pipeline_mode<synchronous>, transform_indices = @transform_1, window_bounds = array<i64: 64, 16>}, {pipeline_mode = #tpu.pipeline_mode<synchronous>, transform_indices = @transform_2, window_bounds = array<i64: 1, 16>}, {transform_indices = @transform_3, window_bounds = array<i64: 3136, 16>}]} {
    %c0 = arith.constant 0 : index
    %c0_0 = arith.constant 0 : index
    %0 = vector.load %arg1[%c0, %c0_0] : memref<3136x64xbf16, #tpu.memory_space<vmem>>, vector<3136x64xbf16>
    %c0_1 = arith.constant 0 : index
    %c0_2 = arith.constant 0 : index
    %1 = vector.load %arg2[%c0_1, %c0_2] : memref<64x16xbf16, #tpu.memory_space<vmem>>, vector<64x16xbf16>
    %cst = arith.constant dense<0.000000e+00> : vector<3136x16xf32>
    %2 = tpu.matmul %0, %1, %cst {dimension_numbers = #tpu.dot_dimension_numbers<[1], [0], [0], [1], [0, 0, 1, 1], [], []>} : vector<3136x64xbf16>, vector<64x16xbf16>, vector<3136x16xf32> -> vector<3136x16xf32>
    %c0_3 = arith.constant 0 : index
    %c0_4 = arith.constant 0 : index
    %3 = vector.load %arg3[%c0_3, %c0_4] : memref<1x16xf32, #tpu.memory_space<vmem>>, vector<1x16xf32>
    %4 = vector.broadcast %3 : vector<1x16xf32> to vector<3136x16xf32>
    %5 = arith.addf %2, %4 : vector<3136x16xf32>
    %cst_5 = arith.constant 0.000000e+00 : f32
    %6 = vector.broadcast %cst_5 : f32 to vector<3136x16xf32>
    %7 = arith.maximumf %5, %6 : vector<3136x16xf32>
    %cst_6 = arith.constant 0.000000e+00 : f32
    %8 = vector.broadcast %cst_6 : f32 to vector<240x16xf32>
    %9 = tpu.concatenate %7, %8 in 0 : vector<3136x16xf32>, vector<240x16xf32> -> vector<3376x16xf32>
    %10 = vector.extract_strided_slice %9 {offsets = [16, 0], sizes = [3136, 16], strides = [1, 1]} : vector<3376x16xf32> to vector<3136x16xf32>
    %11 = arith.maximumf %7, %10 : vector<3136x16xf32>
    %12 = vector.extract_strided_slice %9 {offsets = [224, 0], sizes = [3136, 16], strides = [1, 1]} : vector<3376x16xf32> to vector<3136x16xf32>
    %13 = vector.extract_strided_slice %9 {offsets = [240, 0], sizes = [3136, 16], strides = [1, 1]} : vector<3376x16xf32> to vector<3136x16xf32>
    %14 = arith.maximumf %12, %13 : vector<3136x16xf32>
    %15 = arith.maximumf %11, %14 : vector<3136x16xf32>
    %16 = arith.truncf %15 : vector<3136x16xf32> to vector<3136x16xbf16>
    %c0_7 = arith.constant 0 : index
    %c0_8 = arith.constant 0 : index
    %17 = vector.load %arg4[%c0_7, %c0_8] : memref<3136x16xbf16, #tpu.memory_space<vmem>>, vector<3136x16xbf16>
    tpu.vector_store %arg4[%c0_7, %c0_8], %16 {strides = array<i32>} : memref<3136x16xbf16, #tpu.memory_space<vmem>>, vector<3136x16xbf16>,
    return
  }
  func.func @transform_0(%arg0: i32) -> (i32, i32) {
    %c0_i32 = arith.constant 0 : i32
    %c0_i32_0 = arith.constant 0 : i32
    return %arg0, %c0_i32 : i32, i32
  }
  func.func @transform_1(%arg0: i32) -> (i32, i32) {
    %c0_i32 = arith.constant 0 : i32
    %c0_i32_0 = arith.constant 0 : i32
    %c0_i32_1 = arith.constant 0 : i32
    return %c0_i32, %c0_i32_0 : i32, i32
  }
  func.func @transform_2(%arg0: i32) -> (i32, i32) {
    %c0_i32 = arith.constant 0 : i32
    %c0_i32_0 = arith.constant 0 : i32
    %c0_i32_1 = arith.constant 0 : i32
    return %c0_i32, %c0_i32_0 : i32, i32
  }
  func.func @transform_3(%arg0: i32) -> (i32, i32) {
    %c0_i32 = arith.constant 0 : i32
    %c0_i32_0 = arith.constant 0 : i32
    return %arg0, %c0_i32 : i32, i32
  }
}

module attributes {stable_mosaic.version = 11 : i64} {
  func.func @_conv2_fc_kernel(%arg0: i32, %arg1: memref<400x256xbf16, #tpu.memory_space<vmem>>, %arg2: memref<256x32xbf16, #tpu.memory_space<vmem>>, %arg3: memref<1x32xf32, #tpu.memory_space<vmem>>, %arg4: memref<512x32xbf16, #tpu.memory_space<vmem>>, %arg5: memref<1x32xf32, #tpu.memory_space<vmem>>, %arg6: memref<32x128xbf16, #tpu.memory_space<vmem>>, %arg7: memref<1x128xf32, #tpu.memory_space<vmem>>, %arg8: memref<16x128xf32, #tpu.memory_space<vmem>>) attributes {dimension_semantics = [#tpu.dimension_semantics<parallel>], iteration_bounds = array<i64: 1>, scalar_prefetch = 0 : i64, scratch_operands = 0 : i64, tpu.core_type = #tpu.core_type<tc>, window_params = [{transform_indices = @transform_0, window_bounds = array<i64: 400, 256>}, {pipeline_mode = #tpu.pipeline_mode<synchronous>, transform_indices = @transform_1, window_bounds = array<i64: 256, 32>}, {pipeline_mode = #tpu.pipeline_mode<synchronous>, transform_indices = @transform_2, window_bounds = array<i64: 1, 32>}, {pipeline_mode = #tpu.pipeline_mode<synchronous>, transform_indices = @transform_3, window_bounds = array<i64: 512, 32>}, {pipeline_mode = #tpu.pipeline_mode<synchronous>, transform_indices = @transform_4, window_bounds = array<i64: 1, 32>}, {pipeline_mode = #tpu.pipeline_mode<synchronous>, transform_indices = @transform_5, window_bounds = array<i64: 32, 128>}, {pipeline_mode = #tpu.pipeline_mode<synchronous>, transform_indices = @transform_6, window_bounds = array<i64: 1, 128>}, {transform_indices = @transform_7, window_bounds = array<i64: 16, 128>}]} {
    %c0 = arith.constant 0 : index
    %c0_0 = arith.constant 0 : index
    %0 = vector.load %arg1[%c0, %c0_0] : memref<400x256xbf16, #tpu.memory_space<vmem>>, vector<400x256xbf16>
    %c0_1 = arith.constant 0 : index
    %c0_2 = arith.constant 0 : index
    %1 = vector.load %arg2[%c0_1, %c0_2] : memref<256x32xbf16, #tpu.memory_space<vmem>>, vector<256x32xbf16>
    %cst = arith.constant dense<0.000000e+00> : vector<400x32xf32>
    %2 = tpu.matmul %0, %1, %cst {dimension_numbers = #tpu.dot_dimension_numbers<[1], [0], [0], [1], [0, 0, 1, 1], [], []>} : vector<400x256xbf16>, vector<256x32xbf16>, vector<400x32xf32> -> vector<400x32xf32>
    %c0_3 = arith.constant 0 : index
    %c0_4 = arith.constant 0 : index
    %3 = vector.load %arg3[%c0_3, %c0_4] : memref<1x32xf32, #tpu.memory_space<vmem>>, vector<1x32xf32>
    %4 = vector.broadcast %3 : vector<1x32xf32> to vector<400x32xf32>
    %5 = arith.addf %2, %4 : vector<400x32xf32>
    %cst_5 = arith.constant 0.000000e+00 : f32
    %6 = vector.broadcast %cst_5 : f32 to vector<400x32xf32>
    %7 = arith.maximumf %5, %6 : vector<400x32xf32>
    %8 = vector.extract_strided_slice %7 {offsets = [0, 0], sizes = [16, 32], strides = [1, 1]} : vector<400x32xf32> to vector<16x32xf32>
    %9 = vector.extract_strided_slice %7 {offsets = [16, 0], sizes = [16, 32], strides = [1, 1]} : vector<400x32xf32> to vector<16x32xf32>
    %10 = vector.extract_strided_slice %7 {offsets = [32, 0], sizes = [16, 32], strides = [1, 1]} : vector<400x32xf32> to vector<16x32xf32>
    %11 = vector.extract_strided_slice %7 {offsets = [48, 0], sizes = [16, 32], strides = [1, 1]} : vector<400x32xf32> to vector<16x32xf32>
    %12 = vector.extract_strided_slice %7 {offsets = [64, 0], sizes = [16, 32], strides = [1, 1]} : vector<400x32xf32> to vector<16x32xf32>
    %13 = vector.extract_strided_slice %7 {offsets = [80, 0], sizes = [16, 32], strides = [1, 1]} : vector<400x32xf32> to vector<16x32xf32>
    %14 = vector.extract_strided_slice %7 {offsets = [96, 0], sizes = [16, 32], strides = [1, 1]} : vector<400x32xf32> to vector<16x32xf32>
    %15 = vector.extract_strided_slice %7 {offsets = [112, 0], sizes = [16, 32], strides = [1, 1]} : vector<400x32xf32> to vector<16x32xf32>
    %16 = vector.extract_strided_slice %7 {offsets = [128, 0], sizes = [16, 32], strides = [1, 1]} : vector<400x32xf32> to vector<16x32xf32>
    %17 = vector.extract_strided_slice %7 {offsets = [144, 0], sizes = [16, 32], strides = [1, 1]} : vector<400x32xf32> to vector<16x32xf32>
    %18 = vector.extract_strided_slice %7 {offsets = [160, 0], sizes = [16, 32], strides = [1, 1]} : vector<400x32xf32> to vector<16x32xf32>
    %19 = vector.extract_strided_slice %7 {offsets = [176, 0], sizes = [16, 32], strides = [1, 1]} : vector<400x32xf32> to vector<16x32xf32>
    %20 = vector.extract_strided_slice %7 {offsets = [192, 0], sizes = [16, 32], strides = [1, 1]} : vector<400x32xf32> to vector<16x32xf32>
    %21 = vector.extract_strided_slice %7 {offsets = [208, 0], sizes = [16, 32], strides = [1, 1]} : vector<400x32xf32> to vector<16x32xf32>
    %22 = vector.extract_strided_slice %7 {offsets = [224, 0], sizes = [16, 32], strides = [1, 1]} : vector<400x32xf32> to vector<16x32xf32>
    %23 = vector.extract_strided_slice %7 {offsets = [240, 0], sizes = [16, 32], strides = [1, 1]} : vector<400x32xf32> to vector<16x32xf32>
    %24 = vector.extract_strided_slice %7 {offsets = [256, 0], sizes = [16, 32], strides = [1, 1]} : vector<400x32xf32> to vector<16x32xf32>
    %25 = vector.extract_strided_slice %7 {offsets = [272, 0], sizes = [16, 32], strides = [1, 1]} : vector<400x32xf32> to vector<16x32xf32>
    %26 = vector.extract_strided_slice %7 {offsets = [288, 0], sizes = [16, 32], strides = [1, 1]} : vector<400x32xf32> to vector<16x32xf32>
    %27 = vector.extract_strided_slice %7 {offsets = [304, 0], sizes = [16, 32], strides = [1, 1]} : vector<400x32xf32> to vector<16x32xf32>
    %28 = vector.extract_strided_slice %7 {offsets = [320, 0], sizes = [16, 32], strides = [1, 1]} : vector<400x32xf32> to vector<16x32xf32>
    %29 = vector.extract_strided_slice %7 {offsets = [336, 0], sizes = [16, 32], strides = [1, 1]} : vector<400x32xf32> to vector<16x32xf32>
    %30 = vector.extract_strided_slice %7 {offsets = [352, 0], sizes = [16, 32], strides = [1, 1]} : vector<400x32xf32> to vector<16x32xf32>
    %31 = vector.extract_strided_slice %7 {offsets = [368, 0], sizes = [16, 32], strides = [1, 1]} : vector<400x32xf32> to vector<16x32xf32>
    %32 = vector.extract_strided_slice %7 {offsets = [384, 0], sizes = [16, 32], strides = [1, 1]} : vector<400x32xf32> to vector<16x32xf32>
    %33 = arith.maximumf %8, %9 : vector<16x32xf32>
    %34 = arith.maximumf %13, %14 : vector<16x32xf32>
    %35 = arith.maximumf %33, %34 : vector<16x32xf32>
    %36 = arith.maximumf %9, %10 : vector<16x32xf32>
    %37 = arith.maximumf %14, %15 : vector<16x32xf32>
    %38 = arith.maximumf %36, %37 : vector<16x32xf32>
    %39 = arith.maximumf %10, %11 : vector<16x32xf32>
    %40 = arith.maximumf %15, %16 : vector<16x32xf32>
    %41 = arith.maximumf %39, %40 : vector<16x32xf32>
    %42 = arith.maximumf %11, %12 : vector<16x32xf32>
    %43 = arith.maximumf %16, %17 : vector<16x32xf32>
    %44 = arith.maximumf %42, %43 : vector<16x32xf32>
    %45 = arith.maximumf %13, %14 : vector<16x32xf32>
    %46 = arith.maximumf %18, %19 : vector<16x32xf32>
    %47 = arith.maximumf %45, %46 : vector<16x32xf32>
    %48 = arith.maximumf %14, %15 : vector<16x32xf32>
    %49 = arith.maximumf %19, %20 : vector<16x32xf32>
    %50 = arith.maximumf %48, %49 : vector<16x32xf32>
    %51 = arith.maximumf %15, %16 : vector<16x32xf32>
    %52 = arith.maximumf %20, %21 : vector<16x32xf32>
    %53 = arith.maximumf %51, %52 : vector<16x32xf32>
    %54 = arith.maximumf %16, %17 : vector<16x32xf32>
    %55 = arith.maximumf %21, %22 : vector<16x32xf32>
    %56 = arith.maximumf %54, %55 : vector<16x32xf32>
    %57 = arith.maximumf %18, %19 : vector<16x32xf32>
    %58 = arith.maximumf %23, %24 : vector<16x32xf32>
    %59 = arith.maximumf %57, %58 : vector<16x32xf32>
    %60 = arith.maximumf %19, %20 : vector<16x32xf32>
    %61 = arith.maximumf %24, %25 : vector<16x32xf32>
    %62 = arith.maximumf %60, %61 : vector<16x32xf32>
    %63 = arith.maximumf %20, %21 : vector<16x32xf32>
    %64 = arith.maximumf %25, %26 : vector<16x32xf32>
    %65 = arith.maximumf %63, %64 : vector<16x32xf32>
    %66 = arith.maximumf %21, %22 : vector<16x32xf32>
    %67 = arith.maximumf %26, %27 : vector<16x32xf32>
    %68 = arith.maximumf %66, %67 : vector<16x32xf32>
    %69 = arith.maximumf %23, %24 : vector<16x32xf32>
    %70 = arith.maximumf %28, %29 : vector<16x32xf32>
    %71 = arith.maximumf %69, %70 : vector<16x32xf32>
    %72 = arith.maximumf %24, %25 : vector<16x32xf32>
    %73 = arith.maximumf %29, %30 : vector<16x32xf32>
    %74 = arith.maximumf %72, %73 : vector<16x32xf32>
    %75 = arith.maximumf %25, %26 : vector<16x32xf32>
    %76 = arith.maximumf %30, %31 : vector<16x32xf32>
    %77 = arith.maximumf %75, %76 : vector<16x32xf32>
    %78 = arith.maximumf %26, %27 : vector<16x32xf32>
    %79 = arith.maximumf %31, %32 : vector<16x32xf32>
    %80 = arith.maximumf %78, %79 : vector<16x32xf32>
    %81 = tpu.concatenate %35, %38, %41, %44, %47, %50, %53, %56, %59, %62, %65, %68, %71, %74, %77, %80 in 1 : vector<16x32xf32>, vector<16x32xf32>, vector<16x32xf32>, vector<16x32xf32>, vector<16x32xf32>, vector<16x32xf32>, vector<16x32xf32>, vector<16x32xf32>, vector<16x32xf32>, vector<16x32xf32>, vector<16x32xf32>, vector<16x32xf32>, vector<16x32xf32>, vector<16x32xf32>, vector<16x32xf32>, vector<16x32xf32> -> vector<16x512xf32>
    %82 = arith.truncf %81 : vector<16x512xf32> to vector<16x512xbf16>
    %c0_6 = arith.constant 0 : index
    %c0_7 = arith.constant 0 : index
    %83 = vector.load %arg4[%c0_6, %c0_7] : memref<512x32xbf16, #tpu.memory_space<vmem>>, vector<512x32xbf16>
    %cst_8 = arith.constant dense<0.000000e+00> : vector<16x32xf32>
    %84 = tpu.matmul %82, %83, %cst_8 {dimension_numbers = #tpu.dot_dimension_numbers<[1], [0], [0], [1], [0, 0, 1, 1], [], []>} : vector<16x512xbf16>, vector<512x32xbf16>, vector<16x32xf32> -> vector<16x32xf32>
    %c0_9 = arith.constant 0 : index
    %c0_10 = arith.constant 0 : index
    %85 = vector.load %arg5[%c0_9, %c0_10] : memref<1x32xf32, #tpu.memory_space<vmem>>, vector<1x32xf32>
    %86 = vector.broadcast %85 : vector<1x32xf32> to vector<16x32xf32>
    %87 = arith.addf %84, %86 : vector<16x32xf32>
    %cst_11 = arith.constant 0.000000e+00 : f32
    %88 = vector.broadcast %cst_11 : f32 to vector<16x32xf32>
    %89 = arith.maximumf %87, %88 : vector<16x32xf32>
    %90 = arith.truncf %89 : vector<16x32xf32> to vector<16x32xbf16>
    %c0_12 = arith.constant 0 : index
    %c0_13 = arith.constant 0 : index
    %91 = vector.load %arg6[%c0_12, %c0_13] : memref<32x128xbf16, #tpu.memory_space<vmem>>, vector<32x128xbf16>
    %cst_14 = arith.constant dense<0.000000e+00> : vector<16x128xf32>
    %92 = tpu.matmul %90, %91, %cst_14 {dimension_numbers = #tpu.dot_dimension_numbers<[1], [0], [0], [1], [0, 0, 1, 1], [], []>} : vector<16x32xbf16>, vector<32x128xbf16>, vector<16x128xf32> -> vector<16x128xf32>
    %c0_15 = arith.constant 0 : index
    %c0_16 = arith.constant 0 : index
    %93 = vector.load %arg7[%c0_15, %c0_16] : memref<1x128xf32, #tpu.memory_space<vmem>>, vector<1x128xf32>
    %94 = vector.broadcast %93 : vector<1x128xf32> to vector<16x128xf32>
    %95 = arith.addf %92, %94 : vector<16x128xf32>
    %c0_17 = arith.constant 0 : index
    %c0_18 = arith.constant 0 : index
    %96 = vector.load %arg8[%c0_17, %c0_18] : memref<16x128xf32, #tpu.memory_space<vmem>>, vector<16x128xf32>
    tpu.vector_store %arg8[%c0_17, %c0_18], %95 {strides = array<i32>} : memref<16x128xf32, #tpu.memory_space<vmem>>, vector<16x128xf32>,
    return
  }
  func.func @transform_0(%arg0: i32) -> (i32, i32) {
    %c0_i32 = arith.constant 0 : i32
    %c0_i32_0 = arith.constant 0 : i32
    return %arg0, %c0_i32 : i32, i32
  }
  func.func @transform_1(%arg0: i32) -> (i32, i32) {
    %c0_i32 = arith.constant 0 : i32
    %c0_i32_0 = arith.constant 0 : i32
    %c0_i32_1 = arith.constant 0 : i32
    return %c0_i32, %c0_i32_0 : i32, i32
  }
  func.func @transform_2(%arg0: i32) -> (i32, i32) {
    %c0_i32 = arith.constant 0 : i32
    %c0_i32_0 = arith.constant 0 : i32
    %c0_i32_1 = arith.constant 0 : i32
    return %c0_i32, %c0_i32_0 : i32, i32
  }
  func.func @transform_3(%arg0: i32) -> (i32, i32) {
    %c0_i32 = arith.constant 0 : i32
    %c0_i32_0 = arith.constant 0 : i32
    %c0_i32_1 = arith.constant 0 : i32
    return %c0_i32, %c0_i32_0 : i32, i32
  }
  func.func @transform_4(%arg0: i32) -> (i32, i32) {
    %c0_i32 = arith.constant 0 : i32
    %c0_i32_0 = arith.constant 0 : i32
    %c0_i32_1 = arith.constant 0 : i32
    return %c0_i32, %c0_i32_0 : i32, i32
  }
  func.func @transform_5(%arg0: i32) -> (i32, i32) {
    %c0_i32 = arith.constant 0 : i32
    %c0_i32_0 = arith.constant 0 : i32
    %c0_i32_1 = arith.constant 0 : i32
    return %c0_i32, %c0_i32_0 : i32, i32
  }
  func.func @transform_6(%arg0: i32) -> (i32, i32) {
    %c0_i32 = arith.constant 0 : i32
    %c0_i32_0 = arith.constant 0 : i32
    %c0_i32_1 = arith.constant 0 : i32
    return %c0_i32, %c0_i32_0 : i32, i32
  }
  func.func @transform_7(%arg0: i32) -> (i32, i32) {
    %c0_i32 = arith.constant 0 : i32
    %c0_i32_0 = arith.constant 0 : i32
    return %arg0, %c0_i32 : i32, i32
  }
}

</mosaic_0001>

<llo_original>
// kernel: sample_convnet_forward.3
$region0: #{sample_convnet_forward.3}
  #allocation0 [shape = 'u32[]', space=smem, size = 0x4, offset = 0x4, fixed_abs, tag = 'smem constant byte address 0x4 - core index']
  #allocation1 [shape = 'u32[144,128]{1,0:T(1,128)}', space=vmem, size = 0x12000, scoped, tag = 'internal scratch']
  %s0 = inlined_call_operand.vmem [shape: bf16[400,256], index: 0, kind: input, shape index: {}]
  %s1 = inlined_call_operand.vmem [shape: bf16[256,32], index: 1, kind: input, shape index: {}]
  %s2 = inlined_call_operand.vmem [shape: f32[1,32], index: 2, kind: input, shape index: {}]
  %s3 = inlined_call_operand.vmem [shape: bf16[512,32], index: 3, kind: input, shape index: {}]
  %s4 = inlined_call_operand.vmem [shape: f32[1,32], index: 4, kind: input, shape index: {}]
  %s5 = inlined_call_operand.vmem [shape: bf16[32,128], index: 5, kind: input, shape index: {}]
  %s6 = inlined_call_operand.vmem [shape: f32[1,128], index: 6, kind: input, shape index: {}]
  %s7 = inlined_call_operand.vmem [shape: f32[16,128], index: 7, kind: output, shape index: {}]
  %s8 = sld [smem:[#allocation0]]
  $region38: #{sample_convnet_forward.3} parent=0
    _
  %s10 = ssub.s32 1, %s8
  %s11 = scalar_select 0, %s10, %s8
  // Predicated region
  $region2: #{sample_convnet_forward.3} parent=0 // pred_check
    _
  $region3: #{sample_convnet_forward.3} parent=0 // pred_check_branch
    %13 = sbr.rel (0) target = $region5
  $region4: #{sample_convnet_forward.3} parent=0 // pred_region
    _
  $region5: #{sample_convnet_forward.3} parent=0 // pred_fallthru
    _
  // Predicated region
  $region6: #{sample_convnet_forward.3} parent=0 // pred_check
    _
  $region7: #{sample_convnet_forward.3} parent=0 // pred_check_branch
    %15 = sbr.rel (0) target = $region9
  $region8: #{sample_convnet_forward.3} parent=0 // pred_region
    _
  $region9: #{sample_convnet_forward.3} parent=0 // pred_fallthru
    _
  // Predicated region
  $region10: #{sample_convnet_forward.3} parent=0 // pred_check
    _
  $region11: #{sample_convnet_forward.3} parent=0 // pred_check_branch
    %17 = sbr.rel (0) target = $region13
  $region12: #{sample_convnet_forward.3} parent=0 // pred_region
    _
  $region13: #{sample_convnet_forward.3} parent=0 // pred_fallthru
    _
  // Predicated region
  $region14: #{sample_convnet_forward.3} parent=0 // pred_check
    _
  $region15: #{sample_convnet_forward.3} parent=0 // pred_check_branch
    %19 = sbr.rel (0) target = $region17
  $region16: #{sample_convnet_forward.3} parent=0 // pred_region
    _
  $region17: #{sample_convnet_forward.3} parent=0 // pred_fallthru
    _
  // Predicated region
  $region18: #{sample_convnet_forward.3} parent=0 // pred_check
    _
  $region19: #{sample_convnet_forward.3} parent=0 // pred_check_branch
    %21 = sbr.rel (0) target = $region21
  $region20: #{sample_convnet_forward.3} parent=0 // pred_region
    _
  $region21: #{sample_convnet_forward.3} parent=0 // pred_fallthru
    _
  // Predicated region
  $region22: #{sample_convnet_forward.3} parent=0 // pred_check
    _
  $region23: #{sample_convnet_forward.3} parent=0 // pred_check_branch
    %23 = sbr.rel (0) target = $region25
  $region24: #{sample_convnet_forward.3} parent=0 // pred_region
    _
  $region25: #{sample_convnet_forward.3} parent=0 // pred_fallthru
    _
  // Predicated region
  $region26: #{sample_convnet_forward.3} parent=0 // pred_check
    _
  $region27: #{sample_convnet_forward.3} parent=0 // pred_check_branch
    %25 = sbr.rel (0) target = $region29
  $region28: #{sample_convnet_forward.3} parent=0 // pred_region
    _
  $region29: #{sample_convnet_forward.3} parent=0 // pred_fallthru
    _
  %v27 = vld [vmem:[%s0] sm:$0xff]
  %v28 = vld [vmem:[%s0 + $0x8] sm:$0xff]
  %v29 = vld [vmem:[%s0 + $0x10] sm:$0xff]
  %v30 = vld [vmem:[%s0 + $0x18] sm:$0xff]
  %v31 = vld [vmem:[%s0 + $0x20] sm:$0xff]
  %v32 = vld [vmem:[%s0 + $0x28] sm:$0xff]
  %v33 = vld [vmem:[%s0 + $0x30] sm:$0xff]
  %v34 = vld [vmem:[%s0 + $0x38] sm:$0xff]
  %v35 = vld [vmem:[%s0 + $0x40] sm:$0xff]
  %v36 = vld [vmem:[%s0 + $0x48] sm:$0xff]
  %v37 = vld [vmem:[%s0 + $0x50] sm:$0xff]
  %v38 = vld [vmem:[%s0 + $0x58] sm:$0xff]
  %v39 = vld [vmem:[%s0 + $0x60] sm:$0xff]
  %v40 = vld [vmem:[%s0 + $0x68] sm:$0xff]
  %v41 = vld [vmem:[%s0 + $0x70] sm:$0xff]
  %v42 = vld [vmem:[%s0 + $0x78] sm:$0xff]
  %v43 = vld [vmem:[%s0 + $0x80] sm:$0xff]
  %v44 = vld [vmem:[%s0 + $0x88] sm:$0xff]
  %v45 = vld [vmem:[%s0 + $0x90] sm:$0xff]
  %v46 = vld [vmem:[%s0 + $0x98] sm:$0xff]
  %v47 = vld [vmem:[%s0 + $0xa0] sm:$0xff]
  %v48 = vld [vmem:[%s0 + $0xa8] sm:$0xff]
  %v49 = vld [vmem:[%s0 + $0xb0] sm:$0xff]
  %v50 = vld [vmem:[%s0 + $0xb8] sm:$0xff]
  %v51 = vld [vmem:[%s0 + $0xc0] sm:$0xff]
  %v52 = vld [vmem:[%s0 + $0xc8] sm:$0xff]
  %v53 = vld [vmem:[%s0 + $0xd0] sm:$0xff]
  %v54 = vld [vmem:[%s0 + $0xd8] sm:$0xff]
  %v55 = vld [vmem:[%s0 + $0xe0] sm:$0xff]
  %v56 = vld [vmem:[%s0 + $0xe8] sm:$0xff]
  %v57 = vld [vmem:[%s0 + $0xf0] sm:$0xff]
  %v58 = vld [vmem:[%s0 + $0xf8] sm:$0xff]
  %v59 = vld [vmem:[%s0 + $0x100] sm:$0xff]
  %v60 = vld [vmem:[%s0 + $0x108] sm:$0xff]
  %v61 = vld [vmem:[%s0 + $0x110] sm:$0xff]
  %v62 = vld [vmem:[%s0 + $0x118] sm:$0xff]
  %v63 = vld [vmem:[%s0 + $0x120] sm:$0xff]
  %v64 = vld [vmem:[%s0 + $0x128] sm:$0xff]
  %v65 = vld [vmem:[%s0 + $0x130] sm:$0xff]
  %v66 = vld [vmem:[%s0 + $0x138] sm:$0xff]
  %v67 = vld [vmem:[%s0 + $0x140] sm:$0xff]
  %v68 = vld [vmem:[%s0 + $0x148] sm:$0xff]
  %v69 = vld [vmem:[%s0 + $0x150] sm:$0xff]
  %v70 = vld [vmem:[%s0 + $0x158] sm:$0xff]
  %v71 = vld [vmem:[%s0 + $0x160] sm:$0xff]
  %v72 = vld [vmem:[%s0 + $0x168] sm:$0xff]
  %v73 = vld [vmem:[%s0 + $0x170] sm:$0xff]
  %v74 = vld [vmem:[%s0 + $0x178] sm:$0xff]
  %v75 = vld [vmem:[%s0 + $0x180] sm:$0xff]
  %v76 = vld [vmem:[%s0 + $0x188] sm:$0xff]
  %v77 = vld [vmem:[%s1] sm:$0xf]
  %v78 = vld [vmem:[%s1 + $0x4] sm:$0xf]
  %v79 = vld [vmem:[%s1 + $0x8] sm:$0xf]
  %v80 = vld [vmem:[%s1 + $0xc] sm:$0xf]
  %v81 = vld [vmem:[%s1 + $0x10] sm:$0xf]
  %v82 = vld [vmem:[%s1 + $0x14] sm:$0xf]
  %v83 = vld [vmem:[%s1 + $0x18] sm:$0xf]
  %v84 = vld [vmem:[%s1 + $0x1c] sm:$0xf]
  %v85 = vld [vmem:[%s1 + $0x20] sm:$0xf]
  %v86 = vld [vmem:[%s1 + $0x24] sm:$0xf]
  %v87 = vld [vmem:[%s1 + $0x28] sm:$0xf]
  %v88 = vld [vmem:[%s1 + $0x2c] sm:$0xf]
  %v89 = vld [vmem:[%s1 + $0x30] sm:$0xf]
  %v90 = vld [vmem:[%s1 + $0x34] sm:$0xf]
  %v91 = vld [vmem:[%s1 + $0x38] sm:$0xf]
  %v92 = vld [vmem:[%s1 + $0x3c] sm:$0xf]
  %v93 = vld [vmem:[%s1 + $0x40] sm:$0xf]
  %v94 = vld [vmem:[%s1 + $0x44] sm:$0xf]
  %v95 = vld [vmem:[%s1 + $0x48] sm:$0xf]
  %v96 = vld [vmem:[%s1 + $0x4c] sm:$0xf]
  %v97 = vld [vmem:[%s1 + $0x50] sm:$0xf]
  %v98 = vld [vmem:[%s1 + $0x54] sm:$0xf]
  %v99 = vld [vmem:[%s1 + $0x58] sm:$0xf]
  %v100 = vld [vmem:[%s1 + $0x5c] sm:$0xf]
  %v101 = vld [vmem:[%s1 + $0x60] sm:$0xf]
  %v102 = vld [vmem:[%s1 + $0x64] sm:$0xf]
  %v103 = vld [vmem:[%s1 + $0x68] sm:$0xf]
  %v104 = vld [vmem:[%s1 + $0x6c] sm:$0xf]
  %v105 = vld [vmem:[%s1 + $0x70] sm:$0xf]
  %v106 = vld [vmem:[%s1 + $0x74] sm:$0xf]
  %v107 = vld [vmem:[%s1 + $0x78] sm:$0xf]
  %v108 = vld [vmem:[%s1 + $0x7c] sm:$0xf]
  %v109 = vld [vmem:[%s2] sm:$0x1]
  %v111 = vlaneseq
  %v112 = vshrl.u32 %v111, 7
  %v113 = vsub.s32 0, %v112
  %v114 = vrot.slane %v109, %v113
  %v166 = vunpack.c.l.b16 %v27
  %v167 = vunpack.c.h.b16 %v27
  %v168 = vunpack.c.l.b16 %v28
  %v169 = vunpack.c.h.b16 %v28
  %v170 = vunpack.c.l.b16 %v29
  %v171 = vunpack.c.h.b16 %v29
  %v172 = vunpack.c.l.b16 %v30
  %v173 = vunpack.c.h.b16 %v30
  %v174 = vunpack.c.l.b16 %v31
  %v175 = vunpack.c.h.b16 %v31
  %v176 = vunpack.c.l.b16 %v32
  %v177 = vunpack.c.h.b16 %v32
  %v178 = vunpack.c.l.b16 %v33
  %v179 = vunpack.c.h.b16 %v33
  %v180 = vunpack.c.l.b16 %v34
  %v181 = vunpack.c.h.b16 %v34
  %v182 = vunpack.c.l.b16 %v35
  %v183 = vunpack.c.h.b16 %v35
  %v184 = vunpack.c.l.b16 %v36
  %v185 = vunpack.c.h.b16 %v36
  %v186 = vunpack.c.l.b16 %v37
  %v187 = vunpack.c.h.b16 %v37
  %v188 = vunpack.c.l.b16 %v38
  %v189 = vunpack.c.h.b16 %v38
  %v190 = vunpack.c.l.b16 %v39
  %v191 = vunpack.c.h.b16 %v39
  %v192 = vunpack.c.l.b16 %v40
  %v193 = vunpack.c.h.b16 %v40
  %v194 = vunpack.c.l.b16 %v41
  %v195 = vunpack.c.h.b16 %v41
  %v196 = vunpack.c.l.b16 %v42
  %v197 = vunpack.c.h.b16 %v42
  %v198 = vunpack.c.l.b16 %v43
  %v199 = vunpack.c.h.b16 %v43
  %v200 = vunpack.c.l.b16 %v44
  %v201 = vunpack.c.h.b16 %v44
  %v202 = vunpack.c.l.b16 %v45
  %v203 = vunpack.c.h.b16 %v45
  %v204 = vunpack.c.l.b16 %v46
  %v205 = vunpack.c.h.b16 %v46
  %v206 = vunpack.c.l.b16 %v47
  %v207 = vunpack.c.h.b16 %v47
  %v208 = vunpack.c.l.b16 %v48
  %v209 = vunpack.c.h.b16 %v48
  %v210 = vunpack.c.l.b16 %v49
  %v211 = vunpack.c.h.b16 %v49
  %v212 = vunpack.c.l.b16 %v50
  %v213 = vunpack.c.h.b16 %v50
  %v214 = vunpack.c.l.b16 %v51
  %v215 = vunpack.c.h.b16 %v51
  %v216 = vunpack.c.l.b16 %v52
  %v217 = vunpack.c.h.b16 %v52
  %v218 = vunpack.c.l.b16 %v53
  %v219 = vunpack.c.h.b16 %v53
  %v220 = vunpack.c.l.b16 %v54
  %v221 = vunpack.c.h.b16 %v54
  %v222 = vunpack.c.l.b16 %v55
  %v223 = vunpack.c.h.b16 %v55
  %v224 = vunpack.c.l.b16 %v56
  %v225 = vunpack.c.h.b16 %v56
  %v226 = vunpack.c.l.b16 %v57
  %v227 = vunpack.c.h.b16 %v57
  %v228 = vunpack.c.l.b16 %v58
  %v229 = vunpack.c.h.b16 %v58
  %v230 = vunpack.c.l.b16 %v59
  %v231 = vunpack.c.h.b16 %v59
  %v232 = vunpack.c.l.b16 %v60
  %v233 = vunpack.c.h.b16 %v60
  %v234 = vunpack.c.l.b16 %v61
  %v235 = vunpack.c.h.b16 %v61
  %v236 = vunpack.c.l.b16 %v62
  %v237 = vunpack.c.h.b16 %v62
  %v238 = vunpack.c.l.b16 %v63
  %v239 = vunpack.c.h.b16 %v63
  %v240 = vunpack.c.l.b16 %v64
  %v241 = vunpack.c.h.b16 %v64
  %v242 = vunpack.c.l.b16 %v65
  %v243 = vunpack.c.h.b16 %v65
  %v244 = vunpack.c.l.b16 %v66
  %v245 = vunpack.c.h.b16 %v66
  %v246 = vunpack.c.l.b16 %v67
  %v247 = vunpack.c.h.b16 %v67
  %v248 = vunpack.c.l.b16 %v68
  %v249 = vunpack.c.h.b16 %v68
  %v250 = vunpack.c.l.b16 %v69
  %v251 = vunpack.c.h.b16 %v69
  %v252 = vunpack.c.l.b16 %v70
  %v253 = vunpack.c.h.b16 %v70
  %v254 = vunpack.c.l.b16 %v71
  %v255 = vunpack.c.h.b16 %v71
  %v256 = vunpack.c.l.b16 %v72
  %v257 = vunpack.c.h.b16 %v72
  %v258 = vunpack.c.l.b16 %v73
  %v259 = vunpack.c.h.b16 %v73
  %v260 = vunpack.c.l.b16 %v74
  %v261 = vunpack.c.h.b16 %v74
  %v262 = vunpack.c.l.b16 %v75
  %v263 = vunpack.c.h.b16 %v75
  %v264 = vunpack.c.l.b16 %v76
  %v265 = vunpack.c.h.b16 %v76
  %v266 = vpack.c.b16 %v168, %v166
  %v267 = vpack.c.b16 %v169, %v167
  %v268 = vpack.c.b16 %v172, %v170
  %v269 = vpack.c.b16 %v173, %v171
  %v270 = vpack.c.b16 %v176, %v174
  %v271 = vpack.c.b16 %v177, %v175
  %v272 = vpack.c.b16 %v180, %v178
  %v273 = vpack.c.b16 %v181, %v179
  %v274 = vpack.c.b16 %v184, %v182
  %v275 = vpack.c.b16 %v185, %v183
  %v276 = vpack.c.b16 %v188, %v186
  %v277 = vpack.c.b16 %v189, %v187
  %v278 = vpack.c.b16 %v192, %v190
  %v279 = vpack.c.b16 %v193, %v191
  %v280 = vpack.c.b16 %v196, %v194
  %v281 = vpack.c.b16 %v197, %v195
  %v282 = vpack.c.b16 %v200, %v198
  %v283 = vpack.c.b16 %v201, %v199
  %v284 = vpack.c.b16 %v204, %v202
  %v285 = vpack.c.b16 %v205, %v203
  %v286 = vpack.c.b16 %v208, %v206
  %v287 = vpack.c.b16 %v209, %v207
  %v288 = vpack.c.b16 %v212, %v210
  %v289 = vpack.c.b16 %v213, %v211
  %v290 = vpack.c.b16 %v216, %v214
  %v291 = vpack.c.b16 %v217, %v215
  %v292 = vpack.c.b16 %v220, %v218
  %v293 = vpack.c.b16 %v221, %v219
  %v294 = vpack.c.b16 %v224, %v222
  %v295 = vpack.c.b16 %v225, %v223
  %v296 = vpack.c.b16 %v228, %v226
  %v297 = vpack.c.b16 %v229, %v227
  %v298 = vpack.c.b16 %v232, %v230
  %v299 = vpack.c.b16 %v233, %v231
  %v300 = vpack.c.b16 %v236, %v234
  %v301 = vpack.c.b16 %v237, %v235
  %v302 = vpack.c.b16 %v240, %v238
  %v303 = vpack.c.b16 %v241, %v239
  %v304 = vpack.c.b16 %v244, %v242
  %v305 = vpack.c.b16 %v245, %v243
  %v306 = vpack.c.b16 %v248, %v246
  %v307 = vpack.c.b16 %v249, %v247
  %v308 = vpack.c.b16 %v252, %v250
  %v309 = vpack.c.b16 %v253, %v251
  %v310 = vpack.c.b16 %v256, %v254
  %v311 = vpack.c.b16 %v257, %v255
  %v312 = vpack.c.b16 %v260, %v258
  %v313 = vpack.c.b16 %v261, %v259
  %v314 = vpack.c.b16 %v264, %v262
  %v315 = vpack.c.b16 %v265, %v263
  %v398 = vunpack.c.l.b16 %v77
  %v399 = vunpack.c.l.b16 %v78
  %v400 = vunpack.c.l.b16 %v79
  %v401 = vunpack.c.l.b16 %v80
  %v402 = vunpack.c.l.b16 %v81
  %v403 = vunpack.c.l.b16 %v82
  %v404 = vunpack.c.l.b16 %v83
  %v405 = vunpack.c.l.b16 %v84
  %v406 = vunpack.c.l.b16 %v85
  %v407 = vunpack.c.l.b16 %v86
  %v408 = vunpack.c.l.b16 %v87
  %v409 = vunpack.c.l.b16 %v88
  %v410 = vunpack.c.l.b16 %v89
  %v411 = vunpack.c.l.b16 %v90
  %v412 = vunpack.c.l.b16 %v91
  %v413 = vunpack.c.l.b16 %v92
  %v414 = vunpack.c.l.b16 %v93
  %v415 = vunpack.c.l.b16 %v94
  %v416 = vunpack.c.l.b16 %v95
  %v417 = vunpack.c.l.b16 %v96
  %v418 = vunpack.c.l.b16 %v97
  %v419 = vunpack.c.l.b16 %v98
  %v420 = vunpack.c.l.b16 %v99
  %v421 = vunpack.c.l.b16 %v100
  %v422 = vunpack.c.l.b16 %v101
  %v423 = vunpack.c.l.b16 %v102
  %v424 = vunpack.c.l.b16 %v103
  %v425 = vunpack.c.l.b16 %v104
  %v426 = vunpack.c.l.b16 %v105
  %v427 = vunpack.c.l.b16 %v106
  %v428 = vunpack.c.l.b16 %v107
  %v429 = vunpack.c.l.b16 %v108
  %v430 = vpack.c.b16 %v399, %v398
  %v431 = vpack.c.b16 %v401, %v400
  %v432 = vpack.c.b16 %v403, %v402
  %v433 = vpack.c.b16 %v405, %v404
  %v434 = vpack.c.b16 %v407, %v406
  %v435 = vpack.c.b16 %v409, %v408
  %v436 = vpack.c.b16 %v411, %v410
  %v437 = vpack.c.b16 %v413, %v412
  %v438 = vpack.c.b16 %v415, %v414
  %v439 = vpack.c.b16 %v417, %v416
  %v440 = vpack.c.b16 %v419, %v418
  %v441 = vpack.c.b16 %v421, %v420
  %v442 = vpack.c.b16 %v423, %v422
  %v443 = vpack.c.b16 %v425, %v424
  %v444 = vpack.c.b16 %v427, %v426
  %v445 = vpack.c.b16 %v429, %v428
  %462 = vmatprep.subr.bf16.mxu0 0
  %463 = vmatpush1.bf16.msra.mxu0 %v430
  %464 = vmatprep.subr.bf16.mxu0 0
  %465 = vmatpush1.bf16.msra.mxu0 %v431
  %466 = vmatprep.subr.bf16.mxu0 0
  %467 = vmatpush1.bf16.msra.mxu0 %v432
  %468 = vmatprep.subr.bf16.mxu0 0
  %469 = vmatpush1.bf16.msra.mxu0 %v433
  %470 = vmatprep.subr.bf16.mxu0 0
  %471 = vmatpush1.bf16.msra.mxu0 %v434
  %472 = vmatprep.subr.bf16.mxu0 0
  %473 = vmatpush1.bf16.msra.mxu0 %v435
  %474 = vmatprep.subr.bf16.mxu0 0
  %475 = vmatpush1.bf16.msra.mxu0 %v436
  %476 = vmatprep.subr.bf16.mxu0 0
  %477 = vmatpush1.bf16.msra.mxu0 %v437
  %478 = vmatprep.subr.bf16.mxu0 0
  %479 = vmatpush1.bf16.msra.mxu0 %v438
  %480 = vmatprep.subr.bf16.mxu0 0
  %481 = vmatpush1.bf16.msra.mxu0 %v439
  %482 = vmatprep.subr.bf16.mxu0 0
  %483 = vmatpush1.bf16.msra.mxu0 %v440
  %484 = vmatprep.subr.bf16.mxu0 0
  %485 = vmatpush1.bf16.msra.mxu0 %v441
  %486 = vmatprep.subr.bf16.mxu0 0
  %487 = vmatpush1.bf16.msra.mxu0 %v442
  %488 = vmatprep.subr.bf16.mxu0 0
  %489 = vmatpush1.bf16.msra.mxu0 %v443
  %490 = vmatprep.subr.bf16.mxu0 0
  %491 = vmatpush1.bf16.msra.mxu0 %v444
  %492 = vmatprep.subr.bf16.mxu0 0
  %493 = vmatpush1.bf16.msra.mxu0 %v445
  %494 = vmatprep.mubr.bf16.mxu0 %v267
  %495 = vmatmul.mubr.bf16.gmra.mrb[0].mxu0 %v266
  %v496 = vpop.f32.mrb[0].mxu0
  %v497 = vadd.f32 %v114, %v496
  %v498 = vpop.f32.mrb[0].mxu0
  %v499 = vpop.f32.mrb[0].mxu0
  %v500 = vadd.f32 %v114, %v499
  %v501 = vpop.f32.mrb[0].mxu0
  %502 = vmatprep.mubr.bf16.mxu0 %v269
  %503 = vmatmul.mubr.bf16.gmra.mrb[0].mxu0 %v268
  %v504 = vpop.f32.mrb[0].mxu0
  %v505 = vadd.f32 %v114, %v504
  %v506 = vpop.f32.mrb[0].mxu0
  %v507 = vpop.f32.mrb[0].mxu0
  %v508 = vadd.f32 %v114, %v507
  %v509 = vpop.f32.mrb[0].mxu0
  %510 = vmatprep.mubr.bf16.mxu0 %v271
  %511 = vmatmul.mubr.bf16.gmra.mrb[0].mxu0 %v270
  %v512 = vpop.f32.mrb[0].mxu0
  %v513 = vadd.f32 %v114, %v512
  %v514 = vpop.f32.mrb[0].mxu0
  %v515 = vpop.f32.mrb[0].mxu0
  %v516 = vadd.f32 %v114, %v515
  %v517 = vpop.f32.mrb[0].mxu0
  %518 = vmatprep.mubr.bf16.mxu0 %v273
  %519 = vmatmul.mubr.bf16.gmra.mrb[0].mxu0 %v272
  %v520 = vpop.f32.mrb[0].mxu0
  %v521 = vadd.f32 %v114, %v520
  %v522 = vpop.f32.mrb[0].mxu0
  %v523 = vpop.f32.mrb[0].mxu0
  %v524 = vadd.f32 %v114, %v523
  %v525 = vpop.f32.mrb[0].mxu0
  %526 = vmatprep.mubr.bf16.mxu0 %v275
  %527 = vmatmul.mubr.bf16.gmra.mrb[0].mxu0 %v274
  %v528 = vpop.f32.mrb[0].mxu0
  %v529 = vadd.f32 %v114, %v528
  %v530 = vpop.f32.mrb[0].mxu0
  %v531 = vpop.f32.mrb[0].mxu0
  %v532 = vadd.f32 %v114, %v531
  %v533 = vpop.f32.mrb[0].mxu0
  %534 = vmatprep.mubr.bf16.mxu0 %v277
  %535 = vmatmul.mubr.bf16.gmra.mrb[0].mxu0 %v276
  %v536 = vpop.f32.mrb[0].mxu0
  %v537 = vadd.f32 %v114, %v536
  %v538 = vpop.f32.mrb[0].mxu0
  %v539 = vpop.f32.mrb[0].mxu0
  %v540 = vadd.f32 %v114, %v539
  %v541 = vpop.f32.mrb[0].mxu0
  %542 = vmatprep.mubr.bf16.mxu0 %v279
  %543 = vmatmul.mubr.bf16.gmra.mrb[0].mxu0 %v278
  %v544 = vpop.f32.mrb[0].mxu0
  %v545 = vadd.f32 %v114, %v544
  %v546 = vpop.f32.mrb[0].mxu0
  %v547 = vpop.f32.mrb[0].mxu0
  %v548 = vadd.f32 %v114, %v547
  %v549 = vpop.f32.mrb[0].mxu0
  %550 = vmatprep.mubr.bf16.mxu0 %v281
  %551 = vmatmul.mubr.bf16.gmra.mrb[0].mxu0 %v280
  %v552 = vpop.f32.mrb[0].mxu0
  %v553 = vadd.f32 %v114, %v552
  %v554 = vpop.f32.mrb[0].mxu0
  %v555 = vpop.f32.mrb[0].mxu0
  %v556 = vadd.f32 %v114, %v555
  %v557 = vpop.f32.mrb[0].mxu0
  %558 = vmatprep.mubr.bf16.mxu0 %v283
  %559 = vmatmul.mubr.bf16.gmra.mrb[0].mxu0 %v282
  %v560 = vpop.f32.mrb[0].mxu0
  %v561 = vadd.f32 %v114, %v560
  %v562 = vpop.f32.mrb[0].mxu0
  %v563 = vpop.f32.mrb[0].mxu0
  %v564 = vadd.f32 %v114, %v563
  %v565 = vpop.f32.mrb[0].mxu0
  %566 = vmatprep.mubr.bf16.mxu0 %v285
  %567 = vmatmul.mubr.bf16.gmra.mrb[0].mxu0 %v284
  %v568 = vpop.f32.mrb[0].mxu0
  %v569 = vadd.f32 %v114, %v568
  %v570 = vpop.f32.mrb[0].mxu0
  %v571 = vpop.f32.mrb[0].mxu0
  %v572 = vadd.f32 %v114, %v571
  %v573 = vpop.f32.mrb[0].mxu0
  %574 = vmatprep.mubr.bf16.mxu0 %v287
  %575 = vmatmul.mubr.bf16.gmra.mrb[0].mxu0 %v286
  %v576 = vpop.f32.mrb[0].mxu0
  %v577 = vadd.f32 %v114, %v576
  %v578 = vpop.f32.mrb[0].mxu0
  %v579 = vpop.f32.mrb[0].mxu0
  %v580 = vadd.f32 %v114, %v579
  %v581 = vpop.f32.mrb[0].mxu0
  %582 = vmatprep.mubr.bf16.mxu0 %v289
  %583 = vmatmul.mubr.bf16.gmra.mrb[0].mxu0 %v288
  %v584 = vpop.f32.mrb[0].mxu0
  %v585 = vadd.f32 %v114, %v584
  %v586 = vpop.f32.mrb[0].mxu0
  %v587 = vpop.f32.mrb[0].mxu0
  %v588 = vadd.f32 %v114, %v587
  %v589 = vpop.f32.mrb[0].mxu0
  %590 = vmatprep.mubr.bf16.mxu0 %v291
  %591 = vmatmul.mubr.bf16.gmra.mrb[0].mxu0 %v290
  %v592 = vpop.f32.mrb[0].mxu0
  %v593 = vadd.f32 %v114, %v592
  %v594 = vpop.f32.mrb[0].mxu0
  %v595 = vpop.f32.mrb[0].mxu0
  %v596 = vadd.f32 %v114, %v595
  %v597 = vpop.f32.mrb[0].mxu0
  %598 = vmatprep.mubr.bf16.mxu0 %v293
  %599 = vmatmul.mubr.bf16.gmra.mrb[0].mxu0 %v292
  %v600 = vpop.f32.mrb[0].mxu0
  %v601 = vadd.f32 %v114, %v600
  %v602 = vpop.f32.mrb[0].mxu0
  %v603 = vpop.f32.mrb[0].mxu0
  %v604 = vadd.f32 %v114, %v603
  %v605 = vpop.f32.mrb[0].mxu0
  %606 = vmatprep.mubr.bf16.mxu0 %v295
  %607 = vmatmul.mubr.bf16.gmra.mrb[0].mxu0 %v294
  %v608 = vpop.f32.mrb[0].mxu0
  %v609 = vadd.f32 %v114, %v608
  %v610 = vpop.f32.mrb[0].mxu0
  %v611 = vpop.f32.mrb[0].mxu0
  %v612 = vadd.f32 %v114, %v611
  %v613 = vpop.f32.mrb[0].mxu0
  %614 = vmatprep.mubr.bf16.mxu0 %v297
  %615 = vmatmul.mubr.bf16.gmra.mrb[0].mxu0 %v296
  %v616 = vpop.f32.mrb[0].mxu0
  %v617 = vadd.f32 %v114, %v616
  %v618 = vpop.f32.mrb[0].mxu0
  %v619 = vpop.f32.mrb[0].mxu0
  %v620 = vadd.f32 %v114, %v619
  %v621 = vpop.f32.mrb[0].mxu0
  %622 = vmatprep.mubr.bf16.mxu0 %v299
  %623 = vmatmul.mubr.bf16.gmra.mrb[0].mxu0 %v298
  %v624 = vpop.f32.mrb[0].mxu0
  %v625 = vadd.f32 %v114, %v624
  %v626 = vpop.f32.mrb[0].mxu0
  %v627 = vpop.f32.mrb[0].mxu0
  %v628 = vadd.f32 %v114, %v627
  %v629 = vpop.f32.mrb[0].mxu0
  %630 = vmatprep.mubr.bf16.mxu0 %v301
  %631 = vmatmul.mubr.bf16.gmra.mrb[0].mxu0 %v300
  %v632 = vpop.f32.mrb[0].mxu0
  %v633 = vadd.f32 %v114, %v632
  %v634 = vpop.f32.mrb[0].mxu0
  %v635 = vpop.f32.mrb[0].mxu0
  %v636 = vadd.f32 %v114, %v635
  %v637 = vpop.f32.mrb[0].mxu0
  %638 = vmatprep.mubr.bf16.mxu0 %v303
  %639 = vmatmul.mubr.bf16.gmra.mrb[0].mxu0 %v302
  %v640 = vpop.f32.mrb[0].mxu0
  %v641 = vadd.f32 %v114, %v640
  %v642 = vpop.f32.mrb[0].mxu0
  %v643 = vpop.f32.mrb[0].mxu0
  %v644 = vadd.f32 %v114, %v643
  %v645 = vpop.f32.mrb[0].mxu0
  %646 = vmatprep.mubr.bf16.mxu0 %v305
  %647 = vmatmul.mubr.bf16.gmra.mrb[0].mxu0 %v304
  %v648 = vpop.f32.mrb[0].mxu0
  %v649 = vadd.f32 %v114, %v648
  %v650 = vpop.f32.mrb[0].mxu0
  %v651 = vpop.f32.mrb[0].mxu0
  %v652 = vadd.f32 %v114, %v651
  %v653 = vpop.f32.mrb[0].mxu0
  %654 = vmatprep.mubr.bf16.mxu0 %v307
  %655 = vmatmul.mubr.bf16.gmra.mrb[0].mxu0 %v306
  %v656 = vpop.f32.mrb[0].mxu0
  %v657 = vadd.f32 %v114, %v656
  %v658 = vpop.f32.mrb[0].mxu0
  %v659 = vpop.f32.mrb[0].mxu0
  %v660 = vadd.f32 %v114, %v659
  %v661 = vpop.f32.mrb[0].mxu0
  %662 = vmatprep.mubr.bf16.mxu0 %v309
  %663 = vmatmul.mubr.bf16.gmra.mrb[0].mxu0 %v308
  %v664 = vpop.f32.mrb[0].mxu0
  %v665 = vadd.f32 %v114, %v664
  %v666 = vpop.f32.mrb[0].mxu0
  %v667 = vpop.f32.mrb[0].mxu0
  %v668 = vadd.f32 %v114, %v667
  %v669 = vpop.f32.mrb[0].mxu0
  %670 = vmatprep.mubr.bf16.mxu0 %v311
  %671 = vmatmul.mubr.bf16.gmra.mrb[0].mxu0 %v310
  %v672 = vpop.f32.mrb[0].mxu0
  %v673 = vadd.f32 %v114, %v672
  %v674 = vpop.f32.mrb[0].mxu0
  %v675 = vpop.f32.mrb[0].mxu0
  %v676 = vadd.f32 %v114, %v675
  %v677 = vpop.f32.mrb[0].mxu0
  %678 = vmatprep.mubr.bf16.mxu0 %v313
  %679 = vmatmul.mubr.bf16.gmra.mrb[0].mxu0 %v312
  %v680 = vpop.f32.mrb[0].mxu0
  %v681 = vadd.f32 %v114, %v680
  %v682 = vpop.f32.mrb[0].mxu0
  %v683 = vpop.f32.mrb[0].mxu0
  %v684 = vadd.f32 %v114, %v683
  %v685 = vpop.f32.mrb[0].mxu0
  %686 = vmatprep.mubr.bf16.mxu0 %v315
  %687 = vmatmul.mubr.bf16.gmra.mrb[0].mxu0 %v314
  %v688 = vpop.f32.mrb[0].mxu0
  %v689 = vadd.f32 %v114, %v688
  %v690 = vpop.f32.mrb[0].mxu0
  %v691 = vpop.f32.mrb[0].mxu0
  %v692 = vadd.f32 %v114, %v691
  %v693 = vpop.f32.mrb[0].mxu0
  %694 = vdwg.mxu0
  %v695 = vmax.f32 %v497, 0.0
  %v696 = vmax.f32 %v500, 0.0
  %v697 = vmax.f32 %v505, 0.0
  %v698 = vmax.f32 %v508, 0.0
  %v699 = vmax.f32 %v513, 0.0
  %v700 = vmax.f32 %v516, 0.0
  %v701 = vmax.f32 %v521, 0.0
  %v702 = vmax.f32 %v524, 0.0
  %v703 = vmax.f32 %v529, 0.0
  %v704 = vmax.f32 %v532, 0.0
  %v705 = vmax.f32 %v537, 0.0
  %v706 = vmax.f32 %v540, 0.0
  %v707 = vmax.f32 %v545, 0.0
  %v708 = vmax.f32 %v548, 0.0
  %v709 = vmax.f32 %v553, 0.0
  %v710 = vmax.f32 %v556, 0.0
  %v711 = vmax.f32 %v561, 0.0
  %v712 = vmax.f32 %v564, 0.0
  %v713 = vmax.f32 %v569, 0.0
  %v714 = vmax.f32 %v572, 0.0
  %v715 = vmax.f32 %v577, 0.0
  %v716 = vmax.f32 %v580, 0.0
  %v717 = vmax.f32 %v585, 0.0
  %v718 = vmax.f32 %v588, 0.0
  %v719 = vmax.f32 %v593, 0.0
  %v720 = vmax.f32 %v596, 0.0
  %v721 = vmax.f32 %v601, 0.0
  %v722 = vmax.f32 %v604, 0.0
  %v723 = vmax.f32 %v609, 0.0
  %v724 = vmax.f32 %v612, 0.0
  %v725 = vmax.f32 %v617, 0.0
  %v726 = vmax.f32 %v620, 0.0
  %v727 = vmax.f32 %v625, 0.0
  %v728 = vmax.f32 %v628, 0.0
  %v729 = vmax.f32 %v633, 0.0
  %v730 = vmax.f32 %v636, 0.0
  %v731 = vmax.f32 %v641, 0.0
  %v732 = vmax.f32 %v644, 0.0
  %v733 = vmax.f32 %v649, 0.0
  %v734 = vmax.f32 %v652, 0.0
  %v735 = vmax.f32 %v657, 0.0
  %v736 = vmax.f32 %v660, 0.0
  %v737 = vmax.f32 %v665, 0.0
  %v738 = vmax.f32 %v668, 0.0
  %v739 = vmax.f32 %v673, 0.0
  %v740 = vmax.f32 %v676, 0.0
  %v741 = vmax.f32 %v681, 0.0
  %v742 = vmax.f32 %v684, 0.0
  %v743 = vmax.f32 %v689, 0.0
  %v744 = vmax.f32 %v692, 0.0
  %v745 = vmax.f32 %v695, %v697
  %v746 = vmax.f32 %v696, %v698
  %v747 = vmax.f32 %v705, %v707
  %v748 = vmax.f32 %v706, %v708
  %v749 = vmax.f32 %v745, %v747
  %v750 = vmax.f32 %v746, %v748
  %v751 = vmax.f32 %v697, %v699
  %v752 = vmax.f32 %v698, %v700
  %v753 = vmax.f32 %v707, %v709
  %v754 = vmax.f32 %v708, %v710
  %v755 = vmax.f32 %v751, %v753
  %v756 = vmax.f32 %v752, %v754
  %v757 = vmax.f32 %v699, %v701
  %v758 = vmax.f32 %v700, %v702
  %v759 = vmax.f32 %v709, %v711
  %v760 = vmax.f32 %v710, %v712
  %v761 = vmax.f32 %v757, %v759
  %v762 = vmax.f32 %v758, %v760
  %v763 = vmax.f32 %v701, %v703
  %v764 = vmax.f32 %v702, %v704
  %v765 = vmax.f32 %v711, %v713
  %v766 = vmax.f32 %v712, %v714
  %v767 = vmax.f32 %v763, %v765
  %v768 = vmax.f32 %v764, %v766
  %v769 = vmax.f32 %v715, %v717
  %v770 = vmax.f32 %v716, %v718
  %v771 = vmax.f32 %v747, %v769
  %v772 = vmax.f32 %v748, %v770
  %v773 = vmax.f32 %v717, %v719
  %v774 = vmax.f32 %v718, %v720
  %v775 = vmax.f32 %v753, %v773
  %v776 = vmax.f32 %v754, %v774
  %v777 = vmax.f32 %v719, %v721
  %v778 = vmax.f32 %v720, %v722
  %v779 = vmax.f32 %v759, %v777
  %v780 = vmax.f32 %v760, %v778
  %v781 = vmax.f32 %v721, %v723
  %v782 = vmax.f32 %v722, %v724
  %v783 = vmax.f32 %v765, %v781
  %v784 = vmax.f32 %v766, %v782
  %v785 = vmax.f32 %v725, %v727
  %v786 = vmax.f32 %v726, %v728
  %v787 = vmax.f32 %v769, %v785
  %v788 = vmax.f32 %v770, %v786
  %v789 = vmax.f32 %v727, %v729
  %v790 = vmax.f32 %v728, %v730
  %v791 = vmax.f32 %v773, %v789
  %v792 = vmax.f32 %v774, %v790
  %v793 = vmax.f32 %v729, %v731
  %v794 = vmax.f32 %v730, %v732
  %v795 = vmax.f32 %v777, %v793
  %v796 = vmax.f32 %v778, %v794
  %v797 = vmax.f32 %v731, %v733
  %v798 = vmax.f32 %v732, %v734
  %v799 = vmax.f32 %v781, %v797
  %v800 = vmax.f32 %v782, %v798
  %v801 = vmax.f32 %v735, %v737
  %v802 = vmax.f32 %v736, %v738
  %v803 = vmax.f32 %v785, %v801
  %v804 = vmax.f32 %v786, %v802
  %v805 = vmax.f32 %v737, %v739
  %v806 = vmax.f32 %v738, %v740
  %v807 = vmax.f32 %v789, %v805
  %v808 = vmax.f32 %v790, %v806
  %v809 = vmax.f32 %v739, %v741
  %v810 = vmax.f32 %v740, %v742
  %v811 = vmax.f32 %v793, %v809
  %v812 = vmax.f32 %v794, %v810
  %v813 = vmax.f32 %v741, %v743
  %v814 = vmax.f32 %v742, %v744
  %v815 = vmax.f32 %v797, %v813
  %v816 = vmax.f32 %v798, %v814
  %819 = vrot.lane.b32.xlu0 %v755, 32
  %v820 = vpop.permute.xlu0 %819
  %821 = vrot.lane.b32.xlu0 %v756, 32
  %v822 = vpop.permute.xlu0 %821
  %827 = vrot.lane.b32.xlu0 %v761, 64
  %v828 = vpop.permute.xlu0 %827
  %829 = vrot.lane.b32.xlu0 %v762, 64
  %v830 = vpop.permute.xlu0 %829
  %835 = vrot.lane.b32.xlu0 %v767, 96
  %v836 = vpop.permute.xlu0 %835
  %837 = vrot.lane.b32.xlu0 %v768, 96
  %v838 = vpop.permute.xlu0 %837
  %843 = vrot.lane.b32.xlu0 %v775, 32
  %v844 = vpop.permute.xlu0 %843
  %845 = vrot.lane.b32.xlu0 %v776, 32
  %v846 = vpop.permute.xlu0 %845
  %851 = vrot.lane.b32.xlu0 %v779, 64
  %v852 = vpop.permute.xlu0 %851
  %853 = vrot.lane.b32.xlu0 %v780, 64
  %v854 = vpop.permute.xlu0 %853
  %859 = vrot.lane.b32.xlu0 %v783, 96
  %v860 = vpop.permute.xlu0 %859
  %861 = vrot.lane.b32.xlu0 %v784, 96
  %v862 = vpop.permute.xlu0 %861
  %867 = vrot.lane.b32.xlu0 %v791, 32
  %v868 = vpop.permute.xlu0 %867
  %869 = vrot.lane.b32.xlu0 %v792, 32
  %v870 = vpop.permute.xlu0 %869
  %875 = vrot.lane.b32.xlu0 %v795, 64
  %v876 = vpop.permute.xlu0 %875
  %877 = vrot.lane.b32.xlu0 %v796, 64
  %v878 = vpop.permute.xlu0 %877
  %883 = vrot.lane.b32.xlu0 %v799, 96
  %v884 = vpop.permute.xlu0 %883
  %885 = vrot.lane.b32.xlu0 %v800, 96
  %v886 = vpop.permute.xlu0 %885
  %891 = vrot.lane.b32.xlu0 %v807, 32
  %v892 = vpop.permute.xlu0 %891
  %893 = vrot.lane.b32.xlu0 %v808, 32
  %v894 = vpop.permute.xlu0 %893
  %899 = vrot.lane.b32.xlu0 %v811, 64
  %v900 = vpop.permute.xlu0 %899
  %901 = vrot.lane.b32.xlu0 %v812, 64
  %v902 = vpop.permute.xlu0 %901
  %907 = vrot.lane.b32.xlu0 %v815, 96
  %v908 = vpop.permute.xlu0 %907
  %909 = vrot.lane.b32.xlu0 %v816, 96
  %v910 = vpop.permute.xlu0 %909
  %vm913 = vcmask 261120
  %v914 = vsel %vm913, %v749, %v820
  %v915 = vsel %vm913, %v750, %v822
  %vm916 = vcmask 523264
  %v917 = vsel %vm916, %v914, %v828
  %v918 = vsel %vm916, %v915, %v830
  %vm919 = vcmask 785408
  %v920 = vsel %vm919, %v917, %v836
  %v921 = vsel %vm919, %v918, %v838
  %v922 = vsel %vm913, %v771, %v844
  %v923 = vsel %vm913, %v772, %v846
  %v924 = vsel %vm916, %v922, %v852
  %v925 = vsel %vm916, %v923, %v854
  %v926 = vsel %vm919, %v924, %v860
  %v927 = vsel %vm919, %v925, %v862
  %v928 = vsel %vm913, %v787, %v868
  %v929 = vsel %vm913, %v788, %v870
  %v930 = vsel %vm916, %v928, %v876
  %v931 = vsel %vm916, %v929, %v878
  %v932 = vsel %vm919, %v930, %v884
  %v933 = vsel %vm919, %v931, %v886
  %v934 = vsel %vm913, %v803, %v892
  %v935 = vsel %vm913, %v804, %v894
  %v936 = vsel %vm916, %v934, %v900
  %v937 = vsel %vm916, %v935, %v902
  %v938 = vsel %vm919, %v936, %v908
  %v939 = vsel %vm919, %v937, %v910
  %v940 = vpack.c.bf16 %v921, %v920
  %v941 = vpack.c.bf16 %v927, %v926
  %v942 = vpack.c.bf16 %v933, %v932
  %v943 = vpack.c.bf16 %v939, %v938
  %v944 = vld [vmem:[%s3] sm:$0xf]
  %v945 = vld [vmem:[%s3 + $0x4] sm:$0xf]
  %v946 = vld [vmem:[%s3 + $0x8] sm:$0xf]
  %v947 = vld [vmem:[%s3 + $0xc] sm:$0xf]
  %v948 = vld [vmem:[%s3 + $0x10] sm:$0xf]
  %v949 = vld [vmem:[%s3 + $0x14] sm:$0xf]
  %v950 = vld [vmem:[%s3 + $0x18] sm:$0xf]
  %v951 = vld [vmem:[%s3 + $0x1c] sm:$0xf]
  %v952 = vld [vmem:[%s3 + $0x20] sm:$0xf]
  %v953 = vld [vmem:[%s3 + $0x24] sm:$0xf]
  %v954 = vld [vmem:[%s3 + $0x28] sm:$0xf]
  %v955 = vld [vmem:[%s3 + $0x2c] sm:$0xf]
  %v956 = vld [vmem:[%s3 + $0x30] sm:$0xf]
  %v957 = vld [vmem:[%s3 + $0x34] sm:$0xf]
  %v958 = vld [vmem:[%s3 + $0x38] sm:$0xf]
  %v959 = vld [vmem:[%s3 + $0x3c] sm:$0xf]
  %v960 = vld [vmem:[%s3 + $0x40] sm:$0xf]
  %v961 = vld [vmem:[%s3 + $0x44] sm:$0xf]
  %v962 = vld [vmem:[%s3 + $0x48] sm:$0xf]
  %v963 = vld [vmem:[%s3 + $0x4c] sm:$0xf]
  %v964 = vld [vmem:[%s3 + $0x50] sm:$0xf]
  %v965 = vld [vmem:[%s3 + $0x54] sm:$0xf]
  %v966 = vld [vmem:[%s3 + $0x58] sm:$0xf]
  %v967 = vld [vmem:[%s3 + $0x5c] sm:$0xf]
  %v968 = vld [vmem:[%s3 + $0x60] sm:$0xf]
  %v969 = vld [vmem:[%s3 + $0x64] sm:$0xf]
  %v970 = vld [vmem:[%s3 + $0x68] sm:$0xf]
  %v971 = vld [vmem:[%s3 + $0x6c] sm:$0xf]
  %v972 = vld [vmem:[%s3 + $0x70] sm:$0xf]
  %v973 = vld [vmem:[%s3 + $0x74] sm:$0xf]
  %v974 = vld [vmem:[%s3 + $0x78] sm:$0xf]
  %v975 = vld [vmem:[%s3 + $0x7c] sm:$0xf]
  %v976 = vld [vmem:[%s3 + $0x80] sm:$0xf]
  %v977 = vld [vmem:[%s3 + $0x84] sm:$0xf]
  %v978 = vld [vmem:[%s3 + $0x88] sm:$0xf]
  %v979 = vld [vmem:[%s3 + $0x8c] sm:$0xf]
  %v980 = vld [vmem:[%s3 + $0x90] sm:$0xf]
  %v981 = vld [vmem:[%s3 + $0x94] sm:$0xf]
  %v982 = vld [vmem:[%s3 + $0x98] sm:$0xf]
  %v983 = vld [vmem:[%s3 + $0x9c] sm:$0xf]
  %v984 = vld [vmem:[%s3 + $0xa0] sm:$0xf]
  %v985 = vld [vmem:[%s3 + $0xa4] sm:$0xf]
  %v986 = vld [vmem:[%s3 + $0xa8] sm:$0xf]
  %v987 = vld [vmem:[%s3 + $0xac] sm:$0xf]
  %v988 = vld [vmem:[%s3 + $0xb0] sm:$0xf]
  %v989 = vld [vmem:[%s3 + $0xb4] sm:$0xf]
  %v990 = vld [vmem:[%s3 + $0xb8] sm:$0xf]
  %v991 = vld [vmem:[%s3 + $0xbc] sm:$0xf]
  %v992 = vld [vmem:[%s3 + $0xc0] sm:$0xf]
  %v993 = vld [vmem:[%s3 + $0xc4] sm:$0xf]
  %v994 = vld [vmem:[%s3 + $0xc8] sm:$0xf]
  %v995 = vld [vmem:[%s3 + $0xcc] sm:$0xf]
  %v996 = vld [vmem:[%s3 + $0xd0] sm:$0xf]
  %v997 = vld [vmem:[%s3 + $0xd4] sm:$0xf]
  %v998 = vld [vmem:[%s3 + $0xd8] sm:$0xf]
  %v999 = vld [vmem:[%s3 + $0xdc] sm:$0xf]
  %v1000 = vld [vmem:[%s3 + $0xe0] sm:$0xf]
  %v1001 = vld [vmem:[%s3 + $0xe4] sm:$0xf]
  %v1002 = vld [vmem:[%s3 + $0xe8] sm:$0xf]
  %v1003 = vld [vmem:[%s3 + $0xec] sm:$0xf]
  %v1004 = vld [vmem:[%s3 + $0xf0] sm:$0xf]
  %v1005 = vld [vmem:[%s3 + $0xf4] sm:$0xf]
  %v1006 = vld [vmem:[%s3 + $0xf8] sm:$0xf]
  %v1007 = vld [vmem:[%s3 + $0xfc] sm:$0xf]
  %v1008 = vld [vmem:[%s4] sm:$0x1]
  %v1010 = vlaneseq
  %v1011 = vshrl.u32 %v1010, 7
  %v1012 = vsub.s32 0, %v1011
  %v1013 = vrot.slane %v1008, %v1012
  %v1079 = vunpack.c.l.b16 %v944
  %v1080 = vunpack.c.l.b16 %v945
  %v1081 = vunpack.c.l.b16 %v946
  %v1082 = vunpack.c.l.b16 %v947
  %v1083 = vunpack.c.l.b16 %v948
  %v1084 = vunpack.c.l.b16 %v949
  %v1085 = vunpack.c.l.b16 %v950
  %v1086 = vunpack.c.l.b16 %v951
  %v1087 = vunpack.c.l.b16 %v952
  %v1088 = vunpack.c.l.b16 %v953
  %v1089 = vunpack.c.l.b16 %v954
  %v1090 = vunpack.c.l.b16 %v955
  %v1091 = vunpack.c.l.b16 %v956
  %v1092 = vunpack.c.l.b16 %v957
  %v1093 = vunpack.c.l.b16 %v958
  %v1094 = vunpack.c.l.b16 %v959
  %v1095 = vunpack.c.l.b16 %v960
  %v1096 = vunpack.c.l.b16 %v961
  %v1097 = vunpack.c.l.b16 %v962
  %v1098 = vunpack.c.l.b16 %v963
  %v1099 = vunpack.c.l.b16 %v964
  %v1100 = vunpack.c.l.b16 %v965
  %v1101 = vunpack.c.l.b16 %v966
  %v1102 = vunpack.c.l.b16 %v967
  %v1103 = vunpack.c.l.b16 %v968
  %v1104 = vunpack.c.l.b16 %v969
  %v1105 = vunpack.c.l.b16 %v970
  %v1106 = vunpack.c.l.b16 %v971
  %v1107 = vunpack.c.l.b16 %v972
  %v1108 = vunpack.c.l.b16 %v973
  %v1109 = vunpack.c.l.b16 %v974
  %v1110 = vunpack.c.l.b16 %v975
  %v1111 = vunpack.c.l.b16 %v976
  %v1112 = vunpack.c.l.b16 %v977
  %v1113 = vunpack.c.l.b16 %v978
  %v1114 = vunpack.c.l.b16 %v979
  %v1115 = vunpack.c.l.b16 %v980
  %v1116 = vunpack.c.l.b16 %v981
  %v1117 = vunpack.c.l.b16 %v982
  %v1118 = vunpack.c.l.b16 %v983
  %v1119 = vunpack.c.l.b16 %v984
  %v1120 = vunpack.c.l.b16 %v985
  %v1121 = vunpack.c.l.b16 %v986
  %v1122 = vunpack.c.l.b16 %v987
  %v1123 = vunpack.c.l.b16 %v988
  %v1124 = vunpack.c.l.b16 %v989
  %v1125 = vunpack.c.l.b16 %v990
  %v1126 = vunpack.c.l.b16 %v991
  %v1127 = vunpack.c.l.b16 %v992
  %v1128 = vunpack.c.l.b16 %v993
  %v1129 = vunpack.c.l.b16 %v994
  %v1130 = vunpack.c.l.b16 %v995
  %v1131 = vunpack.c.l.b16 %v996
  %v1132 = vunpack.c.l.b16 %v997
  %v1133 = vunpack.c.l.b16 %v998
  %v1134 = vunpack.c.l.b16 %v999
  %v1135 = vunpack.c.l.b16 %v1000
  %v1136 = vunpack.c.l.b16 %v1001
  %v1137 = vunpack.c.l.b16 %v1002
  %v1138 = vunpack.c.l.b16 %v1003
  %v1139 = vunpack.c.l.b16 %v1004
  %v1140 = vunpack.c.l.b16 %v1005
  %v1141 = vunpack.c.l.b16 %v1006
  %v1142 = vunpack.c.l.b16 %v1007
  %v1143 = vpack.c.b16 %v1080, %v1079
  %v1144 = vpack.c.b16 %v1082, %v1081
  %v1145 = vpack.c.b16 %v1084, %v1083
  %v1146 = vpack.c.b16 %v1086, %v1085
  %v1147 = vpack.c.b16 %v1088, %v1087
  %v1148 = vpack.c.b16 %v1090, %v1089
  %v1149 = vpack.c.b16 %v1092, %v1091
  %v1150 = vpack.c.b16 %v1094, %v1093
  %v1151 = vpack.c.b16 %v1096, %v1095
  %v1152 = vpack.c.b16 %v1098, %v1097
  %v1153 = vpack.c.b16 %v1100, %v1099
  %v1154 = vpack.c.b16 %v1102, %v1101
  %v1155 = vpack.c.b16 %v1104, %v1103
  %v1156 = vpack.c.b16 %v1106, %v1105
  %v1157 = vpack.c.b16 %v1108, %v1107
  %v1158 = vpack.c.b16 %v1110, %v1109
  %v1159 = vpack.c.b16 %v1112, %v1111
  %v1160 = vpack.c.b16 %v1114, %v1113
  %v1161 = vpack.c.b16 %v1116, %v1115
  %v1162 = vpack.c.b16 %v1118, %v1117
  %v1163 = vpack.c.b16 %v1120, %v1119
  %v1164 = vpack.c.b16 %v1122, %v1121
  %v1165 = vpack.c.b16 %v1124, %v1123
  %v1166 = vpack.c.b16 %v1126, %v1125
  %v1167 = vpack.c.b16 %v1128, %v1127
  %v1168 = vpack.c.b16 %v1130, %v1129
  %v1169 = vpack.c.b16 %v1132, %v1131
  %v1170 = vpack.c.b16 %v1134, %v1133
  %v1171 = vpack.c.b16 %v1136, %v1135
  %v1172 = vpack.c.b16 %v1138, %v1137
  %v1173 = vpack.c.b16 %v1140, %v1139
  %v1174 = vpack.c.b16 %v1142, %v1141
  %1207 = vmatprep.subr.bf16.mxu0 0
  %1208 = vmatpush1.bf16.msra.mxu0 %v1143
  %1209 = vmatprep.subr.bf16.mxu0 0
  %1210 = vmatpush1.bf16.msra.mxu0 %v1144
  %1211 = vmatprep.subr.bf16.mxu0 0
  %1212 = vmatpush1.bf16.msra.mxu0 %v1145
  %1213 = vmatprep.subr.bf16.mxu0 0
  %1214 = vmatpush1.bf16.msra.mxu0 %v1146
  %1215 = vmatprep.subr.bf16.mxu0 0
  %1216 = vmatpush1.bf16.msra.mxu0 %v1147
  %1217 = vmatprep.subr.bf16.mxu0 0
  %1218 = vmatpush1.bf16.msra.mxu0 %v1148
  %1219 = vmatprep.subr.bf16.mxu0 0
  %1220 = vmatpush1.bf16.msra.mxu0 %v1149
  %1221 = vmatprep.subr.bf16.mxu0 0
  %1222 = vmatpush1.bf16.msra.mxu0 %v1150
  %1223 = vmatprep.subr.bf16.mxu0 0
  %1224 = vmatpush1.bf16.msra.mxu0 %v1151
  %1225 = vmatprep.subr.bf16.mxu0 0
  %1226 = vmatpush1.bf16.msra.mxu0 %v1152
  %1227 = vmatprep.subr.bf16.mxu0 0
  %1228 = vmatpush1.bf16.msra.mxu0 %v1153
  %1229 = vmatprep.subr.bf16.mxu0 0
  %1230 = vmatpush1.bf16.msra.mxu0 %v1154
  %1231 = vmatprep.subr.bf16.mxu0 0
  %1232 = vmatpush1.bf16.msra.mxu0 %v1155
  %1233 = vmatprep.subr.bf16.mxu0 0
  %1234 = vmatpush1.bf16.msra.mxu0 %v1156
  %1235 = vmatprep.subr.bf16.mxu0 0
  %1236 = vmatpush1.bf16.msra.mxu0 %v1157
  %1237 = vmatprep.subr.bf16.mxu0 0
  %1238 = vmatpush1.bf16.msra.mxu0 %v1158
  %1239 = vmatprep.mubr.bf16.mxu0 %v941
  %1240 = vmatmul.mubr.bf16.gmra.mrb[0].mxu0 %v940
  %v1241 = vpop.f32.mrb[0].mxu0
  %v1242 = vadd.f32 %v1013, %v1241
  %v1243 = vpop.f32.mrb[0].mxu0
  %v1244 = vpop.f32.mrb[0].mxu0
  %v1245 = vadd.f32 %v1013, %v1244
  %v1246 = vpop.f32.mrb[0].mxu0
  %1247 = vdwg.mxu0
  %1248 = vmatprep.subr.bf16.mxu0 0
  %1249 = vmatpush1.bf16.msra.mxu0 %v1159
  %1250 = vmatprep.subr.bf16.mxu0 0
  %1251 = vmatpush1.bf16.msra.mxu0 %v1160
  %1252 = vmatprep.subr.bf16.mxu0 0
  %1253 = vmatpush1.bf16.msra.mxu0 %v1161
  %1254 = vmatprep.subr.bf16.mxu0 0
  %1255 = vmatpush1.bf16.msra.mxu0 %v1162
  %1256 = vmatprep.subr.bf16.mxu0 0
  %1257 = vmatpush1.bf16.msra.mxu0 %v1163
  %1258 = vmatprep.subr.bf16.mxu0 0
  %1259 = vmatpush1.bf16.msra.mxu0 %v1164
  %1260 = vmatprep.subr.bf16.mxu0 0
  %1261 = vmatpush1.bf16.msra.mxu0 %v1165
  %1262 = vmatprep.subr.bf16.mxu0 0
  %1263 = vmatpush1.bf16.msra.mxu0 %v1166
  %1264 = vmatprep.subr.bf16.mxu0 0
  %1265 = vmatpush1.bf16.msra.mxu0 %v1167
  %1266 = vmatprep.subr.bf16.mxu0 0
  %1267 = vmatpush1.bf16.msra.mxu0 %v1168
  %1268 = vmatprep.subr.bf16.mxu0 0
  %1269 = vmatpush1.bf16.msra.mxu0 %v1169
  %1270 = vmatprep.subr.bf16.mxu0 0
  %1271 = vmatpush1.bf16.msra.mxu0 %v1170
  %1272 = vmatprep.subr.bf16.mxu0 0
  %1273 = vmatpush1.bf16.msra.mxu0 %v1171
  %1274 = vmatprep.subr.bf16.mxu0 0
  %1275 = vmatpush1.bf16.msra.mxu0 %v1172
  %1276 = vmatprep.subr.bf16.mxu0 0
  %1277 = vmatpush1.bf16.msra.mxu0 %v1173
  %1278 = vmatprep.subr.bf16.mxu0 0
  %1279 = vmatpush1.bf16.msra.mxu0 %v1174
  %1280 = vmatprep.mubr.bf16.mxu0 %v943
  %1281 = vmatmul.mubr.bf16.gmra.mrb[0].mxu0 %v942
  %v1282 = vpop.f32.mrb[0].mxu0
  %v1283 = vadd.f32 %v1242, %v1282
  %v1284 = vpop.f32.mrb[0].mxu0
  %v1285 = vpop.f32.mrb[0].mxu0
  %v1286 = vadd.f32 %v1245, %v1285
  %v1287 = vpop.f32.mrb[0].mxu0
  %1288 = vdwg.mxu0
  %v1289 = vmax.f32 %v1283, 0.0
  %v1290 = vmax.f32 %v1286, 0.0
  %v1291 = vpack.c.bf16 %v1290, %v1289
  %v1292 = vld [vmem:[%s5] sm:$0xf]
  %v1293 = vld [vmem:[%s5 + $0x4] sm:$0xf]
  %v1294 = vld [vmem:[%s5 + $0x8] sm:$0xf]
  %v1295 = vld [vmem:[%s5 + $0xc] sm:$0xf]
  %v1296 = vld [vmem:[%s6] sm:$0x1]
  %v1298 = vlaneseq
  %v1299 = vshrl.u32 %v1298, 7
  %v1300 = vsub.s32 0, %v1299
  %v1301 = vrot.slane %v1296, %v1300
  %v1307 = vunpack.c.l.b16 %v1292
  %v1308 = vunpack.c.l.b16 %v1293
  %v1309 = vunpack.c.l.b16 %v1294
  %v1310 = vunpack.c.l.b16 %v1295
  %v1311 = vpack.c.b16 %v1308, %v1307
  %v1312 = vpack.c.b16 %v1310, %v1309
  %v1316 = vsel %vm913, %v1291, 0
  %1318 = vmatprep.subr.bf16.mxu0 0
  %1319 = vmatpush1.bf16.msra.mxu0 %v1311
  %1320 = vmatprep.subr.bf16.mxu0 0
  %1321 = vmatpush1.bf16.msra.mxu0 %v1312
  %1322 = vmatprep.subr.bf16.mxu0 0
  %1323 = vmatpush1.bf16.msra.mxu0 0
  %1324 = vmatprep.subr.bf16.mxu0 0
  %1325 = vmatpush1.bf16.msra.mxu0 0
  %1326 = vmatprep.subr.bf16.mxu0 0
  %1327 = vmatpush1.bf16.msra.mxu0 0
  %1328 = vmatprep.subr.bf16.mxu0 0
  %1329 = vmatpush1.bf16.msra.mxu0 0
  %1330 = vmatprep.subr.bf16.mxu0 0
  %1331 = vmatpush1.bf16.msra.mxu0 0
  %1332 = vmatprep.subr.bf16.mxu0 0
  %1333 = vmatpush1.bf16.msra.mxu0 0
  %1334 = vmatprep.subr.bf16.mxu0 0
  %1335 = vmatpush1.bf16.msra.mxu0 0
  %1336 = vmatprep.subr.bf16.mxu0 0
  %1337 = vmatpush1.bf16.msra.mxu0 0
  %1338 = vmatprep.subr.bf16.mxu0 0
  %1339 = vmatpush1.bf16.msra.mxu0 0
  %1340 = vmatprep.subr.bf16.mxu0 0
  %1341 = vmatpush1.bf16.msra.mxu0 0
  %1342 = vmatprep.subr.bf16.mxu0 0
  %1343 = vmatpush1.bf16.msra.mxu0 0
  %1344 = vmatprep.subr.bf16.mxu0 0
  %1345 = vmatpush1.bf16.msra.mxu0 0
  %1346 = vmatprep.subr.bf16.mxu0 0
  %1347 = vmatpush1.bf16.msra.mxu0 0
  %1348 = vmatprep.subr.bf16.mxu0 0
  %1349 = vmatpush1.bf16.msra.mxu0 0
  %1350 = vmatprep.mubr.bf16.mxu0 0
  %1351 = vmatmul.mubr.bf16.gmra.mrb[0].mxu0 %v1316
  %v1352 = vpop.f32.mrb[0].mxu0
  %v1353 = vadd.f32 %v1301, %v1352
  %v1354 = vpop.f32.mrb[0].mxu0
  %v1355 = vpop.f32.mrb[0].mxu0
  %v1356 = vadd.f32 %v1301, %v1355
  %v1357 = vpop.f32.mrb[0].mxu0
  %1358 = vdwg.mxu0
  %1359 = vst [vmem:[%s7] sm:$0xff] %v1353
  %1360 = vst [vmem:[%s7 + $0x8] sm:$0xff] %v1356
  // Predicated region
  $region30: #{sample_convnet_forward.3} parent=0 // pred_check
    _
  $region31: #{sample_convnet_forward.3} parent=0 // pred_check_branch
    %1362 = sbr.rel (0) target = $region33
  $region32: #{sample_convnet_forward.3} parent=0 // pred_region
    _
  $region33: #{sample_convnet_forward.3} parent=0 // pred_fallthru
    _
  // Predicated region
  $region34: #{sample_convnet_forward.3} parent=0 // pred_check
    _
  $region35: #{sample_convnet_forward.3} parent=0 // pred_check_branch
    %1364 = sbr.rel (0) target = $region37
  $region36: #{sample_convnet_forward.3} parent=0 // pred_region
    _
  $region37: #{sample_convnet_forward.3} parent=0 // pred_fallthru
    _

// kernel: sample_convnet_forward.2
$region0: #{sample_convnet_forward.2}
  #allocation0 [shape = 'u32[]', space=smem, size = 0x4, offset = 0x4, fixed_abs, tag = 'smem constant byte address 0x4 - core index']
  #allocation1 [shape = 'u32[144,128]{1,0:T(1,128)}', space=vmem, size = 0x12000, scoped, tag = 'internal scratch']
  %s0 = inlined_call_operand.vmem [shape: bf16[3136,64], index: 0, kind: input, shape index: {}]
  %s1 = inlined_call_operand.vmem [shape: bf16[64,16], index: 1, kind: input, shape index: {}]
  %s2 = inlined_call_operand.vmem [shape: f32[1,16], index: 2, kind: input, shape index: {}]
  %s3 = inlined_call_operand.vmem [shape: bf16[3136,16], index: 3, kind: output, shape index: {}]
  %s4 = sld [smem:[#allocation0]]
  $region22: #{sample_convnet_forward.2} parent=0
    _
  %s6 = ssub.s32 1, %s4
  %s7 = scalar_select 0, %s6, %s4
  // Predicated region
  $region2: #{sample_convnet_forward.2} parent=0 // pred_check
    _
  $region3: #{sample_convnet_forward.2} parent=0 // pred_check_branch
    %9 = sbr.rel (0) target = $region5
  $region4: #{sample_convnet_forward.2} parent=0 // pred_region
    _
  $region5: #{sample_convnet_forward.2} parent=0 // pred_fallthru
    _
  // Predicated region
  $region6: #{sample_convnet_forward.2} parent=0 // pred_check
    _
  $region7: #{sample_convnet_forward.2} parent=0 // pred_check_branch
    %11 = sbr.rel (0) target = $region9
  $region8: #{sample_convnet_forward.2} parent=0 // pred_region
    _
  $region9: #{sample_convnet_forward.2} parent=0 // pred_fallthru
    _
  // Predicated region
  $region10: #{sample_convnet_forward.2} parent=0 // pred_check
    _
  $region11: #{sample_convnet_forward.2} parent=0 // pred_check_branch
    %13 = sbr.rel (0) target = $region13
  $region12: #{sample_convnet_forward.2} parent=0 // pred_region
    _
  $region13: #{sample_convnet_forward.2} parent=0 // pred_fallthru
    _
  %v15 = vld [vmem:[%s0] sm:$0xf]
  %v16 = vld [vmem:[%s0 + $0x4] sm:$0xf]
  %v17 = vld [vmem:[%s0 + $0x8] sm:$0xf]
  %v18 = vld [vmem:[%s0 + $0xc] sm:$0xf]
  %v19 = vld [vmem:[%s0 + $0x10] sm:$0xf]
  %v20 = vld [vmem:[%s0 + $0x14] sm:$0xf]
  %v21 = vld [vmem:[%s0 + $0x18] sm:$0xf]
  %v22 = vld [vmem:[%s0 + $0x1c] sm:$0xf]
  %v23 = vld [vmem:[%s0 + $0x20] sm:$0xf]
  %v24 = vld [vmem:[%s0 + $0x24] sm:$0xf]
  %v25 = vld [vmem:[%s0 + $0x28] sm:$0xf]
  %v26 = vld [vmem:[%s0 + $0x2c] sm:$0xf]
  %v27 = vld [vmem:[%s0 + $0x30] sm:$0xf]
  %v28 = vld [vmem:[%s0 + $0x34] sm:$0xf]
  %v29 = vld [vmem:[%s0 + $0x38] sm:$0xf]
  %v30 = vld [vmem:[%s0 + $0x3c] sm:$0xf]
  %v31 = vld [vmem:[%s0 + $0x40] sm:$0xf]
  %v32 = vld [vmem:[%s0 + $0x44] sm:$0xf]
  %v33 = vld [vmem:[%s0 + $0x48] sm:$0xf]
  %v34 = vld [vmem:[%s0 + $0x4c] sm:$0xf]
  %v35 = vld [vmem:[%s0 + $0x50] sm:$0xf]
  %v36 = vld [vmem:[%s0 + $0x54] sm:$0xf]
  %v37 = vld [vmem:[%s0 + $0x58] sm:$0xf]
  %v38 = vld [vmem:[%s0 + $0x5c] sm:$0xf]
  %v39 = vld [vmem:[%s0 + $0x60] sm:$0xf]
  %v40 = vld [vmem:[%s0 + $0x64] sm:$0xf]
  %v41 = vld [vmem:[%s0 + $0x68] sm:$0xf]
  %v42 = vld [vmem:[%s0 + $0x6c] sm:$0xf]
  %v43 = vld [vmem:[%s0 + $0x70] sm:$0xf]
  %v44 = vld [vmem:[%s0 + $0x74] sm:$0xf]
  %v45 = vld [vmem:[%s0 + $0x78] sm:$0xf]
  %v46 = vld [vmem:[%s0 + $0x7c] sm:$0xf]
  %v47 = vld [vmem:[%s0 + $0x80] sm:$0xf]
  %v48 = vld [vmem:[%s0 + $0x84] sm:$0xf]
  %v49 = vld [vmem:[%s0 + $0x88] sm:$0xf]
  %v50 = vld [vmem:[%s0 + $0x8c] sm:$0xf]
  %v51 = vld [vmem:[%s0 + $0x90] sm:$0xf]
  %v52 = vld [vmem:[%s0 + $0x94] sm:$0xf]
  %v53 = vld [vmem:[%s0 + $0x98] sm:$0xf]
  %v54 = vld [vmem:[%s0 + $0x9c] sm:$0xf]
  %v55 = vld [vmem:[%s0 + $0xa0] sm:$0xf]
  %v56 = vld [vmem:[%s0 + $0xa4] sm:$0xf]
  %v57 = vld [vmem:[%s0 + $0xa8] sm:$0xf]
  %v58 = vld [vmem:[%s0 + $0xac] sm:$0xf]
  %v59 = vld [vmem:[%s0 + $0xb0] sm:$0xf]
  %v60 = vld [vmem:[%s0 + $0xb4] sm:$0xf]
  %v61 = vld [vmem:[%s0 + $0xb8] sm:$0xf]
  %v62 = vld [vmem:[%s0 + $0xbc] sm:$0xf]
  %v63 = vld [vmem:[%s0 + $0xc0] sm:$0xf]
  %v64 = vld [vmem:[%s0 + $0xc4] sm:$0xf]
  %v65 = vld [vmem:[%s0 + $0xc8] sm:$0xf]
  %v66 = vld [vmem:[%s0 + $0xcc] sm:$0xf]
  %v67 = vld [vmem:[%s0 + $0xd0] sm:$0xf]
  %v68 = vld [vmem:[%s0 + $0xd4] sm:$0xf]
  %v69 = vld [vmem:[%s0 + $0xd8] sm:$0xf]
  %v70 = vld [vmem:[%s0 + $0xdc] sm:$0xf]
  %v71 = vld [vmem:[%s0 + $0xe0] sm:$0xf]
  %v72 = vld [vmem:[%s0 + $0xe4] sm:$0xf]
  %v73 = vld [vmem:[%s0 + $0xe8] sm:$0xf]
  %v74 = vld [vmem:[%s0 + $0xec] sm:$0xf]
  %v75 = vld [vmem:[%s0 + $0xf0] sm:$0xf]
  %v76 = vld [vmem:[%s0 + $0xf4] sm:$0xf]
  %v77 = vld [vmem:[%s0 + $0xf8] sm:$0xf]
  %v78 = vld [vmem:[%s0 + $0xfc] sm:$0xf]
  %v79 = vld [vmem:[%s0 + $0x100] sm:$0xf]
  %v80 = vld [vmem:[%s0 + $0x104] sm:$0xf]
  %v81 = vld [vmem:[%s0 + $0x108] sm:$0xf]
  %v82 = vld [vmem:[%s0 + $0x10c] sm:$0xf]
  %v83 = vld [vmem:[%s0 + $0x110] sm:$0xf]
  %v84 = vld [vmem:[%s0 + $0x114] sm:$0xf]
  %v85 = vld [vmem:[%s0 + $0x118] sm:$0xf]
  %v86 = vld [vmem:[%s0 + $0x11c] sm:$0xf]
  %v87 = vld [vmem:[%s0 + $0x120] sm:$0xf]
  %v88 = vld [vmem:[%s0 + $0x124] sm:$0xf]
  %v89 = vld [vmem:[%s0 + $0x128] sm:$0xf]
  %v90 = vld [vmem:[%s0 + $0x12c] sm:$0xf]
  %v91 = vld [vmem:[%s0 + $0x130] sm:$0xf]
  %v92 = vld [vmem:[%s0 + $0x134] sm:$0xf]
  %v93 = vld [vmem:[%s0 + $0x138] sm:$0xf]
  %v94 = vld [vmem:[%s0 + $0x13c] sm:$0xf]
  %v95 = vld [vmem:[%s0 + $0x140] sm:$0xf]
  %v96 = vld [vmem:[%s0 + $0x144] sm:$0xf]
  %v97 = vld [vmem:[%s0 + $0x148] sm:$0xf]
  %v98 = vld [vmem:[%s0 + $0x14c] sm:$0xf]
  %v99 = vld [vmem:[%s0 + $0x150] sm:$0xf]
  %v100 = vld [vmem:[%s0 + $0x154] sm:$0xf]
  %v101 = vld [vmem:[%s0 + $0x158] sm:$0xf]
  %v102 = vld [vmem:[%s0 + $0x15c] sm:$0xf]
  %v103 = vld [vmem:[%s0 + $0x160] sm:$0xf]
  %v104 = vld [vmem:[%s0 + $0x164] sm:$0xf]
  %v105 = vld [vmem:[%s0 + $0x168] sm:$0xf]
  %v106 = vld [vmem:[%s0 + $0x16c] sm:$0xf]
  %v107 = vld [vmem:[%s0 + $0x170] sm:$0xf]
  %v108 = vld [vmem:[%s0 + $0x174] sm:$0xf]
  %v109 = vld [vmem:[%s0 + $0x178] sm:$0xf]
  %v110 = vld [vmem:[%s0 + $0x17c] sm:$0xf]
  %v111 = vld [vmem:[%s0 + $0x180] sm:$0xf]
  %v112 = vld [vmem:[%s0 + $0x184] sm:$0xf]
  %v113 = vld [vmem:[%s0 + $0x188] sm:$0xf]
  %v114 = vld [vmem:[%s0 + $0x18c] sm:$0xf]
  %v115 = vld [vmem:[%s0 + $0x190] sm:$0xf]
  %v116 = vld [vmem:[%s0 + $0x194] sm:$0xf]
  %v117 = vld [vmem:[%s0 + $0x198] sm:$0xf]
  %v118 = vld [vmem:[%s0 + $0x19c] sm:$0xf]
  %v119 = vld [vmem:[%s0 + $0x1a0] sm:$0xf]
  %v120 = vld [vmem:[%s0 + $0x1a4] sm:$0xf]
  %v121 = vld [vmem:[%s0 + $0x1a8] sm:$0xf]
  %v122 = vld [vmem:[%s0 + $0x1ac] sm:$0xf]
  %v123 = vld [vmem:[%s0 + $0x1b0] sm:$0xf]
  %v124 = vld [vmem:[%s0 + $0x1b4] sm:$0xf]
  %v125 = vld [vmem:[%s0 + $0x1b8] sm:$0xf]
  %v126 = vld [vmem:[%s0 + $0x1bc] sm:$0xf]
  %v127 = vld [vmem:[%s0 + $0x1c0] sm:$0xf]
  %v128 = vld [vmem:[%s0 + $0x1c4] sm:$0xf]
  %v129 = vld [vmem:[%s0 + $0x1c8] sm:$0xf]
  %v130 = vld [vmem:[%s0 + $0x1cc] sm:$0xf]
  %v131 = vld [vmem:[%s0 + $0x1d0] sm:$0xf]
  %v132 = vld [vmem:[%s0 + $0x1d4] sm:$0xf]
  %v133 = vld [vmem:[%s0 + $0x1d8] sm:$0xf]
  %v134 = vld [vmem:[%s0 + $0x1dc] sm:$0xf]
  %v135 = vld [vmem:[%s0 + $0x1e0] sm:$0xf]
  %v136 = vld [vmem:[%s0 + $0x1e4] sm:$0xf]
  %v137 = vld [vmem:[%s0 + $0x1e8] sm:$0xf]
  %v138 = vld [vmem:[%s0 + $0x1ec] sm:$0xf]
  %v139 = vld [vmem:[%s0 + $0x1f0] sm:$0xf]
  %v140 = vld [vmem:[%s0 + $0x1f4] sm:$0xf]
  %v141 = vld [vmem:[%s0 + $0x1f8] sm:$0xf]
  %v142 = vld [vmem:[%s0 + $0x1fc] sm:$0xf]
  %v143 = vld [vmem:[%s0 + $0x200] sm:$0xf]
  %v144 = vld [vmem:[%s0 + $0x204] sm:$0xf]
  %v145 = vld [vmem:[%s0 + $0x208] sm:$0xf]
  %v146 = vld [vmem:[%s0 + $0x20c] sm:$0xf]
  %v147 = vld [vmem:[%s0 + $0x210] sm:$0xf]
  %v148 = vld [vmem:[%s0 + $0x214] sm:$0xf]
  %v149 = vld [vmem:[%s0 + $0x218] sm:$0xf]
  %v150 = vld [vmem:[%s0 + $0x21c] sm:$0xf]
  %v151 = vld [vmem:[%s0 + $0x220] sm:$0xf]
  %v152 = vld [vmem:[%s0 + $0x224] sm:$0xf]
  %v153 = vld [vmem:[%s0 + $0x228] sm:$0xf]
  %v154 = vld [vmem:[%s0 + $0x22c] sm:$0xf]
  %v155 = vld [vmem:[%s0 + $0x230] sm:$0xf]
  %v156 = vld [vmem:[%s0 + $0x234] sm:$0xf]
  %v157 = vld [vmem:[%s0 + $0x238] sm:$0xf]
  %v158 = vld [vmem:[%s0 + $0x23c] sm:$0xf]
  %v159 = vld [vmem:[%s0 + $0x240] sm:$0xf]
  %v160 = vld [vmem:[%s0 + $0x244] sm:$0xf]
  %v161 = vld [vmem:[%s0 + $0x248] sm:$0xf]
  %v162 = vld [vmem:[%s0 + $0x24c] sm:$0xf]
  %v163 = vld [vmem:[%s0 + $0x250] sm:$0xf]
  %v164 = vld [vmem:[%s0 + $0x254] sm:$0xf]
  %v165 = vld [vmem:[%s0 + $0x258] sm:$0xf]
  %v166 = vld [vmem:[%s0 + $0x25c] sm:$0xf]
  %v167 = vld [vmem:[%s0 + $0x260] sm:$0xf]
  %v168 = vld [vmem:[%s0 + $0x264] sm:$0xf]
  %v169 = vld [vmem:[%s0 + $0x268] sm:$0xf]
  %v170 = vld [vmem:[%s0 + $0x26c] sm:$0xf]
  %v171 = vld [vmem:[%s0 + $0x270] sm:$0xf]
  %v172 = vld [vmem:[%s0 + $0x274] sm:$0xf]
  %v173 = vld [vmem:[%s0 + $0x278] sm:$0xf]
  %v174 = vld [vmem:[%s0 + $0x27c] sm:$0xf]
  %v175 = vld [vmem:[%s0 + $0x280] sm:$0xf]
  %v176 = vld [vmem:[%s0 + $0x284] sm:$0xf]
  %v177 = vld [vmem:[%s0 + $0x288] sm:$0xf]
  %v178 = vld [vmem:[%s0 + $0x28c] sm:$0xf]
  %v179 = vld [vmem:[%s0 + $0x290] sm:$0xf]
  %v180 = vld [vmem:[%s0 + $0x294] sm:$0xf]
  %v181 = vld [vmem:[%s0 + $0x298] sm:$0xf]
  %v182 = vld [vmem:[%s0 + $0x29c] sm:$0xf]
  %v183 = vld [vmem:[%s0 + $0x2a0] sm:$0xf]
  %v184 = vld [vmem:[%s0 + $0x2a4] sm:$0xf]
  %v185 = vld [vmem:[%s0 + $0x2a8] sm:$0xf]
  %v186 = vld [vmem:[%s0 + $0x2ac] sm:$0xf]
  %v187 = vld [vmem:[%s0 + $0x2b0] sm:$0xf]
  %v188 = vld [vmem:[%s0 + $0x2b4] sm:$0xf]
  %v189 = vld [vmem:[%s0 + $0x2b8] sm:$0xf]
  %v190 = vld [vmem:[%s0 + $0x2bc] sm:$0xf]
  %v191 = vld [vmem:[%s0 + $0x2c0] sm:$0xf]
  %v192 = vld [vmem:[%s0 + $0x2c4] sm:$0xf]
  %v193 = vld [vmem:[%s0 + $0x2c8] sm:$0xf]
  %v194 = vld [vmem:[%s0 + $0x2cc] sm:$0xf]
  %v195 = vld [vmem:[%s0 + $0x2d0] sm:$0xf]
  %v196 = vld [vmem:[%s0 + $0x2d4] sm:$0xf]
  %v197 = vld [vmem:[%s0 + $0x2d8] sm:$0xf]
  %v198 = vld [vmem:[%s0 + $0x2dc] sm:$0xf]
  %v199 = vld [vmem:[%s0 + $0x2e0] sm:$0xf]
  %v200 = vld [vmem:[%s0 + $0x2e4] sm:$0xf]
  %v201 = vld [vmem:[%s0 + $0x2e8] sm:$0xf]
  %v202 = vld [vmem:[%s0 + $0x2ec] sm:$0xf]
  %v203 = vld [vmem:[%s0 + $0x2f0] sm:$0xf]
  %v204 = vld [vmem:[%s0 + $0x2f4] sm:$0xf]
  %v205 = vld [vmem:[%s0 + $0x2f8] sm:$0xf]
  %v206 = vld [vmem:[%s0 + $0x2fc] sm:$0xf]
  %v207 = vld [vmem:[%s0 + $0x300] sm:$0xf]
  %v208 = vld [vmem:[%s0 + $0x304] sm:$0xf]
  %v209 = vld [vmem:[%s0 + $0x308] sm:$0xf]
  %v210 = vld [vmem:[%s0 + $0x30c] sm:$0xf]
  %v211 = vld [vmem:[%s0 + $0x310] sm:$0xf]
  %v212 = vld [vmem:[%s0 + $0x314] sm:$0xf]
  %v213 = vld [vmem:[%s0 + $0x318] sm:$0xf]
  %v214 = vld [vmem:[%s0 + $0x31c] sm:$0xf]
  %v215 = vld [vmem:[%s0 + $0x320] sm:$0xf]
  %v216 = vld [vmem:[%s0 + $0x324] sm:$0xf]
  %v217 = vld [vmem:[%s0 + $0x328] sm:$0xf]
  %v218 = vld [vmem:[%s0 + $0x32c] sm:$0xf]
  %v219 = vld [vmem:[%s0 + $0x330] sm:$0xf]
  %v220 = vld [vmem:[%s0 + $0x334] sm:$0xf]
  %v221 = vld [vmem:[%s0 + $0x338] sm:$0xf]
  %v222 = vld [vmem:[%s0 + $0x33c] sm:$0xf]
  %v223 = vld [vmem:[%s0 + $0x340] sm:$0xf]
  %v224 = vld [vmem:[%s0 + $0x344] sm:$0xf]
  %v225 = vld [vmem:[%s0 + $0x348] sm:$0xf]
  %v226 = vld [vmem:[%s0 + $0x34c] sm:$0xf]
  %v227 = vld [vmem:[%s0 + $0x350] sm:$0xf]
  %v228 = vld [vmem:[%s0 + $0x354] sm:$0xf]
  %v229 = vld [vmem:[%s0 + $0x358] sm:$0xf]
  %v230 = vld [vmem:[%s0 + $0x35c] sm:$0xf]
  %v231 = vld [vmem:[%s0 + $0x360] sm:$0xf]
  %v232 = vld [vmem:[%s0 + $0x364] sm:$0xf]
  %v233 = vld [vmem:[%s0 + $0x368] sm:$0xf]
  %v234 = vld [vmem:[%s0 + $0x36c] sm:$0xf]
  %v235 = vld [vmem:[%s0 + $0x370] sm:$0xf]
  %v236 = vld [vmem:[%s0 + $0x374] sm:$0xf]
  %v237 = vld [vmem:[%s0 + $0x378] sm:$0xf]
  %v238 = vld [vmem:[%s0 + $0x37c] sm:$0xf]
  %v239 = vld [vmem:[%s0 + $0x380] sm:$0xf]
  %v240 = vld [vmem:[%s0 + $0x384] sm:$0xf]
  %v241 = vld [vmem:[%s0 + $0x388] sm:$0xf]
  %v242 = vld [vmem:[%s0 + $0x38c] sm:$0xf]
  %v243 = vld [vmem:[%s0 + $0x390] sm:$0xf]
  %v244 = vld [vmem:[%s0 + $0x394] sm:$0xf]
  %v245 = vld [vmem:[%s0 + $0x398] sm:$0xf]
  %v246 = vld [vmem:[%s0 + $0x39c] sm:$0xf]
  %v247 = vld [vmem:[%s0 + $0x3a0] sm:$0xf]
  %v248 = vld [vmem:[%s0 + $0x3a4] sm:$0xf]
  %v249 = vld [vmem:[%s0 + $0x3a8] sm:$0xf]
  %v250 = vld [vmem:[%s0 + $0x3ac] sm:$0xf]
  %v251 = vld [vmem:[%s0 + $0x3b0] sm:$0xf]
  %v252 = vld [vmem:[%s0 + $0x3b4] sm:$0xf]
  %v253 = vld [vmem:[%s0 + $0x3b8] sm:$0xf]
  %v254 = vld [vmem:[%s0 + $0x3bc] sm:$0xf]
  %v255 = vld [vmem:[%s0 + $0x3c0] sm:$0xf]
  %v256 = vld [vmem:[%s0 + $0x3c4] sm:$0xf]
  %v257 = vld [vmem:[%s0 + $0x3c8] sm:$0xf]
  %v258 = vld [vmem:[%s0 + $0x3cc] sm:$0xf]
  %v259 = vld [vmem:[%s0 + $0x3d0] sm:$0xf]
  %v260 = vld [vmem:[%s0 + $0x3d4] sm:$0xf]
  %v261 = vld [vmem:[%s0 + $0x3d8] sm:$0xf]
  %v262 = vld [vmem:[%s0 + $0x3dc] sm:$0xf]
  %v263 = vld [vmem:[%s0 + $0x3e0] sm:$0xf]
  %v264 = vld [vmem:[%s0 + $0x3e4] sm:$0xf]
  %v265 = vld [vmem:[%s0 + $0x3e8] sm:$0xf]
  %v266 = vld [vmem:[%s0 + $0x3ec] sm:$0xf]
  %v267 = vld [vmem:[%s0 + $0x3f0] sm:$0xf]
  %v268 = vld [vmem:[%s0 + $0x3f4] sm:$0xf]
  %v269 = vld [vmem:[%s0 + $0x3f8] sm:$0xf]
  %v270 = vld [vmem:[%s0 + $0x3fc] sm:$0xf]
  %v271 = vld [vmem:[%s0 + $0x400] sm:$0xf]
  %v272 = vld [vmem:[%s0 + $0x404] sm:$0xf]
  %v273 = vld [vmem:[%s0 + $0x408] sm:$0xf]
  %v274 = vld [vmem:[%s0 + $0x40c] sm:$0xf]
  %v275 = vld [vmem:[%s0 + $0x410] sm:$0xf]
  %v276 = vld [vmem:[%s0 + $0x414] sm:$0xf]
  %v277 = vld [vmem:[%s0 + $0x418] sm:$0xf]
  %v278 = vld [vmem:[%s0 + $0x41c] sm:$0xf]
  %v279 = vld [vmem:[%s0 + $0x420] sm:$0xf]
  %v280 = vld [vmem:[%s0 + $0x424] sm:$0xf]
  %v281 = vld [vmem:[%s0 + $0x428] sm:$0xf]
  %v282 = vld [vmem:[%s0 + $0x42c] sm:$0xf]
  %v283 = vld [vmem:[%s0 + $0x430] sm:$0xf]
  %v284 = vld [vmem:[%s0 + $0x434] sm:$0xf]
  %v285 = vld [vmem:[%s0 + $0x438] sm:$0xf]
  %v286 = vld [vmem:[%s0 + $0x43c] sm:$0xf]
  %v287 = vld [vmem:[%s0 + $0x440] sm:$0xf]
  %v288 = vld [vmem:[%s0 + $0x444] sm:$0xf]
  %v289 = vld [vmem:[%s0 + $0x448] sm:$0xf]
  %v290 = vld [vmem:[%s0 + $0x44c] sm:$0xf]
  %v291 = vld [vmem:[%s0 + $0x450] sm:$0xf]
  %v292 = vld [vmem:[%s0 + $0x454] sm:$0xf]
  %v293 = vld [vmem:[%s0 + $0x458] sm:$0xf]
  %v294 = vld [vmem:[%s0 + $0x45c] sm:$0xf]
  %v295 = vld [vmem:[%s0 + $0x460] sm:$0xf]
  %v296 = vld [vmem:[%s0 + $0x464] sm:$0xf]
  %v297 = vld [vmem:[%s0 + $0x468] sm:$0xf]
  %v298 = vld [vmem:[%s0 + $0x46c] sm:$0xf]
  %v299 = vld [vmem:[%s0 + $0x470] sm:$0xf]
  %v300 = vld [vmem:[%s0 + $0x474] sm:$0xf]
  %v301 = vld [vmem:[%s0 + $0x478] sm:$0xf]
  %v302 = vld [vmem:[%s0 + $0x47c] sm:$0xf]
  %v303 = vld [vmem:[%s0 + $0x480] sm:$0xf]
  %v304 = vld [vmem:[%s0 + $0x484] sm:$0xf]
  %v305 = vld [vmem:[%s0 + $0x488] sm:$0xf]
  %v306 = vld [vmem:[%s0 + $0x48c] sm:$0xf]
  %v307 = vld [vmem:[%s0 + $0x490] sm:$0xf]
  %v308 = vld [vmem:[%s0 + $0x494] sm:$0xf]
  %v309 = vld [vmem:[%s0 + $0x498] sm:$0xf]
  %v310 = vld [vmem:[%s0 + $0x49c] sm:$0xf]
  %v311 = vld [vmem:[%s0 + $0x4a0] sm:$0xf]
  %v312 = vld [vmem:[%s0 + $0x4a4] sm:$0xf]
  %v313 = vld [vmem:[%s0 + $0x4a8] sm:$0xf]
  %v314 = vld [vmem:[%s0 + $0x4ac] sm:$0xf]
  %v315 = vld [vmem:[%s0 + $0x4b0] sm:$0xf]
  %v316 = vld [vmem:[%s0 + $0x4b4] sm:$0xf]
  %v317 = vld [vmem:[%s0 + $0x4b8] sm:$0xf]
  %v318 = vld [vmem:[%s0 + $0x4bc] sm:$0xf]
  %v319 = vld [vmem:[%s0 + $0x4c0] sm:$0xf]
  %v320 = vld [vmem:[%s0 + $0x4c4] sm:$0xf]
  %v321 = vld [vmem:[%s0 + $0x4c8] sm:$0xf]
  %v322 = vld [vmem:[%s0 + $0x4cc] sm:$0xf]
  %v323 = vld [vmem:[%s0 + $0x4d0] sm:$0xf]
  %v324 = vld [vmem:[%s0 + $0x4d4] sm:$0xf]
  %v325 = vld [vmem:[%s0 + $0x4d8] sm:$0xf]
  %v326 = vld [vmem:[%s0 + $0x4dc] sm:$0xf]
  %v327 = vld [vmem:[%s0 + $0x4e0] sm:$0xf]
  %v328 = vld [vmem:[%s0 + $0x4e4] sm:$0xf]
  %v329 = vld [vmem:[%s0 + $0x4e8] sm:$0xf]
  %v330 = vld [vmem:[%s0 + $0x4ec] sm:$0xf]
  %v331 = vld [vmem:[%s0 + $0x4f0] sm:$0xf]
  %v332 = vld [vmem:[%s0 + $0x4f4] sm:$0xf]
  %v333 = vld [vmem:[%s0 + $0x4f8] sm:$0xf]
  %v334 = vld [vmem:[%s0 + $0x4fc] sm:$0xf]
  %v335 = vld [vmem:[%s0 + $0x500] sm:$0xf]
  %v336 = vld [vmem:[%s0 + $0x504] sm:$0xf]
  %v337 = vld [vmem:[%s0 + $0x508] sm:$0xf]
  %v338 = vld [vmem:[%s0 + $0x50c] sm:$0xf]
  %v339 = vld [vmem:[%s0 + $0x510] sm:$0xf]
  %v340 = vld [vmem:[%s0 + $0x514] sm:$0xf]
  %v341 = vld [vmem:[%s0 + $0x518] sm:$0xf]
  %v342 = vld [vmem:[%s0 + $0x51c] sm:$0xf]
  %v343 = vld [vmem:[%s0 + $0x520] sm:$0xf]
  %v344 = vld [vmem:[%s0 + $0x524] sm:$0xf]
  %v345 = vld [vmem:[%s0 + $0x528] sm:$0xf]
  %v346 = vld [vmem:[%s0 + $0x52c] sm:$0xf]
  %v347 = vld [vmem:[%s0 + $0x530] sm:$0xf]
  %v348 = vld [vmem:[%s0 + $0x534] sm:$0xf]
  %v349 = vld [vmem:[%s0 + $0x538] sm:$0xf]
  %v350 = vld [vmem:[%s0 + $0x53c] sm:$0xf]
  %v351 = vld [vmem:[%s0 + $0x540] sm:$0xf]
  %v352 = vld [vmem:[%s0 + $0x544] sm:$0xf]
  %v353 = vld [vmem:[%s0 + $0x548] sm:$0xf]
  %v354 = vld [vmem:[%s0 + $0x54c] sm:$0xf]
  %v355 = vld [vmem:[%s0 + $0x550] sm:$0xf]
  %v356 = vld [vmem:[%s0 + $0x554] sm:$0xf]
  %v357 = vld [vmem:[%s0 + $0x558] sm:$0xf]
  %v358 = vld [vmem:[%s0 + $0x55c] sm:$0xf]
  %v359 = vld [vmem:[%s0 + $0x560] sm:$0xf]
  %v360 = vld [vmem:[%s0 + $0x564] sm:$0xf]
  %v361 = vld [vmem:[%s0 + $0x568] sm:$0xf]
  %v362 = vld [vmem:[%s0 + $0x56c] sm:$0xf]
  %v363 = vld [vmem:[%s0 + $0x570] sm:$0xf]
  %v364 = vld [vmem:[%s0 + $0x574] sm:$0xf]
  %v365 = vld [vmem:[%s0 + $0x578] sm:$0xf]
  %v366 = vld [vmem:[%s0 + $0x57c] sm:$0xf]
  %v367 = vld [vmem:[%s0 + $0x580] sm:$0xf]
  %v368 = vld [vmem:[%s0 + $0x584] sm:$0xf]
  %v369 = vld [vmem:[%s0 + $0x588] sm:$0xf]
  %v370 = vld [vmem:[%s0 + $0x58c] sm:$0xf]
  %v371 = vld [vmem:[%s0 + $0x590] sm:$0xf]
  %v372 = vld [vmem:[%s0 + $0x594] sm:$0xf]
  %v373 = vld [vmem:[%s0 + $0x598] sm:$0xf]
  %v374 = vld [vmem:[%s0 + $0x59c] sm:$0xf]
  %v375 = vld [vmem:[%s0 + $0x5a0] sm:$0xf]
  %v376 = vld [vmem:[%s0 + $0x5a4] sm:$0xf]
  %v377 = vld [vmem:[%s0 + $0x5a8] sm:$0xf]
  %v378 = vld [vmem:[%s0 + $0x5ac] sm:$0xf]
  %v379 = vld [vmem:[%s0 + $0x5b0] sm:$0xf]
  %v380 = vld [vmem:[%s0 + $0x5b4] sm:$0xf]
  %v381 = vld [vmem:[%s0 + $0x5b8] sm:$0xf]
  %v382 = vld [vmem:[%s0 + $0x5bc] sm:$0xf]
  %v383 = vld [vmem:[%s0 + $0x5c0] sm:$0xf]
  %v384 = vld [vmem:[%s0 + $0x5c4] sm:$0xf]
  %v385 = vld [vmem:[%s0 + $0x5c8] sm:$0xf]
  %v386 = vld [vmem:[%s0 + $0x5cc] sm:$0xf]
  %v387 = vld [vmem:[%s0 + $0x5d0] sm:$0xf]
  %v388 = vld [vmem:[%s0 + $0x5d4] sm:$0xf]
  %v389 = vld [vmem:[%s0 + $0x5d8] sm:$0xf]
  %v390 = vld [vmem:[%s0 + $0x5dc] sm:$0xf]
  %v391 = vld [vmem:[%s0 + $0x5e0] sm:$0xf]
  %v392 = vld [vmem:[%s0 + $0x5e4] sm:$0xf]
  %v393 = vld [vmem:[%s0 + $0x5e8] sm:$0xf]
  %v394 = vld [vmem:[%s0 + $0x5ec] sm:$0xf]
  %v395 = vld [vmem:[%s0 + $0x5f0] sm:$0xf]
  %v396 = vld [vmem:[%s0 + $0x5f4] sm:$0xf]
  %v397 = vld [vmem:[%s0 + $0x5f8] sm:$0xf]
  %v398 = vld [vmem:[%s0 + $0x5fc] sm:$0xf]
  %v399 = vld [vmem:[%s0 + $0x600] sm:$0xf]
  %v400 = vld [vmem:[%s0 + $0x604] sm:$0xf]
  %v401 = vld [vmem:[%s0 + $0x608] sm:$0xf]
  %v402 = vld [vmem:[%s0 + $0x60c] sm:$0xf]
  %v403 = vld [vmem:[%s0 + $0x610] sm:$0xf]
  %v404 = vld [vmem:[%s0 + $0x614] sm:$0xf]
  %v405 = vld [vmem:[%s0 + $0x618] sm:$0xf]
  %v406 = vld [vmem:[%s0 + $0x61c] sm:$0xf]
  %v407 = vld [vmem:[%s1] sm:$0xf]
  %v408 = vld [vmem:[%s1 + $0x4] sm:$0xf]
  %v409 = vld [vmem:[%s1 + $0x8] sm:$0xf]
  %v410 = vld [vmem:[%s1 + $0xc] sm:$0xf]
  %v411 = vld [vmem:[%s1 + $0x10] sm:$0xf]
  %v412 = vld [vmem:[%s1 + $0x14] sm:$0xf]
  %v413 = vld [vmem:[%s1 + $0x18] sm:$0xf]
  %v414 = vld [vmem:[%s1 + $0x1c] sm:$0xf]
  %v415 = vld [vmem:[%s2] sm:$0x1]
  %v417 = vlaneseq
  %v418 = vshrl.u32 %v417, 7
  %v419 = vsub.s32 0, %v418
  %v420 = vrot.slane %v415, %v419
  %v814 = vunpack.c.l.b16 %v15
  %v815 = vunpack.c.l.b16 %v16
  %v816 = vunpack.c.l.b16 %v17
  %v817 = vunpack.c.l.b16 %v18
  %v818 = vunpack.c.l.b16 %v19
  %v819 = vunpack.c.l.b16 %v20
  %v820 = vunpack.c.l.b16 %v21
  %v821 = vunpack.c.l.b16 %v22
  %v822 = vunpack.c.l.b16 %v23
  %v823 = vunpack.c.l.b16 %v24
  %v824 = vunpack.c.l.b16 %v25
  %v825 = vunpack.c.l.b16 %v26
  %v826 = vunpack.c.l.b16 %v27
  %v827 = vunpack.c.l.b16 %v28
  %v828 = vunpack.c.l.b16 %v29
  %v829 = vunpack.c.l.b16 %v30
  %v830 = vunpack.c.l.b16 %v31
  %v831 = vunpack.c.l.b16 %v32
  %v832 = vunpack.c.l.b16 %v33
  %v833 = vunpack.c.l.b16 %v34
  %v834 = vunpack.c.l.b16 %v35
  %v835 = vunpack.c.l.b16 %v36
  %v836 = vunpack.c.l.b16 %v37
  %v837 = vunpack.c.l.b16 %v38
  %v838 = vunpack.c.l.b16 %v39
  %v839 = vunpack.c.l.b16 %v40
  %v840 = vunpack.c.l.b16 %v41
  %v841 = vunpack.c.l.b16 %v42
  %v842 = vunpack.c.l.b16 %v43
  %v843 = vunpack.c.l.b16 %v44
  %v844 = vunpack.c.l.b16 %v45
  %v845 = vunpack.c.l.b16 %v46
  %v846 = vunpack.c.l.b16 %v47
  %v847 = vunpack.c.l.b16 %v48
  %v848 = vunpack.c.l.b16 %v49
  %v849 = vunpack.c.l.b16 %v50
  %v850 = vunpack.c.l.b16 %v51
  %v851 = vunpack.c.l.b16 %v52
  %v852 = vunpack.c.l.b16 %v53
  %v853 = vunpack.c.l.b16 %v54
  %v854 = vunpack.c.l.b16 %v55
  %v855 = vunpack.c.l.b16 %v56
  %v856 = vunpack.c.l.b16 %v57
  %v857 = vunpack.c.l.b16 %v58
  %v858 = vunpack.c.l.b16 %v59
  %v859 = vunpack.c.l.b16 %v60
  %v860 = vunpack.c.l.b16 %v61
  %v861 = vunpack.c.l.b16 %v62
  %v862 = vunpack.c.l.b16 %v63
  %v863 = vunpack.c.l.b16 %v64
  %v864 = vunpack.c.l.b16 %v65
  %v865 = vunpack.c.l.b16 %v66
  %v866 = vunpack.c.l.b16 %v67
  %v867 = vunpack.c.l.b16 %v68
  %v868 = vunpack.c.l.b16 %v69
  %v869 = vunpack.c.l.b16 %v70
  %v870 = vunpack.c.l.b16 %v71
  %v871 = vunpack.c.l.b16 %v72
  %v872 = vunpack.c.l.b16 %v73
  %v873 = vunpack.c.l.b16 %v74
  %v874 = vunpack.c.l.b16 %v75
  %v875 = vunpack.c.l.b16 %v76
  %v876 = vunpack.c.l.b16 %v77
  %v877 = vunpack.c.l.b16 %v78
  %v878 = vunpack.c.l.b16 %v79
  %v879 = vunpack.c.l.b16 %v80
  %v880 = vunpack.c.l.b16 %v81
  %v881 = vunpack.c.l.b16 %v82
  %v882 = vunpack.c.l.b16 %v83
  %v883 = vunpack.c.l.b16 %v84
  %v884 = vunpack.c.l.b16 %v85
  %v885 = vunpack.c.l.b16 %v86
  %v886 = vunpack.c.l.b16 %v87
  %v887 = vunpack.c.l.b16 %v88
  %v888 = vunpack.c.l.b16 %v89
  %v889 = vunpack.c.l.b16 %v90
  %v890 = vunpack.c.l.b16 %v91
  %v891 = vunpack.c.l.b16 %v92
  %v892 = vunpack.c.l.b16 %v93
  %v893 = vunpack.c.l.b16 %v94
  %v894 = vunpack.c.l.b16 %v95
  %v895 = vunpack.c.l.b16 %v96
  %v896 = vunpack.c.l.b16 %v97
  %v897 = vunpack.c.l.b16 %v98
  %v898 = vunpack.c.l.b16 %v99
  %v899 = vunpack.c.l.b16 %v100
  %v900 = vunpack.c.l.b16 %v101
  %v901 = vunpack.c.l.b16 %v102
  %v902 = vunpack.c.l.b16 %v103
  %v903 = vunpack.c.l.b16 %v104
  %v904 = vunpack.c.l.b16 %v105
  %v905 = vunpack.c.l.b16 %v106
  %v906 = vunpack.c.l.b16 %v107
  %v907 = vunpack.c.l.b16 %v108
  %v908 = vunpack.c.l.b16 %v109
  %v909 = vunpack.c.l.b16 %v110
  %v910 = vunpack.c.l.b16 %v111
  %v911 = vunpack.c.l.b16 %v112
  %v912 = vunpack.c.l.b16 %v113
  %v913 = vunpack.c.l.b16 %v114
  %v914 = vunpack.c.l.b16 %v115
  %v915 = vunpack.c.l.b16 %v116
  %v916 = vunpack.c.l.b16 %v117
  %v917 = vunpack.c.l.b16 %v118
  %v918 = vunpack.c.l.b16 %v119
  %v919 = vunpack.c.l.b16 %v120
  %v920 = vunpack.c.l.b16 %v121
  %v921 = vunpack.c.l.b16 %v122
  %v922 = vunpack.c.l.b16 %v123
  %v923 = vunpack.c.l.b16 %v124
  %v924 = vunpack.c.l.b16 %v125
  %v925 = vunpack.c.l.b16 %v126
  %v926 = vunpack.c.l.b16 %v127
  %v927 = vunpack.c.l.b16 %v128
  %v928 = vunpack.c.l.b16 %v129
  %v929 = vunpack.c.l.b16 %v130
  %v930 = vunpack.c.l.b16 %v131
  %v931 = vunpack.c.l.b16 %v132
  %v932 = vunpack.c.l.b16 %v133
  %v933 = vunpack.c.l.b16 %v134
  %v934 = vunpack.c.l.b16 %v135
  %v935 = vunpack.c.l.b16 %v136
  %v936 = vunpack.c.l.b16 %v137
  %v937 = vunpack.c.l.b16 %v138
  %v938 = vunpack.c.l.b16 %v139
  %v939 = vunpack.c.l.b16 %v140
  %v940 = vunpack.c.l.b16 %v141
  %v941 = vunpack.c.l.b16 %v142
  %v942 = vunpack.c.l.b16 %v143
  %v943 = vunpack.c.l.b16 %v144
  %v944 = vunpack.c.l.b16 %v145
  %v945 = vunpack.c.l.b16 %v146
  %v946 = vunpack.c.l.b16 %v147
  %v947 = vunpack.c.l.b16 %v148
  %v948 = vunpack.c.l.b16 %v149
  %v949 = vunpack.c.l.b16 %v150
  %v950 = vunpack.c.l.b16 %v151
  %v951 = vunpack.c.l.b16 %v152
  %v952 = vunpack.c.l.b16 %v153
  %v953 = vunpack.c.l.b16 %v154
  %v954 = vunpack.c.l.b16 %v155
  %v955 = vunpack.c.l.b16 %v156
  %v956 = vunpack.c.l.b16 %v157
  %v957 = vunpack.c.l.b16 %v158
  %v958 = vunpack.c.l.b16 %v159
  %v959 = vunpack.c.l.b16 %v160
  %v960 = vunpack.c.l.b16 %v161
  %v961 = vunpack.c.l.b16 %v162
  %v962 = vunpack.c.l.b16 %v163
  %v963 = vunpack.c.l.b16 %v164
  %v964 = vunpack.c.l.b16 %v165
  %v965 = vunpack.c.l.b16 %v166
  %v966 = vunpack.c.l.b16 %v167
  %v967 = vunpack.c.l.b16 %v168
  %v968 = vunpack.c.l.b16 %v169
  %v969 = vunpack.c.l.b16 %v170
  %v970 = vunpack.c.l.b16 %v171
  %v971 = vunpack.c.l.b16 %v172
  %v972 = vunpack.c.l.b16 %v173
  %v973 = vunpack.c.l.b16 %v174
  %v974 = vunpack.c.l.b16 %v175
  %v975 = vunpack.c.l.b16 %v176
  %v976 = vunpack.c.l.b16 %v177
  %v977 = vunpack.c.l.b16 %v178
  %v978 = vunpack.c.l.b16 %v179
  %v979 = vunpack.c.l.b16 %v180
  %v980 = vunpack.c.l.b16 %v181
  %v981 = vunpack.c.l.b16 %v182
  %v982 = vunpack.c.l.b16 %v183
  %v983 = vunpack.c.l.b16 %v184
  %v984 = vunpack.c.l.b16 %v185
  %v985 = vunpack.c.l.b16 %v186
  %v986 = vunpack.c.l.b16 %v187
  %v987 = vunpack.c.l.b16 %v188
  %v988 = vunpack.c.l.b16 %v189
  %v989 = vunpack.c.l.b16 %v190
  %v990 = vunpack.c.l.b16 %v191
  %v991 = vunpack.c.l.b16 %v192
  %v992 = vunpack.c.l.b16 %v193
  %v993 = vunpack.c.l.b16 %v194
  %v994 = vunpack.c.l.b16 %v195
  %v995 = vunpack.c.l.b16 %v196
  %v996 = vunpack.c.l.b16 %v197
  %v997 = vunpack.c.l.b16 %v198
  %v998 = vunpack.c.l.b16 %v199
  %v999 = vunpack.c.l.b16 %v200
  %v1000 = vunpack.c.l.b16 %v201
  %v1001 = vunpack.c.l.b16 %v202
  %v1002 = vunpack.c.l.b16 %v203
  %v1003 = vunpack.c.l.b16 %v204
  %v1004 = vunpack.c.l.b16 %v205
  %v1005 = vunpack.c.l.b16 %v206
  %v1006 = vunpack.c.l.b16 %v207
  %v1007 = vunpack.c.l.b16 %v208
  %v1008 = vunpack.c.l.b16 %v209
  %v1009 = vunpack.c.l.b16 %v210
  %v1010 = vunpack.c.l.b16 %v211
  %v1011 = vunpack.c.l.b16 %v212
  %v1012 = vunpack.c.l.b16 %v213
  %v1013 = vunpack.c.l.b16 %v214
  %v1014 = vunpack.c.l.b16 %v215
  %v1015 = vunpack.c.l.b16 %v216
  %v1016 = vunpack.c.l.b16 %v217
  %v1017 = vunpack.c.l.b16 %v218
  %v1018 = vunpack.c.l.b16 %v219
  %v1019 = vunpack.c.l.b16 %v220
  %v1020 = vunpack.c.l.b16 %v221
  %v1021 = vunpack.c.l.b16 %v222
  %v1022 = vunpack.c.l.b16 %v223
  %v1023 = vunpack.c.l.b16 %v224
  %v1024 = vunpack.c.l.b16 %v225
  %v1025 = vunpack.c.l.b16 %v226
  %v1026 = vunpack.c.l.b16 %v227
  %v1027 = vunpack.c.l.b16 %v228
  %v1028 = vunpack.c.l.b16 %v229
  %v1029 = vunpack.c.l.b16 %v230
  %v1030 = vunpack.c.l.b16 %v231
  %v1031 = vunpack.c.l.b16 %v232
  %v1032 = vunpack.c.l.b16 %v233
  %v1033 = vunpack.c.l.b16 %v234
  %v1034 = vunpack.c.l.b16 %v235
  %v1035 = vunpack.c.l.b16 %v236
  %v1036 = vunpack.c.l.b16 %v237
  %v1037 = vunpack.c.l.b16 %v238
  %v1038 = vunpack.c.l.b16 %v239
  %v1039 = vunpack.c.l.b16 %v240
  %v1040 = vunpack.c.l.b16 %v241
  %v1041 = vunpack.c.l.b16 %v242
  %v1042 = vunpack.c.l.b16 %v243
  %v1043 = vunpack.c.l.b16 %v244
  %v1044 = vunpack.c.l.b16 %v245
  %v1045 = vunpack.c.l.b16 %v246
  %v1046 = vunpack.c.l.b16 %v247
  %v1047 = vunpack.c.l.b16 %v248
  %v1048 = vunpack.c.l.b16 %v249
  %v1049 = vunpack.c.l.b16 %v250
  %v1050 = vunpack.c.l.b16 %v251
  %v1051 = vunpack.c.l.b16 %v252
  %v1052 = vunpack.c.l.b16 %v253
  %v1053 = vunpack.c.l.b16 %v254
  %v1054 = vunpack.c.l.b16 %v255
  %v1055 = vunpack.c.l.b16 %v256
  %v1056 = vunpack.c.l.b16 %v257
  %v1057 = vunpack.c.l.b16 %v258
  %v1058 = vunpack.c.l.b16 %v259
  %v1059 = vunpack.c.l.b16 %v260
  %v1060 = vunpack.c.l.b16 %v261
  %v1061 = vunpack.c.l.b16 %v262
  %v1062 = vunpack.c.l.b16 %v263
  %v1063 = vunpack.c.l.b16 %v264
  %v1064 = vunpack.c.l.b16 %v265
  %v1065 = vunpack.c.l.b16 %v266
  %v1066 = vunpack.c.l.b16 %v267
  %v1067 = vunpack.c.l.b16 %v268
  %v1068 = vunpack.c.l.b16 %v269
  %v1069 = vunpack.c.l.b16 %v270
  %v1070 = vunpack.c.l.b16 %v271
  %v1071 = vunpack.c.l.b16 %v272
  %v1072 = vunpack.c.l.b16 %v273
  %v1073 = vunpack.c.l.b16 %v274
  %v1074 = vunpack.c.l.b16 %v275
  %v1075 = vunpack.c.l.b16 %v276
  %v1076 = vunpack.c.l.b16 %v277
  %v1077 = vunpack.c.l.b16 %v278
  %v1078 = vunpack.c.l.b16 %v279
  %v1079 = vunpack.c.l.b16 %v280
  %v1080 = vunpack.c.l.b16 %v281
  %v1081 = vunpack.c.l.b16 %v282
  %v1082 = vunpack.c.l.b16 %v283
  %v1083 = vunpack.c.l.b16 %v284
  %v1084 = vunpack.c.l.b16 %v285
  %v1085 = vunpack.c.l.b16 %v286
  %v1086 = vunpack.c.l.b16 %v287
  %v1087 = vunpack.c.l.b16 %v288
  %v1088 = vunpack.c.l.b16 %v289
  %v1089 = vunpack.c.l.b16 %v290
  %v1090 = vunpack.c.l.b16 %v291
  %v1091 = vunpack.c.l.b16 %v292
  %v1092 = vunpack.c.l.b16 %v293
  %v1093 = vunpack.c.l.b16 %v294
  %v1094 = vunpack.c.l.b16 %v295
  %v1095 = vunpack.c.l.b16 %v296
  %v1096 = vunpack.c.l.b16 %v297
  %v1097 = vunpack.c.l.b16 %v298
  %v1098 = vunpack.c.l.b16 %v299
  %v1099 = vunpack.c.l.b16 %v300
  %v1100 = vunpack.c.l.b16 %v301
  %v1101 = vunpack.c.l.b16 %v302
  %v1102 = vunpack.c.l.b16 %v303
  %v1103 = vunpack.c.l.b16 %v304
  %v1104 = vunpack.c.l.b16 %v305
  %v1105 = vunpack.c.l.b16 %v306
  %v1106 = vunpack.c.l.b16 %v307
  %v1107 = vunpack.c.l.b16 %v308
  %v1108 = vunpack.c.l.b16 %v309
  %v1109 = vunpack.c.l.b16 %v310
  %v1110 = vunpack.c.l.b16 %v311
  %v1111 = vunpack.c.l.b16 %v312
  %v1112 = vunpack.c.l.b16 %v313
  %v1113 = vunpack.c.l.b16 %v314
  %v1114 = vunpack.c.l.b16 %v315
  %v1115 = vunpack.c.l.b16 %v316
  %v1116 = vunpack.c.l.b16 %v317
  %v1117 = vunpack.c.l.b16 %v318
  %v1118 = vunpack.c.l.b16 %v319
  %v1119 = vunpack.c.l.b16 %v320
  %v1120 = vunpack.c.l.b16 %v321
  %v1121 = vunpack.c.l.b16 %v322
  %v1122 = vunpack.c.l.b16 %v323
  %v1123 = vunpack.c.l.b16 %v324
  %v1124 = vunpack.c.l.b16 %v325
  %v1125 = vunpack.c.l.b16 %v326
  %v1126 = vunpack.c.l.b16 %v327
  %v1127 = vunpack.c.l.b16 %v328
  %v1128 = vunpack.c.l.b16 %v329
  %v1129 = vunpack.c.l.b16 %v330
  %v1130 = vunpack.c.l.b16 %v331
  %v1131 = vunpack.c.l.b16 %v332
  %v1132 = vunpack.c.l.b16 %v333
  %v1133 = vunpack.c.l.b16 %v334
  %v1134 = vunpack.c.l.b16 %v335
  %v1135 = vunpack.c.l.b16 %v336
  %v1136 = vunpack.c.l.b16 %v337
  %v1137 = vunpack.c.l.b16 %v338
  %v1138 = vunpack.c.l.b16 %v339
  %v1139 = vunpack.c.l.b16 %v340
  %v1140 = vunpack.c.l.b16 %v341
  %v1141 = vunpack.c.l.b16 %v342
  %v1142 = vunpack.c.l.b16 %v343
  %v1143 = vunpack.c.l.b16 %v344
  %v1144 = vunpack.c.l.b16 %v345
  %v1145 = vunpack.c.l.b16 %v346
  %v1146 = vunpack.c.l.b16 %v347
  %v1147 = vunpack.c.l.b16 %v348
  %v1148 = vunpack.c.l.b16 %v349
  %v1149 = vunpack.c.l.b16 %v350
  %v1150 = vunpack.c.l.b16 %v351
  %v1151 = vunpack.c.l.b16 %v352
  %v1152 = vunpack.c.l.b16 %v353
  %v1153 = vunpack.c.l.b16 %v354
  %v1154 = vunpack.c.l.b16 %v355
  %v1155 = vunpack.c.l.b16 %v356
  %v1156 = vunpack.c.l.b16 %v357
  %v1157 = vunpack.c.l.b16 %v358
  %v1158 = vunpack.c.l.b16 %v359
  %v1159 = vunpack.c.l.b16 %v360
  %v1160 = vunpack.c.l.b16 %v361
  %v1161 = vunpack.c.l.b16 %v362
  %v1162 = vunpack.c.l.b16 %v363
  %v1163 = vunpack.c.l.b16 %v364
  %v1164 = vunpack.c.l.b16 %v365
  %v1165 = vunpack.c.l.b16 %v366
  %v1166 = vunpack.c.l.b16 %v367
  %v1167 = vunpack.c.l.b16 %v368
  %v1168 = vunpack.c.l.b16 %v369
  %v1169 = vunpack.c.l.b16 %v370
  %v1170 = vunpack.c.l.b16 %v371
  %v1171 = vunpack.c.l.b16 %v372
  %v1172 = vunpack.c.l.b16 %v373
  %v1173 = vunpack.c.l.b16 %v374
  %v1174 = vunpack.c.l.b16 %v375
  %v1175 = vunpack.c.l.b16 %v376
  %v1176 = vunpack.c.l.b16 %v377
  %v1177 = vunpack.c.l.b16 %v378
  %v1178 = vunpack.c.l.b16 %v379
  %v1179 = vunpack.c.l.b16 %v380
  %v1180 = vunpack.c.l.b16 %v381
  %v1181 = vunpack.c.l.b16 %v382
  %v1182 = vunpack.c.l.b16 %v383
  %v1183 = vunpack.c.l.b16 %v384
  %v1184 = vunpack.c.l.b16 %v385
  %v1185 = vunpack.c.l.b16 %v386
  %v1186 = vunpack.c.l.b16 %v387
  %v1187 = vunpack.c.l.b16 %v388
  %v1188 = vunpack.c.l.b16 %v389
  %v1189 = vunpack.c.l.b16 %v390
  %v1190 = vunpack.c.l.b16 %v391
  %v1191 = vunpack.c.l.b16 %v392
  %v1192 = vunpack.c.l.b16 %v393
  %v1193 = vunpack.c.l.b16 %v394
  %v1194 = vunpack.c.l.b16 %v395
  %v1195 = vunpack.c.l.b16 %v396
  %v1196 = vunpack.c.l.b16 %v397
  %v1197 = vunpack.c.l.b16 %v398
  %v1198 = vunpack.c.l.b16 %v399
  %v1199 = vunpack.c.l.b16 %v400
  %v1200 = vunpack.c.l.b16 %v401
  %v1201 = vunpack.c.l.b16 %v402
  %v1202 = vunpack.c.l.b16 %v403
  %v1203 = vunpack.c.l.b16 %v404
  %v1204 = vunpack.c.l.b16 %v405
  %v1205 = vunpack.c.l.b16 %v406
  %v1206 = vpack.c.b16 %v815, %v814
  %v1207 = vpack.c.b16 %v817, %v816
  %v1208 = vpack.c.b16 %v819, %v818
  %v1209 = vpack.c.b16 %v821, %v820
  %v1210 = vpack.c.b16 %v823, %v822
  %v1211 = vpack.c.b16 %v825, %v824
  %v1212 = vpack.c.b16 %v827, %v826
  %v1213 = vpack.c.b16 %v829, %v828
  %v1214 = vpack.c.b16 %v831, %v830
  %v1215 = vpack.c.b16 %v833, %v832
  %v1216 = vpack.c.b16 %v835, %v834
  %v1217 = vpack.c.b16 %v837, %v836
  %v1218 = vpack.c.b16 %v839, %v838
  %v1219 = vpack.c.b16 %v841, %v840
  %v1220 = vpack.c.b16 %v843, %v842
  %v1221 = vpack.c.b16 %v845, %v844
  %v1222 = vpack.c.b16 %v847, %v846
  %v1223 = vpack.c.b16 %v849, %v848
  %v1224 = vpack.c.b16 %v851, %v850
  %v1225 = vpack.c.b16 %v853, %v852
  %v1226 = vpack.c.b16 %v855, %v854
  %v1227 = vpack.c.b16 %v857, %v856
  %v1228 = vpack.c.b16 %v859, %v858
  %v1229 = vpack.c.b16 %v861, %v860
  %v1230 = vpack.c.b16 %v863, %v862
  %v1231 = vpack.c.b16 %v865, %v864
  %v1232 = vpack.c.b16 %v867, %v866
  %v1233 = vpack.c.b16 %v869, %v868
  %v1234 = vpack.c.b16 %v871, %v870
  %v1235 = vpack.c.b16 %v873, %v872
  %v1236 = vpack.c.b16 %v875, %v874
  %v1237 = vpack.c.b16 %v877, %v876
  %v1238 = vpack.c.b16 %v879, %v878
  %v1239 = vpack.c.b16 %v881, %v880
  %v1240 = vpack.c.b16 %v883, %v882
  %v1241 = vpack.c.b16 %v885, %v884
  %v1242 = vpack.c.b16 %v887, %v886
  %v1243 = vpack.c.b16 %v889, %v888
  %v1244 = vpack.c.b16 %v891, %v890
  %v1245 = vpack.c.b16 %v893, %v892
  %v1246 = vpack.c.b16 %v895, %v894
  %v1247 = vpack.c.b16 %v897, %v896
  %v1248 = vpack.c.b16 %v899, %v898
  %v1249 = vpack.c.b16 %v901, %v900
  %v1250 = vpack.c.b16 %v903, %v902
  %v1251 = vpack.c.b16 %v905, %v904
  %v1252 = vpack.c.b16 %v907, %v906
  %v1253 = vpack.c.b16 %v909, %v908
  %v1254 = vpack.c.b16 %v911, %v910
  %v1255 = vpack.c.b16 %v913, %v912
  %v1256 = vpack.c.b16 %v915, %v914
  %v1257 = vpack.c.b16 %v917, %v916
  %v1258 = vpack.c.b16 %v919, %v918
  %v1259 = vpack.c.b16 %v921, %v920
  %v1260 = vpack.c.b16 %v923, %v922
  %v1261 = vpack.c.b16 %v925, %v924
  %v1262 = vpack.c.b16 %v927, %v926
  %v1263 = vpack.c.b16 %v929, %v928
  %v1264 = vpack.c.b16 %v931, %v930
  %v1265 = vpack.c.b16 %v933, %v932
  %v1266 = vpack.c.b16 %v935, %v934
  %v1267 = vpack.c.b16 %v937, %v936
  %v1268 = vpack.c.b16 %v939, %v938
  %v1269 = vpack.c.b16 %v941, %v940
  %v1270 = vpack.c.b16 %v943, %v942
  %v1271 = vpack.c.b16 %v945, %v944
  %v1272 = vpack.c.b16 %v947, %v946
  %v1273 = vpack.c.b16 %v949, %v948
  %v1274 = vpack.c.b16 %v951, %v950
  %v1275 = vpack.c.b16 %v953, %v952
  %v1276 = vpack.c.b16 %v955, %v954
  %v1277 = vpack.c.b16 %v957, %v956
  %v1278 = vpack.c.b16 %v959, %v958
  %v1279 = vpack.c.b16 %v961, %v960
  %v1280 = vpack.c.b16 %v963, %v962
  %v1281 = vpack.c.b16 %v965, %v964
  %v1282 = vpack.c.b16 %v967, %v966
  %v1283 = vpack.c.b16 %v969, %v968
  %v1284 = vpack.c.b16 %v971, %v970
  %v1285 = vpack.c.b16 %v973, %v972
  %v1286 = vpack.c.b16 %v975, %v974
  %v1287 = vpack.c.b16 %v977, %v976
  %v1288 = vpack.c.b16 %v979, %v978
  %v1289 = vpack.c.b16 %v981, %v980
  %v1290 = vpack.c.b16 %v983, %v982
  %v1291 = vpack.c.b16 %v985, %v984
  %v1292 = vpack.c.b16 %v987, %v986
  %v1293 = vpack.c.b16 %v989, %v988
  %v1294 = vpack.c.b16 %v991, %v990
  %v1295 = vpack.c.b16 %v993, %v992
  %v1296 = vpack.c.b16 %v995, %v994
  %v1297 = vpack.c.b16 %v997, %v996
  %v1298 = vpack.c.b16 %v999, %v998
  %v1299 = vpack.c.b16 %v1001, %v1000
  %v1300 = vpack.c.b16 %v1003, %v1002
  %v1301 = vpack.c.b16 %v1005, %v1004
  %v1302 = vpack.c.b16 %v1007, %v1006
  %v1303 = vpack.c.b16 %v1009, %v1008
  %v1304 = vpack.c.b16 %v1011, %v1010
  %v1305 = vpack.c.b16 %v1013, %v1012
  %v1306 = vpack.c.b16 %v1015, %v1014
  %v1307 = vpack.c.b16 %v1017, %v1016
  %v1308 = vpack.c.b16 %v1019, %v1018
  %v1309 = vpack.c.b16 %v1021, %v1020
  %v1310 = vpack.c.b16 %v1023, %v1022
  %v1311 = vpack.c.b16 %v1025, %v1024
  %v1312 = vpack.c.b16 %v1027, %v1026
  %v1313 = vpack.c.b16 %v1029, %v1028
  %v1314 = vpack.c.b16 %v1031, %v1030
  %v1315 = vpack.c.b16 %v1033, %v1032
  %v1316 = vpack.c.b16 %v1035, %v1034
  %v1317 = vpack.c.b16 %v1037, %v1036
  %v1318 = vpack.c.b16 %v1039, %v1038
  %v1319 = vpack.c.b16 %v1041, %v1040
  %v1320 = vpack.c.b16 %v1043, %v1042
  %v1321 = vpack.c.b16 %v1045, %v1044
  %v1322 = vpack.c.b16 %v1047, %v1046
  %v1323 = vpack.c.b16 %v1049, %v1048
  %v1324 = vpack.c.b16 %v1051, %v1050
  %v1325 = vpack.c.b16 %v1053, %v1052
  %v1326 = vpack.c.b16 %v1055, %v1054
  %v1327 = vpack.c.b16 %v1057, %v1056
  %v1328 = vpack.c.b16 %v1059, %v1058
  %v1329 = vpack.c.b16 %v1061, %v1060
  %v1330 = vpack.c.b16 %v1063, %v1062
  %v1331 = vpack.c.b16 %v1065, %v1064
  %v1332 = vpack.c.b16 %v1067, %v1066
  %v1333 = vpack.c.b16 %v1069, %v1068
  %v1334 = vpack.c.b16 %v1071, %v1070
  %v1335 = vpack.c.b16 %v1073, %v1072
  %v1336 = vpack.c.b16 %v1075, %v1074
  %v1337 = vpack.c.b16 %v1077, %v1076
  %v1338 = vpack.c.b16 %v1079, %v1078
  %v1339 = vpack.c.b16 %v1081, %v1080
  %v1340 = vpack.c.b16 %v1083, %v1082
  %v1341 = vpack.c.b16 %v1085, %v1084
  %v1342 = vpack.c.b16 %v1087, %v1086
  %v1343 = vpack.c.b16 %v1089, %v1088
  %v1344 = vpack.c.b16 %v1091, %v1090
  %v1345 = vpack.c.b16 %v1093, %v1092
  %v1346 = vpack.c.b16 %v1095, %v1094
  %v1347 = vpack.c.b16 %v1097, %v1096
  %v1348 = vpack.c.b16 %v1099, %v1098
  %v1349 = vpack.c.b16 %v1101, %v1100
  %v1350 = vpack.c.b16 %v1103, %v1102
  %v1351 = vpack.c.b16 %v1105, %v1104
  %v1352 = vpack.c.b16 %v1107, %v1106
  %v1353 = vpack.c.b16 %v1109, %v1108
  %v1354 = vpack.c.b16 %v1111, %v1110
  %v1355 = vpack.c.b16 %v1113, %v1112
  %v1356 = vpack.c.b16 %v1115, %v1114
  %v1357 = vpack.c.b16 %v1117, %v1116
  %v1358 = vpack.c.b16 %v1119, %v1118
  %v1359 = vpack.c.b16 %v1121, %v1120
  %v1360 = vpack.c.b16 %v1123, %v1122
  %v1361 = vpack.c.b16 %v1125, %v1124
  %v1362 = vpack.c.b16 %v1127, %v1126
  %v1363 = vpack.c.b16 %v1129, %v1128
  %v1364 = vpack.c.b16 %v1131, %v1130
  %v1365 = vpack.c.b16 %v1133, %v1132
  %v1366 = vpack.c.b16 %v1135, %v1134
  %v1367 = vpack.c.b16 %v1137, %v1136
  %v1368 = vpack.c.b16 %v1139, %v1138
  %v1369 = vpack.c.b16 %v1141, %v1140
  %v1370 = vpack.c.b16 %v1143, %v1142
  %v1371 = vpack.c.b16 %v1145, %v1144
  %v1372 = vpack.c.b16 %v1147, %v1146
  %v1373 = vpack.c.b16 %v1149, %v1148
  %v1374 = vpack.c.b16 %v1151, %v1150
  %v1375 = vpack.c.b16 %v1153, %v1152
  %v1376 = vpack.c.b16 %v1155, %v1154
  %v1377 = vpack.c.b16 %v1157, %v1156
  %v1378 = vpack.c.b16 %v1159, %v1158
  %v1379 = vpack.c.b16 %v1161, %v1160
  %v1380 = vpack.c.b16 %v1163, %v1162
  %v1381 = vpack.c.b16 %v1165, %v1164
  %v1382 = vpack.c.b16 %v1167, %v1166
  %v1383 = vpack.c.b16 %v1169, %v1168
  %v1384 = vpack.c.b16 %v1171, %v1170
  %v1385 = vpack.c.b16 %v1173, %v1172
  %v1386 = vpack.c.b16 %v1175, %v1174
  %v1387 = vpack.c.b16 %v1177, %v1176
  %v1388 = vpack.c.b16 %v1179, %v1178
  %v1389 = vpack.c.b16 %v1181, %v1180
  %v1390 = vpack.c.b16 %v1183, %v1182
  %v1391 = vpack.c.b16 %v1185, %v1184
  %v1392 = vpack.c.b16 %v1187, %v1186
  %v1393 = vpack.c.b16 %v1189, %v1188
  %v1394 = vpack.c.b16 %v1191, %v1190
  %v1395 = vpack.c.b16 %v1193, %v1192
  %v1396 = vpack.c.b16 %v1195, %v1194
  %v1397 = vpack.c.b16 %v1197, %v1196
  %v1398 = vpack.c.b16 %v1199, %v1198
  %v1399 = vpack.c.b16 %v1201, %v1200
  %v1400 = vpack.c.b16 %v1203, %v1202
  %v1401 = vpack.c.b16 %v1205, %v1204
  %v1410 = vunpack.c.l.b16 %v407
  %v1411 = vunpack.c.l.b16 %v408
  %v1412 = vunpack.c.l.b16 %v409
  %v1413 = vunpack.c.l.b16 %v410
  %v1414 = vunpack.c.l.b16 %v411
  %v1415 = vunpack.c.l.b16 %v412
  %v1416 = vunpack.c.l.b16 %v413
  %v1417 = vunpack.c.l.b16 %v414
  %v1418 = vpack.c.b16 %v1411, %v1410
  %v1419 = vpack.c.b16 %v1413, %v1412
  %v1420 = vpack.c.b16 %v1415, %v1414
  %v1421 = vpack.c.b16 %v1417, %v1416
  %vm1426 = vcmask 523264
  %v1428 = vsel %vm1426, %v1206, 0
  %v1431 = vsel %vm1426, %v1207, 0
  %v1434 = vsel %vm1426, %v1208, 0
  %v1437 = vsel %vm1426, %v1209, 0
  %v1440 = vsel %vm1426, %v1210, 0
  %v1443 = vsel %vm1426, %v1211, 0
  %v1446 = vsel %vm1426, %v1212, 0
  %v1449 = vsel %vm1426, %v1213, 0
  %v1452 = vsel %vm1426, %v1214, 0
  %v1455 = vsel %vm1426, %v1215, 0
  %v1458 = vsel %vm1426, %v1216, 0
  %v1461 = vsel %vm1426, %v1217, 0
  %v1464 = vsel %vm1426, %v1218, 0
  %v1467 = vsel %vm1426, %v1219, 0
  %v1470 = vsel %vm1426, %v1220, 0
  %v1473 = vsel %vm1426, %v1221, 0
  %v1476 = vsel %vm1426, %v1222, 0
  %v1479 = vsel %vm1426, %v1223, 0
  %v1482 = vsel %vm1426, %v1224, 0
  %v1485 = vsel %vm1426, %v1225, 0
  %v1488 = vsel %vm1426, %v1226, 0
  %v1491 = vsel %vm1426, %v1227, 0
  %v1494 = vsel %vm1426, %v1228, 0
  %v1497 = vsel %vm1426, %v1229, 0
  %v1500 = vsel %vm1426, %v1230, 0
  %v1503 = vsel %vm1426, %v1231, 0
  %v1506 = vsel %vm1426, %v1232, 0
  %v1509 = vsel %vm1426, %v1233, 0
  %v1512 = vsel %vm1426, %v1234, 0
  %v1515 = vsel %vm1426, %v1235, 0
  %v1518 = vsel %vm1426, %v1236, 0
  %v1521 = vsel %vm1426, %v1237, 0
  %v1524 = vsel %vm1426, %v1238, 0
  %v1527 = vsel %vm1426, %v1239, 0
  %v1530 = vsel %vm1426, %v1240, 0
  %v1533 = vsel %vm1426, %v1241, 0
  %v1536 = vsel %vm1426, %v1242, 0
  %v1539 = vsel %vm1426, %v1243, 0
  %v1542 = vsel %vm1426, %v1244, 0
  %v1545 = vsel %vm1426, %v1245, 0
  %v1548 = vsel %vm1426, %v1246, 0
  %v1551 = vsel %vm1426, %v1247, 0
  %v1554 = vsel %vm1426, %v1248, 0
  %v1557 = vsel %vm1426, %v1249, 0
  %v1560 = vsel %vm1426, %v1250, 0
  %v1563 = vsel %vm1426, %v1251, 0
  %v1566 = vsel %vm1426, %v1252, 0
  %v1569 = vsel %vm1426, %v1253, 0
  %v1572 = vsel %vm1426, %v1254, 0
  %v1575 = vsel %vm1426, %v1255, 0
  %v1578 = vsel %vm1426, %v1256, 0
  %v1581 = vsel %vm1426, %v1257, 0
  %v1584 = vsel %vm1426, %v1258, 0
  %v1587 = vsel %vm1426, %v1259, 0
  %v1590 = vsel %vm1426, %v1260, 0
  %v1593 = vsel %vm1426, %v1261, 0
  %v1596 = vsel %vm1426, %v1262, 0
  %v1599 = vsel %vm1426, %v1263, 0
  %v1602 = vsel %vm1426, %v1264, 0
  %v1605 = vsel %vm1426, %v1265, 0
  %v1608 = vsel %vm1426, %v1266, 0
  %v1611 = vsel %vm1426, %v1267, 0
  %v1614 = vsel %vm1426, %v1268, 0
  %v1617 = vsel %vm1426, %v1269, 0
  %v1620 = vsel %vm1426, %v1270, 0
  %v1623 = vsel %vm1426, %v1271, 0
  %v1626 = vsel %vm1426, %v1272, 0
  %v1629 = vsel %vm1426, %v1273, 0
  %v1632 = vsel %vm1426, %v1274, 0
  %v1635 = vsel %vm1426, %v1275, 0
  %v1638 = vsel %vm1426, %v1276, 0
  %v1641 = vsel %vm1426, %v1277, 0
  %v1644 = vsel %vm1426, %v1278, 0
  %v1647 = vsel %vm1426, %v1279, 0
  %v1650 = vsel %vm1426, %v1280, 0
  %v1653 = vsel %vm1426, %v1281, 0
  %v1656 = vsel %vm1426, %v1282, 0
  %v1659 = vsel %vm1426, %v1283, 0
  %v1662 = vsel %vm1426, %v1284, 0
  %v1665 = vsel %vm1426, %v1285, 0
  %v1668 = vsel %vm1426, %v1286, 0
  %v1671 = vsel %vm1426, %v1287, 0
  %v1674 = vsel %vm1426, %v1288, 0
  %v1677 = vsel %vm1426, %v1289, 0
  %v1680 = vsel %vm1426, %v1290, 0
  %v1683 = vsel %vm1426, %v1291, 0
  %v1686 = vsel %vm1426, %v1292, 0
  %v1689 = vsel %vm1426, %v1293, 0
  %v1692 = vsel %vm1426, %v1294, 0
  %v1695 = vsel %vm1426, %v1295, 0
  %v1698 = vsel %vm1426, %v1296, 0
  %v1701 = vsel %vm1426, %v1297, 0
  %v1704 = vsel %vm1426, %v1298, 0
  %v1707 = vsel %vm1426, %v1299, 0
  %v1710 = vsel %vm1426, %v1300, 0
  %v1713 = vsel %vm1426, %v1301, 0
  %v1716 = vsel %vm1426, %v1302, 0
  %v1719 = vsel %vm1426, %v1303, 0
  %v1722 = vsel %vm1426, %v1304, 0
  %v1725 = vsel %vm1426, %v1305, 0
  %v1728 = vsel %vm1426, %v1306, 0
  %v1731 = vsel %vm1426, %v1307, 0
  %v1734 = vsel %vm1426, %v1308, 0
  %v1737 = vsel %vm1426, %v1309, 0
  %v1740 = vsel %vm1426, %v1310, 0
  %v1743 = vsel %vm1426, %v1311, 0
  %v1746 = vsel %vm1426, %v1312, 0
  %v1749 = vsel %vm1426, %v1313, 0
  %v1752 = vsel %vm1426, %v1314, 0
  %v1755 = vsel %vm1426, %v1315, 0
  %v1758 = vsel %vm1426, %v1316, 0
  %v1761 = vsel %vm1426, %v1317, 0
  %v1764 = vsel %vm1426, %v1318, 0
  %v1767 = vsel %vm1426, %v1319, 0
  %v1770 = vsel %vm1426, %v1320, 0
  %v1773 = vsel %vm1426, %v1321, 0
  %v1776 = vsel %vm1426, %v1322, 0
  %v1779 = vsel %vm1426, %v1323, 0
  %v1782 = vsel %vm1426, %v1324, 0
  %v1785 = vsel %vm1426, %v1325, 0
  %v1788 = vsel %vm1426, %v1326, 0
  %v1791 = vsel %vm1426, %v1327, 0
  %v1794 = vsel %vm1426, %v1328, 0
  %v1797 = vsel %vm1426, %v1329, 0
  %v1800 = vsel %vm1426, %v1330, 0
  %v1803 = vsel %vm1426, %v1331, 0
  %v1806 = vsel %vm1426, %v1332, 0
  %v1809 = vsel %vm1426, %v1333, 0
  %v1812 = vsel %vm1426, %v1334, 0
  %v1815 = vsel %vm1426, %v1335, 0
  %v1818 = vsel %vm1426, %v1336, 0
  %v1821 = vsel %vm1426, %v1337, 0
  %v1824 = vsel %vm1426, %v1338, 0
  %v1827 = vsel %vm1426, %v1339, 0
  %v1830 = vsel %vm1426, %v1340, 0
  %v1833 = vsel %vm1426, %v1341, 0
  %v1836 = vsel %vm1426, %v1342, 0
  %v1839 = vsel %vm1426, %v1343, 0
  %v1842 = vsel %vm1426, %v1344, 0
  %v1845 = vsel %vm1426, %v1345, 0
  %v1848 = vsel %vm1426, %v1346, 0
  %v1851 = vsel %vm1426, %v1347, 0
  %v1854 = vsel %vm1426, %v1348, 0
  %v1857 = vsel %vm1426, %v1349, 0
  %v1860 = vsel %vm1426, %v1350, 0
  %v1863 = vsel %vm1426, %v1351, 0
  %v1866 = vsel %vm1426, %v1352, 0
  %v1869 = vsel %vm1426, %v1353, 0
  %v1872 = vsel %vm1426, %v1354, 0
  %v1875 = vsel %vm1426, %v1355, 0
  %v1878 = vsel %vm1426, %v1356, 0
  %v1881 = vsel %vm1426, %v1357, 0
  %v1884 = vsel %vm1426, %v1358, 0
  %v1887 = vsel %vm1426, %v1359, 0
  %v1890 = vsel %vm1426, %v1360, 0
  %v1893 = vsel %vm1426, %v1361, 0
  %v1896 = vsel %vm1426, %v1362, 0
  %v1899 = vsel %vm1426, %v1363, 0
  %v1902 = vsel %vm1426, %v1364, 0
  %v1905 = vsel %vm1426, %v1365, 0
  %v1908 = vsel %vm1426, %v1366, 0
  %v1911 = vsel %vm1426, %v1367, 0
  %v1914 = vsel %vm1426, %v1368, 0
  %v1917 = vsel %vm1426, %v1369, 0
  %v1920 = vsel %vm1426, %v1370, 0
  %v1923 = vsel %vm1426, %v1371, 0
  %v1926 = vsel %vm1426, %v1372, 0
  %v1929 = vsel %vm1426, %v1373, 0
  %v1932 = vsel %vm1426, %v1374, 0
  %v1935 = vsel %vm1426, %v1375, 0
  %v1938 = vsel %vm1426, %v1376, 0
  %v1941 = vsel %vm1426, %v1377, 0
  %v1944 = vsel %vm1426, %v1378, 0
  %v1947 = vsel %vm1426, %v1379, 0
  %v1950 = vsel %vm1426, %v1380, 0
  %v1953 = vsel %vm1426, %v1381, 0
  %v1956 = vsel %vm1426, %v1382, 0
  %v1959 = vsel %vm1426, %v1383, 0
  %v1962 = vsel %vm1426, %v1384, 0
  %v1965 = vsel %vm1426, %v1385, 0
  %v1968 = vsel %vm1426, %v1386, 0
  %v1971 = vsel %vm1426, %v1387, 0
  %v1974 = vsel %vm1426, %v1388, 0
  %v1977 = vsel %vm1426, %v1389, 0
  %v1980 = vsel %vm1426, %v1390, 0
  %v1983 = vsel %vm1426, %v1391, 0
  %v1986 = vsel %vm1426, %v1392, 0
  %v1989 = vsel %vm1426, %v1393, 0
  %v1992 = vsel %vm1426, %v1394, 0
  %v1995 = vsel %vm1426, %v1395, 0
  %v1998 = vsel %vm1426, %v1396, 0
  %v2001 = vsel %vm1426, %v1397, 0
  %v2004 = vsel %vm1426, %v1398, 0
  %v2007 = vsel %vm1426, %v1399, 0
  %v2010 = vsel %vm1426, %v1400, 0
  %v2013 = vsel %vm1426, %v1401, 0
  %2015 = vmatprep.subr.bf16.mxu0 0
  %2016 = vmatpush1.bf16.msra.mxu0 %v1418
  %2017 = vmatprep.subr.bf16.mxu0 0
  %2018 = vmatpush1.bf16.msra.mxu0 %v1419
  %2019 = vmatprep.subr.bf16.mxu0 0
  %2020 = vmatpush1.bf16.msra.mxu0 %v1420
  %2021 = vmatprep.subr.bf16.mxu0 0
  %2022 = vmatpush1.bf16.msra.mxu0 %v1421
  %2023 = vmatprep.subr.bf16.mxu0 0
  %2024 = vmatpush1.bf16.msra.mxu0 0
  %2025 = vmatprep.subr.bf16.mxu0 0
  %2026 = vmatpush1.bf16.msra.mxu0 0
  %2027 = vmatprep.subr.bf16.mxu0 0
  %2028 = vmatpush1.bf16.msra.mxu0 0
  %2029 = vmatprep.subr.bf16.mxu0 0
  %2030 = vmatpush1.bf16.msra.mxu0 0
  %2031 = vmatprep.subr.bf16.mxu0 0
  %2032 = vmatpush1.bf16.msra.mxu0 0
  %2033 = vmatprep.subr.bf16.mxu0 0
  %2034 = vmatpush1.bf16.msra.mxu0 0
  %2035 = vmatprep.subr.bf16.mxu0 0
  %2036 = vmatpush1.bf16.msra.mxu0 0
  %2037 = vmatprep.subr.bf16.mxu0 0
  %2038 = vmatpush1.bf16.msra.mxu0 0
  %2039 = vmatprep.subr.bf16.mxu0 0
  %2040 = vmatpush1.bf16.msra.mxu0 0
  %2041 = vmatprep.subr.bf16.mxu0 0
  %2042 = vmatpush1.bf16.msra.mxu0 0
  %2043 = vmatprep.subr.bf16.mxu0 0
  %2044 = vmatpush1.bf16.msra.mxu0 0
  %2045 = vmatprep.subr.bf16.mxu0 0
  %2046 = vmatpush1.bf16.msra.mxu0 0
  %2047 = vmatprep.mubr.bf16.mxu0 0
  %2048 = vmatmul.mubr.bf16.gmra.mrb[0].mxu0 %v1428
  %v2049 = vpop.f32.mrb[0].mxu0
  %v2050 = vadd.f32 %v420, %v2049
  %v2051 = vpop.f32.mrb[0].mxu0
  %v2052 = vpop.f32.mrb[0].mxu0
  %v2053 = vadd.f32 %v420, %v2052
  %v2054 = vpop.f32.mrb[0].mxu0
  %2055 = vmatprep.mubr.bf16.mxu0 0
  %2056 = vmatmul.mubr.bf16.gmra.mrb[0].mxu0 %v1431
  %v2057 = vpop.f32.mrb[0].mxu0
  %v2058 = vadd.f32 %v420, %v2057
  %v2059 = vpop.f32.mrb[0].mxu0
  %v2060 = vpop.f32.mrb[0].mxu0
  %v2061 = vadd.f32 %v420, %v2060
  %v2062 = vpop.f32.mrb[0].mxu0
  %2063 = vmatprep.mubr.bf16.mxu0 0
  %2064 = vmatmul.mubr.bf16.gmra.mrb[0].mxu0 %v1434
  %v2065 = vpop.f32.mrb[0].mxu0
  %v2066 = vadd.f32 %v420, %v2065
  %v2067 = vpop.f32.mrb[0].mxu0
  %v2068 = vpop.f32.mrb[0].mxu0
  %v2069 = vadd.f32 %v420, %v2068
  %v2070 = vpop.f32.mrb[0].mxu0
  %2071 = vmatprep.mubr.bf16.mxu0 0
  %2072 = vmatmul.mubr.bf16.gmra.mrb[0].mxu0 %v1437
  %v2073 = vpop.f32.mrb[0].mxu0
  %v2074 = vadd.f32 %v420, %v2073
  %v2075 = vpop.f32.mrb[0].mxu0
  %v2076 = vpop.f32.mrb[0].mxu0
  %v2077 = vadd.f32 %v420, %v2076
  %v2078 = vpop.f32.mrb[0].mxu0
  %2079 = vmatprep.mubr.bf16.mxu0 0
  %2080 = vmatmul.mubr.bf16.gmra.mrb[0].mxu0 %v1440
  %v2081 = vpop.f32.mrb[0].mxu0
  %v2082 = vadd.f32 %v420, %v2081
  %v2083 = vpop.f32.mrb[0].mxu0
  %v2084 = vpop.f32.mrb[0].mxu0
  %v2085 = vadd.f32 %v420, %v2084
  %v2086 = vpop.f32.mrb[0].mxu0
  %2087 = vmatprep.mubr.bf16.mxu0 0
  %2088 = vmatmul.mubr.bf16.gmra.mrb[0].mxu0 %v1443
  %v2089 = vpop.f32.mrb[0].mxu0
  %v2090 = vadd.f32 %v420, %v2089
  %v2091 = vpop.f32.mrb[0].mxu0
  %v2092 = vpop.f32.mrb[0].mxu0
  %v2093 = vadd.f32 %v420, %v2092
  %v2094 = vpop.f32.mrb[0].mxu0
  %2095 = vmatprep.mubr.bf16.mxu0 0
  %2096 = vmatmul.mubr.bf16.gmra.mrb[0].mxu0 %v1446
  %v2097 = vpop.f32.mrb[0].mxu0
  %v2098 = vadd.f32 %v420, %v2097
  %v2099 = vpop.f32.mrb[0].mxu0
  %v2100 = vpop.f32.mrb[0].mxu0
  %v2101 = vadd.f32 %v420, %v2100
  %v2102 = vpop.f32.mrb[0].mxu0
  %2103 = vmatprep.mubr.bf16.mxu0 0
  %2104 = vmatmul.mubr.bf16.gmra.mrb[0].mxu0 %v1449
  %v2105 = vpop.f32.mrb[0].mxu0
  %v2106 = vadd.f32 %v420, %v2105
  %v2107 = vpop.f32.mrb[0].mxu0
  %v2108 = vpop.f32.mrb[0].mxu0
  %v2109 = vadd.f32 %v420, %v2108
  %v2110 = vpop.f32.mrb[0].mxu0
  %2111 = vmatprep.mubr.bf16.mxu0 0
  %2112 = vmatmul.mubr.bf16.gmra.mrb[0].mxu0 %v1452
  %v2113 = vpop.f32.mrb[0].mxu0
  %v2114 = vadd.f32 %v420, %v2113
  %v2115 = vpop.f32.mrb[0].mxu0
  %v2116 = vpop.f32.mrb[0].mxu0
  %v2117 = vadd.f32 %v420, %v2116
  %v2118 = vpop.f32.mrb[0].mxu0
  %2119 = vmatprep.mubr.bf16.mxu0 0
  %2120 = vmatmul.mubr.bf16.gmra.mrb[0].mxu0 %v1455
  %v2121 = vpop.f32.mrb[0].mxu0
  %v2122 = vadd.f32 %v420, %v2121
  %v2123 = vpop.f32.mrb[0].mxu0
  %v2124 = vpop.f32.mrb[0].mxu0
  %v2125 = vadd.f32 %v420, %v2124
  %v2126 = vpop.f32.mrb[0].mxu0
  %2127 = vmatprep.mubr.bf16.mxu0 0
  %2128 = vmatmul.mubr.bf16.gmra.mrb[0].mxu0 %v1458
  %v2129 = vpop.f32.mrb[0].mxu0
  %v2130 = vadd.f32 %v420, %v2129
  %v2131 = vpop.f32.mrb[0].mxu0
  %v2132 = vpop.f32.mrb[0].mxu0
  %v2133 = vadd.f32 %v420, %v2132
  %v2134 = vpop.f32.mrb[0].mxu0
  %2135 = vmatprep.mubr.bf16.mxu0 0
  %2136 = vmatmul.mubr.bf16.gmra.mrb[0].mxu0 %v1461
  %v2137 = vpop.f32.mrb[0].mxu0
  %v2138 = vadd.f32 %v420, %v2137
  %v2139 = vpop.f32.mrb[0].mxu0
  %v2140 = vpop.f32.mrb[0].mxu0
  %v2141 = vadd.f32 %v420, %v2140
  %v2142 = vpop.f32.mrb[0].mxu0
  %2143 = vmatprep.mubr.bf16.mxu0 0
  %2144 = vmatmul.mubr.bf16.gmra.mrb[0].mxu0 %v1464
  %v2145 = vpop.f32.mrb[0].mxu0
  %v2146 = vadd.f32 %v420, %v2145
  %v2147 = vpop.f32.mrb[0].mxu0
  %v2148 = vpop.f32.mrb[0].mxu0
  %v2149 = vadd.f32 %v420, %v2148
  %v2150 = vpop.f32.mrb[0].mxu0
  %2151 = vmatprep.mubr.bf16.mxu0 0
  %2152 = vmatmul.mubr.bf16.gmra.mrb[0].mxu0 %v1467
  %v2153 = vpop.f32.mrb[0].mxu0
  %v2154 = vadd.f32 %v420, %v2153
  %v2155 = vpop.f32.mrb[0].mxu0
  %v2156 = vpop.f32.mrb[0].mxu0
  %v2157 = vadd.f32 %v420, %v2156
  %v2158 = vpop.f32.mrb[0].mxu0
  %2159 = vmatprep.mubr.bf16.mxu0 0
  %2160 = vmatmul.mubr.bf16.gmra.mrb[0].mxu0 %v1470
  %v2161 = vpop.f32.mrb[0].mxu0
  %v2162 = vadd.f32 %v420, %v2161
  %v2163 = vpop.f32.mrb[0].mxu0
  %v2164 = vpop.f32.mrb[0].mxu0
  %v2165 = vadd.f32 %v420, %v2164
  %v2166 = vpop.f32.mrb[0].mxu0
  %2167 = vmatprep.mubr.bf16.mxu0 0
  %2168 = vmatmul.mubr.bf16.gmra.mrb[0].mxu0 %v1473
  %v2169 = vpop.f32.mrb[0].mxu0
  %v2170 = vadd.f32 %v420, %v2169
  %v2171 = vpop.f32.mrb[0].mxu0
  %v2172 = vpop.f32.mrb[0].mxu0
  %v2173 = vadd.f32 %v420, %v2172
  %v2174 = vpop.f32.mrb[0].mxu0
  %2175 = vmatprep.mubr.bf16.mxu0 0
  %2176 = vmatmul.mubr.bf16.gmra.mrb[0].mxu0 %v1476
  %v2177 = vpop.f32.mrb[0].mxu0
  %v2178 = vadd.f32 %v420, %v2177
  %v2179 = vpop.f32.mrb[0].mxu0
  %v2180 = vpop.f32.mrb[0].mxu0
  %v2181 = vadd.f32 %v420, %v2180
  %v2182 = vpop.f32.mrb[0].mxu0
  %2183 = vmatprep.mubr.bf16.mxu0 0
  %2184 = vmatmul.mubr.bf16.gmra.mrb[0].mxu0 %v1479
  %v2185 = vpop.f32.mrb[0].mxu0
  %v2186 = vadd.f32 %v420, %v2185
  %v2187 = vpop.f32.mrb[0].mxu0
  %v2188 = vpop.f32.mrb[0].mxu0
  %v2189 = vadd.f32 %v420, %v2188
  %v2190 = vpop.f32.mrb[0].mxu0
  %2191 = vmatprep.mubr.bf16.mxu0 0
  %2192 = vmatmul.mubr.bf16.gmra.mrb[0].mxu0 %v1482
  %v2193 = vpop.f32.mrb[0].mxu0
  %v2194 = vadd.f32 %v420, %v2193
  %v2195 = vpop.f32.mrb[0].mxu0
  %v2196 = vpop.f32.mrb[0].mxu0
  %v2197 = vadd.f32 %v420, %v2196
  %v2198 = vpop.f32.mrb[0].mxu0
  %2199 = vmatprep.mubr.bf16.mxu0 0
  %2200 = vmatmul.mubr.bf16.gmra.mrb[0].mxu0 %v1485
  %v2201 = vpop.f32.mrb[0].mxu0
  %v2202 = vadd.f32 %v420, %v2201
  %v2203 = vpop.f32.mrb[0].mxu0
  %v2204 = vpop.f32.mrb[0].mxu0
  %v2205 = vadd.f32 %v420, %v2204
  %v2206 = vpop.f32.mrb[0].mxu0
  %2207 = vmatprep.mubr.bf16.mxu0 0
  %2208 = vmatmul.mubr.bf16.gmra.mrb[0].mxu0 %v1488
  %v2209 = vpop.f32.mrb[0].mxu0
  %v2210 = vadd.f32 %v420, %v2209
  %v2211 = vpop.f32.mrb[0].mxu0
  %v2212 = vpop.f32.mrb[0].mxu0
  %v2213 = vadd.f32 %v420, %v2212
  %v2214 = vpop.f32.mrb[0].mxu0
  %2215 = vmatprep.mubr.bf16.mxu0 0
  %2216 = vmatmul.mubr.bf16.gmra.mrb[0].mxu0 %v1491
  %v2217 = vpop.f32.mrb[0].mxu0
  %v2218 = vadd.f32 %v420, %v2217
  %v2219 = vpop.f32.mrb[0].mxu0
  %v2220 = vpop.f32.mrb[0].mxu0
  %v2221 = vadd.f32 %v420, %v2220
  %v2222 = vpop.f32.mrb[0].mxu0
  %2223 = vmatprep.mubr.bf16.mxu0 0
  %2224 = vmatmul.mubr.bf16.gmra.mrb[0].mxu0 %v1494
  %v2225 = vpop.f32.mrb[0].mxu0
  %v2226 = vadd.f32 %v420, %v2225
  %v2227 = vpop.f32.mrb[0].mxu0
  %v2228 = vpop.f32.mrb[0].mxu0
  %v2229 = vadd.f32 %v420, %v2228
  %v2230 = vpop.f32.mrb[0].mxu0
  %2231 = vmatprep.mubr.bf16.mxu0 0
  %2232 = vmatmul.mubr.bf16.gmra.mrb[0].mxu0 %v1497
  %v2233 = vpop.f32.mrb[0].mxu0
  %v2234 = vadd.f32 %v420, %v2233
  %v2235 = vpop.f32.mrb[0].mxu0
  %v2236 = vpop.f32.mrb[0].mxu0
  %v2237 = vadd.f32 %v420, %v2236
  %v2238 = vpop.f32.mrb[0].mxu0
  %2239 = vmatprep.mubr.bf16.mxu0 0
  %2240 = vmatmul.mubr.bf16.gmra.mrb[0].mxu0 %v1500
  %v2241 = vpop.f32.mrb[0].mxu0
  %v2242 = vadd.f32 %v420, %v2241
  %v2243 = vpop.f32.mrb[0].mxu0
  %v2244 = vpop.f32.mrb[0].mxu0
  %v2245 = vadd.f32 %v420, %v2244
  %v2246 = vpop.f32.mrb[0].mxu0
  %2247 = vmatprep.mubr.bf16.mxu0 0
  %2248 = vmatmul.mubr.bf16.gmra.mrb[0].mxu0 %v1503
  %v2249 = vpop.f32.mrb[0].mxu0
  %v2250 = vadd.f32 %v420, %v2249
  %v2251 = vpop.f32.mrb[0].mxu0
  %v2252 = vpop.f32.mrb[0].mxu0
  %v2253 = vadd.f32 %v420, %v2252
  %v2254 = vpop.f32.mrb[0].mxu0
  %2255 = vmatprep.mubr.bf16.mxu0 0
  %2256 = vmatmul.mubr.bf16.gmra.mrb[0].mxu0 %v1506
  %v2257 = vpop.f32.mrb[0].mxu0
  %v2258 = vadd.f32 %v420, %v2257
  %v2259 = vpop.f32.mrb[0].mxu0
  %v2260 = vpop.f32.mrb[0].mxu0
  %v2261 = vadd.f32 %v420, %v2260
  %v2262 = vpop.f32.mrb[0].mxu0
  %2263 = vmatprep.mubr.bf16.mxu0 0
  %2264 = vmatmul.mubr.bf16.gmra.mrb[0].mxu0 %v1509
  %v2265 = vpop.f32.mrb[0].mxu0
  %v2266 = vadd.f32 %v420, %v2265
  %v2267 = vpop.f32.mrb[0].mxu0
  %v2268 = vpop.f32.mrb[0].mxu0
  %v2269 = vadd.f32 %v420, %v2268
  %v2270 = vpop.f32.mrb[0].mxu0
  %2271 = vmatprep.mubr.bf16.mxu0 0
  %2272 = vmatmul.mubr.bf16.gmra.mrb[0].mxu0 %v1512
  %v2273 = vpop.f32.mrb[0].mxu0
  %v2274 = vadd.f32 %v420, %v2273
  %v2275 = vpop.f32.mrb[0].mxu0
  %v2276 = vpop.f32.mrb[0].mxu0
  %v2277 = vadd.f32 %v420, %v2276
  %v2278 = vpop.f32.mrb[0].mxu0
  %2279 = vmatprep.mubr.bf16.mxu0 0
  %2280 = vmatmul.mubr.bf16.gmra.mrb[0].mxu0 %v1515
  %v2281 = vpop.f32.mrb[0].mxu0
  %v2282 = vadd.f32 %v420, %v2281
  %v2283 = vpop.f32.mrb[0].mxu0
  %v2284 = vpop.f32.mrb[0].mxu0
  %v2285 = vadd.f32 %v420, %v2284
  %v2286 = vpop.f32.mrb[0].mxu0
  %2287 = vmatprep.mubr.bf16.mxu0 0
  %2288 = vmatmul.mubr.bf16.gmra.mrb[0].mxu0 %v1518
  %v2289 = vpop.f32.mrb[0].mxu0
  %v2290 = vadd.f32 %v420, %v2289
  %v2291 = vpop.f32.mrb[0].mxu0
  %v2292 = vpop.f32.mrb[0].mxu0
  %v2293 = vadd.f32 %v420, %v2292
  %v2294 = vpop.f32.mrb[0].mxu0
  %2295 = vmatprep.mubr.bf16.mxu0 0
  %2296 = vmatmul.mubr.bf16.gmra.mrb[0].mxu0 %v1521
  %v2297 = vpop.f32.mrb[0].mxu0
  %v2298 = vadd.f32 %v420, %v2297
  %v2299 = vpop.f32.mrb[0].mxu0
  %v2300 = vpop.f32.mrb[0].mxu0
  %v2301 = vadd.f32 %v420, %v2300
  %v2302 = vpop.f32.mrb[0].mxu0
  %2303 = vmatprep.mubr.bf16.mxu0 0
  %2304 = vmatmul.mubr.bf16.gmra.mrb[0].mxu0 %v1524
  %v2305 = vpop.f32.mrb[0].mxu0
  %v2306 = vadd.f32 %v420, %v2305
  %v2307 = vpop.f32.mrb[0].mxu0
  %v2308 = vpop.f32.mrb[0].mxu0
  %v2309 = vadd.f32 %v420, %v2308
  %v2310 = vpop.f32.mrb[0].mxu0
  %2311 = vmatprep.mubr.bf16.mxu0 0
  %2312 = vmatmul.mubr.bf16.gmra.mrb[0].mxu0 %v1527
  %v2313 = vpop.f32.mrb[0].mxu0
  %v2314 = vadd.f32 %v420, %v2313
  %v2315 = vpop.f32.mrb[0].mxu0
  %v2316 = vpop.f32.mrb[0].mxu0
  %v2317 = vadd.f32 %v420, %v2316
  %v2318 = vpop.f32.mrb[0].mxu0
  %2319 = vmatprep.mubr.bf16.mxu0 0
  %2320 = vmatmul.mubr.bf16.gmra.mrb[0].mxu0 %v1530
  %v2321 = vpop.f32.mrb[0].mxu0
  %v2322 = vadd.f32 %v420, %v2321
  %v2323 = vpop.f32.mrb[0].mxu0
  %v2324 = vpop.f32.mrb[0].mxu0
  %v2325 = vadd.f32 %v420, %v2324
  %v2326 = vpop.f32.mrb[0].mxu0
  %2327 = vmatprep.mubr.bf16.mxu0 0
  %2328 = vmatmul.mubr.bf16.gmra.mrb[0].mxu0 %v1533
  %v2329 = vpop.f32.mrb[0].mxu0
  %v2330 = vadd.f32 %v420, %v2329
  %v2331 = vpop.f32.mrb[0].mxu0
  %v2332 = vpop.f32.mrb[0].mxu0
  %v2333 = vadd.f32 %v420, %v2332
  %v2334 = vpop.f32.mrb[0].mxu0
  %2335 = vmatprep.mubr.bf16.mxu0 0
  %2336 = vmatmul.mubr.bf16.gmra.mrb[0].mxu0 %v1536
  %v2337 = vpop.f32.mrb[0].mxu0
  %v2338 = vadd.f32 %v420, %v2337
  %v2339 = vpop.f32.mrb[0].mxu0
  %v2340 = vpop.f32.mrb[0].mxu0
  %v2341 = vadd.f32 %v420, %v2340
  %v2342 = vpop.f32.mrb[0].mxu0
  %2343 = vmatprep.mubr.bf16.mxu0 0
  %2344 = vmatmul.mubr.bf16.gmra.mrb[0].mxu0 %v1539
  %v2345 = vpop.f32.mrb[0].mxu0
  %v2346 = vadd.f32 %v420, %v2345
  %v2347 = vpop.f32.mrb[0].mxu0
  %v2348 = vpop.f32.mrb[0].mxu0
  %v2349 = vadd.f32 %v420, %v2348
  %v2350 = vpop.f32.mrb[0].mxu0
  %2351 = vmatprep.mubr.bf16.mxu0 0
  %2352 = vmatmul.mubr.bf16.gmra.mrb[0].mxu0 %v1542
  %v2353 = vpop.f32.mrb[0].mxu0
  %v2354 = vadd.f32 %v420, %v2353
  %v2355 = vpop.f32.mrb[0].mxu0
  %v2356 = vpop.f32.mrb[0].mxu0
  %v2357 = vadd.f32 %v420, %v2356
  %v2358 = vpop.f32.mrb[0].mxu0
  %2359 = vmatprep.mubr.bf16.mxu0 0
  %2360 = vmatmul.mubr.bf16.gmra.mrb[0].mxu0 %v1545
  %v2361 = vpop.f32.mrb[0].mxu0
  %v2362 = vadd.f32 %v420, %v2361
  %v2363 = vpop.f32.mrb[0].mxu0
  %v2364 = vpop.f32.mrb[0].mxu0
  %v2365 = vadd.f32 %v420, %v2364
  %v2366 = vpop.f32.mrb[0].mxu0
  %2367 = vmatprep.mubr.bf16.mxu0 0
  %2368 = vmatmul.mubr.bf16.gmra.mrb[0].mxu0 %v1548
  %v2369 = vpop.f32.mrb[0].mxu0
  %v2370 = vadd.f32 %v420, %v2369
  %v2371 = vpop.f32.mrb[0].mxu0
  %v2372 = vpop.f32.mrb[0].mxu0
  %v2373 = vadd.f32 %v420, %v2372
  %v2374 = vpop.f32.mrb[0].mxu0
  %2375 = vmatprep.mubr.bf16.mxu0 0
  %2376 = vmatmul.mubr.bf16.gmra.mrb[0].mxu0 %v1551
  %v2377 = vpop.f32.mrb[0].mxu0
  %v2378 = vadd.f32 %v420, %v2377
  %v2379 = vpop.f32.mrb[0].mxu0
  %v2380 = vpop.f32.mrb[0].mxu0
  %v2381 = vadd.f32 %v420, %v2380
  %v2382 = vpop.f32.mrb[0].mxu0
  %2383 = vmatprep.mubr.bf16.mxu0 0
  %2384 = vmatmul.mubr.bf16.gmra.mrb[0].mxu0 %v1554
  %v2385 = vpop.f32.mrb[0].mxu0
  %v2386 = vadd.f32 %v420, %v2385
  %v2387 = vpop.f32.mrb[0].mxu0
  %v2388 = vpop.f32.mrb[0].mxu0
  %v2389 = vadd.f32 %v420, %v2388
  %v2390 = vpop.f32.mrb[0].mxu0
  %2391 = vmatprep.mubr.bf16.mxu0 0
  %2392 = vmatmul.mubr.bf16.gmra.mrb[0].mxu0 %v1557
  %v2393 = vpop.f32.mrb[0].mxu0
  %v2394 = vadd.f32 %v420, %v2393
  %v2395 = vpop.f32.mrb[0].mxu0
  %v2396 = vpop.f32.mrb[0].mxu0
  %v2397 = vadd.f32 %v420, %v2396
  %v2398 = vpop.f32.mrb[0].mxu0
  %2399 = vmatprep.mubr.bf16.mxu0 0
  %2400 = vmatmul.mubr.bf16.gmra.mrb[0].mxu0 %v1560
  %v2401 = vpop.f32.mrb[0].mxu0
  %v2402 = vadd.f32 %v420, %v2401
  %v2403 = vpop.f32.mrb[0].mxu0
  %v2404 = vpop.f32.mrb[0].mxu0
  %v2405 = vadd.f32 %v420, %v2404
  %v2406 = vpop.f32.mrb[0].mxu0
  %2407 = vmatprep.mubr.bf16.mxu0 0
  %2408 = vmatmul.mubr.bf16.gmra.mrb[0].mxu0 %v1563
  %v2409 = vpop.f32.mrb[0].mxu0
  %v2410 = vadd.f32 %v420, %v2409
  %v2411 = vpop.f32.mrb[0].mxu0
  %v2412 = vpop.f32.mrb[0].mxu0
  %v2413 = vadd.f32 %v420, %v2412
  %v2414 = vpop.f32.mrb[0].mxu0
  %2415 = vmatprep.mubr.bf16.mxu0 0
  %2416 = vmatmul.mubr.bf16.gmra.mrb[0].mxu0 %v1566
  %v2417 = vpop.f32.mrb[0].mxu0
  %v2418 = vadd.f32 %v420, %v2417
  %v2419 = vpop.f32.mrb[0].mxu0
  %v2420 = vpop.f32.mrb[0].mxu0
  %v2421 = vadd.f32 %v420, %v2420
  %v2422 = vpop.f32.mrb[0].mxu0
  %2423 = vmatprep.mubr.bf16.mxu0 0
  %2424 = vmatmul.mubr.bf16.gmra.mrb[0].mxu0 %v1569
  %v2425 = vpop.f32.mrb[0].mxu0
  %v2426 = vadd.f32 %v420, %v2425
  %v2427 = vpop.f32.mrb[0].mxu0
  %v2428 = vpop.f32.mrb[0].mxu0
  %v2429 = vadd.f32 %v420, %v2428
  %v2430 = vpop.f32.mrb[0].mxu0
  %2431 = vmatprep.mubr.bf16.mxu0 0
  %2432 = vmatmul.mubr.bf16.gmra.mrb[0].mxu0 %v1572
  %v2433 = vpop.f32.mrb[0].mxu0
  %v2434 = vadd.f32 %v420, %v2433
  %v2435 = vpop.f32.mrb[0].mxu0
  %v2436 = vpop.f32.mrb[0].mxu0
  %v2437 = vadd.f32 %v420, %v2436
  %v2438 = vpop.f32.mrb[0].mxu0
  %2439 = vmatprep.mubr.bf16.mxu0 0
  %2440 = vmatmul.mubr.bf16.gmra.mrb[0].mxu0 %v1575
  %v2441 = vpop.f32.mrb[0].mxu0
  %v2442 = vadd.f32 %v420, %v2441
  %v2443 = vpop.f32.mrb[0].mxu0
  %v2444 = vpop.f32.mrb[0].mxu0
  %v2445 = vadd.f32 %v420, %v2444
  %v2446 = vpop.f32.mrb[0].mxu0
  %2447 = vmatprep.mubr.bf16.mxu0 0
  %2448 = vmatmul.mubr.bf16.gmra.mrb[0].mxu0 %v1578
  %v2449 = vpop.f32.mrb[0].mxu0
  %v2450 = vadd.f32 %v420, %v2449
  %v2451 = vpop.f32.mrb[0].mxu0
  %v2452 = vpop.f32.mrb[0].mxu0
  %v2453 = vadd.f32 %v420, %v2452
  %v2454 = vpop.f32.mrb[0].mxu0
  %2455 = vmatprep.mubr.bf16.mxu0 0
  %2456 = vmatmul.mubr.bf16.gmra.mrb[0].mxu0 %v1581
  %v2457 = vpop.f32.mrb[0].mxu0
  %v2458 = vadd.f32 %v420, %v2457
  %v2459 = vpop.f32.mrb[0].mxu0
  %v2460 = vpop.f32.mrb[0].mxu0
  %v2461 = vadd.f32 %v420, %v2460
  %v2462 = vpop.f32.mrb[0].mxu0
  %2463 = vmatprep.mubr.bf16.mxu0 0
  %2464 = vmatmul.mubr.bf16.gmra.mrb[0].mxu0 %v1584
  %v2465 = vpop.f32.mrb[0].mxu0
  %v2466 = vadd.f32 %v420, %v2465
  %v2467 = vpop.f32.mrb[0].mxu0
  %v2468 = vpop.f32.mrb[0].mxu0
  %v2469 = vadd.f32 %v420, %v2468
  %v2470 = vpop.f32.mrb[0].mxu0
  %2471 = vmatprep.mubr.bf16.mxu0 0
  %2472 = vmatmul.mubr.bf16.gmra.mrb[0].mxu0 %v1587
  %v2473 = vpop.f32.mrb[0].mxu0
  %v2474 = vadd.f32 %v420, %v2473
  %v2475 = vpop.f32.mrb[0].mxu0
  %v2476 = vpop.f32.mrb[0].mxu0
  %v2477 = vadd.f32 %v420, %v2476
  %v2478 = vpop.f32.mrb[0].mxu0
  %2479 = vmatprep.mubr.bf16.mxu0 0
  %2480 = vmatmul.mubr.bf16.gmra.mrb[0].mxu0 %v1590
  %v2481 = vpop.f32.mrb[0].mxu0
  %v2482 = vadd.f32 %v420, %v2481
  %v2483 = vpop.f32.mrb[0].mxu0
  %v2484 = vpop.f32.mrb[0].mxu0
  %v2485 = vadd.f32 %v420, %v2484
  %v2486 = vpop.f32.mrb[0].mxu0
  %2487 = vmatprep.mubr.bf16.mxu0 0
  %2488 = vmatmul.mubr.bf16.gmra.mrb[0].mxu0 %v1593
  %v2489 = vpop.f32.mrb[0].mxu0
  %v2490 = vadd.f32 %v420, %v2489
  %v2491 = vpop.f32.mrb[0].mxu0
  %v2492 = vpop.f32.mrb[0].mxu0
  %v2493 = vadd.f32 %v420, %v2492
  %v2494 = vpop.f32.mrb[0].mxu0
  %2495 = vmatprep.mubr.bf16.mxu0 0
  %2496 = vmatmul.mubr.bf16.gmra.mrb[0].mxu0 %v1596
  %v2497 = vpop.f32.mrb[0].mxu0
  %v2498 = vadd.f32 %v420, %v2497
  %v2499 = vpop.f32.mrb[0].mxu0
  %v2500 = vpop.f32.mrb[0].mxu0
  %v2501 = vadd.f32 %v420, %v2500
  %v2502 = vpop.f32.mrb[0].mxu0
  %2503 = vmatprep.mubr.bf16.mxu0 0
  %2504 = vmatmul.mubr.bf16.gmra.mrb[0].mxu0 %v1599
  %v2505 = vpop.f32.mrb[0].mxu0
  %v2506 = vadd.f32 %v420, %v2505
  %v2507 = vpop.f32.mrb[0].mxu0
  %v2508 = vpop.f32.mrb[0].mxu0
  %v2509 = vadd.f32 %v420, %v2508
  %v2510 = vpop.f32.mrb[0].mxu0
  %2511 = vmatprep.mubr.bf16.mxu0 0
  %2512 = vmatmul.mubr.bf16.gmra.mrb[0].mxu0 %v1602
  %v2513 = vpop.f32.mrb[0].mxu0
  %v2514 = vadd.f32 %v420, %v2513
  %v2515 = vpop.f32.mrb[0].mxu0
  %v2516 = vpop.f32.mrb[0].mxu0
  %v2517 = vadd.f32 %v420, %v2516
  %v2518 = vpop.f32.mrb[0].mxu0
  %2519 = vmatprep.mubr.bf16.mxu0 0
  %2520 = vmatmul.mubr.bf16.gmra.mrb[0].mxu0 %v1605
  %v2521 = vpop.f32.mrb[0].mxu0
  %v2522 = vadd.f32 %v420, %v2521
  %v2523 = vpop.f32.mrb[0].mxu0
  %v2524 = vpop.f32.mrb[0].mxu0
  %v2525 = vadd.f32 %v420, %v2524
  %v2526 = vpop.f32.mrb[0].mxu0
  %2527 = vmatprep.mubr.bf16.mxu0 0
  %2528 = vmatmul.mubr.bf16.gmra.mrb[0].mxu0 %v1608
  %v2529 = vpop.f32.mrb[0].mxu0
  %v2530 = vadd.f32 %v420, %v2529
  %v2531 = vpop.f32.mrb[0].mxu0
  %v2532 = vpop.f32.mrb[0].mxu0
  %v2533 = vadd.f32 %v420, %v2532
  %v2534 = vpop.f32.mrb[0].mxu0
  %2535 = vmatprep.mubr.bf16.mxu0 0
  %2536 = vmatmul.mubr.bf16.gmra.mrb[0].mxu0 %v1611
  %v2537 = vpop.f32.mrb[0].mxu0
  %v2538 = vadd.f32 %v420, %v2537
  %v2539 = vpop.f32.mrb[0].mxu0
  %v2540 = vpop.f32.mrb[0].mxu0
  %v2541 = vadd.f32 %v420, %v2540
  %v2542 = vpop.f32.mrb[0].mxu0
  %2543 = vmatprep.mubr.bf16.mxu0 0
  %2544 = vmatmul.mubr.bf16.gmra.mrb[0].mxu0 %v1614
  %v2545 = vpop.f32.mrb[0].mxu0
  %v2546 = vadd.f32 %v420, %v2545
  %v2547 = vpop.f32.mrb[0].mxu0
  %v2548 = vpop.f32.mrb[0].mxu0
  %v2549 = vadd.f32 %v420, %v2548
  %v2550 = vpop.f32.mrb[0].mxu0
  %2551 = vmatprep.mubr.bf16.mxu0 0
  %2552 = vmatmul.mubr.bf16.gmra.mrb[0].mxu0 %v1617
  %v2553 = vpop.f32.mrb[0].mxu0
  %v2554 = vadd.f32 %v420, %v2553
  %v2555 = vpop.f32.mrb[0].mxu0
  %v2556 = vpop.f32.mrb[0].mxu0
  %v2557 = vadd.f32 %v420, %v2556
  %v2558 = vpop.f32.mrb[0].mxu0
  %2559 = vmatprep.mubr.bf16.mxu0 0
  %2560 = vmatmul.mubr.bf16.gmra.mrb[0].mxu0 %v1620
  %v2561 = vpop.f32.mrb[0].mxu0
  %v2562 = vadd.f32 %v420, %v2561
  %v2563 = vpop.f32.mrb[0].mxu0
  %v2564 = vpop.f32.mrb[0].mxu0
  %v2565 = vadd.f32 %v420, %v2564
  %v2566 = vpop.f32.mrb[0].mxu0
  %2567 = vmatprep.mubr.bf16.mxu0 0
  %2568 = vmatmul.mubr.bf16.gmra.mrb[0].mxu0 %v1623
  %v2569 = vpop.f32.mrb[0].mxu0
  %v2570 = vadd.f32 %v420, %v2569
  %v2571 = vpop.f32.mrb[0].mxu0
  %v2572 = vpop.f32.mrb[0].mxu0
  %v2573 = vadd.f32 %v420, %v2572
  %v2574 = vpop.f32.mrb[0].mxu0
  %2575 = vmatprep.mubr.bf16.mxu0 0
  %2576 = vmatmul.mubr.bf16.gmra.mrb[0].mxu0 %v1626
  %v2577 = vpop.f32.mrb[0].mxu0
  %v2578 = vadd.f32 %v420, %v2577
  %v2579 = vpop.f32.mrb[0].mxu0
  %v2580 = vpop.f32.mrb[0].mxu0
  %v2581 = vadd.f32 %v420, %v2580
  %v2582 = vpop.f32.mrb[0].mxu0
  %2583 = vmatprep.mubr.bf16.mxu0 0
  %2584 = vmatmul.mubr.bf16.gmra.mrb[0].mxu0 %v1629
  %v2585 = vpop.f32.mrb[0].mxu0
  %v2586 = vadd.f32 %v420, %v2585
  %v2587 = vpop.f32.mrb[0].mxu0
  %v2588 = vpop.f32.mrb[0].mxu0
  %v2589 = vadd.f32 %v420, %v2588
  %v2590 = vpop.f32.mrb[0].mxu0
  %2591 = vmatprep.mubr.bf16.mxu0 0
  %2592 = vmatmul.mubr.bf16.gmra.mrb[0].mxu0 %v1632
  %v2593 = vpop.f32.mrb[0].mxu0
  %v2594 = vadd.f32 %v420, %v2593
  %v2595 = vpop.f32.mrb[0].mxu0
  %v2596 = vpop.f32.mrb[0].mxu0
  %v2597 = vadd.f32 %v420, %v2596
  %v2598 = vpop.f32.mrb[0].mxu0
  %2599 = vmatprep.mubr.bf16.mxu0 0
  %2600 = vmatmul.mubr.bf16.gmra.mrb[0].mxu0 %v1635
  %v2601 = vpop.f32.mrb[0].mxu0
  %v2602 = vadd.f32 %v420, %v2601
  %v2603 = vpop.f32.mrb[0].mxu0
  %v2604 = vpop.f32.mrb[0].mxu0
  %v2605 = vadd.f32 %v420, %v2604
  %v2606 = vpop.f32.mrb[0].mxu0
  %2607 = vmatprep.mubr.bf16.mxu0 0
  %2608 = vmatmul.mubr.bf16.gmra.mrb[0].mxu0 %v1638
  %v2609 = vpop.f32.mrb[0].mxu0
  %v2610 = vadd.f32 %v420, %v2609
  %v2611 = vpop.f32.mrb[0].mxu0
  %v2612 = vpop.f32.mrb[0].mxu0
  %v2613 = vadd.f32 %v420, %v2612
  %v2614 = vpop.f32.mrb[0].mxu0
  %2615 = vmatprep.mubr.bf16.mxu0 0
  %2616 = vmatmul.mubr.bf16.gmra.mrb[0].mxu0 %v1641
  %v2617 = vpop.f32.mrb[0].mxu0
  %v2618 = vadd.f32 %v420, %v2617
  %v2619 = vpop.f32.mrb[0].mxu0
  %v2620 = vpop.f32.mrb[0].mxu0
  %v2621 = vadd.f32 %v420, %v2620
  %v2622 = vpop.f32.mrb[0].mxu0
  %2623 = vmatprep.mubr.bf16.mxu0 0
  %2624 = vmatmul.mubr.bf16.gmra.mrb[0].mxu0 %v1644
  %v2625 = vpop.f32.mrb[0].mxu0
  %v2626 = vadd.f32 %v420, %v2625
  %v2627 = vpop.f32.mrb[0].mxu0
  %v2628 = vpop.f32.mrb[0].mxu0
  %v2629 = vadd.f32 %v420, %v2628
  %v2630 = vpop.f32.mrb[0].mxu0
  %2631 = vmatprep.mubr.bf16.mxu0 0
  %2632 = vmatmul.mubr.bf16.gmra.mrb[0].mxu0 %v1647
  %v2633 = vpop.f32.mrb[0].mxu0
  %v2634 = vadd.f32 %v420, %v2633
  %v2635 = vpop.f32.mrb[0].mxu0
  %v2636 = vpop.f32.mrb[0].mxu0
  %v2637 = vadd.f32 %v420, %v2636
  %v2638 = vpop.f32.mrb[0].mxu0
  %2639 = vmatprep.mubr.bf16.mxu0 0
  %2640 = vmatmul.mubr.bf16.gmra.mrb[0].mxu0 %v1650
  %v2641 = vpop.f32.mrb[0].mxu0
  %v2642 = vadd.f32 %v420, %v2641
  %v2643 = vpop.f32.mrb[0].mxu0
  %v2644 = vpop.f32.mrb[0].mxu0
  %v2645 = vadd.f32 %v420, %v2644
  %v2646 = vpop.f32.mrb[0].mxu0
  %2647 = vmatprep.mubr.bf16.mxu0 0
  %2648 = vmatmul.mubr.bf16.gmra.mrb[0].mxu0 %v1653
  %v2649 = vpop.f32.mrb[0].mxu0
  %v2650 = vadd.f32 %v420, %v2649
  %v2651 = vpop.f32.mrb[0].mxu0
  %v2652 = vpop.f32.mrb[0].mxu0
  %v2653 = vadd.f32 %v420, %v2652
  %v2654 = vpop.f32.mrb[0].mxu0
  %2655 = vmatprep.mubr.bf16.mxu0 0
  %2656 = vmatmul.mubr.bf16.gmra.mrb[0].mxu0 %v1656
  %v2657 = vpop.f32.mrb[0].mxu0
  %v2658 = vadd.f32 %v420, %v2657
  %v2659 = vpop.f32.mrb[0].mxu0
  %v2660 = vpop.f32.mrb[0].mxu0
  %v2661 = vadd.f32 %v420, %v2660
  %v2662 = vpop.f32.mrb[0].mxu0
  %2663 = vmatprep.mubr.bf16.mxu0 0
  %2664 = vmatmul.mubr.bf16.gmra.mrb[0].mxu0 %v1659
  %v2665 = vpop.f32.mrb[0].mxu0
  %v2666 = vadd.f32 %v420, %v2665
  %v2667 = vpop.f32.mrb[0].mxu0
  %v2668 = vpop.f32.mrb[0].mxu0
  %v2669 = vadd.f32 %v420, %v2668
  %v2670 = vpop.f32.mrb[0].mxu0
  %2671 = vmatprep.mubr.bf16.mxu0 0
  %2672 = vmatmul.mubr.bf16.gmra.mrb[0].mxu0 %v1662
  %v2673 = vpop.f32.mrb[0].mxu0
  %v2674 = vadd.f32 %v420, %v2673
  %v2675 = vpop.f32.mrb[0].mxu0
  %v2676 = vpop.f32.mrb[0].mxu0
  %v2677 = vadd.f32 %v420, %v2676
  %v2678 = vpop.f32.mrb[0].mxu0
  %2679 = vmatprep.mubr.bf16.mxu0 0
  %2680 = vmatmul.mubr.bf16.gmra.mrb[0].mxu0 %v1665
  %v2681 = vpop.f32.mrb[0].mxu0
  %v2682 = vadd.f32 %v420, %v2681
  %v2683 = vpop.f32.mrb[0].mxu0
  %v2684 = vpop.f32.mrb[0].mxu0
  %v2685 = vadd.f32 %v420, %v2684
  %v2686 = vpop.f32.mrb[0].mxu0
  %2687 = vmatprep.mubr.bf16.mxu0 0
  %2688 = vmatmul.mubr.bf16.gmra.mrb[0].mxu0 %v1668
  %v2689 = vpop.f32.mrb[0].mxu0
  %v2690 = vadd.f32 %v420, %v2689
  %v2691 = vpop.f32.mrb[0].mxu0
  %v2692 = vpop.f32.mrb[0].mxu0
  %v2693 = vadd.f32 %v420, %v2692
  %v2694 = vpop.f32.mrb[0].mxu0
  %2695 = vmatprep.mubr.bf16.mxu0 0
  %2696 = vmatmul.mubr.bf16.gmra.mrb[0].mxu0 %v1671
  %v2697 = vpop.f32.mrb[0].mxu0
  %v2698 = vadd.f32 %v420, %v2697
  %v2699 = vpop.f32.mrb[0].mxu0
  %v2700 = vpop.f32.mrb[0].mxu0
  %v2701 = vadd.f32 %v420, %v2700
  %v2702 = vpop.f32.mrb[0].mxu0
  %2703 = vmatprep.mubr.bf16.mxu0 0
  %2704 = vmatmul.mubr.bf16.gmra.mrb[0].mxu0 %v1674
  %v2705 = vpop.f32.mrb[0].mxu0
  %v2706 = vadd.f32 %v420, %v2705
  %v2707 = vpop.f32.mrb[0].mxu0
  %v2708 = vpop.f32.mrb[0].mxu0
  %v2709 = vadd.f32 %v420, %v2708
  %v2710 = vpop.f32.mrb[0].mxu0
  %2711 = vmatprep.mubr.bf16.mxu0 0
  %2712 = vmatmul.mubr.bf16.gmra.mrb[0].mxu0 %v1677
  %v2713 = vpop.f32.mrb[0].mxu0
  %v2714 = vadd.f32 %v420, %v2713
  %v2715 = vpop.f32.mrb[0].mxu0
  %v2716 = vpop.f32.mrb[0].mxu0
  %v2717 = vadd.f32 %v420, %v2716
  %v2718 = vpop.f32.mrb[0].mxu0
  %2719 = vmatprep.mubr.bf16.mxu0 0
  %2720 = vmatmul.mubr.bf16.gmra.mrb[0].mxu0 %v1680
  %v2721 = vpop.f32.mrb[0].mxu0
  %v2722 = vadd.f32 %v420, %v2721
  %v2723 = vpop.f32.mrb[0].mxu0
  %v2724 = vpop.f32.mrb[0].mxu0
  %v2725 = vadd.f32 %v420, %v2724
  %v2726 = vpop.f32.mrb[0].mxu0
  %2727 = vmatprep.mubr.bf16.mxu0 0
  %2728 = vmatmul.mubr.bf16.gmra.mrb[0].mxu0 %v1683
  %v2729 = vpop.f32.mrb[0].mxu0
  %v2730 = vadd.f32 %v420, %v2729
  %v2731 = vpop.f32.mrb[0].mxu0
  %v2732 = vpop.f32.mrb[0].mxu0
  %v2733 = vadd.f32 %v420, %v2732
  %v2734 = vpop.f32.mrb[0].mxu0
  %2735 = vmatprep.mubr.bf16.mxu0 0
  %2736 = vmatmul.mubr.bf16.gmra.mrb[0].mxu0 %v1686
  %v2737 = vpop.f32.mrb[0].mxu0
  %v2738 = vadd.f32 %v420, %v2737
  %v2739 = vpop.f32.mrb[0].mxu0
  %v2740 = vpop.f32.mrb[0].mxu0
  %v2741 = vadd.f32 %v420, %v2740
  %v2742 = vpop.f32.mrb[0].mxu0
  %2743 = vmatprep.mubr.bf16.mxu0 0
  %2744 = vmatmul.mubr.bf16.gmra.mrb[0].mxu0 %v1689
  %v2745 = vpop.f32.mrb[0].mxu0
  %v2746 = vadd.f32 %v420, %v2745
  %v2747 = vpop.f32.mrb[0].mxu0
  %v2748 = vpop.f32.mrb[0].mxu0
  %v2749 = vadd.f32 %v420, %v2748
  %v2750 = vpop.f32.mrb[0].mxu0
  %2751 = vmatprep.mubr.bf16.mxu0 0
  %2752 = vmatmul.mubr.bf16.gmra.mrb[0].mxu0 %v1692
  %v2753 = vpop.f32.mrb[0].mxu0
  %v2754 = vadd.f32 %v420, %v2753
  %v2755 = vpop.f32.mrb[0].mxu0
  %v2756 = vpop.f32.mrb[0].mxu0
  %v2757 = vadd.f32 %v420, %v2756
  %v2758 = vpop.f32.mrb[0].mxu0
  %2759 = vmatprep.mubr.bf16.mxu0 0
  %2760 = vmatmul.mubr.bf16.gmra.mrb[0].mxu0 %v1695
  %v2761 = vpop.f32.mrb[0].mxu0
  %v2762 = vadd.f32 %v420, %v2761
  %v2763 = vpop.f32.mrb[0].mxu0
  %v2764 = vpop.f32.mrb[0].mxu0
  %v2765 = vadd.f32 %v420, %v2764
  %v2766 = vpop.f32.mrb[0].mxu0
  %2767 = vmatprep.mubr.bf16.mxu0 0
  %2768 = vmatmul.mubr.bf16.gmra.mrb[0].mxu0 %v1698
  %v2769 = vpop.f32.mrb[0].mxu0
  %v2770 = vadd.f32 %v420, %v2769
  %v2771 = vpop.f32.mrb[0].mxu0
  %v2772 = vpop.f32.mrb[0].mxu0
  %v2773 = vadd.f32 %v420, %v2772
  %v2774 = vpop.f32.mrb[0].mxu0
  %2775 = vmatprep.mubr.bf16.mxu0 0
  %2776 = vmatmul.mubr.bf16.gmra.mrb[0].mxu0 %v1701
  %v2777 = vpop.f32.mrb[0].mxu0
  %v2778 = vadd.f32 %v420, %v2777
  %v2779 = vpop.f32.mrb[0].mxu0
  %v2780 = vpop.f32.mrb[0].mxu0
  %v2781 = vadd.f32 %v420, %v2780
  %v2782 = vpop.f32.mrb[0].mxu0
  %2783 = vmatprep.mubr.bf16.mxu0 0
  %2784 = vmatmul.mubr.bf16.gmra.mrb[0].mxu0 %v1704
  %v2785 = vpop.f32.mrb[0].mxu0
  %v2786 = vadd.f32 %v420, %v2785
  %v2787 = vpop.f32.mrb[0].mxu0
  %v2788 = vpop.f32.mrb[0].mxu0
  %v2789 = vadd.f32 %v420, %v2788
  %v2790 = vpop.f32.mrb[0].mxu0
  %2791 = vmatprep.mubr.bf16.mxu0 0
  %2792 = vmatmul.mubr.bf16.gmra.mrb[0].mxu0 %v1707
  %v2793 = vpop.f32.mrb[0].mxu0
  %v2794 = vadd.f32 %v420, %v2793
  %v2795 = vpop.f32.mrb[0].mxu0
  %v2796 = vpop.f32.mrb[0].mxu0
  %v2797 = vadd.f32 %v420, %v2796
  %v2798 = vpop.f32.mrb[0].mxu0
  %2799 = vmatprep.mubr.bf16.mxu0 0
  %2800 = vmatmul.mubr.bf16.gmra.mrb[0].mxu0 %v1710
  %v2801 = vpop.f32.mrb[0].mxu0
  %v2802 = vadd.f32 %v420, %v2801
  %v2803 = vpop.f32.mrb[0].mxu0
  %v2804 = vpop.f32.mrb[0].mxu0
  %v2805 = vadd.f32 %v420, %v2804
  %v2806 = vpop.f32.mrb[0].mxu0
  %2807 = vmatprep.mubr.bf16.mxu0 0
  %2808 = vmatmul.mubr.bf16.gmra.mrb[0].mxu0 %v1713
  %v2809 = vpop.f32.mrb[0].mxu0
  %v2810 = vadd.f32 %v420, %v2809
  %v2811 = vpop.f32.mrb[0].mxu0
  %v2812 = vpop.f32.mrb[0].mxu0
  %v2813 = vadd.f32 %v420, %v2812
  %v2814 = vpop.f32.mrb[0].mxu0
  %2815 = vmatprep.mubr.bf16.mxu0 0
  %2816 = vmatmul.mubr.bf16.gmra.mrb[0].mxu0 %v1716
  %v2817 = vpop.f32.mrb[0].mxu0
  %v2818 = vadd.f32 %v420, %v2817
  %v2819 = vpop.f32.mrb[0].mxu0
  %v2820 = vpop.f32.mrb[0].mxu0
  %v2821 = vadd.f32 %v420, %v2820
  %v2822 = vpop.f32.mrb[0].mxu0
  %2823 = vmatprep.mubr.bf16.mxu0 0
  %2824 = vmatmul.mubr.bf16.gmra.mrb[0].mxu0 %v1719
  %v2825 = vpop.f32.mrb[0].mxu0
  %v2826 = vadd.f32 %v420, %v2825
  %v2827 = vpop.f32.mrb[0].mxu0
  %v2828 = vpop.f32.mrb[0].mxu0
  %v2829 = vadd.f32 %v420, %v2828
  %v2830 = vpop.f32.mrb[0].mxu0
  %2831 = vmatprep.mubr.bf16.mxu0 0
  %2832 = vmatmul.mubr.bf16.gmra.mrb[0].mxu0 %v1722
  %v2833 = vpop.f32.mrb[0].mxu0
  %v2834 = vadd.f32 %v420, %v2833
  %v2835 = vpop.f32.mrb[0].mxu0
  %v2836 = vpop.f32.mrb[0].mxu0
  %v2837 = vadd.f32 %v420, %v2836
  %v2838 = vpop.f32.mrb[0].mxu0
  %2839 = vmatprep.mubr.bf16.mxu0 0
  %2840 = vmatmul.mubr.bf16.gmra.mrb[0].mxu0 %v1725
  %v2841 = vpop.f32.mrb[0].mxu0
  %v2842 = vadd.f32 %v420, %v2841
  %v2843 = vpop.f32.mrb[0].mxu0
  %v2844 = vpop.f32.mrb[0].mxu0
  %v2845 = vadd.f32 %v420, %v2844
  %v2846 = vpop.f32.mrb[0].mxu0
  %2847 = vmatprep.mubr.bf16.mxu0 0
  %2848 = vmatmul.mubr.bf16.gmra.mrb[0].mxu0 %v1728
  %v2849 = vpop.f32.mrb[0].mxu0
  %v2850 = vadd.f32 %v420, %v2849
  %v2851 = vpop.f32.mrb[0].mxu0
  %v2852 = vpop.f32.mrb[0].mxu0
  %v2853 = vadd.f32 %v420, %v2852
  %v2854 = vpop.f32.mrb[0].mxu0
  %2855 = vmatprep.mubr.bf16.mxu0 0
  %2856 = vmatmul.mubr.bf16.gmra.mrb[0].mxu0 %v1731
  %v2857 = vpop.f32.mrb[0].mxu0
  %v2858 = vadd.f32 %v420, %v2857
  %v2859 = vpop.f32.mrb[0].mxu0
  %v2860 = vpop.f32.mrb[0].mxu0
  %v2861 = vadd.f32 %v420, %v2860
  %v2862 = vpop.f32.mrb[0].mxu0
  %2863 = vmatprep.mubr.bf16.mxu0 0
  %2864 = vmatmul.mubr.bf16.gmra.mrb[0].mxu0 %v1734
  %v2865 = vpop.f32.mrb[0].mxu0
  %v2866 = vadd.f32 %v420, %v2865
  %v2867 = vpop.f32.mrb[0].mxu0
  %v2868 = vpop.f32.mrb[0].mxu0
  %v2869 = vadd.f32 %v420, %v2868
  %v2870 = vpop.f32.mrb[0].mxu0
  %2871 = vmatprep.mubr.bf16.mxu0 0
  %2872 = vmatmul.mubr.bf16.gmra.mrb[0].mxu0 %v1737
  %v2873 = vpop.f32.mrb[0].mxu0
  %v2874 = vadd.f32 %v420, %v2873
  %v2875 = vpop.f32.mrb[0].mxu0
  %v2876 = vpop.f32.mrb[0].mxu0
  %v2877 = vadd.f32 %v420, %v2876
  %v2878 = vpop.f32.mrb[0].mxu0
  %2879 = vmatprep.mubr.bf16.mxu0 0
  %2880 = vmatmul.mubr.bf16.gmra.mrb[0].mxu0 %v1740
  %v2881 = vpop.f32.mrb[0].mxu0
  %v2882 = vadd.f32 %v420, %v2881
  %v2883 = vpop.f32.mrb[0].mxu0
  %v2884 = vpop.f32.mrb[0].mxu0
  %v2885 = vadd.f32 %v420, %v2884
  %v2886 = vpop.f32.mrb[0].mxu0
  %2887 = vmatprep.mubr.bf16.mxu0 0
  %2888 = vmatmul.mubr.bf16.gmra.mrb[0].mxu0 %v1743
  %v2889 = vpop.f32.mrb[0].mxu0
  %v2890 = vadd.f32 %v420, %v2889
  %v2891 = vpop.f32.mrb[0].mxu0
  %v2892 = vpop.f32.mrb[0].mxu0
  %v2893 = vadd.f32 %v420, %v2892
  %v2894 = vpop.f32.mrb[0].mxu0
  %2895 = vmatprep.mubr.bf16.mxu0 0
  %2896 = vmatmul.mubr.bf16.gmra.mrb[0].mxu0 %v1746
  %v2897 = vpop.f32.mrb[0].mxu0
  %v2898 = vadd.f32 %v420, %v2897
  %v2899 = vpop.f32.mrb[0].mxu0
  %v2900 = vpop.f32.mrb[0].mxu0
  %v2901 = vadd.f32 %v420, %v2900
  %v2902 = vpop.f32.mrb[0].mxu0
  %2903 = vmatprep.mubr.bf16.mxu0 0
  %2904 = vmatmul.mubr.bf16.gmra.mrb[0].mxu0 %v1749
  %v2905 = vpop.f32.mrb[0].mxu0
  %v2906 = vadd.f32 %v420, %v2905
  %v2907 = vpop.f32.mrb[0].mxu0
  %v2908 = vpop.f32.mrb[0].mxu0
  %v2909 = vadd.f32 %v420, %v2908
  %v2910 = vpop.f32.mrb[0].mxu0
  %2911 = vmatprep.mubr.bf16.mxu0 0
  %2912 = vmatmul.mubr.bf16.gmra.mrb[0].mxu0 %v1752
  %v2913 = vpop.f32.mrb[0].mxu0
  %v2914 = vadd.f32 %v420, %v2913
  %v2915 = vpop.f32.mrb[0].mxu0
  %v2916 = vpop.f32.mrb[0].mxu0
  %v2917 = vadd.f32 %v420, %v2916
  %v2918 = vpop.f32.mrb[0].mxu0
  %2919 = vmatprep.mubr.bf16.mxu0 0
  %2920 = vmatmul.mubr.bf16.gmra.mrb[0].mxu0 %v1755
  %v2921 = vpop.f32.mrb[0].mxu0
  %v2922 = vadd.f32 %v420, %v2921
  %v2923 = vpop.f32.mrb[0].mxu0
  %v2924 = vpop.f32.mrb[0].mxu0
  %v2925 = vadd.f32 %v420, %v2924
  %v2926 = vpop.f32.mrb[0].mxu0
  %2927 = vmatprep.mubr.bf16.mxu0 0
  %2928 = vmatmul.mubr.bf16.gmra.mrb[0].mxu0 %v1758
  %v2929 = vpop.f32.mrb[0].mxu0
  %v2930 = vadd.f32 %v420, %v2929
  %v2931 = vpop.f32.mrb[0].mxu0
  %v2932 = vpop.f32.mrb[0].mxu0
  %v2933 = vadd.f32 %v420, %v2932
  %v2934 = vpop.f32.mrb[0].mxu0
  %2935 = vmatprep.mubr.bf16.mxu0 0
  %2936 = vmatmul.mubr.bf16.gmra.mrb[0].mxu0 %v1761
  %v2937 = vpop.f32.mrb[0].mxu0
  %v2938 = vadd.f32 %v420, %v2937
  %v2939 = vpop.f32.mrb[0].mxu0
  %v2940 = vpop.f32.mrb[0].mxu0
  %v2941 = vadd.f32 %v420, %v2940
  %v2942 = vpop.f32.mrb[0].mxu0
  %2943 = vmatprep.mubr.bf16.mxu0 0
  %2944 = vmatmul.mubr.bf16.gmra.mrb[0].mxu0 %v1764
  %v2945 = vpop.f32.mrb[0].mxu0
  %v2946 = vadd.f32 %v420, %v2945
  %v2947 = vpop.f32.mrb[0].mxu0
  %v2948 = vpop.f32.mrb[0].mxu0
  %v2949 = vadd.f32 %v420, %v2948
  %v2950 = vpop.f32.mrb[0].mxu0
  %2951 = vmatprep.mubr.bf16.mxu0 0
  %2952 = vmatmul.mubr.bf16.gmra.mrb[0].mxu0 %v1767
  %v2953 = vpop.f32.mrb[0].mxu0
  %v2954 = vadd.f32 %v420, %v2953
  %v2955 = vpop.f32.mrb[0].mxu0
  %v2956 = vpop.f32.mrb[0].mxu0
  %v2957 = vadd.f32 %v420, %v2956
  %v2958 = vpop.f32.mrb[0].mxu0
  %2959 = vmatprep.mubr.bf16.mxu0 0
  %2960 = vmatmul.mubr.bf16.gmra.mrb[0].mxu0 %v1770
  %v2961 = vpop.f32.mrb[0].mxu0
  %v2962 = vadd.f32 %v420, %v2961
  %v2963 = vpop.f32.mrb[0].mxu0
  %v2964 = vpop.f32.mrb[0].mxu0
  %v2965 = vadd.f32 %v420, %v2964
  %v2966 = vpop.f32.mrb[0].mxu0
  %2967 = vmatprep.mubr.bf16.mxu0 0
  %2968 = vmatmul.mubr.bf16.gmra.mrb[0].mxu0 %v1773
  %v2969 = vpop.f32.mrb[0].mxu0
  %v2970 = vadd.f32 %v420, %v2969
  %v2971 = vpop.f32.mrb[0].mxu0
  %v2972 = vpop.f32.mrb[0].mxu0
  %v2973 = vadd.f32 %v420, %v2972
  %v2974 = vpop.f32.mrb[0].mxu0
  %2975 = vmatprep.mubr.bf16.mxu0 0
  %2976 = vmatmul.mubr.bf16.gmra.mrb[0].mxu0 %v1776
  %v2977 = vpop.f32.mrb[0].mxu0
  %v2978 = vadd.f32 %v420, %v2977
  %v2979 = vpop.f32.mrb[0].mxu0
  %v2980 = vpop.f32.mrb[0].mxu0
  %v2981 = vadd.f32 %v420, %v2980
  %v2982 = vpop.f32.mrb[0].mxu0
  %2983 = vmatprep.mubr.bf16.mxu0 0
  %2984 = vmatmul.mubr.bf16.gmra.mrb[0].mxu0 %v1779
  %v2985 = vpop.f32.mrb[0].mxu0
  %v2986 = vadd.f32 %v420, %v2985
  %v2987 = vpop.f32.mrb[0].mxu0
  %v2988 = vpop.f32.mrb[0].mxu0
  %v2989 = vadd.f32 %v420, %v2988
  %v2990 = vpop.f32.mrb[0].mxu0
  %2991 = vmatprep.mubr.bf16.mxu0 0
  %2992 = vmatmul.mubr.bf16.gmra.mrb[0].mxu0 %v1782
  %v2993 = vpop.f32.mrb[0].mxu0
  %v2994 = vadd.f32 %v420, %v2993
  %v2995 = vpop.f32.mrb[0].mxu0
  %v2996 = vpop.f32.mrb[0].mxu0
  %v2997 = vadd.f32 %v420, %v2996
  %v2998 = vpop.f32.mrb[0].mxu0
  %2999 = vmatprep.mubr.bf16.mxu0 0
  %3000 = vmatmul.mubr.bf16.gmra.mrb[0].mxu0 %v1785
  %v3001 = vpop.f32.mrb[0].mxu0
  %v3002 = vadd.f32 %v420, %v3001
  %v3003 = vpop.f32.mrb[0].mxu0
  %v3004 = vpop.f32.mrb[0].mxu0
  %v3005 = vadd.f32 %v420, %v3004
  %v3006 = vpop.f32.mrb[0].mxu0
  %3007 = vmatprep.mubr.bf16.mxu0 0
  %3008 = vmatmul.mubr.bf16.gmra.mrb[0].mxu0 %v1788
  %v3009 = vpop.f32.mrb[0].mxu0
  %v3010 = vadd.f32 %v420, %v3009
  %v3011 = vpop.f32.mrb[0].mxu0
  %v3012 = vpop.f32.mrb[0].mxu0
  %v3013 = vadd.f32 %v420, %v3012
  %v3014 = vpop.f32.mrb[0].mxu0
  %3015 = vmatprep.mubr.bf16.mxu0 0
  %3016 = vmatmul.mubr.bf16.gmra.mrb[0].mxu0 %v1791
  %v3017 = vpop.f32.mrb[0].mxu0
  %v3018 = vadd.f32 %v420, %v3017
  %v3019 = vpop.f32.mrb[0].mxu0
  %v3020 = vpop.f32.mrb[0].mxu0
  %v3021 = vadd.f32 %v420, %v3020
  %v3022 = vpop.f32.mrb[0].mxu0
  %3023 = vmatprep.mubr.bf16.mxu0 0
  %3024 = vmatmul.mubr.bf16.gmra.mrb[0].mxu0 %v1794
  %v3025 = vpop.f32.mrb[0].mxu0
  %v3026 = vadd.f32 %v420, %v3025
  %v3027 = vpop.f32.mrb[0].mxu0
  %v3028 = vpop.f32.mrb[0].mxu0
  %v3029 = vadd.f32 %v420, %v3028
  %v3030 = vpop.f32.mrb[0].mxu0
  %3031 = vmatprep.mubr.bf16.mxu0 0
  %3032 = vmatmul.mubr.bf16.gmra.mrb[0].mxu0 %v1797
  %v3033 = vpop.f32.mrb[0].mxu0
  %v3034 = vadd.f32 %v420, %v3033
  %v3035 = vpop.f32.mrb[0].mxu0
  %v3036 = vpop.f32.mrb[0].mxu0
  %v3037 = vadd.f32 %v420, %v3036
  %v3038 = vpop.f32.mrb[0].mxu0
  %3039 = vmatprep.mubr.bf16.mxu0 0
  %3040 = vmatmul.mubr.bf16.gmra.mrb[0].mxu0 %v1800
  %v3041 = vpop.f32.mrb[0].mxu0
  %v3042 = vadd.f32 %v420, %v3041
  %v3043 = vpop.f32.mrb[0].mxu0
  %v3044 = vpop.f32.mrb[0].mxu0
  %v3045 = vadd.f32 %v420, %v3044
  %v3046 = vpop.f32.mrb[0].mxu0
  %3047 = vmatprep.mubr.bf16.mxu0 0
  %3048 = vmatmul.mubr.bf16.gmra.mrb[0].mxu0 %v1803
  %v3049 = vpop.f32.mrb[0].mxu0
  %v3050 = vadd.f32 %v420, %v3049
  %v3051 = vpop.f32.mrb[0].mxu0
  %v3052 = vpop.f32.mrb[0].mxu0
  %v3053 = vadd.f32 %v420, %v3052
  %v3054 = vpop.f32.mrb[0].mxu0
  %3055 = vmatprep.mubr.bf16.mxu0 0
  %3056 = vmatmul.mubr.bf16.gmra.mrb[0].mxu0 %v1806
  %v3057 = vpop.f32.mrb[0].mxu0
  %v3058 = vadd.f32 %v420, %v3057
  %v3059 = vpop.f32.mrb[0].mxu0
  %v3060 = vpop.f32.mrb[0].mxu0
  %v3061 = vadd.f32 %v420, %v3060
  %v3062 = vpop.f32.mrb[0].mxu0
  %3063 = vmatprep.mubr.bf16.mxu0 0
  %3064 = vmatmul.mubr.bf16.gmra.mrb[0].mxu0 %v1809
  %v3065 = vpop.f32.mrb[0].mxu0
  %v3066 = vadd.f32 %v420, %v3065
  %v3067 = vpop.f32.mrb[0].mxu0
  %v3068 = vpop.f32.mrb[0].mxu0
  %v3069 = vadd.f32 %v420, %v3068
  %v3070 = vpop.f32.mrb[0].mxu0
  %3071 = vmatprep.mubr.bf16.mxu0 0
  %3072 = vmatmul.mubr.bf16.gmra.mrb[0].mxu0 %v1812
  %v3073 = vpop.f32.mrb[0].mxu0
  %v3074 = vadd.f32 %v420, %v3073
  %v3075 = vpop.f32.mrb[0].mxu0
  %v3076 = vpop.f32.mrb[0].mxu0
  %v3077 = vadd.f32 %v420, %v3076
  %v3078 = vpop.f32.mrb[0].mxu0
  %3079 = vmatprep.mubr.bf16.mxu0 0
  %3080 = vmatmul.mubr.bf16.gmra.mrb[0].mxu0 %v1815
  %v3081 = vpop.f32.mrb[0].mxu0
  %v3082 = vadd.f32 %v420, %v3081
  %v3083 = vpop.f32.mrb[0].mxu0
  %v3084 = vpop.f32.mrb[0].mxu0
  %v3085 = vadd.f32 %v420, %v3084
  %v3086 = vpop.f32.mrb[0].mxu0
  %3087 = vmatprep.mubr.bf16.mxu0 0
  %3088 = vmatmul.mubr.bf16.gmra.mrb[0].mxu0 %v1818
  %v3089 = vpop.f32.mrb[0].mxu0
  %v3090 = vadd.f32 %v420, %v3089
  %v3091 = vpop.f32.mrb[0].mxu0
  %v3092 = vpop.f32.mrb[0].mxu0
  %v3093 = vadd.f32 %v420, %v3092
  %v3094 = vpop.f32.mrb[0].mxu0
  %3095 = vmatprep.mubr.bf16.mxu0 0
  %3096 = vmatmul.mubr.bf16.gmra.mrb[0].mxu0 %v1821
  %v3097 = vpop.f32.mrb[0].mxu0
  %v3098 = vadd.f32 %v420, %v3097
  %v3099 = vpop.f32.mrb[0].mxu0
  %v3100 = vpop.f32.mrb[0].mxu0
  %v3101 = vadd.f32 %v420, %v3100
  %v3102 = vpop.f32.mrb[0].mxu0
  %3103 = vmatprep.mubr.bf16.mxu0 0
  %3104 = vmatmul.mubr.bf16.gmra.mrb[0].mxu0 %v1824
  %v3105 = vpop.f32.mrb[0].mxu0
  %v3106 = vadd.f32 %v420, %v3105
  %v3107 = vpop.f32.mrb[0].mxu0
  %v3108 = vpop.f32.mrb[0].mxu0
  %v3109 = vadd.f32 %v420, %v3108
  %v3110 = vpop.f32.mrb[0].mxu0
  %3111 = vmatprep.mubr.bf16.mxu0 0
  %3112 = vmatmul.mubr.bf16.gmra.mrb[0].mxu0 %v1827
  %v3113 = vpop.f32.mrb[0].mxu0
  %v3114 = vadd.f32 %v420, %v3113
  %v3115 = vpop.f32.mrb[0].mxu0
  %v3116 = vpop.f32.mrb[0].mxu0
  %v3117 = vadd.f32 %v420, %v3116
  %v3118 = vpop.f32.mrb[0].mxu0
  %3119 = vmatprep.mubr.bf16.mxu0 0
  %3120 = vmatmul.mubr.bf16.gmra.mrb[0].mxu0 %v1830
  %v3121 = vpop.f32.mrb[0].mxu0
  %v3122 = vadd.f32 %v420, %v3121
  %v3123 = vpop.f32.mrb[0].mxu0
  %v3124 = vpop.f32.mrb[0].mxu0
  %v3125 = vadd.f32 %v420, %v3124
  %v3126 = vpop.f32.mrb[0].mxu0
  %3127 = vmatprep.mubr.bf16.mxu0 0
  %3128 = vmatmul.mubr.bf16.gmra.mrb[0].mxu0 %v1833
  %v3129 = vpop.f32.mrb[0].mxu0
  %v3130 = vadd.f32 %v420, %v3129
  %v3131 = vpop.f32.mrb[0].mxu0
  %v3132 = vpop.f32.mrb[0].mxu0
  %v3133 = vadd.f32 %v420, %v3132
  %v3134 = vpop.f32.mrb[0].mxu0
  %3135 = vmatprep.mubr.bf16.mxu0 0
  %3136 = vmatmul.mubr.bf16.gmra.mrb[0].mxu0 %v1836
  %v3137 = vpop.f32.mrb[0].mxu0
  %v3138 = vadd.f32 %v420, %v3137
  %v3139 = vpop.f32.mrb[0].mxu0
  %v3140 = vpop.f32.mrb[0].mxu0
  %v3141 = vadd.f32 %v420, %v3140
  %v3142 = vpop.f32.mrb[0].mxu0
  %3143 = vmatprep.mubr.bf16.mxu0 0
  %3144 = vmatmul.mubr.bf16.gmra.mrb[0].mxu0 %v1839
  %v3145 = vpop.f32.mrb[0].mxu0
  %v3146 = vadd.f32 %v420, %v3145
  %v3147 = vpop.f32.mrb[0].mxu0
  %v3148 = vpop.f32.mrb[0].mxu0
  %v3149 = vadd.f32 %v420, %v3148
  %v3150 = vpop.f32.mrb[0].mxu0
  %3151 = vmatprep.mubr.bf16.mxu0 0
  %3152 = vmatmul.mubr.bf16.gmra.mrb[0].mxu0 %v1842
  %v3153 = vpop.f32.mrb[0].mxu0
  %v3154 = vadd.f32 %v420, %v3153
  %v3155 = vpop.f32.mrb[0].mxu0
  %v3156 = vpop.f32.mrb[0].mxu0
  %v3157 = vadd.f32 %v420, %v3156
  %v3158 = vpop.f32.mrb[0].mxu0
  %3159 = vmatprep.mubr.bf16.mxu0 0
  %3160 = vmatmul.mubr.bf16.gmra.mrb[0].mxu0 %v1845
  %v3161 = vpop.f32.mrb[0].mxu0
  %v3162 = vadd.f32 %v420, %v3161
  %v3163 = vpop.f32.mrb[0].mxu0
  %v3164 = vpop.f32.mrb[0].mxu0
  %v3165 = vadd.f32 %v420, %v3164
  %v3166 = vpop.f32.mrb[0].mxu0
  %3167 = vmatprep.mubr.bf16.mxu0 0
  %3168 = vmatmul.mubr.bf16.gmra.mrb[0].mxu0 %v1848
  %v3169 = vpop.f32.mrb[0].mxu0
  %v3170 = vadd.f32 %v420, %v3169
  %v3171 = vpop.f32.mrb[0].mxu0
  %v3172 = vpop.f32.mrb[0].mxu0
  %v3173 = vadd.f32 %v420, %v3172
  %v3174 = vpop.f32.mrb[0].mxu0
  %3175 = vmatprep.mubr.bf16.mxu0 0
  %3176 = vmatmul.mubr.bf16.gmra.mrb[0].mxu0 %v1851
  %v3177 = vpop.f32.mrb[0].mxu0
  %v3178 = vadd.f32 %v420, %v3177
  %v3179 = vpop.f32.mrb[0].mxu0
  %v3180 = vpop.f32.mrb[0].mxu0
  %v3181 = vadd.f32 %v420, %v3180
  %v3182 = vpop.f32.mrb[0].mxu0
  %3183 = vmatprep.mubr.bf16.mxu0 0
  %3184 = vmatmul.mubr.bf16.gmra.mrb[0].mxu0 %v1854
  %v3185 = vpop.f32.mrb[0].mxu0
  %v3186 = vadd.f32 %v420, %v3185
  %v3187 = vpop.f32.mrb[0].mxu0
  %v3188 = vpop.f32.mrb[0].mxu0
  %v3189 = vadd.f32 %v420, %v3188
  %v3190 = vpop.f32.mrb[0].mxu0
  %3191 = vmatprep.mubr.bf16.mxu0 0
  %3192 = vmatmul.mubr.bf16.gmra.mrb[0].mxu0 %v1857
  %v3193 = vpop.f32.mrb[0].mxu0
  %v3194 = vadd.f32 %v420, %v3193
  %v3195 = vpop.f32.mrb[0].mxu0
  %v3196 = vpop.f32.mrb[0].mxu0
  %v3197 = vadd.f32 %v420, %v3196
  %v3198 = vpop.f32.mrb[0].mxu0
  %3199 = vmatprep.mubr.bf16.mxu0 0
  %3200 = vmatmul.mubr.bf16.gmra.mrb[0].mxu0 %v1860
  %v3201 = vpop.f32.mrb[0].mxu0
  %v3202 = vadd.f32 %v420, %v3201
  %v3203 = vpop.f32.mrb[0].mxu0
  %v3204 = vpop.f32.mrb[0].mxu0
  %v3205 = vadd.f32 %v420, %v3204
  %v3206 = vpop.f32.mrb[0].mxu0
  %3207 = vmatprep.mubr.bf16.mxu0 0
  %3208 = vmatmul.mubr.bf16.gmra.mrb[0].mxu0 %v1863
  %v3209 = vpop.f32.mrb[0].mxu0
  %v3210 = vadd.f32 %v420, %v3209
  %v3211 = vpop.f32.mrb[0].mxu0
  %v3212 = vpop.f32.mrb[0].mxu0
  %v3213 = vadd.f32 %v420, %v3212
  %v3214 = vpop.f32.mrb[0].mxu0
  %3215 = vmatprep.mubr.bf16.mxu0 0
  %3216 = vmatmul.mubr.bf16.gmra.mrb[0].mxu0 %v1866
  %v3217 = vpop.f32.mrb[0].mxu0
  %v3218 = vadd.f32 %v420, %v3217
  %v3219 = vpop.f32.mrb[0].mxu0
  %v3220 = vpop.f32.mrb[0].mxu0
  %v3221 = vadd.f32 %v420, %v3220
  %v3222 = vpop.f32.mrb[0].mxu0
  %3223 = vmatprep.mubr.bf16.mxu0 0
  %3224 = vmatmul.mubr.bf16.gmra.mrb[0].mxu0 %v1869
  %v3225 = vpop.f32.mrb[0].mxu0
  %v3226 = vadd.f32 %v420, %v3225
  %v3227 = vpop.f32.mrb[0].mxu0
  %v3228 = vpop.f32.mrb[0].mxu0
  %v3229 = vadd.f32 %v420, %v3228
  %v3230 = vpop.f32.mrb[0].mxu0
  %3231 = vmatprep.mubr.bf16.mxu0 0
  %3232 = vmatmul.mubr.bf16.gmra.mrb[0].mxu0 %v1872
  %v3233 = vpop.f32.mrb[0].mxu0
  %v3234 = vadd.f32 %v420, %v3233
  %v3235 = vpop.f32.mrb[0].mxu0
  %v3236 = vpop.f32.mrb[0].mxu0
  %v3237 = vadd.f32 %v420, %v3236
  %v3238 = vpop.f32.mrb[0].mxu0
  %3239 = vmatprep.mubr.bf16.mxu0 0
  %3240 = vmatmul.mubr.bf16.gmra.mrb[0].mxu0 %v1875
  %v3241 = vpop.f32.mrb[0].mxu0
  %v3242 = vadd.f32 %v420, %v3241
  %v3243 = vpop.f32.mrb[0].mxu0
  %v3244 = vpop.f32.mrb[0].mxu0
  %v3245 = vadd.f32 %v420, %v3244
  %v3246 = vpop.f32.mrb[0].mxu0
  %3247 = vmatprep.mubr.bf16.mxu0 0
  %3248 = vmatmul.mubr.bf16.gmra.mrb[0].mxu0 %v1878
  %v3249 = vpop.f32.mrb[0].mxu0
  %v3250 = vadd.f32 %v420, %v3249
  %v3251 = vpop.f32.mrb[0].mxu0
  %v3252 = vpop.f32.mrb[0].mxu0
  %v3253 = vadd.f32 %v420, %v3252
  %v3254 = vpop.f32.mrb[0].mxu0
  %3255 = vmatprep.mubr.bf16.mxu0 0
  %3256 = vmatmul.mubr.bf16.gmra.mrb[0].mxu0 %v1881
  %v3257 = vpop.f32.mrb[0].mxu0
  %v3258 = vadd.f32 %v420, %v3257
  %v3259 = vpop.f32.mrb[0].mxu0
  %v3260 = vpop.f32.mrb[0].mxu0
  %v3261 = vadd.f32 %v420, %v3260
  %v3262 = vpop.f32.mrb[0].mxu0
  %3263 = vmatprep.mubr.bf16.mxu0 0
  %3264 = vmatmul.mubr.bf16.gmra.mrb[0].mxu0 %v1884
  %v3265 = vpop.f32.mrb[0].mxu0
  %v3266 = vadd.f32 %v420, %v3265
  %v3267 = vpop.f32.mrb[0].mxu0
  %v3268 = vpop.f32.mrb[0].mxu0
  %v3269 = vadd.f32 %v420, %v3268
  %v3270 = vpop.f32.mrb[0].mxu0
  %3271 = vmatprep.mubr.bf16.mxu0 0
  %3272 = vmatmul.mubr.bf16.gmra.mrb[0].mxu0 %v1887
  %v3273 = vpop.f32.mrb[0].mxu0
  %v3274 = vadd.f32 %v420, %v3273
  %v3275 = vpop.f32.mrb[0].mxu0
  %v3276 = vpop.f32.mrb[0].mxu0
  %v3277 = vadd.f32 %v420, %v3276
  %v3278 = vpop.f32.mrb[0].mxu0
  %3279 = vmatprep.mubr.bf16.mxu0 0
  %3280 = vmatmul.mubr.bf16.gmra.mrb[0].mxu0 %v1890
  %v3281 = vpop.f32.mrb[0].mxu0
  %v3282 = vadd.f32 %v420, %v3281
  %v3283 = vpop.f32.mrb[0].mxu0
  %v3284 = vpop.f32.mrb[0].mxu0
  %v3285 = vadd.f32 %v420, %v3284
  %v3286 = vpop.f32.mrb[0].mxu0
  %3287 = vmatprep.mubr.bf16.mxu0 0
  %3288 = vmatmul.mubr.bf16.gmra.mrb[0].mxu0 %v1893
  %v3289 = vpop.f32.mrb[0].mxu0
  %v3290 = vadd.f32 %v420, %v3289
  %v3291 = vpop.f32.mrb[0].mxu0
  %v3292 = vpop.f32.mrb[0].mxu0
  %v3293 = vadd.f32 %v420, %v3292
  %v3294 = vpop.f32.mrb[0].mxu0
  %3295 = vmatprep.mubr.bf16.mxu0 0
  %3296 = vmatmul.mubr.bf16.gmra.mrb[0].mxu0 %v1896
  %v3297 = vpop.f32.mrb[0].mxu0
  %v3298 = vadd.f32 %v420, %v3297
  %v3299 = vpop.f32.mrb[0].mxu0
  %v3300 = vpop.f32.mrb[0].mxu0
  %v3301 = vadd.f32 %v420, %v3300
  %v3302 = vpop.f32.mrb[0].mxu0
  %3303 = vmatprep.mubr.bf16.mxu0 0
  %3304 = vmatmul.mubr.bf16.gmra.mrb[0].mxu0 %v1899
  %v3305 = vpop.f32.mrb[0].mxu0
  %v3306 = vadd.f32 %v420, %v3305
  %v3307 = vpop.f32.mrb[0].mxu0
  %v3308 = vpop.f32.mrb[0].mxu0
  %v3309 = vadd.f32 %v420, %v3308
  %v3310 = vpop.f32.mrb[0].mxu0
  %3311 = vmatprep.mubr.bf16.mxu0 0
  %3312 = vmatmul.mubr.bf16.gmra.mrb[0].mxu0 %v1902
  %v3313 = vpop.f32.mrb[0].mxu0
  %v3314 = vadd.f32 %v420, %v3313
  %v3315 = vpop.f32.mrb[0].mxu0
  %v3316 = vpop.f32.mrb[0].mxu0
  %v3317 = vadd.f32 %v420, %v3316
  %v3318 = vpop.f32.mrb[0].mxu0
  %3319 = vmatprep.mubr.bf16.mxu0 0
  %3320 = vmatmul.mubr.bf16.gmra.mrb[0].mxu0 %v1905
  %v3321 = vpop.f32.mrb[0].mxu0
  %v3322 = vadd.f32 %v420, %v3321
  %v3323 = vpop.f32.mrb[0].mxu0
  %v3324 = vpop.f32.mrb[0].mxu0
  %v3325 = vadd.f32 %v420, %v3324
  %v3326 = vpop.f32.mrb[0].mxu0
  %3327 = vmatprep.mubr.bf16.mxu0 0
  %3328 = vmatmul.mubr.bf16.gmra.mrb[0].mxu0 %v1908
  %v3329 = vpop.f32.mrb[0].mxu0
  %v3330 = vadd.f32 %v420, %v3329
  %v3331 = vpop.f32.mrb[0].mxu0
  %v3332 = vpop.f32.mrb[0].mxu0
  %v3333 = vadd.f32 %v420, %v3332
  %v3334 = vpop.f32.mrb[0].mxu0
  %3335 = vmatprep.mubr.bf16.mxu0 0
  %3336 = vmatmul.mubr.bf16.gmra.mrb[0].mxu0 %v1911
  %v3337 = vpop.f32.mrb[0].mxu0
  %v3338 = vadd.f32 %v420, %v3337
  %v3339 = vpop.f32.mrb[0].mxu0
  %v3340 = vpop.f32.mrb[0].mxu0
  %v3341 = vadd.f32 %v420, %v3340
  %v3342 = vpop.f32.mrb[0].mxu0
  %3343 = vmatprep.mubr.bf16.mxu0 0
  %3344 = vmatmul.mubr.bf16.gmra.mrb[0].mxu0 %v1914
  %v3345 = vpop.f32.mrb[0].mxu0
  %v3346 = vadd.f32 %v420, %v3345
  %v3347 = vpop.f32.mrb[0].mxu0
  %v3348 = vpop.f32.mrb[0].mxu0
  %v3349 = vadd.f32 %v420, %v3348
  %v3350 = vpop.f32.mrb[0].mxu0
  %3351 = vmatprep.mubr.bf16.mxu0 0
  %3352 = vmatmul.mubr.bf16.gmra.mrb[0].mxu0 %v1917
  %v3353 = vpop.f32.mrb[0].mxu0
  %v3354 = vadd.f32 %v420, %v3353
  %v3355 = vpop.f32.mrb[0].mxu0
  %v3356 = vpop.f32.mrb[0].mxu0
  %v3357 = vadd.f32 %v420, %v3356
  %v3358 = vpop.f32.mrb[0].mxu0
  %3359 = vmatprep.mubr.bf16.mxu0 0
  %3360 = vmatmul.mubr.bf16.gmra.mrb[0].mxu0 %v1920
  %v3361 = vpop.f32.mrb[0].mxu0
  %v3362 = vadd.f32 %v420, %v3361
  %v3363 = vpop.f32.mrb[0].mxu0
  %v3364 = vpop.f32.mrb[0].mxu0
  %v3365 = vadd.f32 %v420, %v3364
  %v3366 = vpop.f32.mrb[0].mxu0
  %3367 = vmatprep.mubr.bf16.mxu0 0
  %3368 = vmatmul.mubr.bf16.gmra.mrb[0].mxu0 %v1923
  %v3369 = vpop.f32.mrb[0].mxu0
  %v3370 = vadd.f32 %v420, %v3369
  %v3371 = vpop.f32.mrb[0].mxu0
  %v3372 = vpop.f32.mrb[0].mxu0
  %v3373 = vadd.f32 %v420, %v3372
  %v3374 = vpop.f32.mrb[0].mxu0
  %3375 = vmatprep.mubr.bf16.mxu0 0
  %3376 = vmatmul.mubr.bf16.gmra.mrb[0].mxu0 %v1926
  %v3377 = vpop.f32.mrb[0].mxu0
  %v3378 = vadd.f32 %v420, %v3377
  %v3379 = vpop.f32.mrb[0].mxu0
  %v3380 = vpop.f32.mrb[0].mxu0
  %v3381 = vadd.f32 %v420, %v3380
  %v3382 = vpop.f32.mrb[0].mxu0
  %3383 = vmatprep.mubr.bf16.mxu0 0
  %3384 = vmatmul.mubr.bf16.gmra.mrb[0].mxu0 %v1929
  %v3385 = vpop.f32.mrb[0].mxu0
  %v3386 = vadd.f32 %v420, %v3385
  %v3387 = vpop.f32.mrb[0].mxu0
  %v3388 = vpop.f32.mrb[0].mxu0
  %v3389 = vadd.f32 %v420, %v3388
  %v3390 = vpop.f32.mrb[0].mxu0
  %3391 = vmatprep.mubr.bf16.mxu0 0
  %3392 = vmatmul.mubr.bf16.gmra.mrb[0].mxu0 %v1932
  %v3393 = vpop.f32.mrb[0].mxu0
  %v3394 = vadd.f32 %v420, %v3393
  %v3395 = vpop.f32.mrb[0].mxu0
  %v3396 = vpop.f32.mrb[0].mxu0
  %v3397 = vadd.f32 %v420, %v3396
  %v3398 = vpop.f32.mrb[0].mxu0
  %3399 = vmatprep.mubr.bf16.mxu0 0
  %3400 = vmatmul.mubr.bf16.gmra.mrb[0].mxu0 %v1935
  %v3401 = vpop.f32.mrb[0].mxu0
  %v3402 = vadd.f32 %v420, %v3401
  %v3403 = vpop.f32.mrb[0].mxu0
  %v3404 = vpop.f32.mrb[0].mxu0
  %v3405 = vadd.f32 %v420, %v3404
  %v3406 = vpop.f32.mrb[0].mxu0
  %3407 = vmatprep.mubr.bf16.mxu0 0
  %3408 = vmatmul.mubr.bf16.gmra.mrb[0].mxu0 %v1938
  %v3409 = vpop.f32.mrb[0].mxu0
  %v3410 = vadd.f32 %v420, %v3409
  %v3411 = vpop.f32.mrb[0].mxu0
  %v3412 = vpop.f32.mrb[0].mxu0
  %v3413 = vadd.f32 %v420, %v3412
  %v3414 = vpop.f32.mrb[0].mxu0
  %3415 = vmatprep.mubr.bf16.mxu0 0
  %3416 = vmatmul.mubr.bf16.gmra.mrb[0].mxu0 %v1941
  %v3417 = vpop.f32.mrb[0].mxu0
  %v3418 = vadd.f32 %v420, %v3417
  %v3419 = vpop.f32.mrb[0].mxu0
  %v3420 = vpop.f32.mrb[0].mxu0
  %v3421 = vadd.f32 %v420, %v3420
  %v3422 = vpop.f32.mrb[0].mxu0
  %3423 = vmatprep.mubr.bf16.mxu0 0
  %3424 = vmatmul.mubr.bf16.gmra.mrb[0].mxu0 %v1944
  %v3425 = vpop.f32.mrb[0].mxu0
  %v3426 = vadd.f32 %v420, %v3425
  %v3427 = vpop.f32.mrb[0].mxu0
  %v3428 = vpop.f32.mrb[0].mxu0
  %v3429 = vadd.f32 %v420, %v3428
  %v3430 = vpop.f32.mrb[0].mxu0
  %3431 = vmatprep.mubr.bf16.mxu0 0
  %3432 = vmatmul.mubr.bf16.gmra.mrb[0].mxu0 %v1947
  %v3433 = vpop.f32.mrb[0].mxu0
  %v3434 = vadd.f32 %v420, %v3433
  %v3435 = vpop.f32.mrb[0].mxu0
  %v3436 = vpop.f32.mrb[0].mxu0
  %v3437 = vadd.f32 %v420, %v3436
  %v3438 = vpop.f32.mrb[0].mxu0
  %3439 = vmatprep.mubr.bf16.mxu0 0
  %3440 = vmatmul.mubr.bf16.gmra.mrb[0].mxu0 %v1950
  %v3441 = vpop.f32.mrb[0].mxu0
  %v3442 = vadd.f32 %v420, %v3441
  %v3443 = vpop.f32.mrb[0].mxu0
  %v3444 = vpop.f32.mrb[0].mxu0
  %v3445 = vadd.f32 %v420, %v3444
  %v3446 = vpop.f32.mrb[0].mxu0
  %3447 = vmatprep.mubr.bf16.mxu0 0
  %3448 = vmatmul.mubr.bf16.gmra.mrb[0].mxu0 %v1953
  %v3449 = vpop.f32.mrb[0].mxu0
  %v3450 = vadd.f32 %v420, %v3449
  %v3451 = vpop.f32.mrb[0].mxu0
  %v3452 = vpop.f32.mrb[0].mxu0
  %v3453 = vadd.f32 %v420, %v3452
  %v3454 = vpop.f32.mrb[0].mxu0
  %3455 = vmatprep.mubr.bf16.mxu0 0
  %3456 = vmatmul.mubr.bf16.gmra.mrb[0].mxu0 %v1956
  %v3457 = vpop.f32.mrb[0].mxu0
  %v3458 = vadd.f32 %v420, %v3457
  %v3459 = vpop.f32.mrb[0].mxu0
  %v3460 = vpop.f32.mrb[0].mxu0
  %v3461 = vadd.f32 %v420, %v3460
  %v3462 = vpop.f32.mrb[0].mxu0
  %3463 = vmatprep.mubr.bf16.mxu0 0
  %3464 = vmatmul.mubr.bf16.gmra.mrb[0].mxu0 %v1959
  %v3465 = vpop.f32.mrb[0].mxu0
  %v3466 = vadd.f32 %v420, %v3465
  %v3467 = vpop.f32.mrb[0].mxu0
  %v3468 = vpop.f32.mrb[0].mxu0
  %v3469 = vadd.f32 %v420, %v3468
  %v3470 = vpop.f32.mrb[0].mxu0
  %3471 = vmatprep.mubr.bf16.mxu0 0
  %3472 = vmatmul.mubr.bf16.gmra.mrb[0].mxu0 %v1962
  %v3473 = vpop.f32.mrb[0].mxu0
  %v3474 = vadd.f32 %v420, %v3473
  %v3475 = vpop.f32.mrb[0].mxu0
  %v3476 = vpop.f32.mrb[0].mxu0
  %v3477 = vadd.f32 %v420, %v3476
  %v3478 = vpop.f32.mrb[0].mxu0
  %3479 = vmatprep.mubr.bf16.mxu0 0
  %3480 = vmatmul.mubr.bf16.gmra.mrb[0].mxu0 %v1965
  %v3481 = vpop.f32.mrb[0].mxu0
  %v3482 = vadd.f32 %v420, %v3481
  %v3483 = vpop.f32.mrb[0].mxu0
  %v3484 = vpop.f32.mrb[0].mxu0
  %v3485 = vadd.f32 %v420, %v3484
  %v3486 = vpop.f32.mrb[0].mxu0
  %3487 = vmatprep.mubr.bf16.mxu0 0
  %3488 = vmatmul.mubr.bf16.gmra.mrb[0].mxu0 %v1968
  %v3489 = vpop.f32.mrb[0].mxu0
  %v3490 = vadd.f32 %v420, %v3489
  %v3491 = vpop.f32.mrb[0].mxu0
  %v3492 = vpop.f32.mrb[0].mxu0
  %v3493 = vadd.f32 %v420, %v3492
  %v3494 = vpop.f32.mrb[0].mxu0
  %3495 = vmatprep.mubr.bf16.mxu0 0
  %3496 = vmatmul.mubr.bf16.gmra.mrb[0].mxu0 %v1971
  %v3497 = vpop.f32.mrb[0].mxu0
  %v3498 = vadd.f32 %v420, %v3497
  %v3499 = vpop.f32.mrb[0].mxu0
  %v3500 = vpop.f32.mrb[0].mxu0
  %v3501 = vadd.f32 %v420, %v3500
  %v3502 = vpop.f32.mrb[0].mxu0
  %3503 = vmatprep.mubr.bf16.mxu0 0
  %3504 = vmatmul.mubr.bf16.gmra.mrb[0].mxu0 %v1974
  %v3505 = vpop.f32.mrb[0].mxu0
  %v3506 = vadd.f32 %v420, %v3505
  %v3507 = vpop.f32.mrb[0].mxu0
  %v3508 = vpop.f32.mrb[0].mxu0
  %v3509 = vadd.f32 %v420, %v3508
  %v3510 = vpop.f32.mrb[0].mxu0
  %3511 = vmatprep.mubr.bf16.mxu0 0
  %3512 = vmatmul.mubr.bf16.gmra.mrb[0].mxu0 %v1977
  %v3513 = vpop.f32.mrb[0].mxu0
  %v3514 = vadd.f32 %v420, %v3513
  %v3515 = vpop.f32.mrb[0].mxu0
  %v3516 = vpop.f32.mrb[0].mxu0
  %v3517 = vadd.f32 %v420, %v3516
  %v3518 = vpop.f32.mrb[0].mxu0
  %3519 = vmatprep.mubr.bf16.mxu0 0
  %3520 = vmatmul.mubr.bf16.gmra.mrb[0].mxu0 %v1980
  %v3521 = vpop.f32.mrb[0].mxu0
  %v3522 = vadd.f32 %v420, %v3521
  %v3523 = vpop.f32.mrb[0].mxu0
  %v3524 = vpop.f32.mrb[0].mxu0
  %v3525 = vadd.f32 %v420, %v3524
  %v3526 = vpop.f32.mrb[0].mxu0
  %3527 = vmatprep.mubr.bf16.mxu0 0
  %3528 = vmatmul.mubr.bf16.gmra.mrb[0].mxu0 %v1983
  %v3529 = vpop.f32.mrb[0].mxu0
  %v3530 = vadd.f32 %v420, %v3529
  %v3531 = vpop.f32.mrb[0].mxu0
  %v3532 = vpop.f32.mrb[0].mxu0
  %v3533 = vadd.f32 %v420, %v3532
  %v3534 = vpop.f32.mrb[0].mxu0
  %3535 = vmatprep.mubr.bf16.mxu0 0
  %3536 = vmatmul.mubr.bf16.gmra.mrb[0].mxu0 %v1986
  %v3537 = vpop.f32.mrb[0].mxu0
  %v3538 = vadd.f32 %v420, %v3537
  %v3539 = vpop.f32.mrb[0].mxu0
  %v3540 = vpop.f32.mrb[0].mxu0
  %v3541 = vadd.f32 %v420, %v3540
  %v3542 = vpop.f32.mrb[0].mxu0
  %3543 = vmatprep.mubr.bf16.mxu0 0
  %3544 = vmatmul.mubr.bf16.gmra.mrb[0].mxu0 %v1989
  %v3545 = vpop.f32.mrb[0].mxu0
  %v3546 = vadd.f32 %v420, %v3545
  %v3547 = vpop.f32.mrb[0].mxu0
  %v3548 = vpop.f32.mrb[0].mxu0
  %v3549 = vadd.f32 %v420, %v3548
  %v3550 = vpop.f32.mrb[0].mxu0
  %3551 = vmatprep.mubr.bf16.mxu0 0
  %3552 = vmatmul.mubr.bf16.gmra.mrb[0].mxu0 %v1992
  %v3553 = vpop.f32.mrb[0].mxu0
  %v3554 = vadd.f32 %v420, %v3553
  %v3555 = vpop.f32.mrb[0].mxu0
  %v3556 = vpop.f32.mrb[0].mxu0
  %v3557 = vadd.f32 %v420, %v3556
  %v3558 = vpop.f32.mrb[0].mxu0
  %3559 = vmatprep.mubr.bf16.mxu0 0
  %3560 = vmatmul.mubr.bf16.gmra.mrb[0].mxu0 %v1995
  %v3561 = vpop.f32.mrb[0].mxu0
  %v3562 = vadd.f32 %v420, %v3561
  %v3563 = vpop.f32.mrb[0].mxu0
  %v3564 = vpop.f32.mrb[0].mxu0
  %v3565 = vadd.f32 %v420, %v3564
  %v3566 = vpop.f32.mrb[0].mxu0
  %3567 = vmatprep.mubr.bf16.mxu0 0
  %3568 = vmatmul.mubr.bf16.gmra.mrb[0].mxu0 %v1998
  %v3569 = vpop.f32.mrb[0].mxu0
  %v3570 = vadd.f32 %v420, %v3569
  %v3571 = vpop.f32.mrb[0].mxu0
  %v3572 = vpop.f32.mrb[0].mxu0
  %v3573 = vadd.f32 %v420, %v3572
  %v3574 = vpop.f32.mrb[0].mxu0
  %3575 = vmatprep.mubr.bf16.mxu0 0
  %3576 = vmatmul.mubr.bf16.gmra.mrb[0].mxu0 %v2001
  %v3577 = vpop.f32.mrb[0].mxu0
  %v3578 = vadd.f32 %v420, %v3577
  %v3579 = vpop.f32.mrb[0].mxu0
  %v3580 = vpop.f32.mrb[0].mxu0
  %v3581 = vadd.f32 %v420, %v3580
  %v3582 = vpop.f32.mrb[0].mxu0
  %3583 = vmatprep.mubr.bf16.mxu0 0
  %3584 = vmatmul.mubr.bf16.gmra.mrb[0].mxu0 %v2004
  %v3585 = vpop.f32.mrb[0].mxu0
  %v3586 = vadd.f32 %v420, %v3585
  %v3587 = vpop.f32.mrb[0].mxu0
  %v3588 = vpop.f32.mrb[0].mxu0
  %v3589 = vadd.f32 %v420, %v3588
  %v3590 = vpop.f32.mrb[0].mxu0
  %3591 = vmatprep.mubr.bf16.mxu0 0
  %3592 = vmatmul.mubr.bf16.gmra.mrb[0].mxu0 %v2007
  %v3593 = vpop.f32.mrb[0].mxu0
  %v3594 = vadd.f32 %v420, %v3593
  %v3595 = vpop.f32.mrb[0].mxu0
  %v3596 = vpop.f32.mrb[0].mxu0
  %v3597 = vadd.f32 %v420, %v3596
  %v3598 = vpop.f32.mrb[0].mxu0
  %3599 = vmatprep.mubr.bf16.mxu0 0
  %3600 = vmatmul.mubr.bf16.gmra.mrb[0].mxu0 %v2010
  %v3601 = vpop.f32.mrb[0].mxu0
  %v3602 = vadd.f32 %v420, %v3601
  %v3603 = vpop.f32.mrb[0].mxu0
  %v3604 = vpop.f32.mrb[0].mxu0
  %v3605 = vadd.f32 %v420, %v3604
  %v3606 = vpop.f32.mrb[0].mxu0
  %3607 = vmatprep.mubr.bf16.mxu0 0
  %3608 = vmatmul.mubr.bf16.gmra.mrb[0].mxu0 %v2013
  %v3609 = vpop.f32.mrb[0].mxu0
  %v3610 = vadd.f32 %v420, %v3609
  %v3611 = vpop.f32.mrb[0].mxu0
  %v3612 = vpop.f32.mrb[0].mxu0
  %v3613 = vadd.f32 %v420, %v3612
  %v3614 = vpop.f32.mrb[0].mxu0
  %3615 = vdwg.mxu0
  %v3616 = vmax.f32 %v2050, 0.0
  %v3617 = vmax.f32 %v2053, 0.0
  %v3618 = vmax.f32 %v2058, 0.0
  %v3619 = vmax.f32 %v2061, 0.0
  %v3620 = vmax.f32 %v2066, 0.0
  %v3621 = vmax.f32 %v2069, 0.0
  %v3622 = vmax.f32 %v2074, 0.0
  %v3623 = vmax.f32 %v2077, 0.0
  %v3624 = vmax.f32 %v2082, 0.0
  %v3625 = vmax.f32 %v2085, 0.0
  %v3626 = vmax.f32 %v2090, 0.0
  %v3627 = vmax.f32 %v2093, 0.0
  %v3628 = vmax.f32 %v2098, 0.0
  %v3629 = vmax.f32 %v2101, 0.0
  %v3630 = vmax.f32 %v2106, 0.0
  %v3631 = vmax.f32 %v2109, 0.0
  %v3632 = vmax.f32 %v2114, 0.0
  %v3633 = vmax.f32 %v2117, 0.0
  %v3634 = vmax.f32 %v2122, 0.0
  %v3635 = vmax.f32 %v2125, 0.0
  %v3636 = vmax.f32 %v2130, 0.0
  %v3637 = vmax.f32 %v2133, 0.0
  %v3638 = vmax.f32 %v2138, 0.0
  %v3639 = vmax.f32 %v2141, 0.0
  %v3640 = vmax.f32 %v2146, 0.0
  %v3641 = vmax.f32 %v2149, 0.0
  %v3642 = vmax.f32 %v2154, 0.0
  %v3643 = vmax.f32 %v2157, 0.0
  %v3644 = vmax.f32 %v2162, 0.0
  %v3645 = vmax.f32 %v2165, 0.0
  %v3646 = vmax.f32 %v2170, 0.0
  %v3647 = vmax.f32 %v2173, 0.0
  %v3648 = vmax.f32 %v2178, 0.0
  %v3649 = vmax.f32 %v2181, 0.0
  %v3650 = vmax.f32 %v2186, 0.0
  %v3651 = vmax.f32 %v2189, 0.0
  %v3652 = vmax.f32 %v2194, 0.0
  %v3653 = vmax.f32 %v2197, 0.0
  %v3654 = vmax.f32 %v2202, 0.0
  %v3655 = vmax.f32 %v2205, 0.0
  %v3656 = vmax.f32 %v2210, 0.0
  %v3657 = vmax.f32 %v2213, 0.0
  %v3658 = vmax.f32 %v2218, 0.0
  %v3659 = vmax.f32 %v2221, 0.0
  %v3660 = vmax.f32 %v2226, 0.0
  %v3661 = vmax.f32 %v2229, 0.0
  %v3662 = vmax.f32 %v2234, 0.0
  %v3663 = vmax.f32 %v2237, 0.0
  %v3664 = vmax.f32 %v2242, 0.0
  %v3665 = vmax.f32 %v2245, 0.0
  %v3666 = vmax.f32 %v2250, 0.0
  %v3667 = vmax.f32 %v2253, 0.0
  %v3668 = vmax.f32 %v2258, 0.0
  %v3669 = vmax.f32 %v2261, 0.0
  %v3670 = vmax.f32 %v2266, 0.0
  %v3671 = vmax.f32 %v2269, 0.0
  %v3672 = vmax.f32 %v2274, 0.0
  %v3673 = vmax.f32 %v2277, 0.0
  %v3674 = vmax.f32 %v2282, 0.0
  %v3675 = vmax.f32 %v2285, 0.0
  %v3676 = vmax.f32 %v2290, 0.0
  %v3677 = vmax.f32 %v2293, 0.0
  %v3678 = vmax.f32 %v2298, 0.0
  %v3679 = vmax.f32 %v2301, 0.0
  %v3680 = vmax.f32 %v2306, 0.0
  %v3681 = vmax.f32 %v2309, 0.0
  %v3682 = vmax.f32 %v2314, 0.0
  %v3683 = vmax.f32 %v2317, 0.0
  %v3684 = vmax.f32 %v2322, 0.0
  %v3685 = vmax.f32 %v2325, 0.0
  %v3686 = vmax.f32 %v2330, 0.0
  %v3687 = vmax.f32 %v2333, 0.0
  %v3688 = vmax.f32 %v2338, 0.0
  %v3689 = vmax.f32 %v2341, 0.0
  %v3690 = vmax.f32 %v2346, 0.0
  %v3691 = vmax.f32 %v2349, 0.0
  %v3692 = vmax.f32 %v2354, 0.0
  %v3693 = vmax.f32 %v2357, 0.0
  %v3694 = vmax.f32 %v2362, 0.0
  %v3695 = vmax.f32 %v2365, 0.0
  %v3696 = vmax.f32 %v2370, 0.0
  %v3697 = vmax.f32 %v2373, 0.0
  %v3698 = vmax.f32 %v2378, 0.0
  %v3699 = vmax.f32 %v2381, 0.0
  %v3700 = vmax.f32 %v2386, 0.0
  %v3701 = vmax.f32 %v2389, 0.0
  %v3702 = vmax.f32 %v2394, 0.0
  %v3703 = vmax.f32 %v2397, 0.0
  %v3704 = vmax.f32 %v2402, 0.0
  %v3705 = vmax.f32 %v2405, 0.0
  %v3706 = vmax.f32 %v2410, 0.0
  %v3707 = vmax.f32 %v2413, 0.0
  %v3708 = vmax.f32 %v2418, 0.0
  %v3709 = vmax.f32 %v2421, 0.0
  %v3710 = vmax.f32 %v2426, 0.0
  %v3711 = vmax.f32 %v2429, 0.0
  %v3712 = vmax.f32 %v2434, 0.0
  %v3713 = vmax.f32 %v2437, 0.0
  %v3714 = vmax.f32 %v2442, 0.0
  %v3715 = vmax.f32 %v2445, 0.0
  %v3716 = vmax.f32 %v2450, 0.0
  %v3717 = vmax.f32 %v2453, 0.0
  %v3718 = vmax.f32 %v2458, 0.0
  %v3719 = vmax.f32 %v2461, 0.0
  %v3720 = vmax.f32 %v2466, 0.0
  %v3721 = vmax.f32 %v2469, 0.0
  %v3722 = vmax.f32 %v2474, 0.0
  %v3723 = vmax.f32 %v2477, 0.0
  %v3724 = vmax.f32 %v2482, 0.0
  %v3725 = vmax.f32 %v2485, 0.0
  %v3726 = vmax.f32 %v2490, 0.0
  %v3727 = vmax.f32 %v2493, 0.0
  %v3728 = vmax.f32 %v2498, 0.0
  %v3729 = vmax.f32 %v2501, 0.0
  %v3730 = vmax.f32 %v2506, 0.0
  %v3731 = vmax.f32 %v2509, 0.0
  %v3732 = vmax.f32 %v2514, 0.0
  %v3733 = vmax.f32 %v2517, 0.0
  %v3734 = vmax.f32 %v2522, 0.0
  %v3735 = vmax.f32 %v2525, 0.0
  %v3736 = vmax.f32 %v2530, 0.0
  %v3737 = vmax.f32 %v2533, 0.0
  %v3738 = vmax.f32 %v2538, 0.0
  %v3739 = vmax.f32 %v2541, 0.0
  %v3740 = vmax.f32 %v2546, 0.0
  %v3741 = vmax.f32 %v2549, 0.0
  %v3742 = vmax.f32 %v2554, 0.0
  %v3743 = vmax.f32 %v2557, 0.0
  %v3744 = vmax.f32 %v2562, 0.0
  %v3745 = vmax.f32 %v2565, 0.0
  %v3746 = vmax.f32 %v2570, 0.0
  %v3747 = vmax.f32 %v2573, 0.0
  %v3748 = vmax.f32 %v2578, 0.0
  %v3749 = vmax.f32 %v2581, 0.0
  %v3750 = vmax.f32 %v2586, 0.0
  %v3751 = vmax.f32 %v2589, 0.0
  %v3752 = vmax.f32 %v2594, 0.0
  %v3753 = vmax.f32 %v2597, 0.0
  %v3754 = vmax.f32 %v2602, 0.0
  %v3755 = vmax.f32 %v2605, 0.0
  %v3756 = vmax.f32 %v2610, 0.0
  %v3757 = vmax.f32 %v2613, 0.0
  %v3758 = vmax.f32 %v2618, 0.0
  %v3759 = vmax.f32 %v2621, 0.0
  %v3760 = vmax.f32 %v2626, 0.0
  %v3761 = vmax.f32 %v2629, 0.0
  %v3762 = vmax.f32 %v2634, 0.0
  %v3763 = vmax.f32 %v2637, 0.0
  %v3764 = vmax.f32 %v2642, 0.0
  %v3765 = vmax.f32 %v2645, 0.0
  %v3766 = vmax.f32 %v2650, 0.0
  %v3767 = vmax.f32 %v2653, 0.0
  %v3768 = vmax.f32 %v2658, 0.0
  %v3769 = vmax.f32 %v2661, 0.0
  %v3770 = vmax.f32 %v2666, 0.0
  %v3771 = vmax.f32 %v2669, 0.0
  %v3772 = vmax.f32 %v2674, 0.0
  %v3773 = vmax.f32 %v2677, 0.0
  %v3774 = vmax.f32 %v2682, 0.0
  %v3775 = vmax.f32 %v2685, 0.0
  %v3776 = vmax.f32 %v2690, 0.0
  %v3777 = vmax.f32 %v2693, 0.0
  %v3778 = vmax.f32 %v2698, 0.0
  %v3779 = vmax.f32 %v2701, 0.0
  %v3780 = vmax.f32 %v2706, 0.0
  %v3781 = vmax.f32 %v2709, 0.0
  %v3782 = vmax.f32 %v2714, 0.0
  %v3783 = vmax.f32 %v2717, 0.0
  %v3784 = vmax.f32 %v2722, 0.0
  %v3785 = vmax.f32 %v2725, 0.0
  %v3786 = vmax.f32 %v2730, 0.0
  %v3787 = vmax.f32 %v2733, 0.0
  %v3788 = vmax.f32 %v2738, 0.0
  %v3789 = vmax.f32 %v2741, 0.0
  %v3790 = vmax.f32 %v2746, 0.0
  %v3791 = vmax.f32 %v2749, 0.0
  %v3792 = vmax.f32 %v2754, 0.0
  %v3793 = vmax.f32 %v2757, 0.0
  %v3794 = vmax.f32 %v2762, 0.0
  %v3795 = vmax.f32 %v2765, 0.0
  %v3796 = vmax.f32 %v2770, 0.0
  %v3797 = vmax.f32 %v2773, 0.0
  %v3798 = vmax.f32 %v2778, 0.0
  %v3799 = vmax.f32 %v2781, 0.0
  %v3800 = vmax.f32 %v2786, 0.0
  %v3801 = vmax.f32 %v2789, 0.0
  %v3802 = vmax.f32 %v2794, 0.0
  %v3803 = vmax.f32 %v2797, 0.0
  %v3804 = vmax.f32 %v2802, 0.0
  %v3805 = vmax.f32 %v2805, 0.0
  %v3806 = vmax.f32 %v2810, 0.0
  %v3807 = vmax.f32 %v2813, 0.0
  %v3808 = vmax.f32 %v2818, 0.0
  %v3809 = vmax.f32 %v2821, 0.0
  %v3810 = vmax.f32 %v2826, 0.0
  %v3811 = vmax.f32 %v2829, 0.0
  %v3812 = vmax.f32 %v2834, 0.0
  %v3813 = vmax.f32 %v2837, 0.0
  %v3814 = vmax.f32 %v2842, 0.0
  %v3815 = vmax.f32 %v2845, 0.0
  %v3816 = vmax.f32 %v2850, 0.0
  %v3817 = vmax.f32 %v2853, 0.0
  %v3818 = vmax.f32 %v2858, 0.0
  %v3819 = vmax.f32 %v2861, 0.0
  %v3820 = vmax.f32 %v2866, 0.0
  %v3821 = vmax.f32 %v2869, 0.0
  %v3822 = vmax.f32 %v2874, 0.0
  %v3823 = vmax.f32 %v2877, 0.0
  %v3824 = vmax.f32 %v2882, 0.0
  %v3825 = vmax.f32 %v2885, 0.0
  %v3826 = vmax.f32 %v2890, 0.0
  %v3827 = vmax.f32 %v2893, 0.0
  %v3828 = vmax.f32 %v2898, 0.0
  %v3829 = vmax.f32 %v2901, 0.0
  %v3830 = vmax.f32 %v2906, 0.0
  %v3831 = vmax.f32 %v2909, 0.0
  %v3832 = vmax.f32 %v2914, 0.0
  %v3833 = vmax.f32 %v2917, 0.0
  %v3834 = vmax.f32 %v2922, 0.0
  %v3835 = vmax.f32 %v2925, 0.0
  %v3836 = vmax.f32 %v2930, 0.0
  %v3837 = vmax.f32 %v2933, 0.0
  %v3838 = vmax.f32 %v2938, 0.0
  %v3839 = vmax.f32 %v2941, 0.0
  %v3840 = vmax.f32 %v2946, 0.0
  %v3841 = vmax.f32 %v2949, 0.0
  %v3842 = vmax.f32 %v2954, 0.0
  %v3843 = vmax.f32 %v2957, 0.0
  %v3844 = vmax.f32 %v2962, 0.0
  %v3845 = vmax.f32 %v2965, 0.0
  %v3846 = vmax.f32 %v2970, 0.0
  %v3847 = vmax.f32 %v2973, 0.0
  %v3848 = vmax.f32 %v2978, 0.0
  %v3849 = vmax.f32 %v2981, 0.0
  %v3850 = vmax.f32 %v2986, 0.0
  %v3851 = vmax.f32 %v2989, 0.0
  %v3852 = vmax.f32 %v2994, 0.0
  %v3853 = vmax.f32 %v2997, 0.0
  %v3854 = vmax.f32 %v3002, 0.0
  %v3855 = vmax.f32 %v3005, 0.0
  %v3856 = vmax.f32 %v3010, 0.0
  %v3857 = vmax.f32 %v3013, 0.0
  %v3858 = vmax.f32 %v3018, 0.0
  %v3859 = vmax.f32 %v3021, 0.0
  %v3860 = vmax.f32 %v3026, 0.0
  %v3861 = vmax.f32 %v3029, 0.0
  %v3862 = vmax.f32 %v3034, 0.0
  %v3863 = vmax.f32 %v3037, 0.0
  %v3864 = vmax.f32 %v3042, 0.0
  %v3865 = vmax.f32 %v3045, 0.0
  %v3866 = vmax.f32 %v3050, 0.0
  %v3867 = vmax.f32 %v3053, 0.0
  %v3868 = vmax.f32 %v3058, 0.0
  %v3869 = vmax.f32 %v3061, 0.0
  %v3870 = vmax.f32 %v3066, 0.0
  %v3871 = vmax.f32 %v3069, 0.0
  %v3872 = vmax.f32 %v3074, 0.0
  %v3873 = vmax.f32 %v3077, 0.0
  %v3874 = vmax.f32 %v3082, 0.0
  %v3875 = vmax.f32 %v3085, 0.0
  %v3876 = vmax.f32 %v3090, 0.0
  %v3877 = vmax.f32 %v3093, 0.0
  %v3878 = vmax.f32 %v3098, 0.0
  %v3879 = vmax.f32 %v3101, 0.0
  %v3880 = vmax.f32 %v3106, 0.0
  %v3881 = vmax.f32 %v3109, 0.0
  %v3882 = vmax.f32 %v3114, 0.0
  %v3883 = vmax.f32 %v3117, 0.0
  %v3884 = vmax.f32 %v3122, 0.0
  %v3885 = vmax.f32 %v3125, 0.0
  %v3886 = vmax.f32 %v3130, 0.0
  %v3887 = vmax.f32 %v3133, 0.0
  %v3888 = vmax.f32 %v3138, 0.0
  %v3889 = vmax.f32 %v3141, 0.0
  %v3890 = vmax.f32 %v3146, 0.0
  %v3891 = vmax.f32 %v3149, 0.0
  %v3892 = vmax.f32 %v3154, 0.0
  %v3893 = vmax.f32 %v3157, 0.0
  %v3894 = vmax.f32 %v3162, 0.0
  %v3895 = vmax.f32 %v3165, 0.0
  %v3896 = vmax.f32 %v3170, 0.0
  %v3897 = vmax.f32 %v3173, 0.0
  %v3898 = vmax.f32 %v3178, 0.0
  %v3899 = vmax.f32 %v3181, 0.0
  %v3900 = vmax.f32 %v3186, 0.0
  %v3901 = vmax.f32 %v3189, 0.0
  %v3902 = vmax.f32 %v3194, 0.0
  %v3903 = vmax.f32 %v3197, 0.0
  %v3904 = vmax.f32 %v3202, 0.0
  %v3905 = vmax.f32 %v3205, 0.0
  %v3906 = vmax.f32 %v3210, 0.0
  %v3907 = vmax.f32 %v3213, 0.0
  %v3908 = vmax.f32 %v3218, 0.0
  %v3909 = vmax.f32 %v3221, 0.0
  %v3910 = vmax.f32 %v3226, 0.0
  %v3911 = vmax.f32 %v3229, 0.0
  %v3912 = vmax.f32 %v3234, 0.0
  %v3913 = vmax.f32 %v3237, 0.0
  %v3914 = vmax.f32 %v3242, 0.0
  %v3915 = vmax.f32 %v3245, 0.0
  %v3916 = vmax.f32 %v3250, 0.0
  %v3917 = vmax.f32 %v3253, 0.0
  %v3918 = vmax.f32 %v3258, 0.0
  %v3919 = vmax.f32 %v3261, 0.0
  %v3920 = vmax.f32 %v3266, 0.0
  %v3921 = vmax.f32 %v3269, 0.0
  %v3922 = vmax.f32 %v3274, 0.0
  %v3923 = vmax.f32 %v3277, 0.0
  %v3924 = vmax.f32 %v3282, 0.0
  %v3925 = vmax.f32 %v3285, 0.0
  %v3926 = vmax.f32 %v3290, 0.0
  %v3927 = vmax.f32 %v3293, 0.0
  %v3928 = vmax.f32 %v3298, 0.0
  %v3929 = vmax.f32 %v3301, 0.0
  %v3930 = vmax.f32 %v3306, 0.0
  %v3931 = vmax.f32 %v3309, 0.0
  %v3932 = vmax.f32 %v3314, 0.0
  %v3933 = vmax.f32 %v3317, 0.0
  %v3934 = vmax.f32 %v3322, 0.0
  %v3935 = vmax.f32 %v3325, 0.0
  %v3936 = vmax.f32 %v3330, 0.0
  %v3937 = vmax.f32 %v3333, 0.0
  %v3938 = vmax.f32 %v3338, 0.0
  %v3939 = vmax.f32 %v3341, 0.0
  %v3940 = vmax.f32 %v3346, 0.0
  %v3941 = vmax.f32 %v3349, 0.0
  %v3942 = vmax.f32 %v3354, 0.0
  %v3943 = vmax.f32 %v3357, 0.0
  %v3944 = vmax.f32 %v3362, 0.0
  %v3945 = vmax.f32 %v3365, 0.0
  %v3946 = vmax.f32 %v3370, 0.0
  %v3947 = vmax.f32 %v3373, 0.0
  %v3948 = vmax.f32 %v3378, 0.0
  %v3949 = vmax.f32 %v3381, 0.0
  %v3950 = vmax.f32 %v3386, 0.0
  %v3951 = vmax.f32 %v3389, 0.0
  %v3952 = vmax.f32 %v3394, 0.0
  %v3953 = vmax.f32 %v3397, 0.0
  %v3954 = vmax.f32 %v3402, 0.0
  %v3955 = vmax.f32 %v3405, 0.0
  %v3956 = vmax.f32 %v3410, 0.0
  %v3957 = vmax.f32 %v3413, 0.0
  %v3958 = vmax.f32 %v3418, 0.0
  %v3959 = vmax.f32 %v3421, 0.0
  %v3960 = vmax.f32 %v3426, 0.0
  %v3961 = vmax.f32 %v3429, 0.0
  %v3962 = vmax.f32 %v3434, 0.0
  %v3963 = vmax.f32 %v3437, 0.0
  %v3964 = vmax.f32 %v3442, 0.0
  %v3965 = vmax.f32 %v3445, 0.0
  %v3966 = vmax.f32 %v3450, 0.0
  %v3967 = vmax.f32 %v3453, 0.0
  %v3968 = vmax.f32 %v3458, 0.0
  %v3969 = vmax.f32 %v3461, 0.0
  %v3970 = vmax.f32 %v3466, 0.0
  %v3971 = vmax.f32 %v3469, 0.0
  %v3972 = vmax.f32 %v3474, 0.0
  %v3973 = vmax.f32 %v3477, 0.0
  %v3974 = vmax.f32 %v3482, 0.0
  %v3975 = vmax.f32 %v3485, 0.0
  %v3976 = vmax.f32 %v3490, 0.0
  %v3977 = vmax.f32 %v3493, 0.0
  %v3978 = vmax.f32 %v3498, 0.0
  %v3979 = vmax.f32 %v3501, 0.0
  %v3980 = vmax.f32 %v3506, 0.0
  %v3981 = vmax.f32 %v3509, 0.0
  %v3982 = vmax.f32 %v3514, 0.0
  %v3983 = vmax.f32 %v3517, 0.0
  %v3984 = vmax.f32 %v3522, 0.0
  %v3985 = vmax.f32 %v3525, 0.0
  %v3986 = vmax.f32 %v3530, 0.0
  %v3987 = vmax.f32 %v3533, 0.0
  %v3988 = vmax.f32 %v3538, 0.0
  %v3989 = vmax.f32 %v3541, 0.0
  %v3990 = vmax.f32 %v3546, 0.0
  %v3991 = vmax.f32 %v3549, 0.0
  %v3992 = vmax.f32 %v3554, 0.0
  %v3993 = vmax.f32 %v3557, 0.0
  %v3994 = vmax.f32 %v3562, 0.0
  %v3995 = vmax.f32 %v3565, 0.0
  %v3996 = vmax.f32 %v3570, 0.0
  %v3997 = vmax.f32 %v3573, 0.0
  %v3998 = vmax.f32 %v3578, 0.0
  %v3999 = vmax.f32 %v3581, 0.0
  %v4000 = vmax.f32 %v3586, 0.0
  %v4001 = vmax.f32 %v3589, 0.0
  %v4002 = vmax.f32 %v3594, 0.0
  %v4003 = vmax.f32 %v3597, 0.0
  %v4004 = vmax.f32 %v3602, 0.0
  %v4005 = vmax.f32 %v3605, 0.0
  %v4006 = vmax.f32 %v3610, 0.0
  %v4007 = vmax.f32 %v3613, 0.0
  %v4008 = vmax.f32 %v3616, %v3618
  %v4009 = vmax.f32 %v3617, %v3619
  %v4010 = vmax.f32 %v3618, %v3620
  %v4011 = vmax.f32 %v3619, %v3621
  %v4012 = vmax.f32 %v3620, %v3622
  %v4013 = vmax.f32 %v3621, %v3623
  %v4014 = vmax.f32 %v3622, %v3624
  %v4015 = vmax.f32 %v3623, %v3625
  %v4016 = vmax.f32 %v3624, %v3626
  %v4017 = vmax.f32 %v3625, %v3627
  %v4018 = vmax.f32 %v3626, %v3628
  %v4019 = vmax.f32 %v3627, %v3629
  %v4020 = vmax.f32 %v3628, %v3630
  %v4021 = vmax.f32 %v3629, %v3631
  %v4022 = vmax.f32 %v3630, %v3632
  %v4023 = vmax.f32 %v3631, %v3633
  %v4024 = vmax.f32 %v3632, %v3634
  %v4025 = vmax.f32 %v3633, %v3635
  %v4026 = vmax.f32 %v3634, %v3636
  %v4027 = vmax.f32 %v3635, %v3637
  %v4028 = vmax.f32 %v3636, %v3638
  %v4029 = vmax.f32 %v3637, %v3639
  %v4030 = vmax.f32 %v3638, %v3640
  %v4031 = vmax.f32 %v3639, %v3641
  %v4032 = vmax.f32 %v3640, %v3642
  %v4033 = vmax.f32 %v3641, %v3643
  %v4034 = vmax.f32 %v3642, %v3644
  %v4035 = vmax.f32 %v3643, %v3645
  %v4036 = vmax.f32 %v3644, %v3646
  %v4037 = vmax.f32 %v3645, %v3647
  %v4038 = vmax.f32 %v3646, %v3648
  %v4039 = vmax.f32 %v3647, %v3649
  %v4040 = vmax.f32 %v3648, %v3650
  %v4041 = vmax.f32 %v3649, %v3651
  %v4042 = vmax.f32 %v3650, %v3652
  %v4043 = vmax.f32 %v3651, %v3653
  %v4044 = vmax.f32 %v3652, %v3654
  %v4045 = vmax.f32 %v3653, %v3655
  %v4046 = vmax.f32 %v3654, %v3656
  %v4047 = vmax.f32 %v3655, %v3657
  %v4048 = vmax.f32 %v3656, %v3658
  %v4049 = vmax.f32 %v3657, %v3659
  %v4050 = vmax.f32 %v3658, %v3660
  %v4051 = vmax.f32 %v3659, %v3661
  %v4052 = vmax.f32 %v3660, %v3662
  %v4053 = vmax.f32 %v3661, %v3663
  %v4054 = vmax.f32 %v3662, %v3664
  %v4055 = vmax.f32 %v3663, %v3665
  %v4056 = vmax.f32 %v3664, %v3666
  %v4057 = vmax.f32 %v3665, %v3667
  %v4058 = vmax.f32 %v3666, %v3668
  %v4059 = vmax.f32 %v3667, %v3669
  %v4060 = vmax.f32 %v3668, %v3670
  %v4061 = vmax.f32 %v3669, %v3671
  %v4062 = vmax.f32 %v3670, %v3672
  %v4063 = vmax.f32 %v3671, %v3673
  %v4064 = vmax.f32 %v3672, %v3674
  %v4065 = vmax.f32 %v3673, %v3675
  %v4066 = vmax.f32 %v3674, %v3676
  %v4067 = vmax.f32 %v3675, %v3677
  %v4068 = vmax.f32 %v3676, %v3678
  %v4069 = vmax.f32 %v3677, %v3679
  %v4070 = vmax.f32 %v3678, %v3680
  %v4071 = vmax.f32 %v3679, %v3681
  %v4072 = vmax.f32 %v3680, %v3682
  %v4073 = vmax.f32 %v3681, %v3683
  %v4074 = vmax.f32 %v3682, %v3684
  %v4075 = vmax.f32 %v3683, %v3685
  %v4076 = vmax.f32 %v3684, %v3686
  %v4077 = vmax.f32 %v3685, %v3687
  %v4078 = vmax.f32 %v3686, %v3688
  %v4079 = vmax.f32 %v3687, %v3689
  %v4080 = vmax.f32 %v3688, %v3690
  %v4081 = vmax.f32 %v3689, %v3691
  %v4082 = vmax.f32 %v3690, %v3692
  %v4083 = vmax.f32 %v3691, %v3693
  %v4084 = vmax.f32 %v3692, %v3694
  %v4085 = vmax.f32 %v3693, %v3695
  %v4086 = vmax.f32 %v3694, %v3696
  %v4087 = vmax.f32 %v3695, %v3697
  %v4088 = vmax.f32 %v3696, %v3698
  %v4089 = vmax.f32 %v3697, %v3699
  %v4090 = vmax.f32 %v3698, %v3700
  %v4091 = vmax.f32 %v3699, %v3701
  %v4092 = vmax.f32 %v3700, %v3702
  %v4093 = vmax.f32 %v3701, %v3703
  %v4094 = vmax.f32 %v3702, %v3704
  %v4095 = vmax.f32 %v3703, %v3705
  %v4096 = vmax.f32 %v3704, %v3706
  %v4097 = vmax.f32 %v3705, %v3707
  %v4098 = vmax.f32 %v3706, %v3708
  %v4099 = vmax.f32 %v3707, %v3709
  %v4100 = vmax.f32 %v3708, %v3710
  %v4101 = vmax.f32 %v3709, %v3711
  %v4102 = vmax.f32 %v3710, %v3712
  %v4103 = vmax.f32 %v3711, %v3713
  %v4104 = vmax.f32 %v3712, %v3714
  %v4105 = vmax.f32 %v3713, %v3715
  %v4106 = vmax.f32 %v3714, %v3716
  %v4107 = vmax.f32 %v3715, %v3717
  %v4108 = vmax.f32 %v3716, %v3718
  %v4109 = vmax.f32 %v3717, %v3719
  %v4110 = vmax.f32 %v3718, %v3720
  %v4111 = vmax.f32 %v3719, %v3721
  %v4112 = vmax.f32 %v3720, %v3722
  %v4113 = vmax.f32 %v3721, %v3723
  %v4114 = vmax.f32 %v3722, %v3724
  %v4115 = vmax.f32 %v3723, %v3725
  %v4116 = vmax.f32 %v3724, %v3726
  %v4117 = vmax.f32 %v3725, %v3727
  %v4118 = vmax.f32 %v3726, %v3728
  %v4119 = vmax.f32 %v3727, %v3729
  %v4120 = vmax.f32 %v3728, %v3730
  %v4121 = vmax.f32 %v3729, %v3731
  %v4122 = vmax.f32 %v3730, %v3732
  %v4123 = vmax.f32 %v3731, %v3733
  %v4124 = vmax.f32 %v3732, %v3734
  %v4125 = vmax.f32 %v3733, %v3735
  %v4126 = vmax.f32 %v3734, %v3736
  %v4127 = vmax.f32 %v3735, %v3737
  %v4128 = vmax.f32 %v3736, %v3738
  %v4129 = vmax.f32 %v3737, %v3739
  %v4130 = vmax.f32 %v3738, %v3740
  %v4131 = vmax.f32 %v3739, %v3741
  %v4132 = vmax.f32 %v3740, %v3742
  %v4133 = vmax.f32 %v3741, %v3743
  %v4134 = vmax.f32 %v3742, %v3744
  %v4135 = vmax.f32 %v3743, %v3745
  %v4136 = vmax.f32 %v3744, %v3746
  %v4137 = vmax.f32 %v3745, %v3747
  %v4138 = vmax.f32 %v3746, %v3748
  %v4139 = vmax.f32 %v3747, %v3749
  %v4140 = vmax.f32 %v3748, %v3750
  %v4141 = vmax.f32 %v3749, %v3751
  %v4142 = vmax.f32 %v3750, %v3752
  %v4143 = vmax.f32 %v3751, %v3753
  %v4144 = vmax.f32 %v3752, %v3754
  %v4145 = vmax.f32 %v3753, %v3755
  %v4146 = vmax.f32 %v3754, %v3756
  %v4147 = vmax.f32 %v3755, %v3757
  %v4148 = vmax.f32 %v3756, %v3758
  %v4149 = vmax.f32 %v3757, %v3759
  %v4150 = vmax.f32 %v3758, %v3760
  %v4151 = vmax.f32 %v3759, %v3761
  %v4152 = vmax.f32 %v3760, %v3762
  %v4153 = vmax.f32 %v3761, %v3763
  %v4154 = vmax.f32 %v3762, %v3764
  %v4155 = vmax.f32 %v3763, %v3765
  %v4156 = vmax.f32 %v3764, %v3766
  %v4157 = vmax.f32 %v3765, %v3767
  %v4158 = vmax.f32 %v3766, %v3768
  %v4159 = vmax.f32 %v3767, %v3769
  %v4160 = vmax.f32 %v3768, %v3770
  %v4161 = vmax.f32 %v3769, %v3771
  %v4162 = vmax.f32 %v3770, %v3772
  %v4163 = vmax.f32 %v3771, %v3773
  %v4164 = vmax.f32 %v3772, %v3774
  %v4165 = vmax.f32 %v3773, %v3775
  %v4166 = vmax.f32 %v3774, %v3776
  %v4167 = vmax.f32 %v3775, %v3777
  %v4168 = vmax.f32 %v3776, %v3778
  %v4169 = vmax.f32 %v3777, %v3779
  %v4170 = vmax.f32 %v3778, %v3780
  %v4171 = vmax.f32 %v3779, %v3781
  %v4172 = vmax.f32 %v3780, %v3782
  %v4173 = vmax.f32 %v3781, %v3783
  %v4174 = vmax.f32 %v3782, %v3784
  %v4175 = vmax.f32 %v3783, %v3785
  %v4176 = vmax.f32 %v3784, %v3786
  %v4177 = vmax.f32 %v3785, %v3787
  %v4178 = vmax.f32 %v3786, %v3788
  %v4179 = vmax.f32 %v3787, %v3789
  %v4180 = vmax.f32 %v3788, %v3790
  %v4181 = vmax.f32 %v3789, %v3791
  %v4182 = vmax.f32 %v3790, %v3792
  %v4183 = vmax.f32 %v3791, %v3793
  %v4184 = vmax.f32 %v3792, %v3794
  %v4185 = vmax.f32 %v3793, %v3795
  %v4186 = vmax.f32 %v3794, %v3796
  %v4187 = vmax.f32 %v3795, %v3797
  %v4188 = vmax.f32 %v3796, %v3798
  %v4189 = vmax.f32 %v3797, %v3799
  %v4190 = vmax.f32 %v3798, %v3800
  %v4191 = vmax.f32 %v3799, %v3801
  %v4192 = vmax.f32 %v3800, %v3802
  %v4193 = vmax.f32 %v3801, %v3803
  %v4194 = vmax.f32 %v3802, %v3804
  %v4195 = vmax.f32 %v3803, %v3805
  %v4196 = vmax.f32 %v3804, %v3806
  %v4197 = vmax.f32 %v3805, %v3807
  %v4198 = vmax.f32 %v3806, %v3808
  %v4199 = vmax.f32 %v3807, %v3809
  %v4200 = vmax.f32 %v3808, %v3810
  %v4201 = vmax.f32 %v3809, %v3811
  %v4202 = vmax.f32 %v3810, %v3812
  %v4203 = vmax.f32 %v3811, %v3813
  %v4204 = vmax.f32 %v3812, %v3814
  %v4205 = vmax.f32 %v3813, %v3815
  %v4206 = vmax.f32 %v3814, %v3816
  %v4207 = vmax.f32 %v3815, %v3817
  %v4208 = vmax.f32 %v3816, %v3818
  %v4209 = vmax.f32 %v3817, %v3819
  %v4210 = vmax.f32 %v3818, %v3820
  %v4211 = vmax.f32 %v3819, %v3821
  %v4212 = vmax.f32 %v3820, %v3822
  %v4213 = vmax.f32 %v3821, %v3823
  %v4214 = vmax.f32 %v3822, %v3824
  %v4215 = vmax.f32 %v3823, %v3825
  %v4216 = vmax.f32 %v3824, %v3826
  %v4217 = vmax.f32 %v3825, %v3827
  %v4218 = vmax.f32 %v3826, %v3828
  %v4219 = vmax.f32 %v3827, %v3829
  %v4220 = vmax.f32 %v3828, %v3830
  %v4221 = vmax.f32 %v3829, %v3831
  %v4222 = vmax.f32 %v3830, %v3832
  %v4223 = vmax.f32 %v3831, %v3833
  %v4224 = vmax.f32 %v3832, %v3834
  %v4225 = vmax.f32 %v3833, %v3835
  %v4226 = vmax.f32 %v3834, %v3836
  %v4227 = vmax.f32 %v3835, %v3837
  %v4228 = vmax.f32 %v3836, %v3838
  %v4229 = vmax.f32 %v3837, %v3839
  %v4230 = vmax.f32 %v3838, %v3840
  %v4231 = vmax.f32 %v3839, %v3841
  %v4232 = vmax.f32 %v3840, %v3842
  %v4233 = vmax.f32 %v3841, %v3843
  %v4234 = vmax.f32 %v3842, %v3844
  %v4235 = vmax.f32 %v3843, %v3845
  %v4236 = vmax.f32 %v3844, %v3846
  %v4237 = vmax.f32 %v3845, %v3847
  %v4238 = vmax.f32 %v3846, %v3848
  %v4239 = vmax.f32 %v3847, %v3849
  %v4240 = vmax.f32 %v3848, %v3850
  %v4241 = vmax.f32 %v3849, %v3851
  %v4242 = vmax.f32 %v3850, %v3852
  %v4243 = vmax.f32 %v3851, %v3853
  %v4244 = vmax.f32 %v3852, %v3854
  %v4245 = vmax.f32 %v3853, %v3855
  %v4246 = vmax.f32 %v3854, %v3856
  %v4247 = vmax.f32 %v3855, %v3857
  %v4248 = vmax.f32 %v3856, %v3858
  %v4249 = vmax.f32 %v3857, %v3859
  %v4250 = vmax.f32 %v3858, %v3860
  %v4251 = vmax.f32 %v3859, %v3861
  %v4252 = vmax.f32 %v3860, %v3862
  %v4253 = vmax.f32 %v3861, %v3863
  %v4254 = vmax.f32 %v3862, %v3864
  %v4255 = vmax.f32 %v3863, %v3865
  %v4256 = vmax.f32 %v3864, %v3866
  %v4257 = vmax.f32 %v3865, %v3867
  %v4258 = vmax.f32 %v3866, %v3868
  %v4259 = vmax.f32 %v3867, %v3869
  %v4260 = vmax.f32 %v3868, %v3870
  %v4261 = vmax.f32 %v3869, %v3871
  %v4262 = vmax.f32 %v3870, %v3872
  %v4263 = vmax.f32 %v3871, %v3873
  %v4264 = vmax.f32 %v3872, %v3874
  %v4265 = vmax.f32 %v3873, %v3875
  %v4266 = vmax.f32 %v3874, %v3876
  %v4267 = vmax.f32 %v3875, %v3877
  %v4268 = vmax.f32 %v3876, %v3878
  %v4269 = vmax.f32 %v3877, %v3879
  %v4270 = vmax.f32 %v3878, %v3880
  %v4271 = vmax.f32 %v3879, %v3881
  %v4272 = vmax.f32 %v3880, %v3882
  %v4273 = vmax.f32 %v3881, %v3883
  %v4274 = vmax.f32 %v3882, %v3884
  %v4275 = vmax.f32 %v3883, %v3885
  %v4276 = vmax.f32 %v3884, %v3886
  %v4277 = vmax.f32 %v3885, %v3887
  %v4278 = vmax.f32 %v3886, %v3888
  %v4279 = vmax.f32 %v3887, %v3889
  %v4280 = vmax.f32 %v3888, %v3890
  %v4281 = vmax.f32 %v3889, %v3891
  %v4282 = vmax.f32 %v3890, %v3892
  %v4283 = vmax.f32 %v3891, %v3893
  %v4284 = vmax.f32 %v3892, %v3894
  %v4285 = vmax.f32 %v3893, %v3895
  %v4286 = vmax.f32 %v3894, %v3896
  %v4287 = vmax.f32 %v3895, %v3897
  %v4288 = vmax.f32 %v3896, %v3898
  %v4289 = vmax.f32 %v3897, %v3899
  %v4290 = vmax.f32 %v3898, %v3900
  %v4291 = vmax.f32 %v3899, %v3901
  %v4292 = vmax.f32 %v3900, %v3902
  %v4293 = vmax.f32 %v3901, %v3903
  %v4294 = vmax.f32 %v3902, %v3904
  %v4295 = vmax.f32 %v3903, %v3905
  %v4296 = vmax.f32 %v3904, %v3906
  %v4297 = vmax.f32 %v3905, %v3907
  %v4298 = vmax.f32 %v3906, %v3908
  %v4299 = vmax.f32 %v3907, %v3909
  %v4300 = vmax.f32 %v3908, %v3910
  %v4301 = vmax.f32 %v3909, %v3911
  %v4302 = vmax.f32 %v3910, %v3912
  %v4303 = vmax.f32 %v3911, %v3913
  %v4304 = vmax.f32 %v3912, %v3914
  %v4305 = vmax.f32 %v3913, %v3915
  %v4306 = vmax.f32 %v3914, %v3916
  %v4307 = vmax.f32 %v3915, %v3917
  %v4308 = vmax.f32 %v3916, %v3918
  %v4309 = vmax.f32 %v3917, %v3919
  %v4310 = vmax.f32 %v3918, %v3920
  %v4311 = vmax.f32 %v3919, %v3921
  %v4312 = vmax.f32 %v3920, %v3922
  %v4313 = vmax.f32 %v3921, %v3923
  %v4314 = vmax.f32 %v3922, %v3924
  %v4315 = vmax.f32 %v3923, %v3925
  %v4316 = vmax.f32 %v3924, %v3926
  %v4317 = vmax.f32 %v3925, %v3927
  %v4318 = vmax.f32 %v3926, %v3928
  %v4319 = vmax.f32 %v3927, %v3929
  %v4320 = vmax.f32 %v3928, %v3930
  %v4321 = vmax.f32 %v3929, %v3931
  %v4322 = vmax.f32 %v3930, %v3932
  %v4323 = vmax.f32 %v3931, %v3933
  %v4324 = vmax.f32 %v3932, %v3934
  %v4325 = vmax.f32 %v3933, %v3935
  %v4326 = vmax.f32 %v3934, %v3936
  %v4327 = vmax.f32 %v3935, %v3937
  %v4328 = vmax.f32 %v3936, %v3938
  %v4329 = vmax.f32 %v3937, %v3939
  %v4330 = vmax.f32 %v3938, %v3940
  %v4331 = vmax.f32 %v3939, %v3941
  %v4332 = vmax.f32 %v3940, %v3942
  %v4333 = vmax.f32 %v3941, %v3943
  %v4334 = vmax.f32 %v3942, %v3944
  %v4335 = vmax.f32 %v3943, %v3945
  %v4336 = vmax.f32 %v3944, %v3946
  %v4337 = vmax.f32 %v3945, %v3947
  %v4338 = vmax.f32 %v3946, %v3948
  %v4339 = vmax.f32 %v3947, %v3949
  %v4340 = vmax.f32 %v3948, %v3950
  %v4341 = vmax.f32 %v3949, %v3951
  %v4342 = vmax.f32 %v3950, %v3952
  %v4343 = vmax.f32 %v3951, %v3953
  %v4344 = vmax.f32 %v3952, %v3954
  %v4345 = vmax.f32 %v3953, %v3955
  %v4346 = vmax.f32 %v3954, %v3956
  %v4347 = vmax.f32 %v3955, %v3957
  %v4348 = vmax.f32 %v3956, %v3958
  %v4349 = vmax.f32 %v3957, %v3959
  %v4350 = vmax.f32 %v3958, %v3960
  %v4351 = vmax.f32 %v3959, %v3961
  %v4352 = vmax.f32 %v3960, %v3962
  %v4353 = vmax.f32 %v3961, %v3963
  %v4354 = vmax.f32 %v3962, %v3964
  %v4355 = vmax.f32 %v3963, %v3965
  %v4356 = vmax.f32 %v3964, %v3966
  %v4357 = vmax.f32 %v3965, %v3967
  %v4358 = vmax.f32 %v3966, %v3968
  %v4359 = vmax.f32 %v3967, %v3969
  %v4360 = vmax.f32 %v3968, %v3970
  %v4361 = vmax.f32 %v3969, %v3971
  %v4362 = vmax.f32 %v3970, %v3972
  %v4363 = vmax.f32 %v3971, %v3973
  %v4364 = vmax.f32 %v3972, %v3974
  %v4365 = vmax.f32 %v3973, %v3975
  %v4366 = vmax.f32 %v3974, %v3976
  %v4367 = vmax.f32 %v3975, %v3977
  %v4368 = vmax.f32 %v3976, %v3978
  %v4369 = vmax.f32 %v3977, %v3979
  %v4370 = vmax.f32 %v3978, %v3980
  %v4371 = vmax.f32 %v3979, %v3981
  %v4372 = vmax.f32 %v3980, %v3982
  %v4373 = vmax.f32 %v3981, %v3983
  %v4374 = vmax.f32 %v3982, %v3984
  %v4375 = vmax.f32 %v3983, %v3985
  %v4376 = vmax.f32 %v3984, %v3986
  %v4377 = vmax.f32 %v3985, %v3987
  %v4378 = vmax.f32 %v3986, %v3988
  %v4379 = vmax.f32 %v3987, %v3989
  %v4380 = vmax.f32 %v3988, %v3990
  %v4381 = vmax.f32 %v3989, %v3991
  %v4382 = vmax.f32 %v3990, %v3992
  %v4383 = vmax.f32 %v3991, %v3993
  %v4384 = vmax.f32 %v3992, %v3994
  %v4385 = vmax.f32 %v3993, %v3995
  %v4386 = vmax.f32 %v3994, %v3996
  %v4387 = vmax.f32 %v3995, %v3997
  %v4388 = vmax.f32 %v3996, %v3998
  %v4389 = vmax.f32 %v3997, %v3999
  %v4390 = vmax.f32 %v3998, %v4000
  %v4391 = vmax.f32 %v3999, %v4001
  %v4392 = vmax.f32 %v4000, %v4002
  %v4393 = vmax.f32 %v4001, %v4003
  %v4394 = vmax.f32 %v4002, %v4004
  %v4395 = vmax.f32 %v4003, %v4005
  %v4396 = vmax.f32 %v4004, %v4006
  %v4397 = vmax.f32 %v4005, %v4007
  %v4398 = vmax.f32 %v4006, 0.0
  %v4399 = vmax.f32 %v4007, 0.0
  %v4400 = vmax.f32 %v4008, %v4036
  %v4401 = vmax.f32 %v4009, %v4037
  %v4402 = vmax.f32 %v4010, %v4038
  %v4403 = vmax.f32 %v4011, %v4039
  %v4404 = vmax.f32 %v4012, %v4040
  %v4405 = vmax.f32 %v4013, %v4041
  %v4406 = vmax.f32 %v4014, %v4042
  %v4407 = vmax.f32 %v4015, %v4043
  %v4408 = vmax.f32 %v4016, %v4044
  %v4409 = vmax.f32 %v4017, %v4045
  %v4410 = vmax.f32 %v4018, %v4046
  %v4411 = vmax.f32 %v4019, %v4047
  %v4412 = vmax.f32 %v4020, %v4048
  %v4413 = vmax.f32 %v4021, %v4049
  %v4414 = vmax.f32 %v4022, %v4050
  %v4415 = vmax.f32 %v4023, %v4051
  %v4416 = vmax.f32 %v4024, %v4052
  %v4417 = vmax.f32 %v4025, %v4053
  %v4418 = vmax.f32 %v4026, %v4054
  %v4419 = vmax.f32 %v4027, %v4055
  %v4420 = vmax.f32 %v4028, %v4056
  %v4421 = vmax.f32 %v4029, %v4057
  %v4422 = vmax.f32 %v4030, %v4058
  %v4423 = vmax.f32 %v4031, %v4059
  %v4424 = vmax.f32 %v4032, %v4060
  %v4425 = vmax.f32 %v4033, %v4061
  %v4426 = vmax.f32 %v4034, %v4062
  %v4427 = vmax.f32 %v4035, %v4063
  %v4428 = vmax.f32 %v4036, %v4064
  %v4429 = vmax.f32 %v4037, %v4065
  %v4430 = vmax.f32 %v4038, %v4066
  %v4431 = vmax.f32 %v4039, %v4067
  %v4432 = vmax.f32 %v4040, %v4068
  %v4433 = vmax.f32 %v4041, %v4069
  %v4434 = vmax.f32 %v4042, %v4070
  %v4435 = vmax.f32 %v4043, %v4071
  %v4436 = vmax.f32 %v4044, %v4072
  %v4437 = vmax.f32 %v4045, %v4073
  %v4438 = vmax.f32 %v4046, %v4074
  %v4439 = vmax.f32 %v4047, %v4075
  %v4440 = vmax.f32 %v4048, %v4076
  %v4441 = vmax.f32 %v4049, %v4077
  %v4442 = vmax.f32 %v4050, %v4078
  %v4443 = vmax.f32 %v4051, %v4079
  %v4444 = vmax.f32 %v4052, %v4080
  %v4445 = vmax.f32 %v4053, %v4081
  %v4446 = vmax.f32 %v4054, %v4082
  %v4447 = vmax.f32 %v4055, %v4083
  %v4448 = vmax.f32 %v4056, %v4084
  %v4449 = vmax.f32 %v4057, %v4085
  %v4450 = vmax.f32 %v4058, %v4086
  %v4451 = vmax.f32 %v4059, %v4087
  %v4452 = vmax.f32 %v4060, %v4088
  %v4453 = vmax.f32 %v4061, %v4089
  %v4454 = vmax.f32 %v4062, %v4090
  %v4455 = vmax.f32 %v4063, %v4091
  %v4456 = vmax.f32 %v4064, %v4092
  %v4457 = vmax.f32 %v4065, %v4093
  %v4458 = vmax.f32 %v4066, %v4094
  %v4459 = vmax.f32 %v4067, %v4095
  %v4460 = vmax.f32 %v4068, %v4096
  %v4461 = vmax.f32 %v4069, %v4097
  %v4462 = vmax.f32 %v4070, %v4098
  %v4463 = vmax.f32 %v4071, %v4099
  %v4464 = vmax.f32 %v4072, %v4100
  %v4465 = vmax.f32 %v4073, %v4101
  %v4466 = vmax.f32 %v4074, %v4102
  %v4467 = vmax.f32 %v4075, %v4103
  %v4468 = vmax.f32 %v4076, %v4104
  %v4469 = vmax.f32 %v4077, %v4105
  %v4470 = vmax.f32 %v4078, %v4106
  %v4471 = vmax.f32 %v4079, %v4107
  %v4472 = vmax.f32 %v4080, %v4108
  %v4473 = vmax.f32 %v4081, %v4109
  %v4474 = vmax.f32 %v4082, %v4110
  %v4475 = vmax.f32 %v4083, %v4111
  %v4476 = vmax.f32 %v4084, %v4112
  %v4477 = vmax.f32 %v4085, %v4113
  %v4478 = vmax.f32 %v4086, %v4114
  %v4479 = vmax.f32 %v4087, %v4115
  %v4480 = vmax.f32 %v4088, %v4116
  %v4481 = vmax.f32 %v4089, %v4117
  %v4482 = vmax.f32 %v4090, %v4118
  %v4483 = vmax.f32 %v4091, %v4119
  %v4484 = vmax.f32 %v4092, %v4120
  %v4485 = vmax.f32 %v4093, %v4121
  %v4486 = vmax.f32 %v4094, %v4122
  %v4487 = vmax.f32 %v4095, %v4123
  %v4488 = vmax.f32 %v4096, %v4124
  %v4489 = vmax.f32 %v4097, %v4125
  %v4490 = vmax.f32 %v4098, %v4126
  %v4491 = vmax.f32 %v4099, %v4127
  %v4492 = vmax.f32 %v4100, %v4128
  %v4493 = vmax.f32 %v4101, %v4129
  %v4494 = vmax.f32 %v4102, %v4130
  %v4495 = vmax.f32 %v4103, %v4131
  %v4496 = vmax.f32 %v4104, %v4132
  %v4497 = vmax.f32 %v4105, %v4133
  %v4498 = vmax.f32 %v4106, %v4134
  %v4499 = vmax.f32 %v4107, %v4135
  %v4500 = vmax.f32 %v4108, %v4136
  %v4501 = vmax.f32 %v4109, %v4137
  %v4502 = vmax.f32 %v4110, %v4138
  %v4503 = vmax.f32 %v4111, %v4139
  %v4504 = vmax.f32 %v4112, %v4140
  %v4505 = vmax.f32 %v4113, %v4141
  %v4506 = vmax.f32 %v4114, %v4142
  %v4507 = vmax.f32 %v4115, %v4143
  %v4508 = vmax.f32 %v4116, %v4144
  %v4509 = vmax.f32 %v4117, %v4145
  %v4510 = vmax.f32 %v4118, %v4146
  %v4511 = vmax.f32 %v4119, %v4147
  %v4512 = vmax.f32 %v4120, %v4148
  %v4513 = vmax.f32 %v4121, %v4149
  %v4514 = vmax.f32 %v4122, %v4150
  %v4515 = vmax.f32 %v4123, %v4151
  %v4516 = vmax.f32 %v4124, %v4152
  %v4517 = vmax.f32 %v4125, %v4153
  %v4518 = vmax.f32 %v4126, %v4154
  %v4519 = vmax.f32 %v4127, %v4155
  %v4520 = vmax.f32 %v4128, %v4156
  %v4521 = vmax.f32 %v4129, %v4157
  %v4522 = vmax.f32 %v4130, %v4158
  %v4523 = vmax.f32 %v4131, %v4159
  %v4524 = vmax.f32 %v4132, %v4160
  %v4525 = vmax.f32 %v4133, %v4161
  %v4526 = vmax.f32 %v4134, %v4162
  %v4527 = vmax.f32 %v4135, %v4163
  %v4528 = vmax.f32 %v4136, %v4164
  %v4529 = vmax.f32 %v4137, %v4165
  %v4530 = vmax.f32 %v4138, %v4166
  %v4531 = vmax.f32 %v4139, %v4167
  %v4532 = vmax.f32 %v4140, %v4168
  %v4533 = vmax.f32 %v4141, %v4169
  %v4534 = vmax.f32 %v4142, %v4170
  %v4535 = vmax.f32 %v4143, %v4171
  %v4536 = vmax.f32 %v4144, %v4172
  %v4537 = vmax.f32 %v4145, %v4173
  %v4538 = vmax.f32 %v4146, %v4174
  %v4539 = vmax.f32 %v4147, %v4175
  %v4540 = vmax.f32 %v4148, %v4176
  %v4541 = vmax.f32 %v4149, %v4177
  %v4542 = vmax.f32 %v4150, %v4178
  %v4543 = vmax.f32 %v4151, %v4179
  %v4544 = vmax.f32 %v4152, %v4180
  %v4545 = vmax.f32 %v4153, %v4181
  %v4546 = vmax.f32 %v4154, %v4182
  %v4547 = vmax.f32 %v4155, %v4183
  %v4548 = vmax.f32 %v4156, %v4184
  %v4549 = vmax.f32 %v4157, %v4185
  %v4550 = vmax.f32 %v4158, %v4186
  %v4551 = vmax.f32 %v4159, %v4187
  %v4552 = vmax.f32 %v4160, %v4188
  %v4553 = vmax.f32 %v4161, %v4189
  %v4554 = vmax.f32 %v4162, %v4190
  %v4555 = vmax.f32 %v4163, %v4191
  %v4556 = vmax.f32 %v4164, %v4192
  %v4557 = vmax.f32 %v4165, %v4193
  %v4558 = vmax.f32 %v4166, %v4194
  %v4559 = vmax.f32 %v4167, %v4195
  %v4560 = vmax.f32 %v4168, %v4196
  %v4561 = vmax.f32 %v4169, %v4197
  %v4562 = vmax.f32 %v4170, %v4198
  %v4563 = vmax.f32 %v4171, %v4199
  %v4564 = vmax.f32 %v4172, %v4200
  %v4565 = vmax.f32 %v4173, %v4201
  %v4566 = vmax.f32 %v4174, %v4202
  %v4567 = vmax.f32 %v4175, %v4203
  %v4568 = vmax.f32 %v4176, %v4204
  %v4569 = vmax.f32 %v4177, %v4205
  %v4570 = vmax.f32 %v4178, %v4206
  %v4571 = vmax.f32 %v4179, %v4207
  %v4572 = vmax.f32 %v4180, %v4208
  %v4573 = vmax.f32 %v4181, %v4209
  %v4574 = vmax.f32 %v4182, %v4210
  %v4575 = vmax.f32 %v4183, %v4211
  %v4576 = vmax.f32 %v4184, %v4212
  %v4577 = vmax.f32 %v4185, %v4213
  %v4578 = vmax.f32 %v4186, %v4214
  %v4579 = vmax.f32 %v4187, %v4215
  %v4580 = vmax.f32 %v4188, %v4216
  %v4581 = vmax.f32 %v4189, %v4217
  %v4582 = vmax.f32 %v4190, %v4218
  %v4583 = vmax.f32 %v4191, %v4219
  %v4584 = vmax.f32 %v4192, %v4220
  %v4585 = vmax.f32 %v4193, %v4221
  %v4586 = vmax.f32 %v4194, %v4222
  %v4587 = vmax.f32 %v4195, %v4223
  %v4588 = vmax.f32 %v4196, %v4224
  %v4589 = vmax.f32 %v4197, %v4225
  %v4590 = vmax.f32 %v4198, %v4226
  %v4591 = vmax.f32 %v4199, %v4227
  %v4592 = vmax.f32 %v4200, %v4228
  %v4593 = vmax.f32 %v4201, %v4229
  %v4594 = vmax.f32 %v4202, %v4230
  %v4595 = vmax.f32 %v4203, %v4231
  %v4596 = vmax.f32 %v4204, %v4232
  %v4597 = vmax.f32 %v4205, %v4233
  %v4598 = vmax.f32 %v4206, %v4234
  %v4599 = vmax.f32 %v4207, %v4235
  %v4600 = vmax.f32 %v4208, %v4236
  %v4601 = vmax.f32 %v4209, %v4237
  %v4602 = vmax.f32 %v4210, %v4238
  %v4603 = vmax.f32 %v4211, %v4239
  %v4604 = vmax.f32 %v4212, %v4240
  %v4605 = vmax.f32 %v4213, %v4241
  %v4606 = vmax.f32 %v4214, %v4242
  %v4607 = vmax.f32 %v4215, %v4243
  %v4608 = vmax.f32 %v4216, %v4244
  %v4609 = vmax.f32 %v4217, %v4245
  %v4610 = vmax.f32 %v4218, %v4246
  %v4611 = vmax.f32 %v4219, %v4247
  %v4612 = vmax.f32 %v4220, %v4248
  %v4613 = vmax.f32 %v4221, %v4249
  %v4614 = vmax.f32 %v4222, %v4250
  %v4615 = vmax.f32 %v4223, %v4251
  %v4616 = vmax.f32 %v4224, %v4252
  %v4617 = vmax.f32 %v4225, %v4253
  %v4618 = vmax.f32 %v4226, %v4254
  %v4619 = vmax.f32 %v4227, %v4255
  %v4620 = vmax.f32 %v4228, %v4256
  %v4621 = vmax.f32 %v4229, %v4257
  %v4622 = vmax.f32 %v4230, %v4258
  %v4623 = vmax.f32 %v4231, %v4259
  %v4624 = vmax.f32 %v4232, %v4260
  %v4625 = vmax.f32 %v4233, %v4261
  %v4626 = vmax.f32 %v4234, %v4262
  %v4627 = vmax.f32 %v4235, %v4263
  %v4628 = vmax.f32 %v4236, %v4264
  %v4629 = vmax.f32 %v4237, %v4265
  %v4630 = vmax.f32 %v4238, %v4266
  %v4631 = vmax.f32 %v4239, %v4267
  %v4632 = vmax.f32 %v4240, %v4268
  %v4633 = vmax.f32 %v4241, %v4269
  %v4634 = vmax.f32 %v4242, %v4270
  %v4635 = vmax.f32 %v4243, %v4271
  %v4636 = vmax.f32 %v4244, %v4272
  %v4637 = vmax.f32 %v4245, %v4273
  %v4638 = vmax.f32 %v4246, %v4274
  %v4639 = vmax.f32 %v4247, %v4275
  %v4640 = vmax.f32 %v4248, %v4276
  %v4641 = vmax.f32 %v4249, %v4277
  %v4642 = vmax.f32 %v4250, %v4278
  %v4643 = vmax.f32 %v4251, %v4279
  %v4644 = vmax.f32 %v4252, %v4280
  %v4645 = vmax.f32 %v4253, %v4281
  %v4646 = vmax.f32 %v4254, %v4282
  %v4647 = vmax.f32 %v4255, %v4283
  %v4648 = vmax.f32 %v4256, %v4284
  %v4649 = vmax.f32 %v4257, %v4285
  %v4650 = vmax.f32 %v4258, %v4286
  %v4651 = vmax.f32 %v4259, %v4287
  %v4652 = vmax.f32 %v4260, %v4288
  %v4653 = vmax.f32 %v4261, %v4289
  %v4654 = vmax.f32 %v4262, %v4290
  %v4655 = vmax.f32 %v4263, %v4291
  %v4656 = vmax.f32 %v4264, %v4292
  %v4657 = vmax.f32 %v4265, %v4293
  %v4658 = vmax.f32 %v4266, %v4294
  %v4659 = vmax.f32 %v4267, %v4295
  %v4660 = vmax.f32 %v4268, %v4296
  %v4661 = vmax.f32 %v4269, %v4297
  %v4662 = vmax.f32 %v4270, %v4298
  %v4663 = vmax.f32 %v4271, %v4299
  %v4664 = vmax.f32 %v4272, %v4300
  %v4665 = vmax.f32 %v4273, %v4301
  %v4666 = vmax.f32 %v4274, %v4302
  %v4667 = vmax.f32 %v4275, %v4303
  %v4668 = vmax.f32 %v4276, %v4304
  %v4669 = vmax.f32 %v4277, %v4305
  %v4670 = vmax.f32 %v4278, %v4306
  %v4671 = vmax.f32 %v4279, %v4307
  %v4672 = vmax.f32 %v4280, %v4308
  %v4673 = vmax.f32 %v4281, %v4309
  %v4674 = vmax.f32 %v4282, %v4310
  %v4675 = vmax.f32 %v4283, %v4311
  %v4676 = vmax.f32 %v4284, %v4312
  %v4677 = vmax.f32 %v4285, %v4313
  %v4678 = vmax.f32 %v4286, %v4314
  %v4679 = vmax.f32 %v4287, %v4315
  %v4680 = vmax.f32 %v4288, %v4316
  %v4681 = vmax.f32 %v4289, %v4317
  %v4682 = vmax.f32 %v4290, %v4318
  %v4683 = vmax.f32 %v4291, %v4319
  %v4684 = vmax.f32 %v4292, %v4320
  %v4685 = vmax.f32 %v4293, %v4321
  %v4686 = vmax.f32 %v4294, %v4322
  %v4687 = vmax.f32 %v4295, %v4323
  %v4688 = vmax.f32 %v4296, %v4324
  %v4689 = vmax.f32 %v4297, %v4325
  %v4690 = vmax.f32 %v4298, %v4326
  %v4691 = vmax.f32 %v4299, %v4327
  %v4692 = vmax.f32 %v4300, %v4328
  %v4693 = vmax.f32 %v4301, %v4329
  %v4694 = vmax.f32 %v4302, %v4330
  %v4695 = vmax.f32 %v4303, %v4331
  %v4696 = vmax.f32 %v4304, %v4332
  %v4697 = vmax.f32 %v4305, %v4333
  %v4698 = vmax.f32 %v4306, %v4334
  %v4699 = vmax.f32 %v4307, %v4335
  %v4700 = vmax.f32 %v4308, %v4336
  %v4701 = vmax.f32 %v4309, %v4337
  %v4702 = vmax.f32 %v4310, %v4338
  %v4703 = vmax.f32 %v4311, %v4339
  %v4704 = vmax.f32 %v4312, %v4340
  %v4705 = vmax.f32 %v4313, %v4341
  %v4706 = vmax.f32 %v4314, %v4342
  %v4707 = vmax.f32 %v4315, %v4343
  %v4708 = vmax.f32 %v4316, %v4344
  %v4709 = vmax.f32 %v4317, %v4345
  %v4710 = vmax.f32 %v4318, %v4346
  %v4711 = vmax.f32 %v4319, %v4347
  %v4712 = vmax.f32 %v4320, %v4348
  %v4713 = vmax.f32 %v4321, %v4349
  %v4714 = vmax.f32 %v4322, %v4350
  %v4715 = vmax.f32 %v4323, %v4351
  %v4716 = vmax.f32 %v4324, %v4352
  %v4717 = vmax.f32 %v4325, %v4353
  %v4718 = vmax.f32 %v4326, %v4354
  %v4719 = vmax.f32 %v4327, %v4355
  %v4720 = vmax.f32 %v4328, %v4356
  %v4721 = vmax.f32 %v4329, %v4357
  %v4722 = vmax.f32 %v4330, %v4358
  %v4723 = vmax.f32 %v4331, %v4359
  %v4724 = vmax.f32 %v4332, %v4360
  %v4725 = vmax.f32 %v4333, %v4361
  %v4726 = vmax.f32 %v4334, %v4362
  %v4727 = vmax.f32 %v4335, %v4363
  %v4728 = vmax.f32 %v4336, %v4364
  %v4729 = vmax.f32 %v4337, %v4365
  %v4730 = vmax.f32 %v4338, %v4366
  %v4731 = vmax.f32 %v4339, %v4367
  %v4732 = vmax.f32 %v4340, %v4368
  %v4733 = vmax.f32 %v4341, %v4369
  %v4734 = vmax.f32 %v4342, %v4370
  %v4735 = vmax.f32 %v4343, %v4371
  %v4736 = vmax.f32 %v4344, %v4372
  %v4737 = vmax.f32 %v4345, %v4373
  %v4738 = vmax.f32 %v4346, %v4374
  %v4739 = vmax.f32 %v4347, %v4375
  %v4740 = vmax.f32 %v4348, %v4376
  %v4741 = vmax.f32 %v4349, %v4377
  %v4742 = vmax.f32 %v4350, %v4378
  %v4743 = vmax.f32 %v4351, %v4379
  %v4744 = vmax.f32 %v4352, %v4380
  %v4745 = vmax.f32 %v4353, %v4381
  %v4746 = vmax.f32 %v4354, %v4382
  %v4747 = vmax.f32 %v4355, %v4383
  %v4748 = vmax.f32 %v4356, %v4384
  %v4749 = vmax.f32 %v4357, %v4385
  %v4750 = vmax.f32 %v4358, %v4386
  %v4751 = vmax.f32 %v4359, %v4387
  %v4752 = vmax.f32 %v4360, %v4388
  %v4753 = vmax.f32 %v4361, %v4389
  %v4754 = vmax.f32 %v4362, %v4390
  %v4755 = vmax.f32 %v4363, %v4391
  %v4756 = vmax.f32 %v4364, %v4392
  %v4757 = vmax.f32 %v4365, %v4393
  %v4758 = vmax.f32 %v4366, %v4394
  %v4759 = vmax.f32 %v4367, %v4395
  %v4760 = vmax.f32 %v4368, %v4396
  %v4761 = vmax.f32 %v4369, %v4397
  %v4762 = vmax.f32 %v4370, %v4398
  %v4763 = vmax.f32 %v4371, %v4399
  %v4764 = vmax.f32 %v4372, 0.0
  %v4765 = vmax.f32 %v4373, 0.0
  %v4766 = vmax.f32 %v4374, 0.0
  %v4767 = vmax.f32 %v4375, 0.0
  %v4768 = vmax.f32 %v4376, 0.0
  %v4769 = vmax.f32 %v4377, 0.0
  %v4770 = vmax.f32 %v4378, 0.0
  %v4771 = vmax.f32 %v4379, 0.0
  %v4772 = vmax.f32 %v4380, 0.0
  %v4773 = vmax.f32 %v4381, 0.0
  %v4774 = vmax.f32 %v4382, 0.0
  %v4775 = vmax.f32 %v4383, 0.0
  %v4776 = vmax.f32 %v4384, 0.0
  %v4777 = vmax.f32 %v4385, 0.0
  %v4778 = vmax.f32 %v4386, 0.0
  %v4779 = vmax.f32 %v4387, 0.0
  %v4780 = vmax.f32 %v4388, 0.0
  %v4781 = vmax.f32 %v4389, 0.0
  %v4782 = vmax.f32 %v4390, 0.0
  %v4783 = vmax.f32 %v4391, 0.0
  %v4784 = vmax.f32 %v4392, 0.0
  %v4785 = vmax.f32 %v4393, 0.0
  %v4786 = vmax.f32 %v4394, 0.0
  %v4787 = vmax.f32 %v4395, 0.0
  %v4788 = vmax.f32 %v4396, 0.0
  %v4789 = vmax.f32 %v4397, 0.0
  %v4790 = vmax.f32 %v4398, 0.0
  %v4791 = vmax.f32 %v4399, 0.0
  %v4792 = vpack.c.bf16 %v4401, %v4400
  %v4793 = vpack.c.bf16 %v4403, %v4402
  %v4794 = vpack.c.bf16 %v4405, %v4404
  %v4795 = vpack.c.bf16 %v4407, %v4406
  %v4796 = vpack.c.bf16 %v4409, %v4408
  %v4797 = vpack.c.bf16 %v4411, %v4410
  %v4798 = vpack.c.bf16 %v4413, %v4412
  %v4799 = vpack.c.bf16 %v4415, %v4414
  %v4800 = vpack.c.bf16 %v4417, %v4416
  %v4801 = vpack.c.bf16 %v4419, %v4418
  %v4802 = vpack.c.bf16 %v4421, %v4420
  %v4803 = vpack.c.bf16 %v4423, %v4422
  %v4804 = vpack.c.bf16 %v4425, %v4424
  %v4805 = vpack.c.bf16 %v4427, %v4426
  %v4806 = vpack.c.bf16 %v4429, %v4428
  %v4807 = vpack.c.bf16 %v4431, %v4430
  %v4808 = vpack.c.bf16 %v4433, %v4432
  %v4809 = vpack.c.bf16 %v4435, %v4434
  %v4810 = vpack.c.bf16 %v4437, %v4436
  %v4811 = vpack.c.bf16 %v4439, %v4438
  %v4812 = vpack.c.bf16 %v4441, %v4440
  %v4813 = vpack.c.bf16 %v4443, %v4442
  %v4814 = vpack.c.bf16 %v4445, %v4444
  %v4815 = vpack.c.bf16 %v4447, %v4446
  %v4816 = vpack.c.bf16 %v4449, %v4448
  %v4817 = vpack.c.bf16 %v4451, %v4450
  %v4818 = vpack.c.bf16 %v4453, %v4452
  %v4819 = vpack.c.bf16 %v4455, %v4454
  %v4820 = vpack.c.bf16 %v4457, %v4456
  %v4821 = vpack.c.bf16 %v4459, %v4458
  %v4822 = vpack.c.bf16 %v4461, %v4460
  %v4823 = vpack.c.bf16 %v4463, %v4462
  %v4824 = vpack.c.bf16 %v4465, %v4464
  %v4825 = vpack.c.bf16 %v4467, %v4466
  %v4826 = vpack.c.bf16 %v4469, %v4468
  %v4827 = vpack.c.bf16 %v4471, %v4470
  %v4828 = vpack.c.bf16 %v4473, %v4472
  %v4829 = vpack.c.bf16 %v4475, %v4474
  %v4830 = vpack.c.bf16 %v4477, %v4476
  %v4831 = vpack.c.bf16 %v4479, %v4478
  %v4832 = vpack.c.bf16 %v4481, %v4480
  %v4833 = vpack.c.bf16 %v4483, %v4482
  %v4834 = vpack.c.bf16 %v4485, %v4484
  %v4835 = vpack.c.bf16 %v4487, %v4486
  %v4836 = vpack.c.bf16 %v4489, %v4488
  %v4837 = vpack.c.bf16 %v4491, %v4490
  %v4838 = vpack.c.bf16 %v4493, %v4492
  %v4839 = vpack.c.bf16 %v4495, %v4494
  %v4840 = vpack.c.bf16 %v4497, %v4496
  %v4841 = vpack.c.bf16 %v4499, %v4498
  %v4842 = vpack.c.bf16 %v4501, %v4500
  %v4843 = vpack.c.bf16 %v4503, %v4502
  %v4844 = vpack.c.bf16 %v4505, %v4504
  %v4845 = vpack.c.bf16 %v4507, %v4506
  %v4846 = vpack.c.bf16 %v4509, %v4508
  %v4847 = vpack.c.bf16 %v4511, %v4510
  %v4848 = vpack.c.bf16 %v4513, %v4512
  %v4849 = vpack.c.bf16 %v4515, %v4514
  %v4850 = vpack.c.bf16 %v4517, %v4516
  %v4851 = vpack.c.bf16 %v4519, %v4518
  %v4852 = vpack.c.bf16 %v4521, %v4520
  %v4853 = vpack.c.bf16 %v4523, %v4522
  %v4854 = vpack.c.bf16 %v4525, %v4524
  %v4855 = vpack.c.bf16 %v4527, %v4526
  %v4856 = vpack.c.bf16 %v4529, %v4528
  %v4857 = vpack.c.bf16 %v4531, %v4530
  %v4858 = vpack.c.bf16 %v4533, %v4532
  %v4859 = vpack.c.bf16 %v4535, %v4534
  %v4860 = vpack.c.bf16 %v4537, %v4536
  %v4861 = vpack.c.bf16 %v4539, %v4538
  %v4862 = vpack.c.bf16 %v4541, %v4540
  %v4863 = vpack.c.bf16 %v4543, %v4542
  %v4864 = vpack.c.bf16 %v4545, %v4544
  %v4865 = vpack.c.bf16 %v4547, %v4546
  %v4866 = vpack.c.bf16 %v4549, %v4548
  %v4867 = vpack.c.bf16 %v4551, %v4550
  %v4868 = vpack.c.bf16 %v4553, %v4552
  %v4869 = vpack.c.bf16 %v4555, %v4554
  %v4870 = vpack.c.bf16 %v4557, %v4556
  %v4871 = vpack.c.bf16 %v4559, %v4558
  %v4872 = vpack.c.bf16 %v4561, %v4560
  %v4873 = vpack.c.bf16 %v4563, %v4562
  %v4874 = vpack.c.bf16 %v4565, %v4564
  %v4875 = vpack.c.bf16 %v4567, %v4566
  %v4876 = vpack.c.bf16 %v4569, %v4568
  %v4877 = vpack.c.bf16 %v4571, %v4570
  %v4878 = vpack.c.bf16 %v4573, %v4572
  %v4879 = vpack.c.bf16 %v4575, %v4574
  %v4880 = vpack.c.bf16 %v4577, %v4576
  %v4881 = vpack.c.bf16 %v4579, %v4578
  %v4882 = vpack.c.bf16 %v4581, %v4580
  %v4883 = vpack.c.bf16 %v4583, %v4582
  %v4884 = vpack.c.bf16 %v4585, %v4584
  %v4885 = vpack.c.bf16 %v4587, %v4586
  %v4886 = vpack.c.bf16 %v4589, %v4588
  %v4887 = vpack.c.bf16 %v4591, %v4590
  %v4888 = vpack.c.bf16 %v4593, %v4592
  %v4889 = vpack.c.bf16 %v4595, %v4594
  %v4890 = vpack.c.bf16 %v4597, %v4596
  %v4891 = vpack.c.bf16 %v4599, %v4598
  %v4892 = vpack.c.bf16 %v4601, %v4600
  %v4893 = vpack.c.bf16 %v4603, %v4602
  %v4894 = vpack.c.bf16 %v4605, %v4604
  %v4895 = vpack.c.bf16 %v4607, %v4606
  %v4896 = vpack.c.bf16 %v4609, %v4608
  %v4897 = vpack.c.bf16 %v4611, %v4610
  %v4898 = vpack.c.bf16 %v4613, %v4612
  %v4899 = vpack.c.bf16 %v4615, %v4614
  %v4900 = vpack.c.bf16 %v4617, %v4616
  %v4901 = vpack.c.bf16 %v4619, %v4618
  %v4902 = vpack.c.bf16 %v4621, %v4620
  %v4903 = vpack.c.bf16 %v4623, %v4622
  %v4904 = vpack.c.bf16 %v4625, %v4624
  %v4905 = vpack.c.bf16 %v4627, %v4626
  %v4906 = vpack.c.bf16 %v4629, %v4628
  %v4907 = vpack.c.bf16 %v4631, %v4630
  %v4908 = vpack.c.bf16 %v4633, %v4632
  %v4909 = vpack.c.bf16 %v4635, %v4634
  %v4910 = vpack.c.bf16 %v4637, %v4636
  %v4911 = vpack.c.bf16 %v4639, %v4638
  %v4912 = vpack.c.bf16 %v4641, %v4640
  %v4913 = vpack.c.bf16 %v4643, %v4642
  %v4914 = vpack.c.bf16 %v4645, %v4644
  %v4915 = vpack.c.bf16 %v4647, %v4646
  %v4916 = vpack.c.bf16 %v4649, %v4648
  %v4917 = vpack.c.bf16 %v4651, %v4650
  %v4918 = vpack.c.bf16 %v4653, %v4652
  %v4919 = vpack.c.bf16 %v4655, %v4654
  %v4920 = vpack.c.bf16 %v4657, %v4656
  %v4921 = vpack.c.bf16 %v4659, %v4658
  %v4922 = vpack.c.bf16 %v4661, %v4660
  %v4923 = vpack.c.bf16 %v4663, %v4662
  %v4924 = vpack.c.bf16 %v4665, %v4664
  %v4925 = vpack.c.bf16 %v4667, %v4666
  %v4926 = vpack.c.bf16 %v4669, %v4668
  %v4927 = vpack.c.bf16 %v4671, %v4670
  %v4928 = vpack.c.bf16 %v4673, %v4672
  %v4929 = vpack.c.bf16 %v4675, %v4674
  %v4930 = vpack.c.bf16 %v4677, %v4676
  %v4931 = vpack.c.bf16 %v4679, %v4678
  %v4932 = vpack.c.bf16 %v4681, %v4680
  %v4933 = vpack.c.bf16 %v4683, %v4682
  %v4934 = vpack.c.bf16 %v4685, %v4684
  %v4935 = vpack.c.bf16 %v4687, %v4686
  %v4936 = vpack.c.bf16 %v4689, %v4688
  %v4937 = vpack.c.bf16 %v4691, %v4690
  %v4938 = vpack.c.bf16 %v4693, %v4692
  %v4939 = vpack.c.bf16 %v4695, %v4694
  %v4940 = vpack.c.bf16 %v4697, %v4696
  %v4941 = vpack.c.bf16 %v4699, %v4698
  %v4942 = vpack.c.bf16 %v4701, %v4700
  %v4943 = vpack.c.bf16 %v4703, %v4702
  %v4944 = vpack.c.bf16 %v4705, %v4704
  %v4945 = vpack.c.bf16 %v4707, %v4706
  %v4946 = vpack.c.bf16 %v4709, %v4708
  %v4947 = vpack.c.bf16 %v4711, %v4710
  %v4948 = vpack.c.bf16 %v4713, %v4712
  %v4949 = vpack.c.bf16 %v4715, %v4714
  %v4950 = vpack.c.bf16 %v4717, %v4716
  %v4951 = vpack.c.bf16 %v4719, %v4718
  %v4952 = vpack.c.bf16 %v4721, %v4720
  %v4953 = vpack.c.bf16 %v4723, %v4722
  %v4954 = vpack.c.bf16 %v4725, %v4724
  %v4955 = vpack.c.bf16 %v4727, %v4726
  %v4956 = vpack.c.bf16 %v4729, %v4728
  %v4957 = vpack.c.bf16 %v4731, %v4730
  %v4958 = vpack.c.bf16 %v4733, %v4732
  %v4959 = vpack.c.bf16 %v4735, %v4734
  %v4960 = vpack.c.bf16 %v4737, %v4736
  %v4961 = vpack.c.bf16 %v4739, %v4738
  %v4962 = vpack.c.bf16 %v4741, %v4740
  %v4963 = vpack.c.bf16 %v4743, %v4742
  %v4964 = vpack.c.bf16 %v4745, %v4744
  %v4965 = vpack.c.bf16 %v4747, %v4746
  %v4966 = vpack.c.bf16 %v4749, %v4748
  %v4967 = vpack.c.bf16 %v4751, %v4750
  %v4968 = vpack.c.bf16 %v4753, %v4752
  %v4969 = vpack.c.bf16 %v4755, %v4754
  %v4970 = vpack.c.bf16 %v4757, %v4756
  %v4971 = vpack.c.bf16 %v4759, %v4758
  %v4972 = vpack.c.bf16 %v4761, %v4760
  %v4973 = vpack.c.bf16 %v4763, %v4762
  %v4974 = vpack.c.bf16 %v4765, %v4764
  %v4975 = vpack.c.bf16 %v4767, %v4766
  %v4976 = vpack.c.bf16 %v4769, %v4768
  %v4977 = vpack.c.bf16 %v4771, %v4770
  %v4978 = vpack.c.bf16 %v4773, %v4772
  %v4979 = vpack.c.bf16 %v4775, %v4774
  %v4980 = vpack.c.bf16 %v4777, %v4776
  %v4981 = vpack.c.bf16 %v4779, %v4778
  %v4982 = vpack.c.bf16 %v4781, %v4780
  %v4983 = vpack.c.bf16 %v4783, %v4782
  %v4984 = vpack.c.bf16 %v4785, %v4784
  %v4985 = vpack.c.bf16 %v4787, %v4786
  %v4986 = vpack.c.bf16 %v4789, %v4788
  %v4987 = vpack.c.bf16 %v4791, %v4790
  %v5184 = vunpack.c.l.b16 %v4792
  %v5185 = vunpack.c.h.b16 %v4792
  %v5186 = vunpack.c.l.b16 %v4793
  %v5187 = vunpack.c.h.b16 %v4793
  %v5188 = vunpack.c.l.b16 %v4794
  %v5189 = vunpack.c.h.b16 %v4794
  %v5190 = vunpack.c.l.b16 %v4795
  %v5191 = vunpack.c.h.b16 %v4795
  %v5192 = vunpack.c.l.b16 %v4796
  %v5193 = vunpack.c.h.b16 %v4796
  %v5194 = vunpack.c.l.b16 %v4797
  %v5195 = vunpack.c.h.b16 %v4797
  %v5196 = vunpack.c.l.b16 %v4798
  %v5197 = vunpack.c.h.b16 %v4798
  %v5198 = vunpack.c.l.b16 %v4799
  %v5199 = vunpack.c.h.b16 %v4799
  %v5200 = vunpack.c.l.b16 %v4800
  %v5201 = vunpack.c.h.b16 %v4800
  %v5202 = vunpack.c.l.b16 %v4801
  %v5203 = vunpack.c.h.b16 %v4801
  %v5204 = vunpack.c.l.b16 %v4802
  %v5205 = vunpack.c.h.b16 %v4802
  %v5206 = vunpack.c.l.b16 %v4803
  %v5207 = vunpack.c.h.b16 %v4803
  %v5208 = vunpack.c.l.b16 %v4804
  %v5209 = vunpack.c.h.b16 %v4804
  %v5210 = vunpack.c.l.b16 %v4805
  %v5211 = vunpack.c.h.b16 %v4805
  %v5212 = vunpack.c.l.b16 %v4806
  %v5213 = vunpack.c.h.b16 %v4806
  %v5214 = vunpack.c.l.b16 %v4807
  %v5215 = vunpack.c.h.b16 %v4807
  %v5216 = vunpack.c.l.b16 %v4808
  %v5217 = vunpack.c.h.b16 %v4808
  %v5218 = vunpack.c.l.b16 %v4809
  %v5219 = vunpack.c.h.b16 %v4809
  %v5220 = vunpack.c.l.b16 %v4810
  %v5221 = vunpack.c.h.b16 %v4810
  %v5222 = vunpack.c.l.b16 %v4811
  %v5223 = vunpack.c.h.b16 %v4811
  %v5224 = vunpack.c.l.b16 %v4812
  %v5225 = vunpack.c.h.b16 %v4812
  %v5226 = vunpack.c.l.b16 %v4813
  %v5227 = vunpack.c.h.b16 %v4813
  %v5228 = vunpack.c.l.b16 %v4814
  %v5229 = vunpack.c.h.b16 %v4814
  %v5230 = vunpack.c.l.b16 %v4815
  %v5231 = vunpack.c.h.b16 %v4815
  %v5232 = vunpack.c.l.b16 %v4816
  %v5233 = vunpack.c.h.b16 %v4816
  %v5234 = vunpack.c.l.b16 %v4817
  %v5235 = vunpack.c.h.b16 %v4817
  %v5236 = vunpack.c.l.b16 %v4818
  %v5237 = vunpack.c.h.b16 %v4818
  %v5238 = vunpack.c.l.b16 %v4819
  %v5239 = vunpack.c.h.b16 %v4819
  %v5240 = vunpack.c.l.b16 %v4820
  %v5241 = vunpack.c.h.b16 %v4820
  %v5242 = vunpack.c.l.b16 %v4821
  %v5243 = vunpack.c.h.b16 %v4821
  %v5244 = vunpack.c.l.b16 %v4822
  %v5245 = vunpack.c.h.b16 %v4822
  %v5246 = vunpack.c.l.b16 %v4823
  %v5247 = vunpack.c.h.b16 %v4823
  %v5248 = vunpack.c.l.b16 %v4824
  %v5249 = vunpack.c.h.b16 %v4824
  %v5250 = vunpack.c.l.b16 %v4825
  %v5251 = vunpack.c.h.b16 %v4825
  %v5252 = vunpack.c.l.b16 %v4826
  %v5253 = vunpack.c.h.b16 %v4826
  %v5254 = vunpack.c.l.b16 %v4827
  %v5255 = vunpack.c.h.b16 %v4827
  %v5256 = vunpack.c.l.b16 %v4828
  %v5257 = vunpack.c.h.b16 %v4828
  %v5258 = vunpack.c.l.b16 %v4829
  %v5259 = vunpack.c.h.b16 %v4829
  %v5260 = vunpack.c.l.b16 %v4830
  %v5261 = vunpack.c.h.b16 %v4830
  %v5262 = vunpack.c.l.b16 %v4831
  %v5263 = vunpack.c.h.b16 %v4831
  %v5264 = vunpack.c.l.b16 %v4832
  %v5265 = vunpack.c.h.b16 %v4832
  %v5266 = vunpack.c.l.b16 %v4833
  %v5267 = vunpack.c.h.b16 %v4833
  %v5268 = vunpack.c.l.b16 %v4834
  %v5269 = vunpack.c.h.b16 %v4834
  %v5270 = vunpack.c.l.b16 %v4835
  %v5271 = vunpack.c.h.b16 %v4835
  %v5272 = vunpack.c.l.b16 %v4836
  %v5273 = vunpack.c.h.b16 %v4836
  %v5274 = vunpack.c.l.b16 %v4837
  %v5275 = vunpack.c.h.b16 %v4837
  %v5276 = vunpack.c.l.b16 %v4838
  %v5277 = vunpack.c.h.b16 %v4838
  %v5278 = vunpack.c.l.b16 %v4839
  %v5279 = vunpack.c.h.b16 %v4839
  %v5280 = vunpack.c.l.b16 %v4840
  %v5281 = vunpack.c.h.b16 %v4840
  %v5282 = vunpack.c.l.b16 %v4841
  %v5283 = vunpack.c.h.b16 %v4841
  %v5284 = vunpack.c.l.b16 %v4842
  %v5285 = vunpack.c.h.b16 %v4842
  %v5286 = vunpack.c.l.b16 %v4843
  %v5287 = vunpack.c.h.b16 %v4843
  %v5288 = vunpack.c.l.b16 %v4844
  %v5289 = vunpack.c.h.b16 %v4844
  %v5290 = vunpack.c.l.b16 %v4845
  %v5291 = vunpack.c.h.b16 %v4845
  %v5292 = vunpack.c.l.b16 %v4846
  %v5293 = vunpack.c.h.b16 %v4846
  %v5294 = vunpack.c.l.b16 %v4847
  %v5295 = vunpack.c.h.b16 %v4847
  %v5296 = vunpack.c.l.b16 %v4848
  %v5297 = vunpack.c.h.b16 %v4848
  %v5298 = vunpack.c.l.b16 %v4849
  %v5299 = vunpack.c.h.b16 %v4849
  %v5300 = vunpack.c.l.b16 %v4850
  %v5301 = vunpack.c.h.b16 %v4850
  %v5302 = vunpack.c.l.b16 %v4851
  %v5303 = vunpack.c.h.b16 %v4851
  %v5304 = vunpack.c.l.b16 %v4852
  %v5305 = vunpack.c.h.b16 %v4852
  %v5306 = vunpack.c.l.b16 %v4853
  %v5307 = vunpack.c.h.b16 %v4853
  %v5308 = vunpack.c.l.b16 %v4854
  %v5309 = vunpack.c.h.b16 %v4854
  %v5310 = vunpack.c.l.b16 %v4855
  %v5311 = vunpack.c.h.b16 %v4855
  %v5312 = vunpack.c.l.b16 %v4856
  %v5313 = vunpack.c.h.b16 %v4856
  %v5314 = vunpack.c.l.b16 %v4857
  %v5315 = vunpack.c.h.b16 %v4857
  %v5316 = vunpack.c.l.b16 %v4858
  %v5317 = vunpack.c.h.b16 %v4858
  %v5318 = vunpack.c.l.b16 %v4859
  %v5319 = vunpack.c.h.b16 %v4859
  %v5320 = vunpack.c.l.b16 %v4860
  %v5321 = vunpack.c.h.b16 %v4860
  %v5322 = vunpack.c.l.b16 %v4861
  %v5323 = vunpack.c.h.b16 %v4861
  %v5324 = vunpack.c.l.b16 %v4862
  %v5325 = vunpack.c.h.b16 %v4862
  %v5326 = vunpack.c.l.b16 %v4863
  %v5327 = vunpack.c.h.b16 %v4863
  %v5328 = vunpack.c.l.b16 %v4864
  %v5329 = vunpack.c.h.b16 %v4864
  %v5330 = vunpack.c.l.b16 %v4865
  %v5331 = vunpack.c.h.b16 %v4865
  %v5332 = vunpack.c.l.b16 %v4866
  %v5333 = vunpack.c.h.b16 %v4866
  %v5334 = vunpack.c.l.b16 %v4867
  %v5335 = vunpack.c.h.b16 %v4867
  %v5336 = vunpack.c.l.b16 %v4868
  %v5337 = vunpack.c.h.b16 %v4868
  %v5338 = vunpack.c.l.b16 %v4869
  %v5339 = vunpack.c.h.b16 %v4869
  %v5340 = vunpack.c.l.b16 %v4870
  %v5341 = vunpack.c.h.b16 %v4870
  %v5342 = vunpack.c.l.b16 %v4871
  %v5343 = vunpack.c.h.b16 %v4871
  %v5344 = vunpack.c.l.b16 %v4872
  %v5345 = vunpack.c.h.b16 %v4872
  %v5346 = vunpack.c.l.b16 %v4873
  %v5347 = vunpack.c.h.b16 %v4873
  %v5348 = vunpack.c.l.b16 %v4874
  %v5349 = vunpack.c.h.b16 %v4874
  %v5350 = vunpack.c.l.b16 %v4875
  %v5351 = vunpack.c.h.b16 %v4875
  %v5352 = vunpack.c.l.b16 %v4876
  %v5353 = vunpack.c.h.b16 %v4876
  %v5354 = vunpack.c.l.b16 %v4877
  %v5355 = vunpack.c.h.b16 %v4877
  %v5356 = vunpack.c.l.b16 %v4878
  %v5357 = vunpack.c.h.b16 %v4878
  %v5358 = vunpack.c.l.b16 %v4879
  %v5359 = vunpack.c.h.b16 %v4879
  %v5360 = vunpack.c.l.b16 %v4880
  %v5361 = vunpack.c.h.b16 %v4880
  %v5362 = vunpack.c.l.b16 %v4881
  %v5363 = vunpack.c.h.b16 %v4881
  %v5364 = vunpack.c.l.b16 %v4882
  %v5365 = vunpack.c.h.b16 %v4882
  %v5366 = vunpack.c.l.b16 %v4883
  %v5367 = vunpack.c.h.b16 %v4883
  %v5368 = vunpack.c.l.b16 %v4884
  %v5369 = vunpack.c.h.b16 %v4884
  %v5370 = vunpack.c.l.b16 %v4885
  %v5371 = vunpack.c.h.b16 %v4885
  %v5372 = vunpack.c.l.b16 %v4886
  %v5373 = vunpack.c.h.b16 %v4886
  %v5374 = vunpack.c.l.b16 %v4887
  %v5375 = vunpack.c.h.b16 %v4887
  %v5376 = vunpack.c.l.b16 %v4888
  %v5377 = vunpack.c.h.b16 %v4888
  %v5378 = vunpack.c.l.b16 %v4889
  %v5379 = vunpack.c.h.b16 %v4889
  %v5380 = vunpack.c.l.b16 %v4890
  %v5381 = vunpack.c.h.b16 %v4890
  %v5382 = vunpack.c.l.b16 %v4891
  %v5383 = vunpack.c.h.b16 %v4891
  %v5384 = vunpack.c.l.b16 %v4892
  %v5385 = vunpack.c.h.b16 %v4892
  %v5386 = vunpack.c.l.b16 %v4893
  %v5387 = vunpack.c.h.b16 %v4893
  %v5388 = vunpack.c.l.b16 %v4894
  %v5389 = vunpack.c.h.b16 %v4894
  %v5390 = vunpack.c.l.b16 %v4895
  %v5391 = vunpack.c.h.b16 %v4895
  %v5392 = vunpack.c.l.b16 %v4896
  %v5393 = vunpack.c.h.b16 %v4896
  %v5394 = vunpack.c.l.b16 %v4897
  %v5395 = vunpack.c.h.b16 %v4897
  %v5396 = vunpack.c.l.b16 %v4898
  %v5397 = vunpack.c.h.b16 %v4898
  %v5398 = vunpack.c.l.b16 %v4899
  %v5399 = vunpack.c.h.b16 %v4899
  %v5400 = vunpack.c.l.b16 %v4900
  %v5401 = vunpack.c.h.b16 %v4900
  %v5402 = vunpack.c.l.b16 %v4901
  %v5403 = vunpack.c.h.b16 %v4901
  %v5404 = vunpack.c.l.b16 %v4902
  %v5405 = vunpack.c.h.b16 %v4902
  %v5406 = vunpack.c.l.b16 %v4903
  %v5407 = vunpack.c.h.b16 %v4903
  %v5408 = vunpack.c.l.b16 %v4904
  %v5409 = vunpack.c.h.b16 %v4904
  %v5410 = vunpack.c.l.b16 %v4905
  %v5411 = vunpack.c.h.b16 %v4905
  %v5412 = vunpack.c.l.b16 %v4906
  %v5413 = vunpack.c.h.b16 %v4906
  %v5414 = vunpack.c.l.b16 %v4907
  %v5415 = vunpack.c.h.b16 %v4907
  %v5416 = vunpack.c.l.b16 %v4908
  %v5417 = vunpack.c.h.b16 %v4908
  %v5418 = vunpack.c.l.b16 %v4909
  %v5419 = vunpack.c.h.b16 %v4909
  %v5420 = vunpack.c.l.b16 %v4910
  %v5421 = vunpack.c.h.b16 %v4910
  %v5422 = vunpack.c.l.b16 %v4911
  %v5423 = vunpack.c.h.b16 %v4911
  %v5424 = vunpack.c.l.b16 %v4912
  %v5425 = vunpack.c.h.b16 %v4912
  %v5426 = vunpack.c.l.b16 %v4913
  %v5427 = vunpack.c.h.b16 %v4913
  %v5428 = vunpack.c.l.b16 %v4914
  %v5429 = vunpack.c.h.b16 %v4914
  %v5430 = vunpack.c.l.b16 %v4915
  %v5431 = vunpack.c.h.b16 %v4915
  %v5432 = vunpack.c.l.b16 %v4916
  %v5433 = vunpack.c.h.b16 %v4916
  %v5434 = vunpack.c.l.b16 %v4917
  %v5435 = vunpack.c.h.b16 %v4917
  %v5436 = vunpack.c.l.b16 %v4918
  %v5437 = vunpack.c.h.b16 %v4918
  %v5438 = vunpack.c.l.b16 %v4919
  %v5439 = vunpack.c.h.b16 %v4919
  %v5440 = vunpack.c.l.b16 %v4920
  %v5441 = vunpack.c.h.b16 %v4920
  %v5442 = vunpack.c.l.b16 %v4921
  %v5443 = vunpack.c.h.b16 %v4921
  %v5444 = vunpack.c.l.b16 %v4922
  %v5445 = vunpack.c.h.b16 %v4922
  %v5446 = vunpack.c.l.b16 %v4923
  %v5447 = vunpack.c.h.b16 %v4923
  %v5448 = vunpack.c.l.b16 %v4924
  %v5449 = vunpack.c.h.b16 %v4924
  %v5450 = vunpack.c.l.b16 %v4925
  %v5451 = vunpack.c.h.b16 %v4925
  %v5452 = vunpack.c.l.b16 %v4926
  %v5453 = vunpack.c.h.b16 %v4926
  %v5454 = vunpack.c.l.b16 %v4927
  %v5455 = vunpack.c.h.b16 %v4927
  %v5456 = vunpack.c.l.b16 %v4928
  %v5457 = vunpack.c.h.b16 %v4928
  %v5458 = vunpack.c.l.b16 %v4929
  %v5459 = vunpack.c.h.b16 %v4929
  %v5460 = vunpack.c.l.b16 %v4930
  %v5461 = vunpack.c.h.b16 %v4930
  %v5462 = vunpack.c.l.b16 %v4931
  %v5463 = vunpack.c.h.b16 %v4931
  %v5464 = vunpack.c.l.b16 %v4932
  %v5465 = vunpack.c.h.b16 %v4932
  %v5466 = vunpack.c.l.b16 %v4933
  %v5467 = vunpack.c.h.b16 %v4933
  %v5468 = vunpack.c.l.b16 %v4934
  %v5469 = vunpack.c.h.b16 %v4934
  %v5470 = vunpack.c.l.b16 %v4935
  %v5471 = vunpack.c.h.b16 %v4935
  %v5472 = vunpack.c.l.b16 %v4936
  %v5473 = vunpack.c.h.b16 %v4936
  %v5474 = vunpack.c.l.b16 %v4937
  %v5475 = vunpack.c.h.b16 %v4937
  %v5476 = vunpack.c.l.b16 %v4938
  %v5477 = vunpack.c.h.b16 %v4938
  %v5478 = vunpack.c.l.b16 %v4939
  %v5479 = vunpack.c.h.b16 %v4939
  %v5480 = vunpack.c.l.b16 %v4940
  %v5481 = vunpack.c.h.b16 %v4940
  %v5482 = vunpack.c.l.b16 %v4941
  %v5483 = vunpack.c.h.b16 %v4941
  %v5484 = vunpack.c.l.b16 %v4942
  %v5485 = vunpack.c.h.b16 %v4942
  %v5486 = vunpack.c.l.b16 %v4943
  %v5487 = vunpack.c.h.b16 %v4943
  %v5488 = vunpack.c.l.b16 %v4944
  %v5489 = vunpack.c.h.b16 %v4944
  %v5490 = vunpack.c.l.b16 %v4945
  %v5491 = vunpack.c.h.b16 %v4945
  %v5492 = vunpack.c.l.b16 %v4946
  %v5493 = vunpack.c.h.b16 %v4946
  %v5494 = vunpack.c.l.b16 %v4947
  %v5495 = vunpack.c.h.b16 %v4947
  %v5496 = vunpack.c.l.b16 %v4948
  %v5497 = vunpack.c.h.b16 %v4948
  %v5498 = vunpack.c.l.b16 %v4949
  %v5499 = vunpack.c.h.b16 %v4949
  %v5500 = vunpack.c.l.b16 %v4950
  %v5501 = vunpack.c.h.b16 %v4950
  %v5502 = vunpack.c.l.b16 %v4951
  %v5503 = vunpack.c.h.b16 %v4951
  %v5504 = vunpack.c.l.b16 %v4952
  %v5505 = vunpack.c.h.b16 %v4952
  %v5506 = vunpack.c.l.b16 %v4953
  %v5507 = vunpack.c.h.b16 %v4953
  %v5508 = vunpack.c.l.b16 %v4954
  %v5509 = vunpack.c.h.b16 %v4954
  %v5510 = vunpack.c.l.b16 %v4955
  %v5511 = vunpack.c.h.b16 %v4955
  %v5512 = vunpack.c.l.b16 %v4956
  %v5513 = vunpack.c.h.b16 %v4956
  %v5514 = vunpack.c.l.b16 %v4957
  %v5515 = vunpack.c.h.b16 %v4957
  %v5516 = vunpack.c.l.b16 %v4958
  %v5517 = vunpack.c.h.b16 %v4958
  %v5518 = vunpack.c.l.b16 %v4959
  %v5519 = vunpack.c.h.b16 %v4959
  %v5520 = vunpack.c.l.b16 %v4960
  %v5521 = vunpack.c.h.b16 %v4960
  %v5522 = vunpack.c.l.b16 %v4961
  %v5523 = vunpack.c.h.b16 %v4961
  %v5524 = vunpack.c.l.b16 %v4962
  %v5525 = vunpack.c.h.b16 %v4962
  %v5526 = vunpack.c.l.b16 %v4963
  %v5527 = vunpack.c.h.b16 %v4963
  %v5528 = vunpack.c.l.b16 %v4964
  %v5529 = vunpack.c.h.b16 %v4964
  %v5530 = vunpack.c.l.b16 %v4965
  %v5531 = vunpack.c.h.b16 %v4965
  %v5532 = vunpack.c.l.b16 %v4966
  %v5533 = vunpack.c.h.b16 %v4966
  %v5534 = vunpack.c.l.b16 %v4967
  %v5535 = vunpack.c.h.b16 %v4967
  %v5536 = vunpack.c.l.b16 %v4968
  %v5537 = vunpack.c.h.b16 %v4968
  %v5538 = vunpack.c.l.b16 %v4969
  %v5539 = vunpack.c.h.b16 %v4969
  %v5540 = vunpack.c.l.b16 %v4970
  %v5541 = vunpack.c.h.b16 %v4970
  %v5542 = vunpack.c.l.b16 %v4971
  %v5543 = vunpack.c.h.b16 %v4971
  %v5544 = vunpack.c.l.b16 %v4972
  %v5545 = vunpack.c.h.b16 %v4972
  %v5546 = vunpack.c.l.b16 %v4973
  %v5547 = vunpack.c.h.b16 %v4973
  %v5548 = vunpack.c.l.b16 %v4974
  %v5549 = vunpack.c.h.b16 %v4974
  %v5550 = vunpack.c.l.b16 %v4975
  %v5551 = vunpack.c.h.b16 %v4975
  %v5552 = vunpack.c.l.b16 %v4976
  %v5553 = vunpack.c.h.b16 %v4976
  %v5554 = vunpack.c.l.b16 %v4977
  %v5555 = vunpack.c.h.b16 %v4977
  %v5556 = vunpack.c.l.b16 %v4978
  %v5557 = vunpack.c.h.b16 %v4978
  %v5558 = vunpack.c.l.b16 %v4979
  %v5559 = vunpack.c.h.b16 %v4979
  %v5560 = vunpack.c.l.b16 %v4980
  %v5561 = vunpack.c.h.b16 %v4980
  %v5562 = vunpack.c.l.b16 %v4981
  %v5563 = vunpack.c.h.b16 %v4981
  %v5564 = vunpack.c.l.b16 %v4982
  %v5565 = vunpack.c.h.b16 %v4982
  %v5566 = vunpack.c.l.b16 %v4983
  %v5567 = vunpack.c.h.b16 %v4983
  %v5568 = vunpack.c.l.b16 %v4984
  %v5569 = vunpack.c.h.b16 %v4984
  %v5570 = vunpack.c.l.b16 %v4985
  %v5571 = vunpack.c.h.b16 %v4985
  %v5572 = vunpack.c.l.b16 %v4986
  %v5573 = vunpack.c.h.b16 %v4986
  %v5574 = vunpack.c.l.b16 %v4987
  %v5575 = vunpack.c.h.b16 %v4987
  %v5576 = vpack.c.b16 %v5184, %v5184
  %v5577 = vpack.c.b16 %v5185, %v5185
  %v5578 = vpack.c.b16 %v5186, %v5186
  %v5579 = vpack.c.b16 %v5187, %v5187
  %v5580 = vpack.c.b16 %v5188, %v5188
  %v5581 = vpack.c.b16 %v5189, %v5189
  %v5582 = vpack.c.b16 %v5190, %v5190
  %v5583 = vpack.c.b16 %v5191, %v5191
  %v5584 = vpack.c.b16 %v5192, %v5192
  %v5585 = vpack.c.b16 %v5193, %v5193
  %v5586 = vpack.c.b16 %v5194, %v5194
  %v5587 = vpack.c.b16 %v5195, %v5195
  %v5588 = vpack.c.b16 %v5196, %v5196
  %v5589 = vpack.c.b16 %v5197, %v5197
  %v5590 = vpack.c.b16 %v5198, %v5198
  %v5591 = vpack.c.b16 %v5199, %v5199
  %v5592 = vpack.c.b16 %v5200, %v5200
  %v5593 = vpack.c.b16 %v5201, %v5201
  %v5594 = vpack.c.b16 %v5202, %v5202
  %v5595 = vpack.c.b16 %v5203, %v5203
  %v5596 = vpack.c.b16 %v5204, %v5204
  %v5597 = vpack.c.b16 %v5205, %v5205
  %v5598 = vpack.c.b16 %v5206, %v5206
  %v5599 = vpack.c.b16 %v5207, %v5207
  %v5600 = vpack.c.b16 %v5208, %v5208
  %v5601 = vpack.c.b16 %v5209, %v5209
  %v5602 = vpack.c.b16 %v5210, %v5210
  %v5603 = vpack.c.b16 %v5211, %v5211
  %v5604 = vpack.c.b16 %v5212, %v5212
  %v5605 = vpack.c.b16 %v5213, %v5213
  %v5606 = vpack.c.b16 %v5214, %v5214
  %v5607 = vpack.c.b16 %v5215, %v5215
  %v5608 = vpack.c.b16 %v5216, %v5216
  %v5609 = vpack.c.b16 %v5217, %v5217
  %v5610 = vpack.c.b16 %v5218, %v5218
  %v5611 = vpack.c.b16 %v5219, %v5219
  %v5612 = vpack.c.b16 %v5220, %v5220
  %v5613 = vpack.c.b16 %v5221, %v5221
  %v5614 = vpack.c.b16 %v5222, %v5222
  %v5615 = vpack.c.b16 %v5223, %v5223
  %v5616 = vpack.c.b16 %v5224, %v5224
  %v5617 = vpack.c.b16 %v5225, %v5225
  %v5618 = vpack.c.b16 %v5226, %v5226
  %v5619 = vpack.c.b16 %v5227, %v5227
  %v5620 = vpack.c.b16 %v5228, %v5228
  %v5621 = vpack.c.b16 %v5229, %v5229
  %v5622 = vpack.c.b16 %v5230, %v5230
  %v5623 = vpack.c.b16 %v5231, %v5231
  %v5624 = vpack.c.b16 %v5232, %v5232
  %v5625 = vpack.c.b16 %v5233, %v5233
  %v5626 = vpack.c.b16 %v5234, %v5234
  %v5627 = vpack.c.b16 %v5235, %v5235
  %v5628 = vpack.c.b16 %v5236, %v5236
  %v5629 = vpack.c.b16 %v5237, %v5237
  %v5630 = vpack.c.b16 %v5238, %v5238
  %v5631 = vpack.c.b16 %v5239, %v5239
  %v5632 = vpack.c.b16 %v5240, %v5240
  %v5633 = vpack.c.b16 %v5241, %v5241
  %v5634 = vpack.c.b16 %v5242, %v5242
  %v5635 = vpack.c.b16 %v5243, %v5243
  %v5636 = vpack.c.b16 %v5244, %v5244
  %v5637 = vpack.c.b16 %v5245, %v5245
  %v5638 = vpack.c.b16 %v5246, %v5246
  %v5639 = vpack.c.b16 %v5247, %v5247
  %v5640 = vpack.c.b16 %v5248, %v5248
  %v5641 = vpack.c.b16 %v5249, %v5249
  %v5642 = vpack.c.b16 %v5250, %v5250
  %v5643 = vpack.c.b16 %v5251, %v5251
  %v5644 = vpack.c.b16 %v5252, %v5252
  %v5645 = vpack.c.b16 %v5253, %v5253
  %v5646 = vpack.c.b16 %v5254, %v5254
  %v5647 = vpack.c.b16 %v5255, %v5255
  %v5648 = vpack.c.b16 %v5256, %v5256
  %v5649 = vpack.c.b16 %v5257, %v5257
  %v5650 = vpack.c.b16 %v5258, %v5258
  %v5651 = vpack.c.b16 %v5259, %v5259
  %v5652 = vpack.c.b16 %v5260, %v5260
  %v5653 = vpack.c.b16 %v5261, %v5261
  %v5654 = vpack.c.b16 %v5262, %v5262
  %v5655 = vpack.c.b16 %v5263, %v5263
  %v5656 = vpack.c.b16 %v5264, %v5264
  %v5657 = vpack.c.b16 %v5265, %v5265
  %v5658 = vpack.c.b16 %v5266, %v5266
  %v5659 = vpack.c.b16 %v5267, %v5267
  %v5660 = vpack.c.b16 %v5268, %v5268
  %v5661 = vpack.c.b16 %v5269, %v5269
  %v5662 = vpack.c.b16 %v5270, %v5270
  %v5663 = vpack.c.b16 %v5271, %v5271
  %v5664 = vpack.c.b16 %v5272, %v5272
  %v5665 = vpack.c.b16 %v5273, %v5273
  %v5666 = vpack.c.b16 %v5274, %v5274
  %v5667 = vpack.c.b16 %v5275, %v5275
  %v5668 = vpack.c.b16 %v5276, %v5276
  %v5669 = vpack.c.b16 %v5277, %v5277
  %v5670 = vpack.c.b16 %v5278, %v5278
  %v5671 = vpack.c.b16 %v5279, %v5279
  %v5672 = vpack.c.b16 %v5280, %v5280
  %v5673 = vpack.c.b16 %v5281, %v5281
  %v5674 = vpack.c.b16 %v5282, %v5282
  %v5675 = vpack.c.b16 %v5283, %v5283
  %v5676 = vpack.c.b16 %v5284, %v5284
  %v5677 = vpack.c.b16 %v5285, %v5285
  %v5678 = vpack.c.b16 %v5286, %v5286
  %v5679 = vpack.c.b16 %v5287, %v5287
  %v5680 = vpack.c.b16 %v5288, %v5288
  %v5681 = vpack.c.b16 %v5289, %v5289
  %v5682 = vpack.c.b16 %v5290, %v5290
  %v5683 = vpack.c.b16 %v5291, %v5291
  %v5684 = vpack.c.b16 %v5292, %v5292
  %v5685 = vpack.c.b16 %v5293, %v5293
  %v5686 = vpack.c.b16 %v5294, %v5294
  %v5687 = vpack.c.b16 %v5295, %v5295
  %v5688 = vpack.c.b16 %v5296, %v5296
  %v5689 = vpack.c.b16 %v5297, %v5297
  %v5690 = vpack.c.b16 %v5298, %v5298
  %v5691 = vpack.c.b16 %v5299, %v5299
  %v5692 = vpack.c.b16 %v5300, %v5300
  %v5693 = vpack.c.b16 %v5301, %v5301
  %v5694 = vpack.c.b16 %v5302, %v5302
  %v5695 = vpack.c.b16 %v5303, %v5303
  %v5696 = vpack.c.b16 %v5304, %v5304
  %v5697 = vpack.c.b16 %v5305, %v5305
  %v5698 = vpack.c.b16 %v5306, %v5306
  %v5699 = vpack.c.b16 %v5307, %v5307
  %v5700 = vpack.c.b16 %v5308, %v5308
  %v5701 = vpack.c.b16 %v5309, %v5309
  %v5702 = vpack.c.b16 %v5310, %v5310
  %v5703 = vpack.c.b16 %v5311, %v5311
  %v5704 = vpack.c.b16 %v5312, %v5312
  %v5705 = vpack.c.b16 %v5313, %v5313
  %v5706 = vpack.c.b16 %v5314, %v5314
  %v5707 = vpack.c.b16 %v5315, %v5315
  %v5708 = vpack.c.b16 %v5316, %v5316
  %v5709 = vpack.c.b16 %v5317, %v5317
  %v5710 = vpack.c.b16 %v5318, %v5318
  %v5711 = vpack.c.b16 %v5319, %v5319
  %v5712 = vpack.c.b16 %v5320, %v5320
  %v5713 = vpack.c.b16 %v5321, %v5321
  %v5714 = vpack.c.b16 %v5322, %v5322
  %v5715 = vpack.c.b16 %v5323, %v5323
  %v5716 = vpack.c.b16 %v5324, %v5324
  %v5717 = vpack.c.b16 %v5325, %v5325
  %v5718 = vpack.c.b16 %v5326, %v5326
  %v5719 = vpack.c.b16 %v5327, %v5327
  %v5720 = vpack.c.b16 %v5328, %v5328
  %v5721 = vpack.c.b16 %v5329, %v5329
  %v5722 = vpack.c.b16 %v5330, %v5330
  %v5723 = vpack.c.b16 %v5331, %v5331
  %v5724 = vpack.c.b16 %v5332, %v5332
  %v5725 = vpack.c.b16 %v5333, %v5333
  %v5726 = vpack.c.b16 %v5334, %v5334
  %v5727 = vpack.c.b16 %v5335, %v5335
  %v5728 = vpack.c.b16 %v5336, %v5336
  %v5729 = vpack.c.b16 %v5337, %v5337
  %v5730 = vpack.c.b16 %v5338, %v5338
  %v5731 = vpack.c.b16 %v5339, %v5339
  %v5732 = vpack.c.b16 %v5340, %v5340
  %v5733 = vpack.c.b16 %v5341, %v5341
  %v5734 = vpack.c.b16 %v5342, %v5342
  %v5735 = vpack.c.b16 %v5343, %v5343
  %v5736 = vpack.c.b16 %v5344, %v5344
  %v5737 = vpack.c.b16 %v5345, %v5345
  %v5738 = vpack.c.b16 %v5346, %v5346
  %v5739 = vpack.c.b16 %v5347, %v5347
  %v5740 = vpack.c.b16 %v5348, %v5348
  %v5741 = vpack.c.b16 %v5349, %v5349
  %v5742 = vpack.c.b16 %v5350, %v5350
  %v5743 = vpack.c.b16 %v5351, %v5351
  %v5744 = vpack.c.b16 %v5352, %v5352
  %v5745 = vpack.c.b16 %v5353, %v5353
  %v5746 = vpack.c.b16 %v5354, %v5354
  %v5747 = vpack.c.b16 %v5355, %v5355
  %v5748 = vpack.c.b16 %v5356, %v5356
  %v5749 = vpack.c.b16 %v5357, %v5357
  %v5750 = vpack.c.b16 %v5358, %v5358
  %v5751 = vpack.c.b16 %v5359, %v5359
  %v5752 = vpack.c.b16 %v5360, %v5360
  %v5753 = vpack.c.b16 %v5361, %v5361
  %v5754 = vpack.c.b16 %v5362, %v5362
  %v5755 = vpack.c.b16 %v5363, %v5363
  %v5756 = vpack.c.b16 %v5364, %v5364
  %v5757 = vpack.c.b16 %v5365, %v5365
  %v5758 = vpack.c.b16 %v5366, %v5366
  %v5759 = vpack.c.b16 %v5367, %v5367
  %v5760 = vpack.c.b16 %v5368, %v5368
  %v5761 = vpack.c.b16 %v5369, %v5369
  %v5762 = vpack.c.b16 %v5370, %v5370
  %v5763 = vpack.c.b16 %v5371, %v5371
  %v5764 = vpack.c.b16 %v5372, %v5372
  %v5765 = vpack.c.b16 %v5373, %v5373
  %v5766 = vpack.c.b16 %v5374, %v5374
  %v5767 = vpack.c.b16 %v5375, %v5375
  %v5768 = vpack.c.b16 %v5376, %v5376
  %v5769 = vpack.c.b16 %v5377, %v5377
  %v5770 = vpack.c.b16 %v5378, %v5378
  %v5771 = vpack.c.b16 %v5379, %v5379
  %v5772 = vpack.c.b16 %v5380, %v5380
  %v5773 = vpack.c.b16 %v5381, %v5381
  %v5774 = vpack.c.b16 %v5382, %v5382
  %v5775 = vpack.c.b16 %v5383, %v5383
  %v5776 = vpack.c.b16 %v5384, %v5384
  %v5777 = vpack.c.b16 %v5385, %v5385
  %v5778 = vpack.c.b16 %v5386, %v5386
  %v5779 = vpack.c.b16 %v5387, %v5387
  %v5780 = vpack.c.b16 %v5388, %v5388
  %v5781 = vpack.c.b16 %v5389, %v5389
  %v5782 = vpack.c.b16 %v5390, %v5390
  %v5783 = vpack.c.b16 %v5391, %v5391
  %v5784 = vpack.c.b16 %v5392, %v5392
  %v5785 = vpack.c.b16 %v5393, %v5393
  %v5786 = vpack.c.b16 %v5394, %v5394
  %v5787 = vpack.c.b16 %v5395, %v5395
  %v5788 = vpack.c.b16 %v5396, %v5396
  %v5789 = vpack.c.b16 %v5397, %v5397
  %v5790 = vpack.c.b16 %v5398, %v5398
  %v5791 = vpack.c.b16 %v5399, %v5399
  %v5792 = vpack.c.b16 %v5400, %v5400
  %v5793 = vpack.c.b16 %v5401, %v5401
  %v5794 = vpack.c.b16 %v5402, %v5402
  %v5795 = vpack.c.b16 %v5403, %v5403
  %v5796 = vpack.c.b16 %v5404, %v5404
  %v5797 = vpack.c.b16 %v5405, %v5405
  %v5798 = vpack.c.b16 %v5406, %v5406
  %v5799 = vpack.c.b16 %v5407, %v5407
  %v5800 = vpack.c.b16 %v5408, %v5408
  %v5801 = vpack.c.b16 %v5409, %v5409
  %v5802 = vpack.c.b16 %v5410, %v5410
  %v5803 = vpack.c.b16 %v5411, %v5411
  %v5804 = vpack.c.b16 %v5412, %v5412
  %v5805 = vpack.c.b16 %v5413, %v5413
  %v5806 = vpack.c.b16 %v5414, %v5414
  %v5807 = vpack.c.b16 %v5415, %v5415
  %v5808 = vpack.c.b16 %v5416, %v5416
  %v5809 = vpack.c.b16 %v5417, %v5417
  %v5810 = vpack.c.b16 %v5418, %v5418
  %v5811 = vpack.c.b16 %v5419, %v5419
  %v5812 = vpack.c.b16 %v5420, %v5420
  %v5813 = vpack.c.b16 %v5421, %v5421
  %v5814 = vpack.c.b16 %v5422, %v5422
  %v5815 = vpack.c.b16 %v5423, %v5423
  %v5816 = vpack.c.b16 %v5424, %v5424
  %v5817 = vpack.c.b16 %v5425, %v5425
  %v5818 = vpack.c.b16 %v5426, %v5426
  %v5819 = vpack.c.b16 %v5427, %v5427
  %v5820 = vpack.c.b16 %v5428, %v5428
  %v5821 = vpack.c.b16 %v5429, %v5429
  %v5822 = vpack.c.b16 %v5430, %v5430
  %v5823 = vpack.c.b16 %v5431, %v5431
  %v5824 = vpack.c.b16 %v5432, %v5432
  %v5825 = vpack.c.b16 %v5433, %v5433
  %v5826 = vpack.c.b16 %v5434, %v5434
  %v5827 = vpack.c.b16 %v5435, %v5435
  %v5828 = vpack.c.b16 %v5436, %v5436
  %v5829 = vpack.c.b16 %v5437, %v5437
  %v5830 = vpack.c.b16 %v5438, %v5438
  %v5831 = vpack.c.b16 %v5439, %v5439
  %v5832 = vpack.c.b16 %v5440, %v5440
  %v5833 = vpack.c.b16 %v5441, %v5441
  %v5834 = vpack.c.b16 %v5442, %v5442
  %v5835 = vpack.c.b16 %v5443, %v5443
  %v5836 = vpack.c.b16 %v5444, %v5444
  %v5837 = vpack.c.b16 %v5445, %v5445
  %v5838 = vpack.c.b16 %v5446, %v5446
  %v5839 = vpack.c.b16 %v5447, %v5447
  %v5840 = vpack.c.b16 %v5448, %v5448
  %v5841 = vpack.c.b16 %v5449, %v5449
  %v5842 = vpack.c.b16 %v5450, %v5450
  %v5843 = vpack.c.b16 %v5451, %v5451
  %v5844 = vpack.c.b16 %v5452, %v5452
  %v5845 = vpack.c.b16 %v5453, %v5453
  %v5846 = vpack.c.b16 %v5454, %v5454
  %v5847 = vpack.c.b16 %v5455, %v5455
  %v5848 = vpack.c.b16 %v5456, %v5456
  %v5849 = vpack.c.b16 %v5457, %v5457
  %v5850 = vpack.c.b16 %v5458, %v5458
  %v5851 = vpack.c.b16 %v5459, %v5459
  %v5852 = vpack.c.b16 %v5460, %v5460
  %v5853 = vpack.c.b16 %v5461, %v5461
  %v5854 = vpack.c.b16 %v5462, %v5462
  %v5855 = vpack.c.b16 %v5463, %v5463
  %v5856 = vpack.c.b16 %v5464, %v5464
  %v5857 = vpack.c.b16 %v5465, %v5465
  %v5858 = vpack.c.b16 %v5466, %v5466
  %v5859 = vpack.c.b16 %v5467, %v5467
  %v5860 = vpack.c.b16 %v5468, %v5468
  %v5861 = vpack.c.b16 %v5469, %v5469
  %v5862 = vpack.c.b16 %v5470, %v5470
  %v5863 = vpack.c.b16 %v5471, %v5471
  %v5864 = vpack.c.b16 %v5472, %v5472
  %v5865 = vpack.c.b16 %v5473, %v5473
  %v5866 = vpack.c.b16 %v5474, %v5474
  %v5867 = vpack.c.b16 %v5475, %v5475
  %v5868 = vpack.c.b16 %v5476, %v5476
  %v5869 = vpack.c.b16 %v5477, %v5477
  %v5870 = vpack.c.b16 %v5478, %v5478
  %v5871 = vpack.c.b16 %v5479, %v5479
  %v5872 = vpack.c.b16 %v5480, %v5480
  %v5873 = vpack.c.b16 %v5481, %v5481
  %v5874 = vpack.c.b16 %v5482, %v5482
  %v5875 = vpack.c.b16 %v5483, %v5483
  %v5876 = vpack.c.b16 %v5484, %v5484
  %v5877 = vpack.c.b16 %v5485, %v5485
  %v5878 = vpack.c.b16 %v5486, %v5486
  %v5879 = vpack.c.b16 %v5487, %v5487
  %v5880 = vpack.c.b16 %v5488, %v5488
  %v5881 = vpack.c.b16 %v5489, %v5489
  %v5882 = vpack.c.b16 %v5490, %v5490
  %v5883 = vpack.c.b16 %v5491, %v5491
  %v5884 = vpack.c.b16 %v5492, %v5492
  %v5885 = vpack.c.b16 %v5493, %v5493
  %v5886 = vpack.c.b16 %v5494, %v5494
  %v5887 = vpack.c.b16 %v5495, %v5495
  %v5888 = vpack.c.b16 %v5496, %v5496
  %v5889 = vpack.c.b16 %v5497, %v5497
  %v5890 = vpack.c.b16 %v5498, %v5498
  %v5891 = vpack.c.b16 %v5499, %v5499
  %v5892 = vpack.c.b16 %v5500, %v5500
  %v5893 = vpack.c.b16 %v5501, %v5501
  %v5894 = vpack.c.b16 %v5502, %v5502
  %v5895 = vpack.c.b16 %v5503, %v5503
  %v5896 = vpack.c.b16 %v5504, %v5504
  %v5897 = vpack.c.b16 %v5505, %v5505
  %v5898 = vpack.c.b16 %v5506, %v5506
  %v5899 = vpack.c.b16 %v5507, %v5507
  %v5900 = vpack.c.b16 %v5508, %v5508
  %v5901 = vpack.c.b16 %v5509, %v5509
  %v5902 = vpack.c.b16 %v5510, %v5510
  %v5903 = vpack.c.b16 %v5511, %v5511
  %v5904 = vpack.c.b16 %v5512, %v5512
  %v5905 = vpack.c.b16 %v5513, %v5513
  %v5906 = vpack.c.b16 %v5514, %v5514
  %v5907 = vpack.c.b16 %v5515, %v5515
  %v5908 = vpack.c.b16 %v5516, %v5516
  %v5909 = vpack.c.b16 %v5517, %v5517
  %v5910 = vpack.c.b16 %v5518, %v5518
  %v5911 = vpack.c.b16 %v5519, %v5519
  %v5912 = vpack.c.b16 %v5520, %v5520
  %v5913 = vpack.c.b16 %v5521, %v5521
  %v5914 = vpack.c.b16 %v5522, %v5522
  %v5915 = vpack.c.b16 %v5523, %v5523
  %v5916 = vpack.c.b16 %v5524, %v5524
  %v5917 = vpack.c.b16 %v5525, %v5525
  %v5918 = vpack.c.b16 %v5526, %v5526
  %v5919 = vpack.c.b16 %v5527, %v5527
  %v5920 = vpack.c.b16 %v5528, %v5528
  %v5921 = vpack.c.b16 %v5529, %v5529
  %v5922 = vpack.c.b16 %v5530, %v5530
  %v5923 = vpack.c.b16 %v5531, %v5531
  %v5924 = vpack.c.b16 %v5532, %v5532
  %v5925 = vpack.c.b16 %v5533, %v5533
  %v5926 = vpack.c.b16 %v5534, %v5534
  %v5927 = vpack.c.b16 %v5535, %v5535
  %v5928 = vpack.c.b16 %v5536, %v5536
  %v5929 = vpack.c.b16 %v5537, %v5537
  %v5930 = vpack.c.b16 %v5538, %v5538
  %v5931 = vpack.c.b16 %v5539, %v5539
  %v5932 = vpack.c.b16 %v5540, %v5540
  %v5933 = vpack.c.b16 %v5541, %v5541
  %v5934 = vpack.c.b16 %v5542, %v5542
  %v5935 = vpack.c.b16 %v5543, %v5543
  %v5936 = vpack.c.b16 %v5544, %v5544
  %v5937 = vpack.c.b16 %v5545, %v5545
  %v5938 = vpack.c.b16 %v5546, %v5546
  %v5939 = vpack.c.b16 %v5547, %v5547
  %v5940 = vpack.c.b16 %v5548, %v5548
  %v5941 = vpack.c.b16 %v5549, %v5549
  %v5942 = vpack.c.b16 %v5550, %v5550
  %v5943 = vpack.c.b16 %v5551, %v5551
  %v5944 = vpack.c.b16 %v5552, %v5552
  %v5945 = vpack.c.b16 %v5553, %v5553
  %v5946 = vpack.c.b16 %v5554, %v5554
  %v5947 = vpack.c.b16 %v5555, %v5555
  %v5948 = vpack.c.b16 %v5556, %v5556
  %v5949 = vpack.c.b16 %v5557, %v5557
  %v5950 = vpack.c.b16 %v5558, %v5558
  %v5951 = vpack.c.b16 %v5559, %v5559
  %v5952 = vpack.c.b16 %v5560, %v5560
  %v5953 = vpack.c.b16 %v5561, %v5561
  %v5954 = vpack.c.b16 %v5562, %v5562
  %v5955 = vpack.c.b16 %v5563, %v5563
  %v5956 = vpack.c.b16 %v5564, %v5564
  %v5957 = vpack.c.b16 %v5565, %v5565
  %v5958 = vpack.c.b16 %v5566, %v5566
  %v5959 = vpack.c.b16 %v5567, %v5567
  %v5960 = vpack.c.b16 %v5568, %v5568
  %v5961 = vpack.c.b16 %v5569, %v5569
  %v5962 = vpack.c.b16 %v5570, %v5570
  %v5963 = vpack.c.b16 %v5571, %v5571
  %v5964 = vpack.c.b16 %v5572, %v5572
  %v5965 = vpack.c.b16 %v5573, %v5573
  %v5966 = vpack.c.b16 %v5574, %v5574
  %v5967 = vpack.c.b16 %v5575, %v5575
  %vm6360 = vcmask 125952
  %6361 = vst.msk [vmem:[%s3] sm:$0xf] %vm6360, %v5576
  %6362 = vst.msk [vmem:[%s3 + $0x4] sm:$0xf] %vm6360, %v5577
  %6363 = vst.msk [vmem:[%s3 + $0x8] sm:$0xf] %vm6360, %v5578
  %6364 = vst.msk [vmem:[%s3 + $0xc] sm:$0xf] %vm6360, %v5579
  %6365 = vst.msk [vmem:[%s3 + $0x10] sm:$0xf] %vm6360, %v5580
  %6366 = vst.msk [vmem:[%s3 + $0x14] sm:$0xf] %vm6360, %v5581
  %6367 = vst.msk [vmem:[%s3 + $0x18] sm:$0xf] %vm6360, %v5582
  %6368 = vst.msk [vmem:[%s3 + $0x1c] sm:$0xf] %vm6360, %v5583
  %6369 = vst.msk [vmem:[%s3 + $0x20] sm:$0xf] %vm6360, %v5584
  %6370 = vst.msk [vmem:[%s3 + $0x24] sm:$0xf] %vm6360, %v5585
  %6371 = vst.msk [vmem:[%s3 + $0x28] sm:$0xf] %vm6360, %v5586
  %6372 = vst.msk [vmem:[%s3 + $0x2c] sm:$0xf] %vm6360, %v5587
  %6373 = vst.msk [vmem:[%s3 + $0x30] sm:$0xf] %vm6360, %v5588
  %6374 = vst.msk [vmem:[%s3 + $0x34] sm:$0xf] %vm6360, %v5589
  %6375 = vst.msk [vmem:[%s3 + $0x38] sm:$0xf] %vm6360, %v5590
  %6376 = vst.msk [vmem:[%s3 + $0x3c] sm:$0xf] %vm6360, %v5591
  %6377 = vst.msk [vmem:[%s3 + $0x40] sm:$0xf] %vm6360, %v5592
  %6378 = vst.msk [vmem:[%s3 + $0x44] sm:$0xf] %vm6360, %v5593
  %6379 = vst.msk [vmem:[%s3 + $0x48] sm:$0xf] %vm6360, %v5594
  %6380 = vst.msk [vmem:[%s3 + $0x4c] sm:$0xf] %vm6360, %v5595
  %6381 = vst.msk [vmem:[%s3 + $0x50] sm:$0xf] %vm6360, %v5596
  %6382 = vst.msk [vmem:[%s3 + $0x54] sm:$0xf] %vm6360, %v5597
  %6383 = vst.msk [vmem:[%s3 + $0x58] sm:$0xf] %vm6360, %v5598
  %6384 = vst.msk [vmem:[%s3 + $0x5c] sm:$0xf] %vm6360, %v5599
  %6385 = vst.msk [vmem:[%s3 + $0x60] sm:$0xf] %vm6360, %v5600
  %6386 = vst.msk [vmem:[%s3 + $0x64] sm:$0xf] %vm6360, %v5601
  %6387 = vst.msk [vmem:[%s3 + $0x68] sm:$0xf] %vm6360, %v5602
  %6388 = vst.msk [vmem:[%s3 + $0x6c] sm:$0xf] %vm6360, %v5603
  %6389 = vst.msk [vmem:[%s3 + $0x70] sm:$0xf] %vm6360, %v5604
  %6390 = vst.msk [vmem:[%s3 + $0x74] sm:$0xf] %vm6360, %v5605
  %6391 = vst.msk [vmem:[%s3 + $0x78] sm:$0xf] %vm6360, %v5606
  %6392 = vst.msk [vmem:[%s3 + $0x7c] sm:$0xf] %vm6360, %v5607
  %6393 = vst.msk [vmem:[%s3 + $0x80] sm:$0xf] %vm6360, %v5608
  %6394 = vst.msk [vmem:[%s3 + $0x84] sm:$0xf] %vm6360, %v5609
  %6395 = vst.msk [vmem:[%s3 + $0x88] sm:$0xf] %vm6360, %v5610
  %6396 = vst.msk [vmem:[%s3 + $0x8c] sm:$0xf] %vm6360, %v5611
  %6397 = vst.msk [vmem:[%s3 + $0x90] sm:$0xf] %vm6360, %v5612
  %6398 = vst.msk [vmem:[%s3 + $0x94] sm:$0xf] %vm6360, %v5613
  %6399 = vst.msk [vmem:[%s3 + $0x98] sm:$0xf] %vm6360, %v5614
  %6400 = vst.msk [vmem:[%s3 + $0x9c] sm:$0xf] %vm6360, %v5615
  %6401 = vst.msk [vmem:[%s3 + $0xa0] sm:$0xf] %vm6360, %v5616
  %6402 = vst.msk [vmem:[%s3 + $0xa4] sm:$0xf] %vm6360, %v5617
  %6403 = vst.msk [vmem:[%s3 + $0xa8] sm:$0xf] %vm6360, %v5618
  %6404 = vst.msk [vmem:[%s3 + $0xac] sm:$0xf] %vm6360, %v5619
  %6405 = vst.msk [vmem:[%s3 + $0xb0] sm:$0xf] %vm6360, %v5620
  %6406 = vst.msk [vmem:[%s3 + $0xb4] sm:$0xf] %vm6360, %v5621
  %6407 = vst.msk [vmem:[%s3 + $0xb8] sm:$0xf] %vm6360, %v5622
  %6408 = vst.msk [vmem:[%s3 + $0xbc] sm:$0xf] %vm6360, %v5623
  %6409 = vst.msk [vmem:[%s3 + $0xc0] sm:$0xf] %vm6360, %v5624
  %6410 = vst.msk [vmem:[%s3 + $0xc4] sm:$0xf] %vm6360, %v5625
  %6411 = vst.msk [vmem:[%s3 + $0xc8] sm:$0xf] %vm6360, %v5626
  %6412 = vst.msk [vmem:[%s3 + $0xcc] sm:$0xf] %vm6360, %v5627
  %6413 = vst.msk [vmem:[%s3 + $0xd0] sm:$0xf] %vm6360, %v5628
  %6414 = vst.msk [vmem:[%s3 + $0xd4] sm:$0xf] %vm6360, %v5629
  %6415 = vst.msk [vmem:[%s3 + $0xd8] sm:$0xf] %vm6360, %v5630
  %6416 = vst.msk [vmem:[%s3 + $0xdc] sm:$0xf] %vm6360, %v5631
  %6417 = vst.msk [vmem:[%s3 + $0xe0] sm:$0xf] %vm6360, %v5632
  %6418 = vst.msk [vmem:[%s3 + $0xe4] sm:$0xf] %vm6360, %v5633
  %6419 = vst.msk [vmem:[%s3 + $0xe8] sm:$0xf] %vm6360, %v5634
  %6420 = vst.msk [vmem:[%s3 + $0xec] sm:$0xf] %vm6360, %v5635
  %6421 = vst.msk [vmem:[%s3 + $0xf0] sm:$0xf] %vm6360, %v5636
  %6422 = vst.msk [vmem:[%s3 + $0xf4] sm:$0xf] %vm6360, %v5637
  %6423 = vst.msk [vmem:[%s3 + $0xf8] sm:$0xf] %vm6360, %v5638
  %6424 = vst.msk [vmem:[%s3 + $0xfc] sm:$0xf] %vm6360, %v5639
  %6425 = vst.msk [vmem:[%s3 + $0x100] sm:$0xf] %vm6360, %v5640
  %6426 = vst.msk [vmem:[%s3 + $0x104] sm:$0xf] %vm6360, %v5641
  %6427 = vst.msk [vmem:[%s3 + $0x108] sm:$0xf] %vm6360, %v5642
  %6428 = vst.msk [vmem:[%s3 + $0x10c] sm:$0xf] %vm6360, %v5643
  %6429 = vst.msk [vmem:[%s3 + $0x110] sm:$0xf] %vm6360, %v5644
  %6430 = vst.msk [vmem:[%s3 + $0x114] sm:$0xf] %vm6360, %v5645
  %6431 = vst.msk [vmem:[%s3 + $0x118] sm:$0xf] %vm6360, %v5646
  %6432 = vst.msk [vmem:[%s3 + $0x11c] sm:$0xf] %vm6360, %v5647
  %6433 = vst.msk [vmem:[%s3 + $0x120] sm:$0xf] %vm6360, %v5648
  %6434 = vst.msk [vmem:[%s3 + $0x124] sm:$0xf] %vm6360, %v5649
  %6435 = vst.msk [vmem:[%s3 + $0x128] sm:$0xf] %vm6360, %v5650
  %6436 = vst.msk [vmem:[%s3 + $0x12c] sm:$0xf] %vm6360, %v5651
  %6437 = vst.msk [vmem:[%s3 + $0x130] sm:$0xf] %vm6360, %v5652
  %6438 = vst.msk [vmem:[%s3 + $0x134] sm:$0xf] %vm6360, %v5653
  %6439 = vst.msk [vmem:[%s3 + $0x138] sm:$0xf] %vm6360, %v5654
  %6440 = vst.msk [vmem:[%s3 + $0x13c] sm:$0xf] %vm6360, %v5655
  %6441 = vst.msk [vmem:[%s3 + $0x140] sm:$0xf] %vm6360, %v5656
  %6442 = vst.msk [vmem:[%s3 + $0x144] sm:$0xf] %vm6360, %v5657
  %6443 = vst.msk [vmem:[%s3 + $0x148] sm:$0xf] %vm6360, %v5658
  %6444 = vst.msk [vmem:[%s3 + $0x14c] sm:$0xf] %vm6360, %v5659
  %6445 = vst.msk [vmem:[%s3 + $0x150] sm:$0xf] %vm6360, %v5660
  %6446 = vst.msk [vmem:[%s3 + $0x154] sm:$0xf] %vm6360, %v5661
  %6447 = vst.msk [vmem:[%s3 + $0x158] sm:$0xf] %vm6360, %v5662
  %6448 = vst.msk [vmem:[%s3 + $0x15c] sm:$0xf] %vm6360, %v5663
  %6449 = vst.msk [vmem:[%s3 + $0x160] sm:$0xf] %vm6360, %v5664
  %6450 = vst.msk [vmem:[%s3 + $0x164] sm:$0xf] %vm6360, %v5665
  %6451 = vst.msk [vmem:[%s3 + $0x168] sm:$0xf] %vm6360, %v5666
  %6452 = vst.msk [vmem:[%s3 + $0x16c] sm:$0xf] %vm6360, %v5667
  %6453 = vst.msk [vmem:[%s3 + $0x170] sm:$0xf] %vm6360, %v5668
  %6454 = vst.msk [vmem:[%s3 + $0x174] sm:$0xf] %vm6360, %v5669
  %6455 = vst.msk [vmem:[%s3 + $0x178] sm:$0xf] %vm6360, %v5670
  %6456 = vst.msk [vmem:[%s3 + $0x17c] sm:$0xf] %vm6360, %v5671
  %6457 = vst.msk [vmem:[%s3 + $0x180] sm:$0xf] %vm6360, %v5672
  %6458 = vst.msk [vmem:[%s3 + $0x184] sm:$0xf] %vm6360, %v5673
  %6459 = vst.msk [vmem:[%s3 + $0x188] sm:$0xf] %vm6360, %v5674
  %6460 = vst.msk [vmem:[%s3 + $0x18c] sm:$0xf] %vm6360, %v5675
  %6461 = vst.msk [vmem:[%s3 + $0x190] sm:$0xf] %vm6360, %v5676
  %6462 = vst.msk [vmem:[%s3 + $0x194] sm:$0xf] %vm6360, %v5677
  %6463 = vst.msk [vmem:[%s3 + $0x198] sm:$0xf] %vm6360, %v5678
  %6464 = vst.msk [vmem:[%s3 + $0x19c] sm:$0xf] %vm6360, %v5679
  %6465 = vst.msk [vmem:[%s3 + $0x1a0] sm:$0xf] %vm6360, %v5680
  %6466 = vst.msk [vmem:[%s3 + $0x1a4] sm:$0xf] %vm6360, %v5681
  %6467 = vst.msk [vmem:[%s3 + $0x1a8] sm:$0xf] %vm6360, %v5682
  %6468 = vst.msk [vmem:[%s3 + $0x1ac] sm:$0xf] %vm6360, %v5683
  %6469 = vst.msk [vmem:[%s3 + $0x1b0] sm:$0xf] %vm6360, %v5684
  %6470 = vst.msk [vmem:[%s3 + $0x1b4] sm:$0xf] %vm6360, %v5685
  %6471 = vst.msk [vmem:[%s3 + $0x1b8] sm:$0xf] %vm6360, %v5686
  %6472 = vst.msk [vmem:[%s3 + $0x1bc] sm:$0xf] %vm6360, %v5687
  %6473 = vst.msk [vmem:[%s3 + $0x1c0] sm:$0xf] %vm6360, %v5688
  %6474 = vst.msk [vmem:[%s3 + $0x1c4] sm:$0xf] %vm6360, %v5689
  %6475 = vst.msk [vmem:[%s3 + $0x1c8] sm:$0xf] %vm6360, %v5690
  %6476 = vst.msk [vmem:[%s3 + $0x1cc] sm:$0xf] %vm6360, %v5691
  %6477 = vst.msk [vmem:[%s3 + $0x1d0] sm:$0xf] %vm6360, %v5692
  %6478 = vst.msk [vmem:[%s3 + $0x1d4] sm:$0xf] %vm6360, %v5693
  %6479 = vst.msk [vmem:[%s3 + $0x1d8] sm:$0xf] %vm6360, %v5694
  %6480 = vst.msk [vmem:[%s3 + $0x1dc] sm:$0xf] %vm6360, %v5695
  %6481 = vst.msk [vmem:[%s3 + $0x1e0] sm:$0xf] %vm6360, %v5696
  %6482 = vst.msk [vmem:[%s3 + $0x1e4] sm:$0xf] %vm6360, %v5697
  %6483 = vst.msk [vmem:[%s3 + $0x1e8] sm:$0xf] %vm6360, %v5698
  %6484 = vst.msk [vmem:[%s3 + $0x1ec] sm:$0xf] %vm6360, %v5699
  %6485 = vst.msk [vmem:[%s3 + $0x1f0] sm:$0xf] %vm6360, %v5700
  %6486 = vst.msk [vmem:[%s3 + $0x1f4] sm:$0xf] %vm6360, %v5701
  %6487 = vst.msk [vmem:[%s3 + $0x1f8] sm:$0xf] %vm6360, %v5702
  %6488 = vst.msk [vmem:[%s3 + $0x1fc] sm:$0xf] %vm6360, %v5703
  %6489 = vst.msk [vmem:[%s3 + $0x200] sm:$0xf] %vm6360, %v5704
  %6490 = vst.msk [vmem:[%s3 + $0x204] sm:$0xf] %vm6360, %v5705
  %6491 = vst.msk [vmem:[%s3 + $0x208] sm:$0xf] %vm6360, %v5706
  %6492 = vst.msk [vmem:[%s3 + $0x20c] sm:$0xf] %vm6360, %v5707
  %6493 = vst.msk [vmem:[%s3 + $0x210] sm:$0xf] %vm6360, %v5708
  %6494 = vst.msk [vmem:[%s3 + $0x214] sm:$0xf] %vm6360, %v5709
  %6495 = vst.msk [vmem:[%s3 + $0x218] sm:$0xf] %vm6360, %v5710
  %6496 = vst.msk [vmem:[%s3 + $0x21c] sm:$0xf] %vm6360, %v5711
  %6497 = vst.msk [vmem:[%s3 + $0x220] sm:$0xf] %vm6360, %v5712
  %6498 = vst.msk [vmem:[%s3 + $0x224] sm:$0xf] %vm6360, %v5713
  %6499 = vst.msk [vmem:[%s3 + $0x228] sm:$0xf] %vm6360, %v5714
  %6500 = vst.msk [vmem:[%s3 + $0x22c] sm:$0xf] %vm6360, %v5715
  %6501 = vst.msk [vmem:[%s3 + $0x230] sm:$0xf] %vm6360, %v5716
  %6502 = vst.msk [vmem:[%s3 + $0x234] sm:$0xf] %vm6360, %v5717
  %6503 = vst.msk [vmem:[%s3 + $0x238] sm:$0xf] %vm6360, %v5718
  %6504 = vst.msk [vmem:[%s3 + $0x23c] sm:$0xf] %vm6360, %v5719
  %6505 = vst.msk [vmem:[%s3 + $0x240] sm:$0xf] %vm6360, %v5720
  %6506 = vst.msk [vmem:[%s3 + $0x244] sm:$0xf] %vm6360, %v5721
  %6507 = vst.msk [vmem:[%s3 + $0x248] sm:$0xf] %vm6360, %v5722
  %6508 = vst.msk [vmem:[%s3 + $0x24c] sm:$0xf] %vm6360, %v5723
  %6509 = vst.msk [vmem:[%s3 + $0x250] sm:$0xf] %vm6360, %v5724
  %6510 = vst.msk [vmem:[%s3 + $0x254] sm:$0xf] %vm6360, %v5725
  %6511 = vst.msk [vmem:[%s3 + $0x258] sm:$0xf] %vm6360, %v5726
  %6512 = vst.msk [vmem:[%s3 + $0x25c] sm:$0xf] %vm6360, %v5727
  %6513 = vst.msk [vmem:[%s3 + $0x260] sm:$0xf] %vm6360, %v5728
  %6514 = vst.msk [vmem:[%s3 + $0x264] sm:$0xf] %vm6360, %v5729
  %6515 = vst.msk [vmem:[%s3 + $0x268] sm:$0xf] %vm6360, %v5730
  %6516 = vst.msk [vmem:[%s3 + $0x26c] sm:$0xf] %vm6360, %v5731
  %6517 = vst.msk [vmem:[%s3 + $0x270] sm:$0xf] %vm6360, %v5732
  %6518 = vst.msk [vmem:[%s3 + $0x274] sm:$0xf] %vm6360, %v5733
  %6519 = vst.msk [vmem:[%s3 + $0x278] sm:$0xf] %vm6360, %v5734
  %6520 = vst.msk [vmem:[%s3 + $0x27c] sm:$0xf] %vm6360, %v5735
  %6521 = vst.msk [vmem:[%s3 + $0x280] sm:$0xf] %vm6360, %v5736
  %6522 = vst.msk [vmem:[%s3 + $0x284] sm:$0xf] %vm6360, %v5737
  %6523 = vst.msk [vmem:[%s3 + $0x288] sm:$0xf] %vm6360, %v5738
  %6524 = vst.msk [vmem:[%s3 + $0x28c] sm:$0xf] %vm6360, %v5739
  %6525 = vst.msk [vmem:[%s3 + $0x290] sm:$0xf] %vm6360, %v5740
  %6526 = vst.msk [vmem:[%s3 + $0x294] sm:$0xf] %vm6360, %v5741
  %6527 = vst.msk [vmem:[%s3 + $0x298] sm:$0xf] %vm6360, %v5742
  %6528 = vst.msk [vmem:[%s3 + $0x29c] sm:$0xf] %vm6360, %v5743
  %6529 = vst.msk [vmem:[%s3 + $0x2a0] sm:$0xf] %vm6360, %v5744
  %6530 = vst.msk [vmem:[%s3 + $0x2a4] sm:$0xf] %vm6360, %v5745
  %6531 = vst.msk [vmem:[%s3 + $0x2a8] sm:$0xf] %vm6360, %v5746
  %6532 = vst.msk [vmem:[%s3 + $0x2ac] sm:$0xf] %vm6360, %v5747
  %6533 = vst.msk [vmem:[%s3 + $0x2b0] sm:$0xf] %vm6360, %v5748
  %6534 = vst.msk [vmem:[%s3 + $0x2b4] sm:$0xf] %vm6360, %v5749
  %6535 = vst.msk [vmem:[%s3 + $0x2b8] sm:$0xf] %vm6360, %v5750
  %6536 = vst.msk [vmem:[%s3 + $0x2bc] sm:$0xf] %vm6360, %v5751
  %6537 = vst.msk [vmem:[%s3 + $0x2c0] sm:$0xf] %vm6360, %v5752
  %6538 = vst.msk [vmem:[%s3 + $0x2c4] sm:$0xf] %vm6360, %v5753
  %6539 = vst.msk [vmem:[%s3 + $0x2c8] sm:$0xf] %vm6360, %v5754
  %6540 = vst.msk [vmem:[%s3 + $0x2cc] sm:$0xf] %vm6360, %v5755
  %6541 = vst.msk [vmem:[%s3 + $0x2d0] sm:$0xf] %vm6360, %v5756
  %6542 = vst.msk [vmem:[%s3 + $0x2d4] sm:$0xf] %vm6360, %v5757
  %6543 = vst.msk [vmem:[%s3 + $0x2d8] sm:$0xf] %vm6360, %v5758
  %6544 = vst.msk [vmem:[%s3 + $0x2dc] sm:$0xf] %vm6360, %v5759
  %6545 = vst.msk [vmem:[%s3 + $0x2e0] sm:$0xf] %vm6360, %v5760
  %6546 = vst.msk [vmem:[%s3 + $0x2e4] sm:$0xf] %vm6360, %v5761
  %6547 = vst.msk [vmem:[%s3 + $0x2e8] sm:$0xf] %vm6360, %v5762
  %6548 = vst.msk [vmem:[%s3 + $0x2ec] sm:$0xf] %vm6360, %v5763
  %6549 = vst.msk [vmem:[%s3 + $0x2f0] sm:$0xf] %vm6360, %v5764
  %6550 = vst.msk [vmem:[%s3 + $0x2f4] sm:$0xf] %vm6360, %v5765
  %6551 = vst.msk [vmem:[%s3 + $0x2f8] sm:$0xf] %vm6360, %v5766
  %6552 = vst.msk [vmem:[%s3 + $0x2fc] sm:$0xf] %vm6360, %v5767
  %6553 = vst.msk [vmem:[%s3 + $0x300] sm:$0xf] %vm6360, %v5768
  %6554 = vst.msk [vmem:[%s3 + $0x304] sm:$0xf] %vm6360, %v5769
  %6555 = vst.msk [vmem:[%s3 + $0x308] sm:$0xf] %vm6360, %v5770
  %6556 = vst.msk [vmem:[%s3 + $0x30c] sm:$0xf] %vm6360, %v5771
  %6557 = vst.msk [vmem:[%s3 + $0x310] sm:$0xf] %vm6360, %v5772
  %6558 = vst.msk [vmem:[%s3 + $0x314] sm:$0xf] %vm6360, %v5773
  %6559 = vst.msk [vmem:[%s3 + $0x318] sm:$0xf] %vm6360, %v5774
  %6560 = vst.msk [vmem:[%s3 + $0x31c] sm:$0xf] %vm6360, %v5775
  %6561 = vst.msk [vmem:[%s3 + $0x320] sm:$0xf] %vm6360, %v5776
  %6562 = vst.msk [vmem:[%s3 + $0x324] sm:$0xf] %vm6360, %v5777
  %6563 = vst.msk [vmem:[%s3 + $0x328] sm:$0xf] %vm6360, %v5778
  %6564 = vst.msk [vmem:[%s3 + $0x32c] sm:$0xf] %vm6360, %v5779
  %6565 = vst.msk [vmem:[%s3 + $0x330] sm:$0xf] %vm6360, %v5780
  %6566 = vst.msk [vmem:[%s3 + $0x334] sm:$0xf] %vm6360, %v5781
  %6567 = vst.msk [vmem:[%s3 + $0x338] sm:$0xf] %vm6360, %v5782
  %6568 = vst.msk [vmem:[%s3 + $0x33c] sm:$0xf] %vm6360, %v5783
  %6569 = vst.msk [vmem:[%s3 + $0x340] sm:$0xf] %vm6360, %v5784
  %6570 = vst.msk [vmem:[%s3 + $0x344] sm:$0xf] %vm6360, %v5785
  %6571 = vst.msk [vmem:[%s3 + $0x348] sm:$0xf] %vm6360, %v5786
  %6572 = vst.msk [vmem:[%s3 + $0x34c] sm:$0xf] %vm6360, %v5787
  %6573 = vst.msk [vmem:[%s3 + $0x350] sm:$0xf] %vm6360, %v5788
  %6574 = vst.msk [vmem:[%s3 + $0x354] sm:$0xf] %vm6360, %v5789
  %6575 = vst.msk [vmem:[%s3 + $0x358] sm:$0xf] %vm6360, %v5790
  %6576 = vst.msk [vmem:[%s3 + $0x35c] sm:$0xf] %vm6360, %v5791
  %6577 = vst.msk [vmem:[%s3 + $0x360] sm:$0xf] %vm6360, %v5792
  %6578 = vst.msk [vmem:[%s3 + $0x364] sm:$0xf] %vm6360, %v5793
  %6579 = vst.msk [vmem:[%s3 + $0x368] sm:$0xf] %vm6360, %v5794
  %6580 = vst.msk [vmem:[%s3 + $0x36c] sm:$0xf] %vm6360, %v5795
  %6581 = vst.msk [vmem:[%s3 + $0x370] sm:$0xf] %vm6360, %v5796
  %6582 = vst.msk [vmem:[%s3 + $0x374] sm:$0xf] %vm6360, %v5797
  %6583 = vst.msk [vmem:[%s3 + $0x378] sm:$0xf] %vm6360, %v5798
  %6584 = vst.msk [vmem:[%s3 + $0x37c] sm:$0xf] %vm6360, %v5799
  %6585 = vst.msk [vmem:[%s3 + $0x380] sm:$0xf] %vm6360, %v5800
  %6586 = vst.msk [vmem:[%s3 + $0x384] sm:$0xf] %vm6360, %v5801
  %6587 = vst.msk [vmem:[%s3 + $0x388] sm:$0xf] %vm6360, %v5802
  %6588 = vst.msk [vmem:[%s3 + $0x38c] sm:$0xf] %vm6360, %v5803
  %6589 = vst.msk [vmem:[%s3 + $0x390] sm:$0xf] %vm6360, %v5804
  %6590 = vst.msk [vmem:[%s3 + $0x394] sm:$0xf] %vm6360, %v5805
  %6591 = vst.msk [vmem:[%s3 + $0x398] sm:$0xf] %vm6360, %v5806
  %6592 = vst.msk [vmem:[%s3 + $0x39c] sm:$0xf] %vm6360, %v5807
  %6593 = vst.msk [vmem:[%s3 + $0x3a0] sm:$0xf] %vm6360, %v5808
  %6594 = vst.msk [vmem:[%s3 + $0x3a4] sm:$0xf] %vm6360, %v5809
  %6595 = vst.msk [vmem:[%s3 + $0x3a8] sm:$0xf] %vm6360, %v5810
  %6596 = vst.msk [vmem:[%s3 + $0x3ac] sm:$0xf] %vm6360, %v5811
  %6597 = vst.msk [vmem:[%s3 + $0x3b0] sm:$0xf] %vm6360, %v5812
  %6598 = vst.msk [vmem:[%s3 + $0x3b4] sm:$0xf] %vm6360, %v5813
  %6599 = vst.msk [vmem:[%s3 + $0x3b8] sm:$0xf] %vm6360, %v5814
  %6600 = vst.msk [vmem:[%s3 + $0x3bc] sm:$0xf] %vm6360, %v5815
  %6601 = vst.msk [vmem:[%s3 + $0x3c0] sm:$0xf] %vm6360, %v5816
  %6602 = vst.msk [vmem:[%s3 + $0x3c4] sm:$0xf] %vm6360, %v5817
  %6603 = vst.msk [vmem:[%s3 + $0x3c8] sm:$0xf] %vm6360, %v5818
  %6604 = vst.msk [vmem:[%s3 + $0x3cc] sm:$0xf] %vm6360, %v5819
  %6605 = vst.msk [vmem:[%s3 + $0x3d0] sm:$0xf] %vm6360, %v5820
  %6606 = vst.msk [vmem:[%s3 + $0x3d4] sm:$0xf] %vm6360, %v5821
  %6607 = vst.msk [vmem:[%s3 + $0x3d8] sm:$0xf] %vm6360, %v5822
  %6608 = vst.msk [vmem:[%s3 + $0x3dc] sm:$0xf] %vm6360, %v5823
  %6609 = vst.msk [vmem:[%s3 + $0x3e0] sm:$0xf] %vm6360, %v5824
  %6610 = vst.msk [vmem:[%s3 + $0x3e4] sm:$0xf] %vm6360, %v5825
  %6611 = vst.msk [vmem:[%s3 + $0x3e8] sm:$0xf] %vm6360, %v5826
  %6612 = vst.msk [vmem:[%s3 + $0x3ec] sm:$0xf] %vm6360, %v5827
  %6613 = vst.msk [vmem:[%s3 + $0x3f0] sm:$0xf] %vm6360, %v5828
  %6614 = vst.msk [vmem:[%s3 + $0x3f4] sm:$0xf] %vm6360, %v5829
  %6615 = vst.msk [vmem:[%s3 + $0x3f8] sm:$0xf] %vm6360, %v5830
  %6616 = vst.msk [vmem:[%s3 + $0x3fc] sm:$0xf] %vm6360, %v5831
  %6617 = vst.msk [vmem:[%s3 + $0x400] sm:$0xf] %vm6360, %v5832
  %6618 = vst.msk [vmem:[%s3 + $0x404] sm:$0xf] %vm6360, %v5833
  %6619 = vst.msk [vmem:[%s3 + $0x408] sm:$0xf] %vm6360, %v5834
  %6620 = vst.msk [vmem:[%s3 + $0x40c] sm:$0xf] %vm6360, %v5835
  %6621 = vst.msk [vmem:[%s3 + $0x410] sm:$0xf] %vm6360, %v5836
  %6622 = vst.msk [vmem:[%s3 + $0x414] sm:$0xf] %vm6360, %v5837
  %6623 = vst.msk [vmem:[%s3 + $0x418] sm:$0xf] %vm6360, %v5838
  %6624 = vst.msk [vmem:[%s3 + $0x41c] sm:$0xf] %vm6360, %v5839
  %6625 = vst.msk [vmem:[%s3 + $0x420] sm:$0xf] %vm6360, %v5840
  %6626 = vst.msk [vmem:[%s3 + $0x424] sm:$0xf] %vm6360, %v5841
  %6627 = vst.msk [vmem:[%s3 + $0x428] sm:$0xf] %vm6360, %v5842
  %6628 = vst.msk [vmem:[%s3 + $0x42c] sm:$0xf] %vm6360, %v5843
  %6629 = vst.msk [vmem:[%s3 + $0x430] sm:$0xf] %vm6360, %v5844
  %6630 = vst.msk [vmem:[%s3 + $0x434] sm:$0xf] %vm6360, %v5845
  %6631 = vst.msk [vmem:[%s3 + $0x438] sm:$0xf] %vm6360, %v5846
  %6632 = vst.msk [vmem:[%s3 + $0x43c] sm:$0xf] %vm6360, %v5847
  %6633 = vst.msk [vmem:[%s3 + $0x440] sm:$0xf] %vm6360, %v5848
  %6634 = vst.msk [vmem:[%s3 + $0x444] sm:$0xf] %vm6360, %v5849
  %6635 = vst.msk [vmem:[%s3 + $0x448] sm:$0xf] %vm6360, %v5850
  %6636 = vst.msk [vmem:[%s3 + $0x44c] sm:$0xf] %vm6360, %v5851
  %6637 = vst.msk [vmem:[%s3 + $0x450] sm:$0xf] %vm6360, %v5852
  %6638 = vst.msk [vmem:[%s3 + $0x454] sm:$0xf] %vm6360, %v5853
  %6639 = vst.msk [vmem:[%s3 + $0x458] sm:$0xf] %vm6360, %v5854
  %6640 = vst.msk [vmem:[%s3 + $0x45c] sm:$0xf] %vm6360, %v5855
  %6641 = vst.msk [vmem:[%s3 + $0x460] sm:$0xf] %vm6360, %v5856
  %6642 = vst.msk [vmem:[%s3 + $0x464] sm:$0xf] %vm6360, %v5857
  %6643 = vst.msk [vmem:[%s3 + $0x468] sm:$0xf] %vm6360, %v5858
  %6644 = vst.msk [vmem:[%s3 + $0x46c] sm:$0xf] %vm6360, %v5859
  %6645 = vst.msk [vmem:[%s3 + $0x470] sm:$0xf] %vm6360, %v5860
  %6646 = vst.msk [vmem:[%s3 + $0x474] sm:$0xf] %vm6360, %v5861
  %6647 = vst.msk [vmem:[%s3 + $0x478] sm:$0xf] %vm6360, %v5862
  %6648 = vst.msk [vmem:[%s3 + $0x47c] sm:$0xf] %vm6360, %v5863
  %6649 = vst.msk [vmem:[%s3 + $0x480] sm:$0xf] %vm6360, %v5864
  %6650 = vst.msk [vmem:[%s3 + $0x484] sm:$0xf] %vm6360, %v5865
  %6651 = vst.msk [vmem:[%s3 + $0x488] sm:$0xf] %vm6360, %v5866
  %6652 = vst.msk [vmem:[%s3 + $0x48c] sm:$0xf] %vm6360, %v5867
  %6653 = vst.msk [vmem:[%s3 + $0x490] sm:$0xf] %vm6360, %v5868
  %6654 = vst.msk [vmem:[%s3 + $0x494] sm:$0xf] %vm6360, %v5869
  %6655 = vst.msk [vmem:[%s3 + $0x498] sm:$0xf] %vm6360, %v5870
  %6656 = vst.msk [vmem:[%s3 + $0x49c] sm:$0xf] %vm6360, %v5871
  %6657 = vst.msk [vmem:[%s3 + $0x4a0] sm:$0xf] %vm6360, %v5872
  %6658 = vst.msk [vmem:[%s3 + $0x4a4] sm:$0xf] %vm6360, %v5873
  %6659 = vst.msk [vmem:[%s3 + $0x4a8] sm:$0xf] %vm6360, %v5874
  %6660 = vst.msk [vmem:[%s3 + $0x4ac] sm:$0xf] %vm6360, %v5875
  %6661 = vst.msk [vmem:[%s3 + $0x4b0] sm:$0xf] %vm6360, %v5876
  %6662 = vst.msk [vmem:[%s3 + $0x4b4] sm:$0xf] %vm6360, %v5877
  %6663 = vst.msk [vmem:[%s3 + $0x4b8] sm:$0xf] %vm6360, %v5878
  %6664 = vst.msk [vmem:[%s3 + $0x4bc] sm:$0xf] %vm6360, %v5879
  %6665 = vst.msk [vmem:[%s3 + $0x4c0] sm:$0xf] %vm6360, %v5880
  %6666 = vst.msk [vmem:[%s3 + $0x4c4] sm:$0xf] %vm6360, %v5881
  %6667 = vst.msk [vmem:[%s3 + $0x4c8] sm:$0xf] %vm6360, %v5882
  %6668 = vst.msk [vmem:[%s3 + $0x4cc] sm:$0xf] %vm6360, %v5883
  %6669 = vst.msk [vmem:[%s3 + $0x4d0] sm:$0xf] %vm6360, %v5884
  %6670 = vst.msk [vmem:[%s3 + $0x4d4] sm:$0xf] %vm6360, %v5885
  %6671 = vst.msk [vmem:[%s3 + $0x4d8] sm:$0xf] %vm6360, %v5886
  %6672 = vst.msk [vmem:[%s3 + $0x4dc] sm:$0xf] %vm6360, %v5887
  %6673 = vst.msk [vmem:[%s3 + $0x4e0] sm:$0xf] %vm6360, %v5888
  %6674 = vst.msk [vmem:[%s3 + $0x4e4] sm:$0xf] %vm6360, %v5889
  %6675 = vst.msk [vmem:[%s3 + $0x4e8] sm:$0xf] %vm6360, %v5890
  %6676 = vst.msk [vmem:[%s3 + $0x4ec] sm:$0xf] %vm6360, %v5891
  %6677 = vst.msk [vmem:[%s3 + $0x4f0] sm:$0xf] %vm6360, %v5892
  %6678 = vst.msk [vmem:[%s3 + $0x4f4] sm:$0xf] %vm6360, %v5893
  %6679 = vst.msk [vmem:[%s3 + $0x4f8] sm:$0xf] %vm6360, %v5894
  %6680 = vst.msk [vmem:[%s3 + $0x4fc] sm:$0xf] %vm6360, %v5895
  %6681 = vst.msk [vmem:[%s3 + $0x500] sm:$0xf] %vm6360, %v5896
  %6682 = vst.msk [vmem:[%s3 + $0x504] sm:$0xf] %vm6360, %v5897
  %6683 = vst.msk [vmem:[%s3 + $0x508] sm:$0xf] %vm6360, %v5898
  %6684 = vst.msk [vmem:[%s3 + $0x50c] sm:$0xf] %vm6360, %v5899
  %6685 = vst.msk [vmem:[%s3 + $0x510] sm:$0xf] %vm6360, %v5900
  %6686 = vst.msk [vmem:[%s3 + $0x514] sm:$0xf] %vm6360, %v5901
  %6687 = vst.msk [vmem:[%s3 + $0x518] sm:$0xf] %vm6360, %v5902
  %6688 = vst.msk [vmem:[%s3 + $0x51c] sm:$0xf] %vm6360, %v5903
  %6689 = vst.msk [vmem:[%s3 + $0x520] sm:$0xf] %vm6360, %v5904
  %6690 = vst.msk [vmem:[%s3 + $0x524] sm:$0xf] %vm6360, %v5905
  %6691 = vst.msk [vmem:[%s3 + $0x528] sm:$0xf] %vm6360, %v5906
  %6692 = vst.msk [vmem:[%s3 + $0x52c] sm:$0xf] %vm6360, %v5907
  %6693 = vst.msk [vmem:[%s3 + $0x530] sm:$0xf] %vm6360, %v5908
  %6694 = vst.msk [vmem:[%s3 + $0x534] sm:$0xf] %vm6360, %v5909
  %6695 = vst.msk [vmem:[%s3 + $0x538] sm:$0xf] %vm6360, %v5910
  %6696 = vst.msk [vmem:[%s3 + $0x53c] sm:$0xf] %vm6360, %v5911
  %6697 = vst.msk [vmem:[%s3 + $0x540] sm:$0xf] %vm6360, %v5912
  %6698 = vst.msk [vmem:[%s3 + $0x544] sm:$0xf] %vm6360, %v5913
  %6699 = vst.msk [vmem:[%s3 + $0x548] sm:$0xf] %vm6360, %v5914
  %6700 = vst.msk [vmem:[%s3 + $0x54c] sm:$0xf] %vm6360, %v5915
  %6701 = vst.msk [vmem:[%s3 + $0x550] sm:$0xf] %vm6360, %v5916
  %6702 = vst.msk [vmem:[%s3 + $0x554] sm:$0xf] %vm6360, %v5917
  %6703 = vst.msk [vmem:[%s3 + $0x558] sm:$0xf] %vm6360, %v5918
  %6704 = vst.msk [vmem:[%s3 + $0x55c] sm:$0xf] %vm6360, %v5919
  %6705 = vst.msk [vmem:[%s3 + $0x560] sm:$0xf] %vm6360, %v5920
  %6706 = vst.msk [vmem:[%s3 + $0x564] sm:$0xf] %vm6360, %v5921
  %6707 = vst.msk [vmem:[%s3 + $0x568] sm:$0xf] %vm6360, %v5922
  %6708 = vst.msk [vmem:[%s3 + $0x56c] sm:$0xf] %vm6360, %v5923
  %6709 = vst.msk [vmem:[%s3 + $0x570] sm:$0xf] %vm6360, %v5924
  %6710 = vst.msk [vmem:[%s3 + $0x574] sm:$0xf] %vm6360, %v5925
  %6711 = vst.msk [vmem:[%s3 + $0x578] sm:$0xf] %vm6360, %v5926
  %6712 = vst.msk [vmem:[%s3 + $0x57c] sm:$0xf] %vm6360, %v5927
  %6713 = vst.msk [vmem:[%s3 + $0x580] sm:$0xf] %vm6360, %v5928
  %6714 = vst.msk [vmem:[%s3 + $0x584] sm:$0xf] %vm6360, %v5929
  %6715 = vst.msk [vmem:[%s3 + $0x588] sm:$0xf] %vm6360, %v5930
  %6716 = vst.msk [vmem:[%s3 + $0x58c] sm:$0xf] %vm6360, %v5931
  %6717 = vst.msk [vmem:[%s3 + $0x590] sm:$0xf] %vm6360, %v5932
  %6718 = vst.msk [vmem:[%s3 + $0x594] sm:$0xf] %vm6360, %v5933
  %6719 = vst.msk [vmem:[%s3 + $0x598] sm:$0xf] %vm6360, %v5934
  %6720 = vst.msk [vmem:[%s3 + $0x59c] sm:$0xf] %vm6360, %v5935
  %6721 = vst.msk [vmem:[%s3 + $0x5a0] sm:$0xf] %vm6360, %v5936
  %6722 = vst.msk [vmem:[%s3 + $0x5a4] sm:$0xf] %vm6360, %v5937
  %6723 = vst.msk [vmem:[%s3 + $0x5a8] sm:$0xf] %vm6360, %v5938
  %6724 = vst.msk [vmem:[%s3 + $0x5ac] sm:$0xf] %vm6360, %v5939
  %6725 = vst.msk [vmem:[%s3 + $0x5b0] sm:$0xf] %vm6360, %v5940
  %6726 = vst.msk [vmem:[%s3 + $0x5b4] sm:$0xf] %vm6360, %v5941
  %6727 = vst.msk [vmem:[%s3 + $0x5b8] sm:$0xf] %vm6360, %v5942
  %6728 = vst.msk [vmem:[%s3 + $0x5bc] sm:$0xf] %vm6360, %v5943
  %6729 = vst.msk [vmem:[%s3 + $0x5c0] sm:$0xf] %vm6360, %v5944
  %6730 = vst.msk [vmem:[%s3 + $0x5c4] sm:$0xf] %vm6360, %v5945
  %6731 = vst.msk [vmem:[%s3 + $0x5c8] sm:$0xf] %vm6360, %v5946
  %6732 = vst.msk [vmem:[%s3 + $0x5cc] sm:$0xf] %vm6360, %v5947
  %6733 = vst.msk [vmem:[%s3 + $0x5d0] sm:$0xf] %vm6360, %v5948
  %6734 = vst.msk [vmem:[%s3 + $0x5d4] sm:$0xf] %vm6360, %v5949
  %6735 = vst.msk [vmem:[%s3 + $0x5d8] sm:$0xf] %vm6360, %v5950
  %6736 = vst.msk [vmem:[%s3 + $0x5dc] sm:$0xf] %vm6360, %v5951
  %6737 = vst.msk [vmem:[%s3 + $0x5e0] sm:$0xf] %vm6360, %v5952
  %6738 = vst.msk [vmem:[%s3 + $0x5e4] sm:$0xf] %vm6360, %v5953
  %6739 = vst.msk [vmem:[%s3 + $0x5e8] sm:$0xf] %vm6360, %v5954
  %6740 = vst.msk [vmem:[%s3 + $0x5ec] sm:$0xf] %vm6360, %v5955
  %6741 = vst.msk [vmem:[%s3 + $0x5f0] sm:$0xf] %vm6360, %v5956
  %6742 = vst.msk [vmem:[%s3 + $0x5f4] sm:$0xf] %vm6360, %v5957
  %6743 = vst.msk [vmem:[%s3 + $0x5f8] sm:$0xf] %vm6360, %v5958
  %6744 = vst.msk [vmem:[%s3 + $0x5fc] sm:$0xf] %vm6360, %v5959
  %6745 = vst.msk [vmem:[%s3 + $0x600] sm:$0xf] %vm6360, %v5960
  %6746 = vst.msk [vmem:[%s3 + $0x604] sm:$0xf] %vm6360, %v5961
  %6747 = vst.msk [vmem:[%s3 + $0x608] sm:$0xf] %vm6360, %v5962
  %6748 = vst.msk [vmem:[%s3 + $0x60c] sm:$0xf] %vm6360, %v5963
  %6749 = vst.msk [vmem:[%s3 + $0x610] sm:$0xf] %vm6360, %v5964
  %6750 = vst.msk [vmem:[%s3 + $0x614] sm:$0xf] %vm6360, %v5965
  %6751 = vst.msk [vmem:[%s3 + $0x618] sm:$0xf] %vm6360, %v5966
  %6752 = vst.msk [vmem:[%s3 + $0x61c] sm:$0xf] %vm6360, %v5967
  // Predicated region
  $region14: #{sample_convnet_forward.2} parent=0 // pred_check
    _
  $region15: #{sample_convnet_forward.2} parent=0 // pred_check_branch
    %6754 = sbr.rel (0) target = $region17
  $region16: #{sample_convnet_forward.2} parent=0 // pred_region
    _
  $region17: #{sample_convnet_forward.2} parent=0 // pred_fallthru
    _
  // Predicated region
  $region18: #{sample_convnet_forward.2} parent=0 // pred_check
    _
  $region19: #{sample_convnet_forward.2} parent=0 // pred_check_branch
    %6756 = sbr.rel (0) target = $region21
  $region20: #{sample_convnet_forward.2} parent=0 // pred_region
    _
  $region21: #{sample_convnet_forward.2} parent=0 // pred_fallthru
    _

</llo_original>
